<compile_context>
chip_gen: v6e
topology: v6e:2x2x1
jax: 0.10.0
libtpu: 0.0.40
codegen_flags: <defaults>
</compile_context>

<pallas_src>
import functools

import numpy as np

import jax
import jax.numpy as jnp
from jax.experimental import pallas as pl
from jax.experimental.pallas import tpu as pltpu


# W-halo width inside the padded VMEM slabs.  Only 1 zero column is needed for
# the 'same' conv; 8 keeps the interior stores reasonably aligned.
_WPAD = 8


# ----------------------------------------------------------------------------
# Host-side constants for the align_corners=True 2x bilinear upsample.
# ----------------------------------------------------------------------------
def _upsample_matrix(n_in, n_out):
    """Dense (n_out, n_in) interpolation matrix (used for the W axis and by
    the f32 reference)."""
    U = np.zeros((n_out, n_in), np.float32)
    if n_in == 1:
        U[:, 0] = 1.0
        return U
    scale = (n_in - 1) / (n_out - 1)
    for o in range(n_out):
        pos = o * scale
        i0 = min(int(np.floor(pos)), n_in - 1)
        i1 = min(i0 + 1, n_in - 1)
        frac = pos - i0
        U[o, i0] += 1.0 - frac
        U[o, i1] += frac
    return U


def _h_upsample_tables(n_in, n_out):
    """2-tap row tables for the H upsample, padded by 2 zero-weight rows on
    each side (these padded rows double as conv1's 'same' zero halo).
    Padded row g corresponds to upsampled row g-2."""
    idx0 = np.zeros(n_out + 4, np.int32)
    w0 = np.zeros(n_out + 4, np.float32)
    w1 = np.zeros(n_out + 4, np.float32)
    scale = 0.0 if n_out <= 1 else (n_in - 1) / (n_out - 1)
    for o in range(n_out):
        pos = o * scale
        i0 = min(int(np.floor(pos)), max(n_in - 2, 0))   # so i0 + 1 stays in range
        frac = pos - i0
        g = o + 2
        idx0[g] = i0
        w0[g] = 1.0 - frac
        w1[g] = frac
    return idx0, w0, w1


# ----------------------------------------------------------------------------
# Fused kernel: upsample + (concat) + conv1+BN+ReLU + conv2+BN+ReLU, row-tiled.
# ----------------------------------------------------------------------------
def _decoder_block_kernel(*refs, H, W, Ho, Wo, TH, Cin, Cskip, Cout, has_skip):
    if has_skip:
        (hidx_ref, hw0_ref, hw1_ref, x_ref, sk_ref, uw_ref,
         w1x_ref, w1s_ref, b1_ref, w2_ref, b2_ref,
         o_ref, xw_ref, px_ref, ps_ref, pm_ref) = refs
    else:
        (hidx_ref, hw0_ref, hw1_ref, x_ref, uw_ref,
         w1x_ref, b1_ref, w2_ref, b2_ref,
         o_ref, xw_ref, px_ref, pm_ref) = refs
        sk_ref = w1s_ref = ps_ref = None

    t = pl.program_id(1)
    nt = pl.num_programs(1)
    r0 = pl.multiple_of(t * TH, TH)          # first output row of this tile
    R = TH + 4                               # conv1-input rows needed (2-row halo)
    Wp = Wo + 2 * _WPAD

    # ---- once per image (t == 0): resident scratch fill + halo zeroing ------
    # Scratch persists across the (sequential, "arbitrary") tile axis, so the
    # halos stay zero and the W-upsampled rows / padded skip stay resident.
    @pl.when(t == 0)
    def _init():
        # W-upsample of the raw input rows: H small MXU dots, once per image.
        for h in range(H):
            xw_ref[h] = jnp.dot(
                uw_ref[...], x_ref[0, h],
                preferred_element_type=jnp.float32).astype(xw_ref.dtype)
        # Zero only the halo strips (review #4); interiors are rewritten per tile.
        px_ref[:, :_WPAD, :] = jnp.zeros((R, _WPAD, Cin), px_ref.dtype)
        px_ref[:, _WPAD + Wo:, :] = jnp.zeros((R, _WPAD, Cin), px_ref.dtype)
        pm_ref[:, :_WPAD, :] = jnp.zeros((TH + 2, _WPAD, Cout), pm_ref.dtype)
        pm_ref[:, _WPAD + Wo:, :] = jnp.zeros((TH + 2, _WPAD, Cout), pm_ref.dtype)
        if has_skip:
            ps_ref[:, :_WPAD, :] = jnp.zeros((Ho + 4, _WPAD, Cskip), ps_ref.dtype)
            ps_ref[:, _WPAD + Wo:, :] = jnp.zeros((Ho + 4, _WPAD, Cskip), ps_ref.dtype)
            ps_ref[:2, :, :] = jnp.zeros((2, Wp, Cskip), ps_ref.dtype)
            ps_ref[Ho + 2:, :, :] = jnp.zeros((2, Wp, Cskip), ps_ref.dtype)
            # The channel concat is never materialized: skip lives in its own
            # padded slab and feeds a separate K-block of the conv1 matmul.
            ps_ref[2:Ho + 2, _WPAD:_WPAD + Wo, :] = sk_ref[0]

    # ---- stage 1: fused H-upsample (2-tap lerp) into the padded conv1 slab --
    # Slab row i holds upsampled row (r0 - 2 + i); the tables give zero weights
    # on the 2-row halo outside the image, so conv1's H 'same' padding is free.
    for i in range(R):
        g = r0 + i
        s0 = hidx_ref[g]
        a0 = hw0_ref[g]
        a1 = hw1_ref[g]
        row = (a0 * xw_ref[s0].astype(jnp.float32)
               + a1 * xw_ref[s0 + 1].astype(jnp.float32))
        px_ref[i, _WPAD:_WPAD + Wo, :] = row.astype(px_ref.dtype)

    # ---- im2col helper: tap-major / channel-minor, matches the
    #      (3,3,C,Cout)->(9*C,Cout) weight reshape ------------------------------
    def im2col(tap, rows, c):
        cols = []
        for dy in range(3):
            for dx in range(3):
                c0 = _WPAD - 1 + dx
                cols.append(tap(dy, c0).reshape(rows * Wo, c))
        return jnp.concatenate(cols, axis=-1)

    # ---- stage 2: conv1 (BN scale folded into weights) + bias + ReLU --------
    # Computes TH + 2 mid rows (1-row halo each side for conv2's window).
    patches_x = im2col(
        lambda dy, c0: px_ref[dy:dy + TH + 2, c0:c0 + Wo, :], TH + 2, Cin)
    acc = jnp.dot(patches_x, w1x_ref[...], preferred_element_type=jnp.float32)
    if has_skip:
        patches_s = im2col(
            lambda dy, c0: ps_ref[pl.ds(r0 + dy, TH + 2), c0:c0 + Wo, :],
            TH + 2, Cskip)
        acc = acc + jnp.dot(patches_s, w1s_ref[...],
                            preferred_element_type=jnp.float32)
    mid = jnp.maximum(acc + b1_ref[...], 0.0)

    # ---- stage 3: conv1 tile stays in VMEM (bf16), re-padded for conv2 ------
    pm_ref[0:TH + 2, _WPAD:_WPAD + Wo, :] = (
        mid.reshape(TH + 2, Wo, Cout).astype(pm_ref.dtype))

    # conv2's own zero padding above/below the image: the halo mid rows at the
    # image boundary must be zero (not conv1 applied to padding).
    @pl.when(t == 0)
    def _zero_top():
        pm_ref[0:1, :, :] = jnp.zeros((1, Wp, Cout), pm_ref.dtype)

    @pl.when(t == nt - 1)
    def _zero_bottom():
        pm_ref[TH + 1:TH + 2, :, :] = jnp.zeros((1, Wp, Cout), pm_ref.dtype)

    # ---- stage 4: conv2 + bias + ReLU -> bf16 output tile --------------------
    patches_m = im2col(
        lambda dy, c0: pm_ref[dy:dy + TH, c0:c0 + Wo, :], TH, Cout)
    acc2 = jnp.dot(patches_m, w2_ref[...], preferred_element_type=jnp.float32)
    out = jnp.maximum(acc2 + b2_ref[...], 0.0)
    o_ref[0] = out.reshape(TH, Wo, Cout).astype(o_ref.dtype)


def fused_decoder_block(x, skip, w1, s1, b1, w2, s2, b2, *, tile_rows=None):
    """x: (N,H,W,Cin) NHWC (pre-upsample); skip: (N,2H,2W,Cskip) NHWC or None;
       w1: (3,3,Cin+Cskip,Cout) f32 HWIO, w2: (3,3,Cout,Cout) f32;
       s*/b*: folded BatchNorm scale/bias, (Cout,) f32.
       Returns (N,2H,2W,Cout) bf16."""
    N, H, W, Cin = x.shape
    Ho, Wo = 2 * H, 2 * W
    Cout = w1.shape[-1]
    has_skip = skip is not None
    Cskip = skip.shape[-1] if has_skip else 0
    assert H >= 2 and W >= 2
    assert w1.shape == (3, 3, Cin + Cskip, Cout), w1.shape
    assert w2.shape == (3, 3, Cout, Cout), w2.shape
    if has_skip:
        assert skip.shape == (N, Ho, Wo, Cskip), skip.shape

    if tile_rows is None:
        tile_rows = min(Ho, 8)
    tile_rows = max(1, min(tile_rows, Ho))
    while Ho % tile_rows:
        tile_rows -= 1
    TH = tile_rows
    nt = Ho // TH
    Wp = Wo + 2 * _WPAD

    x = x.astype(jnp.bfloat16)
    if has_skip:
        skip = skip.astype(jnp.bfloat16)

    # Upsample constants (host-built, passed once).
    h_idx, h_w0, h_w1 = _h_upsample_tables(H, Ho)
    uw = jnp.asarray(_upsample_matrix(W, Wo), jnp.bfloat16)

    # Fold BN scale into the bf16 im2col weights (review #7); bias stays f32.
    # Weight layout: (ky,kx,cin,cout) -> (9*cin, cout), split into the x-channel
    # and skip-channel K-blocks so the channel concat never hits HBM.
    w1f = (w1 * s1).astype(jnp.bfloat16)
    w1x = w1f[:, :, :Cin, :].reshape(9 * Cin, Cout)
    w2r = (w2 * s2).astype(jnp.bfloat16).reshape(9 * Cout, Cout)
    b1r = b1.reshape(1, Cout).astype(jnp.float32)
    b2r = b2.reshape(1, Cout).astype(jnp.float32)

    inputs = [jnp.asarray(h_idx), jnp.asarray(h_w0), jnp.asarray(h_w1), x]
    in_specs = [pl.BlockSpec(memory_space=pltpu.MemorySpace.SMEM)] * 3
    in_specs.append(pl.BlockSpec((1, H, W, Cin), lambda n, t: (n, 0, 0, 0)))
    if has_skip:
        inputs.append(skip)
        in_specs.append(pl.BlockSpec((1, Ho, Wo, Cskip), lambda n, t: (n, 0, 0, 0)))
    inputs.append(uw)
    in_specs.append(pl.BlockSpec((Wo, W), lambda n, t: (0, 0)))
    inputs.append(w1x)
    in_specs.append(pl.BlockSpec((9 * Cin, Cout), lambda n, t: (0, 0)))
    if has_skip:
        w1s = w1f[:, :, Cin:, :].reshape(9 * Cskip, Cout)
        inputs.append(w1s)
        in_specs.append(pl.BlockSpec((9 * Cskip, Cout), lambda n, t: (0, 0)))
    inputs.append(b1r)
    in_specs.append(pl.BlockSpec((1, Cout), lambda n, t: (0, 0)))
    inputs.append(w2r)
    in_specs.append(pl.BlockSpec((9 * Cout, Cout), lambda n, t: (0, 0)))
    inputs.append(b2r)
    in_specs.append(pl.BlockSpec((1, Cout), lambda n, t: (0, 0)))

    scratch = [pltpu.VMEM((H, Wo, Cin), jnp.bfloat16),        # xw: W-upsampled rows
               pltpu.VMEM((TH + 4, Wp, Cin), jnp.bfloat16)]   # px: padded conv1-x slab
    if has_skip:
        scratch.append(pltpu.VMEM((Ho + 4, Wp, Cskip), jnp.bfloat16))   # ps: padded skip
    scratch.append(pltpu.VMEM((TH + 2, Wp, Cout), jnp.bfloat16))        # pm: conv1 out slab

    kernel = functools.partial(
        _decoder_block_kernel, H=H, W=W, Ho=Ho, Wo=Wo, TH=TH,
        Cin=Cin, Cskip=Cskip, Cout=Cout, has_skip=has_skip)

    flops = (2 * N * Ho * Wo * 9 * ((Cin + Cskip) * Cout + Cout * Cout)
             + 2 * N * H * Wo * W * Cin            # W-upsample dots
             + 4 * N * (Ho + 4) * Wo * Cin)        # H lerp madds
    bytes_accessed = (x.size * 2 + (skip.size * 2 if has_skip else 0)
                      + N * Ho * Wo * Cout * 2
                      + (9 * (Cin + Cskip) * Cout + 9 * Cout * Cout) * 2
                      + 2 * Cout * 4 + Wo * W * 2 + 3 * (Ho + 4) * 4)

    return pl.pallas_call(
        kernel,
        out_shape=jax.ShapeDtypeStruct((N, Ho, Wo, Cout), jnp.bfloat16),
        grid_spec=pltpu.PrefetchScalarGridSpec(
            num_scalar_prefetch=0,
            grid=(N, nt),
            in_specs=in_specs,
            out_specs=pl.BlockSpec((1, TH, Wo, Cout), lambda n, t: (n, t, 0, 0)),
            scratch_shapes=scratch),
        compiler_params=pltpu.CompilerParams(
            dimension_semantics=("parallel", "arbitrary"),
            vmem_limit_bytes=64 * 1024 * 1024),
        cost_estimate=pl.CostEstimate(
            flops=flops, transcendentals=0, bytes_accessed=bytes_accessed),
    )(*inputs)


# ----------------------------------------------------------------------------
# Parameter construction (deterministic, synthetic).  Conv weights are stored
# in HWIO = (3,3,Cin,Cout); PyTorch OIHW would map via transpose(2,3,1,0).
# ----------------------------------------------------------------------------
def make_conv_bn_params(key, cin, cout, eps=1e-5):
    kw, kg, kb, km, kv = jax.random.split(key, 5)
    w = jax.random.normal(kw, (3, 3, cin, cout), jnp.float32) / np.sqrt(3.0 * cin)
    gamma = 1.0 + 0.1 * jax.random.normal(kg, (cout,), jnp.float32)
    beta = 0.1 * jax.random.normal(kb, (cout,), jnp.float32)
    running_mean = 0.1 * jax.random.normal(km, (cout,), jnp.float32)
    running_var = jnp.abs(jax.random.normal(kv, (cout,), jnp.float32)) + 0.5
    scale = gamma / jnp.sqrt(running_var + eps)
    bias = beta - running_mean * scale
    return w, scale, bias


# ----------------------------------------------------------------------------
# DecoderBlock forward (NCHW in / NCHW out, like the PyTorch module).
# ----------------------------------------------------------------------------
def decoder_block_forward(x_nchw, skip_nchw, params, *, tile_rows=None):
    # TODO(synk): these NCHW<->NHWC transposes are full HBM passes; drop them
    # if the surrounding model runs NHWC (review #11).
    x = jnp.transpose(x_nchw, (0, 2, 3, 1))
    skip = None
    if skip_nchw is not None:
        skip = jnp.transpose(skip_nchw, (0, 2, 3, 1))
    w1, s1, b1 = params["conv1"]
    w2, s2, b2 = params["conv2"]
    y = fused_decoder_block(x, skip, w1, s1, b1, w2, s2, b2, tile_rows=tile_rows)
    return jnp.transpose(y, (0, 3, 1, 2))


# ----------------------------------------------------------------------------
# Pure-JAX f32 reference (loose tolerance vs. the bf16 kernel pipeline).
# ----------------------------------------------------------------------------
def _reference_forward(x_nchw, skip_nchw, params):
    x = jnp.transpose(x_nchw, (0, 2, 3, 1)).astype(jnp.float32)
    _, H, W, _ = x.shape
    U_h = jnp.asarray(_upsample_matrix(H, 2 * H))
    U_w = jnp.asarray(_upsample_matrix(W, 2 * W))
    x = jnp.einsum("oh,nhwc->nowc", U_h, x, precision=jax.lax.Precision.HIGHEST)
    x = jnp.einsum("pw,nowc->nopc", U_w, x, precision=jax.lax.Precision.HIGHEST)
    if skip_nchw is not None:
        skip = jnp.transpose(skip_nchw, (0, 2, 3, 1)).astype(jnp.float32)
        x = jnp.concatenate([x, skip], axis=-1)
    for name in ("conv1", "conv2"):
        w, s, b = params[name]
        x = jax.lax.conv_general_dilated(
            x, w, window_strides=(1, 1), padding="SAME",
            dimension_numbers=("NHWC", "HWIO", "NHWC"),
            precision=jax.lax.Precision.HIGHEST)
        x = jnp.maximum(x * s + b, 0.0)
    return jnp.transpose(x, (0, 3, 1, 2))


if __name__ == "__main__":
    # Small but lane-aligned demo: 128-channel blocks (realistic TransUNet
    # decoder widths, multiples of the 128-lane vreg), 8x8 -> 16x16 spatial,
    # batch 2.  tile_rows=4 -> 4 row tiles per image (first/middle/last paths
    # all exercised).
    N, Cin, Cskip, Cout, H, W = 2, 128, 128, 128, 8, 8

    key = jax.random.PRNGKey(0)
    kx, ks, kp1, kp2, kp3 = jax.random.split(key, 5)
    x = jax.random.normal(kx, (N, Cin, H, W), jnp.float32)               # NCHW
    skip = jax.random.normal(ks, (N, Cskip, 2 * H, 2 * W), jnp.float32)

    params = {
        "conv1": make_conv_bn_params(kp1, Cin + Cskip, Cout),
        "conv2": make_conv_bn_params(kp2, Cout, Cout),
    }

    fwd = jax.jit(functools.partial(decoder_block_forward, tile_rows=4))
    out = jax.block_until_ready(fwd(x, skip, params))
    assert out.shape == (N, Cout, 2 * H, 2 * W), out.shape
    out_f32 = out.astype(jnp.float32)
    assert bool(jnp.all(jnp.isfinite(out_f32)))

    ref = jax.block_until_ready(_reference_forward(x, skip, params))
    max_err = float(jnp.max(jnp.abs(out_f32 - ref)))
    assert max_err < 0.5, f"max |err| (skip) vs f32 reference = {max_err}"

    # No-skip path (DecoderBlock with skip_channels=0), different tile size.
    params0 = {
        "conv1": make_conv_bn_params(kp3, Cin, Cout),
        "conv2": make_conv_bn_params(kp2, Cout, Cout),
    }
    fwd0 = jax.jit(functools.partial(decoder_block_forward, tile_rows=8))
    out0 = jax.block_until_ready(fwd0(x, None, params0))
    assert out0.shape == (N, Cout, 2 * H, 2 * W), out0.shape
    ref0 = _reference_forward(x, None, params0)
    max_err0 = float(jnp.max(jnp.abs(out0.astype(jnp.float32) - ref0)))
    assert max_err0 < 0.5, f"max |err| (no-skip) vs f32 reference = {max_err0}"

    print("KERNEL_OK")
</pallas_src>

<mosaic_0001>
module attributes {stable_mosaic.version = 11 : i64} {
  func.func @_decoder_block_kernel(%arg0: i32, %arg1: i32, %arg2: memref<20xi32, #tpu.memory_space<smem>>, %arg3: memref<20xf32, #tpu.memory_space<smem>>, %arg4: memref<20xf32, #tpu.memory_space<smem>>, %arg5: memref<1x8x8x128xbf16, #tpu.memory_space<vmem>>, %arg6: memref<1x16x16x128xbf16, #tpu.memory_space<vmem>>, %arg7: memref<16x8xbf16, #tpu.memory_space<vmem>>, %arg8: memref<1152x128xbf16, #tpu.memory_space<vmem>>, %arg9: memref<1152x128xbf16, #tpu.memory_space<vmem>>, %arg10: memref<1x128xf32, #tpu.memory_space<vmem>>, %arg11: memref<1152x128xbf16, #tpu.memory_space<vmem>>, %arg12: memref<1x128xf32, #tpu.memory_space<vmem>>, %arg13: memref<1x4x16x128xbf16, #tpu.memory_space<vmem>>, %arg14: memref<8x16x128xbf16, #tpu.memory_space<vmem>>, %arg15: memref<8x32x128xbf16, #tpu.memory_space<vmem>>, %arg16: memref<20x32x128xbf16, #tpu.memory_space<vmem>>, %arg17: memref<6x32x128xbf16, #tpu.memory_space<vmem>>) attributes {dimension_semantics = [#tpu.dimension_semantics<parallel>, #tpu.dimension_semantics<arbitrary>], iteration_bounds = array<i64: 2, 4>, scalar_prefetch = 0 : i64, scratch_operands = 4 : i64, tpu.core_type = #tpu.core_type<tc>, window_params = [{transform_indices = @transform_0, window_bounds = array<i64: 20>}, {transform_indices = @transform_1, window_bounds = array<i64: 20>}, {transform_indices = @transform_2, window_bounds = array<i64: 20>}, {transform_indices = @transform_3, window_bounds = array<i64: 1, 8, 8, 128>}, {transform_indices = @transform_4, window_bounds = array<i64: 1, 16, 16, 128>}, {pipeline_mode = #tpu.pipeline_mode<synchronous>, transform_indices = @transform_5, window_bounds = array<i64: 16, 8>}, {pipeline_mode = #tpu.pipeline_mode<synchronous>, transform_indices = @transform_6, window_bounds = array<i64: 1152, 128>}, {pipeline_mode = #tpu.pipeline_mode<synchronous>, transform_indices = @transform_7, window_bounds = array<i64: 1152, 128>}, {pipeline_mode = #tpu.pipeline_mode<synchronous>, transform_indices = @transform_8, window_bounds = array<i64: 1, 128>}, {pipeline_mode = #tpu.pipeline_mode<synchronous>, transform_indices = @transform_9, window_bounds = array<i64: 1152, 128>}, {pipeline_mode = #tpu.pipeline_mode<synchronous>, transform_indices = @transform_10, window_bounds = array<i64: 1, 128>}, {transform_indices = @transform_11, window_bounds = array<i64: 1, 4, 16, 128>}]} {
    %c4_i32 = arith.constant 4 : i32
    %0 = arith.muli %arg1, %c4_i32 : i32
    %1 = tpu.assume_multiple %0, 4 : i32
    %c0_i32 = arith.constant 0 : i32
    %2 = arith.cmpi eq, %arg1, %c0_i32 : i32
    %3 = arith.extui %2 : i1 to i32
    %c0_i32_0 = arith.constant 0 : i32
    %4 = arith.cmpi ne, %3, %c0_i32_0 : i32
    scf.if %4 {
      %c0_163 = arith.constant 0 : index
      %c0_164 = arith.constant 0 : index
      %311 = vector.load %arg7[%c0_163, %c0_164] : memref<16x8xbf16, #tpu.memory_space<vmem>>, vector<16x8xbf16>
      %c0_165 = arith.constant 0 : index
      %c0_166 = arith.constant 0 : index
      %c0_167 = arith.constant 0 : index
      %c0_168 = arith.constant 0 : index
      %312 = vector.load %arg5[%c0_165, %c0_166, %c0_167, %c0_168] : memref<1x8x8x128xbf16, #tpu.memory_space<vmem>>, vector<1x1x8x128xbf16>
      %313 = vector.shape_cast %312 : vector<1x1x8x128xbf16> to vector<8x128xbf16>
      %cst_169 = arith.constant dense<0.000000e+00> : vector<16x128xf32>
      %314 = tpu.matmul %311, %313, %cst_169 {dimension_numbers = #tpu.dot_dimension_numbers<[1], [0], [0], [1], [0, 0, 1, 1], [], []>} : vector<16x8xbf16>, vector<8x128xbf16>, vector<16x128xf32> -> vector<16x128xf32>
      %315 = arith.truncf %314 : vector<16x128xf32> to vector<16x128xbf16>
      %c0_170 = arith.constant 0 : index
      %c0_171 = arith.constant 0 : index
      %c0_172 = arith.constant 0 : index
      %316 = vector.load %arg14[%c0_170, %c0_171, %c0_172] : memref<8x16x128xbf16, #tpu.memory_space<vmem>>, vector<1x16x128xbf16>
      %317 = vector.shape_cast %316 : vector<1x16x128xbf16> to vector<16x128xbf16>
      %318 = vector.shape_cast %315 : vector<16x128xbf16> to vector<1x16x128xbf16>
      tpu.vector_store %arg14[%c0_170, %c0_171, %c0_172], %318 {strides = array<i32>} : memref<8x16x128xbf16, #tpu.memory_space<vmem>>, vector<1x16x128xbf16>,
      %c0_173 = arith.constant 0 : index
      %c0_174 = arith.constant 0 : index
      %319 = vector.load %arg7[%c0_173, %c0_174] : memref<16x8xbf16, #tpu.memory_space<vmem>>, vector<16x8xbf16>
      %c0_175 = arith.constant 0 : index
      %c1_176 = arith.constant 1 : index
      %c0_177 = arith.constant 0 : index
      %c0_178 = arith.constant 0 : index
      %320 = vector.load %arg5[%c0_175, %c1_176, %c0_177, %c0_178] : memref<1x8x8x128xbf16, #tpu.memory_space<vmem>>, vector<1x1x8x128xbf16>
      %321 = vector.shape_cast %320 : vector<1x1x8x128xbf16> to vector<8x128xbf16>
      %cst_179 = arith.constant dense<0.000000e+00> : vector<16x128xf32>
      %322 = tpu.matmul %319, %321, %cst_179 {dimension_numbers = #tpu.dot_dimension_numbers<[1], [0], [0], [1], [0, 0, 1, 1], [], []>} : vector<16x8xbf16>, vector<8x128xbf16>, vector<16x128xf32> -> vector<16x128xf32>
      %323 = arith.truncf %322 : vector<16x128xf32> to vector<16x128xbf16>
      %c1_180 = arith.constant 1 : index
      %c0_181 = arith.constant 0 : index
      %c0_182 = arith.constant 0 : index
      %324 = vector.load %arg14[%c1_180, %c0_181, %c0_182] : memref<8x16x128xbf16, #tpu.memory_space<vmem>>, vector<1x16x128xbf16>
      %325 = vector.shape_cast %324 : vector<1x16x128xbf16> to vector<16x128xbf16>
      %326 = vector.shape_cast %323 : vector<16x128xbf16> to vector<1x16x128xbf16>
      tpu.vector_store %arg14[%c1_180, %c0_181, %c0_182], %326 {strides = array<i32>} : memref<8x16x128xbf16, #tpu.memory_space<vmem>>, vector<1x16x128xbf16>,
      %c0_183 = arith.constant 0 : index
      %c0_184 = arith.constant 0 : index
      %327 = vector.load %arg7[%c0_183, %c0_184] : memref<16x8xbf16, #tpu.memory_space<vmem>>, vector<16x8xbf16>
      %c0_185 = arith.constant 0 : index
      %c2_186 = arith.constant 2 : index
      %c0_187 = arith.constant 0 : index
      %c0_188 = arith.constant 0 : index
      %328 = vector.load %arg5[%c0_185, %c2_186, %c0_187, %c0_188] : memref<1x8x8x128xbf16, #tpu.memory_space<vmem>>, vector<1x1x8x128xbf16>
      %329 = vector.shape_cast %328 : vector<1x1x8x128xbf16> to vector<8x128xbf16>
      %cst_189 = arith.constant dense<0.000000e+00> : vector<16x128xf32>
      %330 = tpu.matmul %327, %329, %cst_189 {dimension_numbers = #tpu.dot_dimension_numbers<[1], [0], [0], [1], [0, 0, 1, 1], [], []>} : vector<16x8xbf16>, vector<8x128xbf16>, vector<16x128xf32> -> vector<16x128xf32>
      %331 = arith.truncf %330 : vector<16x128xf32> to vector<16x128xbf16>
      %c2_190 = arith.constant 2 : index
      %c0_191 = arith.constant 0 : index
      %c0_192 = arith.constant 0 : index
      %332 = vector.load %arg14[%c2_190, %c0_191, %c0_192] : memref<8x16x128xbf16, #tpu.memory_space<vmem>>, vector<1x16x128xbf16>
      %333 = vector.shape_cast %332 : vector<1x16x128xbf16> to vector<16x128xbf16>
      %334 = vector.shape_cast %331 : vector<16x128xbf16> to vector<1x16x128xbf16>
      tpu.vector_store %arg14[%c2_190, %c0_191, %c0_192], %334 {strides = array<i32>} : memref<8x16x128xbf16, #tpu.memory_space<vmem>>, vector<1x16x128xbf16>,
      %c0_193 = arith.constant 0 : index
      %c0_194 = arith.constant 0 : index
      %335 = vector.load %arg7[%c0_193, %c0_194] : memref<16x8xbf16, #tpu.memory_space<vmem>>, vector<16x8xbf16>
      %c0_195 = arith.constant 0 : index
      %c3_196 = arith.constant 3 : index
      %c0_197 = arith.constant 0 : index
      %c0_198 = arith.constant 0 : index
      %336 = vector.load %arg5[%c0_195, %c3_196, %c0_197, %c0_198] : memref<1x8x8x128xbf16, #tpu.memory_space<vmem>>, vector<1x1x8x128xbf16>
      %337 = vector.shape_cast %336 : vector<1x1x8x128xbf16> to vector<8x128xbf16>
      %cst_199 = arith.constant dense<0.000000e+00> : vector<16x128xf32>
      %338 = tpu.matmul %335, %337, %cst_199 {dimension_numbers = #tpu.dot_dimension_numbers<[1], [0], [0], [1], [0, 0, 1, 1], [], []>} : vector<16x8xbf16>, vector<8x128xbf16>, vector<16x128xf32> -> vector<16x128xf32>
      %339 = arith.truncf %338 : vector<16x128xf32> to vector<16x128xbf16>
      %c3_200 = arith.constant 3 : index
      %c0_201 = arith.constant 0 : index
      %c0_202 = arith.constant 0 : index
      %340 = vector.load %arg14[%c3_200, %c0_201, %c0_202] : memref<8x16x128xbf16, #tpu.memory_space<vmem>>, vector<1x16x128xbf16>
      %341 = vector.shape_cast %340 : vector<1x16x128xbf16> to vector<16x128xbf16>
      %342 = vector.shape_cast %339 : vector<16x128xbf16> to vector<1x16x128xbf16>
      tpu.vector_store %arg14[%c3_200, %c0_201, %c0_202], %342 {strides = array<i32>} : memref<8x16x128xbf16, #tpu.memory_space<vmem>>, vector<1x16x128xbf16>,
      %c0_203 = arith.constant 0 : index
      %c0_204 = arith.constant 0 : index
      %343 = vector.load %arg7[%c0_203, %c0_204] : memref<16x8xbf16, #tpu.memory_space<vmem>>, vector<16x8xbf16>
      %c0_205 = arith.constant 0 : index
      %c4_206 = arith.constant 4 : index
      %c0_207 = arith.constant 0 : index
      %c0_208 = arith.constant 0 : index
      %344 = vector.load %arg5[%c0_205, %c4_206, %c0_207, %c0_208] : memref<1x8x8x128xbf16, #tpu.memory_space<vmem>>, vector<1x1x8x128xbf16>
      %345 = vector.shape_cast %344 : vector<1x1x8x128xbf16> to vector<8x128xbf16>
      %cst_209 = arith.constant dense<0.000000e+00> : vector<16x128xf32>
      %346 = tpu.matmul %343, %345, %cst_209 {dimension_numbers = #tpu.dot_dimension_numbers<[1], [0], [0], [1], [0, 0, 1, 1], [], []>} : vector<16x8xbf16>, vector<8x128xbf16>, vector<16x128xf32> -> vector<16x128xf32>
      %347 = arith.truncf %346 : vector<16x128xf32> to vector<16x128xbf16>
      %c4_210 = arith.constant 4 : index
      %c0_211 = arith.constant 0 : index
      %c0_212 = arith.constant 0 : index
      %348 = vector.load %arg14[%c4_210, %c0_211, %c0_212] : memref<8x16x128xbf16, #tpu.memory_space<vmem>>, vector<1x16x128xbf16>
      %349 = vector.shape_cast %348 : vector<1x16x128xbf16> to vector<16x128xbf16>
      %350 = vector.shape_cast %347 : vector<16x128xbf16> to vector<1x16x128xbf16>
      tpu.vector_store %arg14[%c4_210, %c0_211, %c0_212], %350 {strides = array<i32>} : memref<8x16x128xbf16, #tpu.memory_space<vmem>>, vector<1x16x128xbf16>,
      %c0_213 = arith.constant 0 : index
      %c0_214 = arith.constant 0 : index
      %351 = vector.load %arg7[%c0_213, %c0_214] : memref<16x8xbf16, #tpu.memory_space<vmem>>, vector<16x8xbf16>
      %c0_215 = arith.constant 0 : index
      %c5_216 = arith.constant 5 : index
      %c0_217 = arith.constant 0 : index
      %c0_218 = arith.constant 0 : index
      %352 = vector.load %arg5[%c0_215, %c5_216, %c0_217, %c0_218] : memref<1x8x8x128xbf16, #tpu.memory_space<vmem>>, vector<1x1x8x128xbf16>
      %353 = vector.shape_cast %352 : vector<1x1x8x128xbf16> to vector<8x128xbf16>
      %cst_219 = arith.constant dense<0.000000e+00> : vector<16x128xf32>
      %354 = tpu.matmul %351, %353, %cst_219 {dimension_numbers = #tpu.dot_dimension_numbers<[1], [0], [0], [1], [0, 0, 1, 1], [], []>} : vector<16x8xbf16>, vector<8x128xbf16>, vector<16x128xf32> -> vector<16x128xf32>
      %355 = arith.truncf %354 : vector<16x128xf32> to vector<16x128xbf16>
      %c5_220 = arith.constant 5 : index
      %c0_221 = arith.constant 0 : index
      %c0_222 = arith.constant 0 : index
      %356 = vector.load %arg14[%c5_220, %c0_221, %c0_222] : memref<8x16x128xbf16, #tpu.memory_space<vmem>>, vector<1x16x128xbf16>
      %357 = vector.shape_cast %356 : vector<1x16x128xbf16> to vector<16x128xbf16>
      %358 = vector.shape_cast %355 : vector<16x128xbf16> to vector<1x16x128xbf16>
      tpu.vector_store %arg14[%c5_220, %c0_221, %c0_222], %358 {strides = array<i32>} : memref<8x16x128xbf16, #tpu.memory_space<vmem>>, vector<1x16x128xbf16>,
      %c0_223 = arith.constant 0 : index
      %c0_224 = arith.constant 0 : index
      %359 = vector.load %arg7[%c0_223, %c0_224] : memref<16x8xbf16, #tpu.memory_space<vmem>>, vector<16x8xbf16>
      %c0_225 = arith.constant 0 : index
      %c6_226 = arith.constant 6 : index
      %c0_227 = arith.constant 0 : index
      %c0_228 = arith.constant 0 : index
      %360 = vector.load %arg5[%c0_225, %c6_226, %c0_227, %c0_228] : memref<1x8x8x128xbf16, #tpu.memory_space<vmem>>, vector<1x1x8x128xbf16>
      %361 = vector.shape_cast %360 : vector<1x1x8x128xbf16> to vector<8x128xbf16>
      %cst_229 = arith.constant dense<0.000000e+00> : vector<16x128xf32>
      %362 = tpu.matmul %359, %361, %cst_229 {dimension_numbers = #tpu.dot_dimension_numbers<[1], [0], [0], [1], [0, 0, 1, 1], [], []>} : vector<16x8xbf16>, vector<8x128xbf16>, vector<16x128xf32> -> vector<16x128xf32>
      %363 = arith.truncf %362 : vector<16x128xf32> to vector<16x128xbf16>
      %c6_230 = arith.constant 6 : index
      %c0_231 = arith.constant 0 : index
      %c0_232 = arith.constant 0 : index
      %364 = vector.load %arg14[%c6_230, %c0_231, %c0_232] : memref<8x16x128xbf16, #tpu.memory_space<vmem>>, vector<1x16x128xbf16>
      %365 = vector.shape_cast %364 : vector<1x16x128xbf16> to vector<16x128xbf16>
      %366 = vector.shape_cast %363 : vector<16x128xbf16> to vector<1x16x128xbf16>
      tpu.vector_store %arg14[%c6_230, %c0_231, %c0_232], %366 {strides = array<i32>} : memref<8x16x128xbf16, #tpu.memory_space<vmem>>, vector<1x16x128xbf16>,
      %c0_233 = arith.constant 0 : index
      %c0_234 = arith.constant 0 : index
      %367 = vector.load %arg7[%c0_233, %c0_234] : memref<16x8xbf16, #tpu.memory_space<vmem>>, vector<16x8xbf16>
      %c0_235 = arith.constant 0 : index
      %c7_236 = arith.constant 7 : index
      %c0_237 = arith.constant 0 : index
      %c0_238 = arith.constant 0 : index
      %368 = vector.load %arg5[%c0_235, %c7_236, %c0_237, %c0_238] : memref<1x8x8x128xbf16, #tpu.memory_space<vmem>>, vector<1x1x8x128xbf16>
      %369 = vector.shape_cast %368 : vector<1x1x8x128xbf16> to vector<8x128xbf16>
      %cst_239 = arith.constant dense<0.000000e+00> : vector<16x128xf32>
      %370 = tpu.matmul %367, %369, %cst_239 {dimension_numbers = #tpu.dot_dimension_numbers<[1], [0], [0], [1], [0, 0, 1, 1], [], []>} : vector<16x8xbf16>, vector<8x128xbf16>, vector<16x128xf32> -> vector<16x128xf32>
      %371 = arith.truncf %370 : vector<16x128xf32> to vector<16x128xbf16>
      %c7_240 = arith.constant 7 : index
      %c0_241 = arith.constant 0 : index
      %c0_242 = arith.constant 0 : index
      %372 = vector.load %arg14[%c7_240, %c0_241, %c0_242] : memref<8x16x128xbf16, #tpu.memory_space<vmem>>, vector<1x16x128xbf16>
      %373 = vector.shape_cast %372 : vector<1x16x128xbf16> to vector<16x128xbf16>
      %374 = vector.shape_cast %371 : vector<16x128xbf16> to vector<1x16x128xbf16>
      tpu.vector_store %arg14[%c7_240, %c0_241, %c0_242], %374 {strides = array<i32>} : memref<8x16x128xbf16, #tpu.memory_space<vmem>>, vector<1x16x128xbf16>,
      %cst_243 = arith.constant 0.000000e+00 : bf16
      %375 = vector.broadcast %cst_243 : bf16 to vector<8x8x128xbf16>
      %c0_244 = arith.constant 0 : index
      %c0_245 = arith.constant 0 : index
      %c0_246 = arith.constant 0 : index
      %376 = vector.load %arg15[%c0_244, %c0_245, %c0_246] : memref<8x32x128xbf16, #tpu.memory_space<vmem>>, vector<8x8x128xbf16>
      tpu.vector_store %arg15[%c0_244, %c0_245, %c0_246], %375 {strides = array<i32>} : memref<8x32x128xbf16, #tpu.memory_space<vmem>>, vector<8x8x128xbf16>,
      %cst_247 = arith.constant 0.000000e+00 : bf16
      %377 = vector.broadcast %cst_247 : bf16 to vector<8x8x128xbf16>
      %c0_248 = arith.constant 0 : index
      %c24 = arith.constant 24 : index
      %c0_249 = arith.constant 0 : index
      %378 = vector.load %arg15[%c0_248, %c24, %c0_249] : memref<8x32x128xbf16, #tpu.memory_space<vmem>>, vector<8x8x128xbf16>
      tpu.vector_store %arg15[%c0_248, %c24, %c0_249], %377 {strides = array<i32>} : memref<8x32x128xbf16, #tpu.memory_space<vmem>>, vector<8x8x128xbf16>,
      %cst_250 = arith.constant 0.000000e+00 : bf16
      %379 = vector.broadcast %cst_250 : bf16 to vector<6x8x128xbf16>
      %c0_251 = arith.constant 0 : index
      %c0_252 = arith.constant 0 : index
      %c0_253 = arith.constant 0 : index
      %380 = vector.load %arg17[%c0_251, %c0_252, %c0_253] : memref<6x32x128xbf16, #tpu.memory_space<vmem>>, vector<6x8x128xbf16>
      tpu.vector_store %arg17[%c0_251, %c0_252, %c0_253], %379 {strides = array<i32>} : memref<6x32x128xbf16, #tpu.memory_space<vmem>>, vector<6x8x128xbf16>,
      %cst_254 = arith.constant 0.000000e+00 : bf16
      %381 = vector.broadcast %cst_254 : bf16 to vector<6x8x128xbf16>
      %c0_255 = arith.constant 0 : index
      %c24_256 = arith.constant 24 : index
      %c0_257 = arith.constant 0 : index
      %382 = vector.load %arg17[%c0_255, %c24_256, %c0_257] : memref<6x32x128xbf16, #tpu.memory_space<vmem>>, vector<6x8x128xbf16>
      tpu.vector_store %arg17[%c0_255, %c24_256, %c0_257], %381 {strides = array<i32>} : memref<6x32x128xbf16, #tpu.memory_space<vmem>>, vector<6x8x128xbf16>,
      %cst_258 = arith.constant 0.000000e+00 : bf16
      %383 = vector.broadcast %cst_258 : bf16 to vector<20x8x128xbf16>
      %c0_259 = arith.constant 0 : index
      %c0_260 = arith.constant 0 : index
      %c0_261 = arith.constant 0 : index
      %384 = vector.load %arg16[%c0_259, %c0_260, %c0_261] : memref<20x32x128xbf16, #tpu.memory_space<vmem>>, vector<20x8x128xbf16>
      tpu.vector_store %arg16[%c0_259, %c0_260, %c0_261], %383 {strides = array<i32>} : memref<20x32x128xbf16, #tpu.memory_space<vmem>>, vector<20x8x128xbf16>,
      %cst_262 = arith.constant 0.000000e+00 : bf16
      %385 = vector.broadcast %cst_262 : bf16 to vector<20x8x128xbf16>
      %c0_263 = arith.constant 0 : index
      %c24_264 = arith.constant 24 : index
      %c0_265 = arith.constant 0 : index
      %386 = vector.load %arg16[%c0_263, %c24_264, %c0_265] : memref<20x32x128xbf16, #tpu.memory_space<vmem>>, vector<20x8x128xbf16>
      tpu.vector_store %arg16[%c0_263, %c24_264, %c0_265], %385 {strides = array<i32>} : memref<20x32x128xbf16, #tpu.memory_space<vmem>>, vector<20x8x128xbf16>,
      %cst_266 = arith.constant 0.000000e+00 : bf16
      %387 = vector.broadcast %cst_266 : bf16 to vector<2x32x128xbf16>
      %c0_267 = arith.constant 0 : index
      %c0_268 = arith.constant 0 : index
      %c0_269 = arith.constant 0 : index
      %388 = vector.load %arg16[%c0_267, %c0_268, %c0_269] : memref<20x32x128xbf16, #tpu.memory_space<vmem>>, vector<2x32x128xbf16>
      tpu.vector_store %arg16[%c0_267, %c0_268, %c0_269], %387 {strides = array<i32>} : memref<20x32x128xbf16, #tpu.memory_space<vmem>>, vector<2x32x128xbf16>,
      %cst_270 = arith.constant 0.000000e+00 : bf16
      %389 = vector.broadcast %cst_270 : bf16 to vector<2x32x128xbf16>
      %c18 = arith.constant 18 : index
      %c0_271 = arith.constant 0 : index
      %c0_272 = arith.constant 0 : index
      %390 = vector.load %arg16[%c18, %c0_271, %c0_272] : memref<20x32x128xbf16, #tpu.memory_space<vmem>>, vector<2x32x128xbf16>
      tpu.vector_store %arg16[%c18, %c0_271, %c0_272], %389 {strides = array<i32>} : memref<20x32x128xbf16, #tpu.memory_space<vmem>>, vector<2x32x128xbf16>,
      %c0_273 = arith.constant 0 : index
      %c0_274 = arith.constant 0 : index
      %c0_275 = arith.constant 0 : index
      %c0_276 = arith.constant 0 : index
      %391 = vector.load %arg6[%c0_273, %c0_274, %c0_275, %c0_276] : memref<1x16x16x128xbf16, #tpu.memory_space<vmem>>, vector<1x16x16x128xbf16>
      %392 = vector.shape_cast %391 : vector<1x16x16x128xbf16> to vector<16x16x128xbf16>
      %c2_277 = arith.constant 2 : index
      %c8_278 = arith.constant 8 : index
      %c0_279 = arith.constant 0 : index
      %393 = vector.load %arg16[%c2_277, %c8_278, %c0_279] : memref<20x32x128xbf16, #tpu.memory_space<vmem>>, vector<16x16x128xbf16>
      tpu.vector_store %arg16[%c2_277, %c8_278, %c0_279], %392 {strides = array<i32>} : memref<20x32x128xbf16, #tpu.memory_space<vmem>>, vector<16x16x128xbf16>,
    } else {
    }
    %c0_i32_1 = arith.constant 0 : i32
    %5 = arith.addi %1, %c0_i32_1 : i32
    %6 = arith.index_cast %5 : i32 to index
    %7 = memref.load %arg2[%6] : memref<20xi32, #tpu.memory_space<smem>>
    %8 = arith.index_cast %5 : i32 to index
    %9 = memref.load %arg3[%8] : memref<20xf32, #tpu.memory_space<smem>>
    %10 = arith.index_cast %5 : i32 to index
    %11 = memref.load %arg4[%10] : memref<20xf32, #tpu.memory_space<smem>>
    %12 = arith.index_cast %7 : i32 to index
    %c0 = arith.constant 0 : index
    %c0_2 = arith.constant 0 : index
    %13 = vector.load %arg14[%12, %c0, %c0_2] : memref<8x16x128xbf16, #tpu.memory_space<vmem>>, vector<1x16x128xbf16>
    %14 = vector.shape_cast %13 : vector<1x16x128xbf16> to vector<16x128xbf16>
    %15 = arith.extf %14 : vector<16x128xbf16> to vector<16x128xf32>
    %16 = vector.broadcast %9 : f32 to vector<16x128xf32>
    %17 = arith.mulf %16, %15 : vector<16x128xf32>
    %c1_i32 = arith.constant 1 : i32
    %18 = arith.addi %7, %c1_i32 : i32
    %19 = arith.index_cast %18 : i32 to index
    %c0_3 = arith.constant 0 : index
    %c0_4 = arith.constant 0 : index
    %20 = vector.load %arg14[%19, %c0_3, %c0_4] : memref<8x16x128xbf16, #tpu.memory_space<vmem>>, vector<1x16x128xbf16>
    %21 = vector.shape_cast %20 : vector<1x16x128xbf16> to vector<16x128xbf16>
    %22 = arith.extf %21 : vector<16x128xbf16> to vector<16x128xf32>
    %23 = vector.broadcast %11 : f32 to vector<16x128xf32>
    %24 = arith.mulf %23, %22 : vector<16x128xf32>
    %25 = arith.addf %17, %24 : vector<16x128xf32>
    %26 = arith.truncf %25 : vector<16x128xf32> to vector<16x128xbf16>
    %c0_5 = arith.constant 0 : index
    %c8 = arith.constant 8 : index
    %c0_6 = arith.constant 0 : index
    %27 = vector.load %arg15[%c0_5, %c8, %c0_6] : memref<8x32x128xbf16, #tpu.memory_space<vmem>>, vector<1x16x128xbf16>
    %28 = vector.shape_cast %27 : vector<1x16x128xbf16> to vector<16x128xbf16>
    %29 = vector.shape_cast %26 : vector<16x128xbf16> to vector<1x16x128xbf16>
    tpu.vector_store %arg15[%c0_5, %c8, %c0_6], %29 {strides = array<i32>} : memref<8x32x128xbf16, #tpu.memory_space<vmem>>, vector<1x16x128xbf16>,
    %c1_i32_7 = arith.constant 1 : i32
    %30 = arith.addi %1, %c1_i32_7 : i32
    %31 = arith.index_cast %30 : i32 to index
    %32 = memref.load %arg2[%31] : memref<20xi32, #tpu.memory_space<smem>>
    %33 = arith.index_cast %30 : i32 to index
    %34 = memref.load %arg3[%33] : memref<20xf32, #tpu.memory_space<smem>>
    %35 = arith.index_cast %30 : i32 to index
    %36 = memref.load %arg4[%35] : memref<20xf32, #tpu.memory_space<smem>>
    %37 = arith.index_cast %32 : i32 to index
    %c0_8 = arith.constant 0 : index
    %c0_9 = arith.constant 0 : index
    %38 = vector.load %arg14[%37, %c0_8, %c0_9] : memref<8x16x128xbf16, #tpu.memory_space<vmem>>, vector<1x16x128xbf16>
    %39 = vector.shape_cast %38 : vector<1x16x128xbf16> to vector<16x128xbf16>
    %40 = arith.extf %39 : vector<16x128xbf16> to vector<16x128xf32>
    %41 = vector.broadcast %34 : f32 to vector<16x128xf32>
    %42 = arith.mulf %41, %40 : vector<16x128xf32>
    %c1_i32_10 = arith.constant 1 : i32
    %43 = arith.addi %32, %c1_i32_10 : i32
    %44 = arith.index_cast %43 : i32 to index
    %c0_11 = arith.constant 0 : index
    %c0_12 = arith.constant 0 : index
    %45 = vector.load %arg14[%44, %c0_11, %c0_12] : memref<8x16x128xbf16, #tpu.memory_space<vmem>>, vector<1x16x128xbf16>
    %46 = vector.shape_cast %45 : vector<1x16x128xbf16> to vector<16x128xbf16>
    %47 = arith.extf %46 : vector<16x128xbf16> to vector<16x128xf32>
    %48 = vector.broadcast %36 : f32 to vector<16x128xf32>
    %49 = arith.mulf %48, %47 : vector<16x128xf32>
    %50 = arith.addf %42, %49 : vector<16x128xf32>
    %51 = arith.truncf %50 : vector<16x128xf32> to vector<16x128xbf16>
    %c1 = arith.constant 1 : index
    %c8_13 = arith.constant 8 : index
    %c0_14 = arith.constant 0 : index
    %52 = vector.load %arg15[%c1, %c8_13, %c0_14] : memref<8x32x128xbf16, #tpu.memory_space<vmem>>, vector<1x16x128xbf16>
    %53 = vector.shape_cast %52 : vector<1x16x128xbf16> to vector<16x128xbf16>
    %54 = vector.shape_cast %51 : vector<16x128xbf16> to vector<1x16x128xbf16>
    tpu.vector_store %arg15[%c1, %c8_13, %c0_14], %54 {strides = array<i32>} : memref<8x32x128xbf16, #tpu.memory_space<vmem>>, vector<1x16x128xbf16>,
    %c2_i32 = arith.constant 2 : i32
    %55 = arith.addi %1, %c2_i32 : i32
    %56 = arith.index_cast %55 : i32 to index
    %57 = memref.load %arg2[%56] : memref<20xi32, #tpu.memory_space<smem>>
    %58 = arith.index_cast %55 : i32 to index
    %59 = memref.load %arg3[%58] : memref<20xf32, #tpu.memory_space<smem>>
    %60 = arith.index_cast %55 : i32 to index
    %61 = memref.load %arg4[%60] : memref<20xf32, #tpu.memory_space<smem>>
    %62 = arith.index_cast %57 : i32 to index
    %c0_15 = arith.constant 0 : index
    %c0_16 = arith.constant 0 : index
    %63 = vector.load %arg14[%62, %c0_15, %c0_16] : memref<8x16x128xbf16, #tpu.memory_space<vmem>>, vector<1x16x128xbf16>
    %64 = vector.shape_cast %63 : vector<1x16x128xbf16> to vector<16x128xbf16>
    %65 = arith.extf %64 : vector<16x128xbf16> to vector<16x128xf32>
    %66 = vector.broadcast %59 : f32 to vector<16x128xf32>
    %67 = arith.mulf %66, %65 : vector<16x128xf32>
    %c1_i32_17 = arith.constant 1 : i32
    %68 = arith.addi %57, %c1_i32_17 : i32
    %69 = arith.index_cast %68 : i32 to index
    %c0_18 = arith.constant 0 : index
    %c0_19 = arith.constant 0 : index
    %70 = vector.load %arg14[%69, %c0_18, %c0_19] : memref<8x16x128xbf16, #tpu.memory_space<vmem>>, vector<1x16x128xbf16>
    %71 = vector.shape_cast %70 : vector<1x16x128xbf16> to vector<16x128xbf16>
    %72 = arith.extf %71 : vector<16x128xbf16> to vector<16x128xf32>
    %73 = vector.broadcast %61 : f32 to vector<16x128xf32>
    %74 = arith.mulf %73, %72 : vector<16x128xf32>
    %75 = arith.addf %67, %74 : vector<16x128xf32>
    %76 = arith.truncf %75 : vector<16x128xf32> to vector<16x128xbf16>
    %c2 = arith.constant 2 : index
    %c8_20 = arith.constant 8 : index
    %c0_21 = arith.constant 0 : index
    %77 = vector.load %arg15[%c2, %c8_20, %c0_21] : memref<8x32x128xbf16, #tpu.memory_space<vmem>>, vector<1x16x128xbf16>
    %78 = vector.shape_cast %77 : vector<1x16x128xbf16> to vector<16x128xbf16>
    %79 = vector.shape_cast %76 : vector<16x128xbf16> to vector<1x16x128xbf16>
    tpu.vector_store %arg15[%c2, %c8_20, %c0_21], %79 {strides = array<i32>} : memref<8x32x128xbf16, #tpu.memory_space<vmem>>, vector<1x16x128xbf16>,
    %c3_i32 = arith.constant 3 : i32
    %80 = arith.addi %1, %c3_i32 : i32
    %81 = arith.index_cast %80 : i32 to index
    %82 = memref.load %arg2[%81] : memref<20xi32, #tpu.memory_space<smem>>
    %83 = arith.index_cast %80 : i32 to index
    %84 = memref.load %arg3[%83] : memref<20xf32, #tpu.memory_space<smem>>
    %85 = arith.index_cast %80 : i32 to index
    %86 = memref.load %arg4[%85] : memref<20xf32, #tpu.memory_space<smem>>
    %87 = arith.index_cast %82 : i32 to index
    %c0_22 = arith.constant 0 : index
    %c0_23 = arith.constant 0 : index
    %88 = vector.load %arg14[%87, %c0_22, %c0_23] : memref<8x16x128xbf16, #tpu.memory_space<vmem>>, vector<1x16x128xbf16>
    %89 = vector.shape_cast %88 : vector<1x16x128xbf16> to vector<16x128xbf16>
    %90 = arith.extf %89 : vector<16x128xbf16> to vector<16x128xf32>
    %91 = vector.broadcast %84 : f32 to vector<16x128xf32>
    %92 = arith.mulf %91, %90 : vector<16x128xf32>
    %c1_i32_24 = arith.constant 1 : i32
    %93 = arith.addi %82, %c1_i32_24 : i32
    %94 = arith.index_cast %93 : i32 to index
    %c0_25 = arith.constant 0 : index
    %c0_26 = arith.constant 0 : index
    %95 = vector.load %arg14[%94, %c0_25, %c0_26] : memref<8x16x128xbf16, #tpu.memory_space<vmem>>, vector<1x16x128xbf16>
    %96 = vector.shape_cast %95 : vector<1x16x128xbf16> to vector<16x128xbf16>
    %97 = arith.extf %96 : vector<16x128xbf16> to vector<16x128xf32>
    %98 = vector.broadcast %86 : f32 to vector<16x128xf32>
    %99 = arith.mulf %98, %97 : vector<16x128xf32>
    %100 = arith.addf %92, %99 : vector<16x128xf32>
    %101 = arith.truncf %100 : vector<16x128xf32> to vector<16x128xbf16>
    %c3 = arith.constant 3 : index
    %c8_27 = arith.constant 8 : index
    %c0_28 = arith.constant 0 : index
    %102 = vector.load %arg15[%c3, %c8_27, %c0_28] : memref<8x32x128xbf16, #tpu.memory_space<vmem>>, vector<1x16x128xbf16>
    %103 = vector.shape_cast %102 : vector<1x16x128xbf16> to vector<16x128xbf16>
    %104 = vector.shape_cast %101 : vector<16x128xbf16> to vector<1x16x128xbf16>
    tpu.vector_store %arg15[%c3, %c8_27, %c0_28], %104 {strides = array<i32>} : memref<8x32x128xbf16, #tpu.memory_space<vmem>>, vector<1x16x128xbf16>,
    %c4_i32_29 = arith.constant 4 : i32
    %105 = arith.addi %1, %c4_i32_29 : i32
    %106 = arith.index_cast %105 : i32 to index
    %107 = memref.load %arg2[%106] : memref<20xi32, #tpu.memory_space<smem>>
    %108 = arith.index_cast %105 : i32 to index
    %109 = memref.load %arg3[%108] : memref<20xf32, #tpu.memory_space<smem>>
    %110 = arith.index_cast %105 : i32 to index
    %111 = memref.load %arg4[%110] : memref<20xf32, #tpu.memory_space<smem>>
    %112 = arith.index_cast %107 : i32 to index
    %c0_30 = arith.constant 0 : index
    %c0_31 = arith.constant 0 : index
    %113 = vector.load %arg14[%112, %c0_30, %c0_31] : memref<8x16x128xbf16, #tpu.memory_space<vmem>>, vector<1x16x128xbf16>
    %114 = vector.shape_cast %113 : vector<1x16x128xbf16> to vector<16x128xbf16>
    %115 = arith.extf %114 : vector<16x128xbf16> to vector<16x128xf32>
    %116 = vector.broadcast %109 : f32 to vector<16x128xf32>
    %117 = arith.mulf %116, %115 : vector<16x128xf32>
    %c1_i32_32 = arith.constant 1 : i32
    %118 = arith.addi %107, %c1_i32_32 : i32
    %119 = arith.index_cast %118 : i32 to index
    %c0_33 = arith.constant 0 : index
    %c0_34 = arith.constant 0 : index
    %120 = vector.load %arg14[%119, %c0_33, %c0_34] : memref<8x16x128xbf16, #tpu.memory_space<vmem>>, vector<1x16x128xbf16>
    %121 = vector.shape_cast %120 : vector<1x16x128xbf16> to vector<16x128xbf16>
    %122 = arith.extf %121 : vector<16x128xbf16> to vector<16x128xf32>
    %123 = vector.broadcast %111 : f32 to vector<16x128xf32>
    %124 = arith.mulf %123, %122 : vector<16x128xf32>
    %125 = arith.addf %117, %124 : vector<16x128xf32>
    %126 = arith.truncf %125 : vector<16x128xf32> to vector<16x128xbf16>
    %c4 = arith.constant 4 : index
    %c8_35 = arith.constant 8 : index
    %c0_36 = arith.constant 0 : index
    %127 = vector.load %arg15[%c4, %c8_35, %c0_36] : memref<8x32x128xbf16, #tpu.memory_space<vmem>>, vector<1x16x128xbf16>
    %128 = vector.shape_cast %127 : vector<1x16x128xbf16> to vector<16x128xbf16>
    %129 = vector.shape_cast %126 : vector<16x128xbf16> to vector<1x16x128xbf16>
    tpu.vector_store %arg15[%c4, %c8_35, %c0_36], %129 {strides = array<i32>} : memref<8x32x128xbf16, #tpu.memory_space<vmem>>, vector<1x16x128xbf16>,
    %c5_i32 = arith.constant 5 : i32
    %130 = arith.addi %1, %c5_i32 : i32
    %131 = arith.index_cast %130 : i32 to index
    %132 = memref.load %arg2[%131] : memref<20xi32, #tpu.memory_space<smem>>
    %133 = arith.index_cast %130 : i32 to index
    %134 = memref.load %arg3[%133] : memref<20xf32, #tpu.memory_space<smem>>
    %135 = arith.index_cast %130 : i32 to index
    %136 = memref.load %arg4[%135] : memref<20xf32, #tpu.memory_space<smem>>
    %137 = arith.index_cast %132 : i32 to index
    %c0_37 = arith.constant 0 : index
    %c0_38 = arith.constant 0 : index
    %138 = vector.load %arg14[%137, %c0_37, %c0_38] : memref<8x16x128xbf16, #tpu.memory_space<vmem>>, vector<1x16x128xbf16>
    %139 = vector.shape_cast %138 : vector<1x16x128xbf16> to vector<16x128xbf16>
    %140 = arith.extf %139 : vector<16x128xbf16> to vector<16x128xf32>
    %141 = vector.broadcast %134 : f32 to vector<16x128xf32>
    %142 = arith.mulf %141, %140 : vector<16x128xf32>
    %c1_i32_39 = arith.constant 1 : i32
    %143 = arith.addi %132, %c1_i32_39 : i32
    %144 = arith.index_cast %143 : i32 to index
    %c0_40 = arith.constant 0 : index
    %c0_41 = arith.constant 0 : index
    %145 = vector.load %arg14[%144, %c0_40, %c0_41] : memref<8x16x128xbf16, #tpu.memory_space<vmem>>, vector<1x16x128xbf16>
    %146 = vector.shape_cast %145 : vector<1x16x128xbf16> to vector<16x128xbf16>
    %147 = arith.extf %146 : vector<16x128xbf16> to vector<16x128xf32>
    %148 = vector.broadcast %136 : f32 to vector<16x128xf32>
    %149 = arith.mulf %148, %147 : vector<16x128xf32>
    %150 = arith.addf %142, %149 : vector<16x128xf32>
    %151 = arith.truncf %150 : vector<16x128xf32> to vector<16x128xbf16>
    %c5 = arith.constant 5 : index
    %c8_42 = arith.constant 8 : index
    %c0_43 = arith.constant 0 : index
    %152 = vector.load %arg15[%c5, %c8_42, %c0_43] : memref<8x32x128xbf16, #tpu.memory_space<vmem>>, vector<1x16x128xbf16>
    %153 = vector.shape_cast %152 : vector<1x16x128xbf16> to vector<16x128xbf16>
    %154 = vector.shape_cast %151 : vector<16x128xbf16> to vector<1x16x128xbf16>
    tpu.vector_store %arg15[%c5, %c8_42, %c0_43], %154 {strides = array<i32>} : memref<8x32x128xbf16, #tpu.memory_space<vmem>>, vector<1x16x128xbf16>,
    %c6_i32 = arith.constant 6 : i32
    %155 = arith.addi %1, %c6_i32 : i32
    %156 = arith.index_cast %155 : i32 to index
    %157 = memref.load %arg2[%156] : memref<20xi32, #tpu.memory_space<smem>>
    %158 = arith.index_cast %155 : i32 to index
    %159 = memref.load %arg3[%158] : memref<20xf32, #tpu.memory_space<smem>>
    %160 = arith.index_cast %155 : i32 to index
    %161 = memref.load %arg4[%160] : memref<20xf32, #tpu.memory_space<smem>>
    %162 = arith.index_cast %157 : i32 to index
    %c0_44 = arith.constant 0 : index
    %c0_45 = arith.constant 0 : index
    %163 = vector.load %arg14[%162, %c0_44, %c0_45] : memref<8x16x128xbf16, #tpu.memory_space<vmem>>, vector<1x16x128xbf16>
    %164 = vector.shape_cast %163 : vector<1x16x128xbf16> to vector<16x128xbf16>
    %165 = arith.extf %164 : vector<16x128xbf16> to vector<16x128xf32>
    %166 = vector.broadcast %159 : f32 to vector<16x128xf32>
    %167 = arith.mulf %166, %165 : vector<16x128xf32>
    %c1_i32_46 = arith.constant 1 : i32
    %168 = arith.addi %157, %c1_i32_46 : i32
    %169 = arith.index_cast %168 : i32 to index
    %c0_47 = arith.constant 0 : index
    %c0_48 = arith.constant 0 : index
    %170 = vector.load %arg14[%169, %c0_47, %c0_48] : memref<8x16x128xbf16, #tpu.memory_space<vmem>>, vector<1x16x128xbf16>
    %171 = vector.shape_cast %170 : vector<1x16x128xbf16> to vector<16x128xbf16>
    %172 = arith.extf %171 : vector<16x128xbf16> to vector<16x128xf32>
    %173 = vector.broadcast %161 : f32 to vector<16x128xf32>
    %174 = arith.mulf %173, %172 : vector<16x128xf32>
    %175 = arith.addf %167, %174 : vector<16x128xf32>
    %176 = arith.truncf %175 : vector<16x128xf32> to vector<16x128xbf16>
    %c6 = arith.constant 6 : index
    %c8_49 = arith.constant 8 : index
    %c0_50 = arith.constant 0 : index
    %177 = vector.load %arg15[%c6, %c8_49, %c0_50] : memref<8x32x128xbf16, #tpu.memory_space<vmem>>, vector<1x16x128xbf16>
    %178 = vector.shape_cast %177 : vector<1x16x128xbf16> to vector<16x128xbf16>
    %179 = vector.shape_cast %176 : vector<16x128xbf16> to vector<1x16x128xbf16>
    tpu.vector_store %arg15[%c6, %c8_49, %c0_50], %179 {strides = array<i32>} : memref<8x32x128xbf16, #tpu.memory_space<vmem>>, vector<1x16x128xbf16>,
    %c7_i32 = arith.constant 7 : i32
    %180 = arith.addi %1, %c7_i32 : i32
    %181 = arith.index_cast %180 : i32 to index
    %182 = memref.load %arg2[%181] : memref<20xi32, #tpu.memory_space<smem>>
    %183 = arith.index_cast %180 : i32 to index
    %184 = memref.load %arg3[%183] : memref<20xf32, #tpu.memory_space<smem>>
    %185 = arith.index_cast %180 : i32 to index
    %186 = memref.load %arg4[%185] : memref<20xf32, #tpu.memory_space<smem>>
    %187 = arith.index_cast %182 : i32 to index
    %c0_51 = arith.constant 0 : index
    %c0_52 = arith.constant 0 : index
    %188 = vector.load %arg14[%187, %c0_51, %c0_52] : memref<8x16x128xbf16, #tpu.memory_space<vmem>>, vector<1x16x128xbf16>
    %189 = vector.shape_cast %188 : vector<1x16x128xbf16> to vector<16x128xbf16>
    %190 = arith.extf %189 : vector<16x128xbf16> to vector<16x128xf32>
    %191 = vector.broadcast %184 : f32 to vector<16x128xf32>
    %192 = arith.mulf %191, %190 : vector<16x128xf32>
    %c1_i32_53 = arith.constant 1 : i32
    %193 = arith.addi %182, %c1_i32_53 : i32
    %194 = arith.index_cast %193 : i32 to index
    %c0_54 = arith.constant 0 : index
    %c0_55 = arith.constant 0 : index
    %195 = vector.load %arg14[%194, %c0_54, %c0_55] : memref<8x16x128xbf16, #tpu.memory_space<vmem>>, vector<1x16x128xbf16>
    %196 = vector.shape_cast %195 : vector<1x16x128xbf16> to vector<16x128xbf16>
    %197 = arith.extf %196 : vector<16x128xbf16> to vector<16x128xf32>
    %198 = vector.broadcast %186 : f32 to vector<16x128xf32>
    %199 = arith.mulf %198, %197 : vector<16x128xf32>
    %200 = arith.addf %192, %199 : vector<16x128xf32>
    %201 = arith.truncf %200 : vector<16x128xf32> to vector<16x128xbf16>
    %c7 = arith.constant 7 : index
    %c8_56 = arith.constant 8 : index
    %c0_57 = arith.constant 0 : index
    %202 = vector.load %arg15[%c7, %c8_56, %c0_57] : memref<8x32x128xbf16, #tpu.memory_space<vmem>>, vector<1x16x128xbf16>
    %203 = vector.shape_cast %202 : vector<1x16x128xbf16> to vector<16x128xbf16>
    %204 = vector.shape_cast %201 : vector<16x128xbf16> to vector<1x16x128xbf16>
    tpu.vector_store %arg15[%c7, %c8_56, %c0_57], %204 {strides = array<i32>} : memref<8x32x128xbf16, #tpu.memory_space<vmem>>, vector<1x16x128xbf16>,
    %c0_58 = arith.constant 0 : index
    %c7_59 = arith.constant 7 : index
    %c0_60 = arith.constant 0 : index
    %205 = vector.load %arg15[%c0_58, %c7_59, %c0_60] : memref<8x32x128xbf16, #tpu.memory_space<vmem>>, vector<6x16x128xbf16>
    %206 = vector.shape_cast %205 : vector<6x16x128xbf16> to vector<96x128xbf16>
    %c0_61 = arith.constant 0 : index
    %c8_62 = arith.constant 8 : index
    %c0_63 = arith.constant 0 : index
    %207 = vector.load %arg15[%c0_61, %c8_62, %c0_63] : memref<8x32x128xbf16, #tpu.memory_space<vmem>>, vector<6x16x128xbf16>
    %208 = vector.shape_cast %207 : vector<6x16x128xbf16> to vector<96x128xbf16>
    %c0_64 = arith.constant 0 : index
    %c9 = arith.constant 9 : index
    %c0_65 = arith.constant 0 : index
    %209 = vector.load %arg15[%c0_64, %c9, %c0_65] : memref<8x32x128xbf16, #tpu.memory_space<vmem>>, vector<6x16x128xbf16>
    %210 = vector.shape_cast %209 : vector<6x16x128xbf16> to vector<96x128xbf16>
    %c1_66 = arith.constant 1 : index
    %c7_67 = arith.constant 7 : index
    %c0_68 = arith.constant 0 : index
    %211 = vector.load %arg15[%c1_66, %c7_67, %c0_68] : memref<8x32x128xbf16, #tpu.memory_space<vmem>>, vector<6x16x128xbf16>
    %212 = vector.shape_cast %211 : vector<6x16x128xbf16> to vector<96x128xbf16>
    %c1_69 = arith.constant 1 : index
    %c8_70 = arith.constant 8 : index
    %c0_71 = arith.constant 0 : index
    %213 = vector.load %arg15[%c1_69, %c8_70, %c0_71] : memref<8x32x128xbf16, #tpu.memory_space<vmem>>, vector<6x16x128xbf16>
    %214 = vector.shape_cast %213 : vector<6x16x128xbf16> to vector<96x128xbf16>
    %c1_72 = arith.constant 1 : index
    %c9_73 = arith.constant 9 : index
    %c0_74 = arith.constant 0 : index
    %215 = vector.load %arg15[%c1_72, %c9_73, %c0_74] : memref<8x32x128xbf16, #tpu.memory_space<vmem>>, vector<6x16x128xbf16>
    %216 = vector.shape_cast %215 : vector<6x16x128xbf16> to vector<96x128xbf16>
    %c2_75 = arith.constant 2 : index
    %c7_76 = arith.constant 7 : index
    %c0_77 = arith.constant 0 : index
    %217 = vector.load %arg15[%c2_75, %c7_76, %c0_77] : memref<8x32x128xbf16, #tpu.memory_space<vmem>>, vector<6x16x128xbf16>
    %218 = vector.shape_cast %217 : vector<6x16x128xbf16> to vector<96x128xbf16>
    %c2_78 = arith.constant 2 : index
    %c8_79 = arith.constant 8 : index
    %c0_80 = arith.constant 0 : index
    %219 = vector.load %arg15[%c2_78, %c8_79, %c0_80] : memref<8x32x128xbf16, #tpu.memory_space<vmem>>, vector<6x16x128xbf16>
    %220 = vector.shape_cast %219 : vector<6x16x128xbf16> to vector<96x128xbf16>
    %c2_81 = arith.constant 2 : index
    %c9_82 = arith.constant 9 : index
    %c0_83 = arith.constant 0 : index
    %221 = vector.load %arg15[%c2_81, %c9_82, %c0_83] : memref<8x32x128xbf16, #tpu.memory_space<vmem>>, vector<6x16x128xbf16>
    %222 = vector.shape_cast %221 : vector<6x16x128xbf16> to vector<96x128xbf16>
    %223 = tpu.concatenate %206, %208, %210, %212, %214, %216, %218, %220, %222 in 1 : vector<96x128xbf16>, vector<96x128xbf16>, vector<96x128xbf16>, vector<96x128xbf16>, vector<96x128xbf16>, vector<96x128xbf16>, vector<96x128xbf16>, vector<96x128xbf16>, vector<96x128xbf16> -> vector<96x1152xbf16>
    %c0_84 = arith.constant 0 : index
    %c0_85 = arith.constant 0 : index
    %224 = vector.load %arg8[%c0_84, %c0_85] : memref<1152x128xbf16, #tpu.memory_space<vmem>>, vector<1152x128xbf16>
    %cst = arith.constant dense<0.000000e+00> : vector<96x128xf32>
    %225 = tpu.matmul %223, %224, %cst {dimension_numbers = #tpu.dot_dimension_numbers<[1], [0], [0], [1], [0, 0, 1, 1], [], []>} : vector<96x1152xbf16>, vector<1152x128xbf16>, vector<96x128xf32> -> vector<96x128xf32>
    %c0_i32_86 = arith.constant 0 : i32
    %226 = arith.addi %1, %c0_i32_86 : i32
    %227 = arith.index_cast %226 : i32 to index
    %c7_87 = arith.constant 7 : index
    %c0_88 = arith.constant 0 : index
    %228 = vector.load %arg16[%227, %c7_87, %c0_88] : memref<20x32x128xbf16, #tpu.memory_space<vmem>>, vector<6x16x128xbf16>
    %229 = vector.shape_cast %228 : vector<6x16x128xbf16> to vector<96x128xbf16>
    %c0_i32_89 = arith.constant 0 : i32
    %230 = arith.addi %1, %c0_i32_89 : i32
    %231 = arith.index_cast %230 : i32 to index
    %c8_90 = arith.constant 8 : index
    %c0_91 = arith.constant 0 : index
    %232 = vector.load %arg16[%231, %c8_90, %c0_91] : memref<20x32x128xbf16, #tpu.memory_space<vmem>>, vector<6x16x128xbf16>
    %233 = vector.shape_cast %232 : vector<6x16x128xbf16> to vector<96x128xbf16>
    %c0_i32_92 = arith.constant 0 : i32
    %234 = arith.addi %1, %c0_i32_92 : i32
    %235 = arith.index_cast %234 : i32 to index
    %c9_93 = arith.constant 9 : index
    %c0_94 = arith.constant 0 : index
    %236 = vector.load %arg16[%235, %c9_93, %c0_94] : memref<20x32x128xbf16, #tpu.memory_space<vmem>>, vector<6x16x128xbf16>
    %237 = vector.shape_cast %236 : vector<6x16x128xbf16> to vector<96x128xbf16>
    %c1_i32_95 = arith.constant 1 : i32
    %238 = arith.addi %1, %c1_i32_95 : i32
    %239 = arith.index_cast %238 : i32 to index
    %c7_96 = arith.constant 7 : index
    %c0_97 = arith.constant 0 : index
    %240 = vector.load %arg16[%239, %c7_96, %c0_97] : memref<20x32x128xbf16, #tpu.memory_space<vmem>>, vector<6x16x128xbf16>
    %241 = vector.shape_cast %240 : vector<6x16x128xbf16> to vector<96x128xbf16>
    %c1_i32_98 = arith.constant 1 : i32
    %242 = arith.addi %1, %c1_i32_98 : i32
    %243 = arith.index_cast %242 : i32 to index
    %c8_99 = arith.constant 8 : index
    %c0_100 = arith.constant 0 : index
    %244 = vector.load %arg16[%243, %c8_99, %c0_100] : memref<20x32x128xbf16, #tpu.memory_space<vmem>>, vector<6x16x128xbf16>
    %245 = vector.shape_cast %244 : vector<6x16x128xbf16> to vector<96x128xbf16>
    %c1_i32_101 = arith.constant 1 : i32
    %246 = arith.addi %1, %c1_i32_101 : i32
    %247 = arith.index_cast %246 : i32 to index
    %c9_102 = arith.constant 9 : index
    %c0_103 = arith.constant 0 : index
    %248 = vector.load %arg16[%247, %c9_102, %c0_103] : memref<20x32x128xbf16, #tpu.memory_space<vmem>>, vector<6x16x128xbf16>
    %249 = vector.shape_cast %248 : vector<6x16x128xbf16> to vector<96x128xbf16>
    %c2_i32_104 = arith.constant 2 : i32
    %250 = arith.addi %1, %c2_i32_104 : i32
    %251 = arith.index_cast %250 : i32 to index
    %c7_105 = arith.constant 7 : index
    %c0_106 = arith.constant 0 : index
    %252 = vector.load %arg16[%251, %c7_105, %c0_106] : memref<20x32x128xbf16, #tpu.memory_space<vmem>>, vector<6x16x128xbf16>
    %253 = vector.shape_cast %252 : vector<6x16x128xbf16> to vector<96x128xbf16>
    %c2_i32_107 = arith.constant 2 : i32
    %254 = arith.addi %1, %c2_i32_107 : i32
    %255 = arith.index_cast %254 : i32 to index
    %c8_108 = arith.constant 8 : index
    %c0_109 = arith.constant 0 : index
    %256 = vector.load %arg16[%255, %c8_108, %c0_109] : memref<20x32x128xbf16, #tpu.memory_space<vmem>>, vector<6x16x128xbf16>
    %257 = vector.shape_cast %256 : vector<6x16x128xbf16> to vector<96x128xbf16>
    %c2_i32_110 = arith.constant 2 : i32
    %258 = arith.addi %1, %c2_i32_110 : i32
    %259 = arith.index_cast %258 : i32 to index
    %c9_111 = arith.constant 9 : index
    %c0_112 = arith.constant 0 : index
    %260 = vector.load %arg16[%259, %c9_111, %c0_112] : memref<20x32x128xbf16, #tpu.memory_space<vmem>>, vector<6x16x128xbf16>
    %261 = vector.shape_cast %260 : vector<6x16x128xbf16> to vector<96x128xbf16>
    %262 = tpu.concatenate %229, %233, %237, %241, %245, %249, %253, %257, %261 in 1 : vector<96x128xbf16>, vector<96x128xbf16>, vector<96x128xbf16>, vector<96x128xbf16>, vector<96x128xbf16>, vector<96x128xbf16>, vector<96x128xbf16>, vector<96x128xbf16>, vector<96x128xbf16> -> vector<96x1152xbf16>
    %c0_113 = arith.constant 0 : index
    %c0_114 = arith.constant 0 : index
    %263 = vector.load %arg9[%c0_113, %c0_114] : memref<1152x128xbf16, #tpu.memory_space<vmem>>, vector<1152x128xbf16>
    %cst_115 = arith.constant dense<0.000000e+00> : vector<96x128xf32>
    %264 = tpu.matmul %262, %263, %cst_115 {dimension_numbers = #tpu.dot_dimension_numbers<[1], [0], [0], [1], [0, 0, 1, 1], [], []>} : vector<96x1152xbf16>, vector<1152x128xbf16>, vector<96x128xf32> -> vector<96x128xf32>
    %265 = arith.addf %225, %264 : vector<96x128xf32>
    %c0_116 = arith.constant 0 : index
    %c0_117 = arith.constant 0 : index
    %266 = vector.load %arg10[%c0_116, %c0_117] : memref<1x128xf32, #tpu.memory_space<vmem>>, vector<1x128xf32>
    %267 = vector.broadcast %266 : vector<1x128xf32> to vector<96x128xf32>
    %268 = arith.addf %265, %267 : vector<96x128xf32>
    %cst_118 = arith.constant 0.000000e+00 : f32
    %269 = vector.broadcast %cst_118 : f32 to vector<96x128xf32>
    %270 = arith.maximumf %268, %269 : vector<96x128xf32>
    %271 = vector.shape_cast %270 : vector<96x128xf32> to vector<6x16x128xf32>
    %272 = arith.truncf %271 : vector<6x16x128xf32> to vector<6x16x128xbf16>
    %c0_119 = arith.constant 0 : index
    %c8_120 = arith.constant 8 : index
    %c0_121 = arith.constant 0 : index
    %273 = vector.load %arg17[%c0_119, %c8_120, %c0_121] : memref<6x32x128xbf16, #tpu.memory_space<vmem>>, vector<6x16x128xbf16>
    tpu.vector_store %arg17[%c0_119, %c8_120, %c0_121], %272 {strides = array<i32>} : memref<6x32x128xbf16, #tpu.memory_space<vmem>>, vector<6x16x128xbf16>,
    %c0_i32_122 = arith.constant 0 : i32
    %274 = arith.cmpi eq, %arg1, %c0_i32_122 : i32
    %275 = arith.extui %274 : i1 to i32
    %c0_i32_123 = arith.constant 0 : i32
    %276 = arith.cmpi ne, %275, %c0_i32_123 : i32
    scf.if %276 {
      %cst_163 = arith.constant 0.000000e+00 : bf16
      %311 = vector.broadcast %cst_163 : bf16 to vector<1x32x128xbf16>
      %c0_164 = arith.constant 0 : index
      %c0_165 = arith.constant 0 : index
      %c0_166 = arith.constant 0 : index
      %312 = vector.load %arg17[%c0_164, %c0_165, %c0_166] : memref<6x32x128xbf16, #tpu.memory_space<vmem>>, vector<1x32x128xbf16>
      tpu.vector_store %arg17[%c0_164, %c0_165, %c0_166], %311 {strides = array<i32>} : memref<6x32x128xbf16, #tpu.memory_space<vmem>>, vector<1x32x128xbf16>,
    } else {
    }
    %c3_i32_124 = arith.constant 3 : i32
    %277 = arith.cmpi eq, %arg1, %c3_i32_124 : i32
    %278 = arith.extui %277 : i1 to i32
    %c0_i32_125 = arith.constant 0 : i32
    %279 = arith.cmpi ne, %278, %c0_i32_125 : i32
    scf.if %279 {
      %cst_163 = arith.constant 0.000000e+00 : bf16
      %311 = vector.broadcast %cst_163 : bf16 to vector<1x32x128xbf16>
      %c5_164 = arith.constant 5 : index
      %c0_165 = arith.constant 0 : index
      %c0_166 = arith.constant 0 : index
      %312 = vector.load %arg17[%c5_164, %c0_165, %c0_166] : memref<6x32x128xbf16, #tpu.memory_space<vmem>>, vector<1x32x128xbf16>
      tpu.vector_store %arg17[%c5_164, %c0_165, %c0_166], %311 {strides = array<i32>} : memref<6x32x128xbf16, #tpu.memory_space<vmem>>, vector<1x32x128xbf16>,
    } else {
    }
    %c0_126 = arith.constant 0 : index
    %c7_127 = arith.constant 7 : index
    %c0_128 = arith.constant 0 : index
    %280 = vector.load %arg17[%c0_126, %c7_127, %c0_128] : memref<6x32x128xbf16, #tpu.memory_space<vmem>>, vector<4x16x128xbf16>
    %281 = vector.shape_cast %280 : vector<4x16x128xbf16> to vector<64x128xbf16>
    %c0_129 = arith.constant 0 : index
    %c8_130 = arith.constant 8 : index
    %c0_131 = arith.constant 0 : index
    %282 = vector.load %arg17[%c0_129, %c8_130, %c0_131] : memref<6x32x128xbf16, #tpu.memory_space<vmem>>, vector<4x16x128xbf16>
    %283 = vector.shape_cast %282 : vector<4x16x128xbf16> to vector<64x128xbf16>
    %c0_132 = arith.constant 0 : index
    %c9_133 = arith.constant 9 : index
    %c0_134 = arith.constant 0 : index
    %284 = vector.load %arg17[%c0_132, %c9_133, %c0_134] : memref<6x32x128xbf16, #tpu.memory_space<vmem>>, vector<4x16x128xbf16>
    %285 = vector.shape_cast %284 : vector<4x16x128xbf16> to vector<64x128xbf16>
    %c1_135 = arith.constant 1 : index
    %c7_136 = arith.constant 7 : index
    %c0_137 = arith.constant 0 : index
    %286 = vector.load %arg17[%c1_135, %c7_136, %c0_137] : memref<6x32x128xbf16, #tpu.memory_space<vmem>>, vector<4x16x128xbf16>
    %287 = vector.shape_cast %286 : vector<4x16x128xbf16> to vector<64x128xbf16>
    %c1_138 = arith.constant 1 : index
    %c8_139 = arith.constant 8 : index
    %c0_140 = arith.constant 0 : index
    %288 = vector.load %arg17[%c1_138, %c8_139, %c0_140] : memref<6x32x128xbf16, #tpu.memory_space<vmem>>, vector<4x16x128xbf16>
    %289 = vector.shape_cast %288 : vector<4x16x128xbf16> to vector<64x128xbf16>
    %c1_141 = arith.constant 1 : index
    %c9_142 = arith.constant 9 : index
    %c0_143 = arith.constant 0 : index
    %290 = vector.load %arg17[%c1_141, %c9_142, %c0_143] : memref<6x32x128xbf16, #tpu.memory_space<vmem>>, vector<4x16x128xbf16>
    %291 = vector.shape_cast %290 : vector<4x16x128xbf16> to vector<64x128xbf16>
    %c2_144 = arith.constant 2 : index
    %c7_145 = arith.constant 7 : index
    %c0_146 = arith.constant 0 : index
    %292 = vector.load %arg17[%c2_144, %c7_145, %c0_146] : memref<6x32x128xbf16, #tpu.memory_space<vmem>>, vector<4x16x128xbf16>
    %293 = vector.shape_cast %292 : vector<4x16x128xbf16> to vector<64x128xbf16>
    %c2_147 = arith.constant 2 : index
    %c8_148 = arith.constant 8 : index
    %c0_149 = arith.constant 0 : index
    %294 = vector.load %arg17[%c2_147, %c8_148, %c0_149] : memref<6x32x128xbf16, #tpu.memory_space<vmem>>, vector<4x16x128xbf16>
    %295 = vector.shape_cast %294 : vector<4x16x128xbf16> to vector<64x128xbf16>
    %c2_150 = arith.constant 2 : index
    %c9_151 = arith.constant 9 : index
    %c0_152 = arith.constant 0 : index
    %296 = vector.load %arg17[%c2_150, %c9_151, %c0_152] : memref<6x32x128xbf16, #tpu.memory_space<vmem>>, vector<4x16x128xbf16>
    %297 = vector.shape_cast %296 : vector<4x16x128xbf16> to vector<64x128xbf16>
    %298 = tpu.concatenate %281, %283, %285, %287, %289, %291, %293, %295, %297 in 1 : vector<64x128xbf16>, vector<64x128xbf16>, vector<64x128xbf16>, vector<64x128xbf16>, vector<64x128xbf16>, vector<64x128xbf16>, vector<64x128xbf16>, vector<64x128xbf16>, vector<64x128xbf16> -> vector<64x1152xbf16>
    %c0_153 = arith.constant 0 : index
    %c0_154 = arith.constant 0 : index
    %299 = vector.load %arg11[%c0_153, %c0_154] : memref<1152x128xbf16, #tpu.memory_space<vmem>>, vector<1152x128xbf16>
    %cst_155 = arith.constant dense<0.000000e+00> : vector<64x128xf32>
    %300 = tpu.matmul %298, %299, %cst_155 {dimension_numbers = #tpu.dot_dimension_numbers<[1], [0], [0], [1], [0, 0, 1, 1], [], []>} : vector<64x1152xbf16>, vector<1152x128xbf16>, vector<64x128xf32> -> vector<64x128xf32>
    %c0_156 = arith.constant 0 : index
    %c0_157 = arith.constant 0 : index
    %301 = vector.load %arg12[%c0_156, %c0_157] : memref<1x128xf32, #tpu.memory_space<vmem>>, vector<1x128xf32>
    %302 = vector.broadcast %301 : vector<1x128xf32> to vector<64x128xf32>
    %303 = arith.addf %300, %302 : vector<64x128xf32>
    %cst_158 = arith.constant 0.000000e+00 : f32
    %304 = vector.broadcast %cst_158 : f32 to vector<64x128xf32>
    %305 = arith.maximumf %303, %304 : vector<64x128xf32>
    %306 = vector.shape_cast %305 : vector<64x128xf32> to vector<4x16x128xf32>
    %307 = arith.truncf %306 : vector<4x16x128xf32> to vector<4x16x128xbf16>
    %c0_159 = arith.constant 0 : index
    %c0_160 = arith.constant 0 : index
    %c0_161 = arith.constant 0 : index
    %c0_162 = arith.constant 0 : index
    %308 = vector.load %arg13[%c0_159, %c0_160, %c0_161, %c0_162] : memref<1x4x16x128xbf16, #tpu.memory_space<vmem>>, vector<1x4x16x128xbf16>
    %309 = vector.shape_cast %308 : vector<1x4x16x128xbf16> to vector<4x16x128xbf16>
    %310 = vector.shape_cast %307 : vector<4x16x128xbf16> to vector<1x4x16x128xbf16>
    tpu.vector_store %arg13[%c0_159, %c0_160, %c0_161, %c0_162], %310 {strides = array<i32>} : memref<1x4x16x128xbf16, #tpu.memory_space<vmem>>, vector<1x4x16x128xbf16>,
    return
  }
  func.func @transform_0(%arg0: i32, %arg1: i32) -> i32 {
    %c0_i32 = arith.constant 0 : i32
    %c0_i32_0 = arith.constant 0 : i32
    return %c0_i32 : i32
  }
  func.func @transform_1(%arg0: i32, %arg1: i32) -> i32 {
    %c0_i32 = arith.constant 0 : i32
    %c0_i32_0 = arith.constant 0 : i32
    return %c0_i32 : i32
  }
  func.func @transform_2(%arg0: i32, %arg1: i32) -> i32 {
    %c0_i32 = arith.constant 0 : i32
    %c0_i32_0 = arith.constant 0 : i32
    return %c0_i32 : i32
  }
  func.func @transform_3(%arg0: i32, %arg1: i32) -> (i32, i32, i32, i32) {
    %c0_i32 = arith.constant 0 : i32
    %c0_i32_0 = arith.constant 0 : i32
    %c0_i32_1 = arith.constant 0 : i32
    %c0_i32_2 = arith.constant 0 : i32
    return %arg0, %c0_i32, %c0_i32_0, %c0_i32_1 : i32, i32, i32, i32
  }
  func.func @transform_4(%arg0: i32, %arg1: i32) -> (i32, i32, i32, i32) {
    %c0_i32 = arith.constant 0 : i32
    %c0_i32_0 = arith.constant 0 : i32
    %c0_i32_1 = arith.constant 0 : i32
    %c0_i32_2 = arith.constant 0 : i32
    return %arg0, %c0_i32, %c0_i32_0, %c0_i32_1 : i32, i32, i32, i32
  }
  func.func @transform_5(%arg0: i32, %arg1: i32) -> (i32, i32) {
    %c0_i32 = arith.constant 0 : i32
    %c0_i32_0 = arith.constant 0 : i32
    %c0_i32_1 = arith.constant 0 : i32
    return %c0_i32, %c0_i32_0 : i32, i32
  }
  func.func @transform_6(%arg0: i32, %arg1: i32) -> (i32, i32) {
    %c0_i32 = arith.constant 0 : i32
    %c0_i32_0 = arith.constant 0 : i32
    %c0_i32_1 = arith.constant 0 : i32
    return %c0_i32, %c0_i32_0 : i32, i32
  }
  func.func @transform_7(%arg0: i32, %arg1: i32) -> (i32, i32) {
    %c0_i32 = arith.constant 0 : i32
    %c0_i32_0 = arith.constant 0 : i32
    %c0_i32_1 = arith.constant 0 : i32
    return %c0_i32, %c0_i32_0 : i32, i32
  }
  func.func @transform_8(%arg0: i32, %arg1: i32) -> (i32, i32) {
    %c0_i32 = arith.constant 0 : i32
    %c0_i32_0 = arith.constant 0 : i32
    %c0_i32_1 = arith.constant 0 : i32
    return %c0_i32, %c0_i32_0 : i32, i32
  }
  func.func @transform_9(%arg0: i32, %arg1: i32) -> (i32, i32) {
    %c0_i32 = arith.constant 0 : i32
    %c0_i32_0 = arith.constant 0 : i32
    %c0_i32_1 = arith.constant 0 : i32
    return %c0_i32, %c0_i32_0 : i32, i32
  }
  func.func @transform_10(%arg0: i32, %arg1: i32) -> (i32, i32) {
    %c0_i32 = arith.constant 0 : i32
    %c0_i32_0 = arith.constant 0 : i32
    %c0_i32_1 = arith.constant 0 : i32
    return %c0_i32, %c0_i32_0 : i32, i32
  }
  func.func @transform_11(%arg0: i32, %arg1: i32) -> (i32, i32, i32, i32) {
    %c0_i32 = arith.constant 0 : i32
    %c0_i32_0 = arith.constant 0 : i32
    %c0_i32_1 = arith.constant 0 : i32
    return %arg0, %arg1, %c0_i32, %c0_i32_0 : i32, i32, i32, i32
  }
}

</mosaic_0001>

<llo_original>
// kernel: decoder_block_forward.1
$region0: #{decoder_block_forward.1}
  #allocation0 [shape = 'u32[]', space=smem, size = 0x4, offset = 0x4, fixed_abs, tag = 'smem constant byte address 0x4 - core index']
  #allocation1 [shape = 'u32[144,128]{1,0:T(1,128)}', space=vmem, size = 0x12000, scoped, tag = 'internal scratch']
  #allocation2 [shape = 'bf16[8,16,128]{2,1,0:T(8,128)(2,1)}', space=vmem, size = 0x8000, scoped, tag = 'scratch operand']
  #allocation3 [shape = 'bf16[8,32,128]{2,1,0:T(8,128)(2,1)}', space=vmem, size = 0x10000, scoped, tag = 'scratch operand']
  #allocation4 [shape = 'bf16[20,32,128]{2,1,0:T(8,128)(2,1)}', space=vmem, size = 0x28000, scoped, tag = 'scratch operand']
  #allocation5 [shape = 'bf16[6,32,128]{2,1,0:T(8,128)(2,1)}', space=vmem, size = 0xc000, scoped, tag = 'scratch operand']
  %s0 = inlined_call_operand.vmem [shape: s32[20], index: 0, kind: input, shape index: {}]
  %s1 = inlined_call_operand.vmem [shape: f32[20], index: 1, kind: input, shape index: {}]
  %s2 = inlined_call_operand.vmem [shape: f32[20], index: 2, kind: input, shape index: {}]
  %s3 = inlined_call_operand.vmem [shape: bf16[2,8,8,128], index: 3, kind: input, shape index: {}]
  %s4 = inlined_call_operand.vmem [shape: bf16[2,16,16,128], index: 4, kind: input, shape index: {}]
  %s5 = inlined_call_operand.vmem [shape: bf16[16,8], index: 5, kind: input, shape index: {}]
  %s6 = inlined_call_operand.vmem [shape: bf16[1152,128], index: 6, kind: input, shape index: {}]
  %s7 = inlined_call_operand.vmem [shape: bf16[1152,128], index: 7, kind: input, shape index: {}]
  %s8 = inlined_call_operand.vmem [shape: f32[1,128], index: 8, kind: input, shape index: {}]
  %s9 = inlined_call_operand.vmem [shape: bf16[1152,128], index: 9, kind: input, shape index: {}]
  %s10 = inlined_call_operand.vmem [shape: f32[1,128], index: 10, kind: input, shape index: {}]
  %s11 = inlined_call_operand.hbm [shape: bf16[2,16,16,128], index: 11, kind: output, shape index: {}]
  %s12 = sld [smem:[#allocation0]]
  $region101: #{decoder_block_forward.1} parent=0
    _
  %s14 = ssub.s32 1, %s12
  %s15 = scalar_select 0, %s14, %s12
  $region1: #{decoder_block_forward.1} parent=0
    #allocation6 [shape = 'u8[512]{0}', space=smem, size = 0x200, scoped, tag = 'input window, operand 0, single buffered']
    #allocation7 [shape = 's32[2]{0}', space=sflag, size = 0x8, scoped, tag = 'scoped memory for decoder_block_forward.1']
    #allocation8 [shape = 's32[2]{0}', space=sflag, size = 0x8, scoped, tag = 'scoped memory for decoder_block_forward.1']
    #allocation9 [shape = 'u8[512]{0}', space=smem, size = 0x200, scoped, tag = 'input window, operand 1, single buffered']
    #allocation10 [shape = 's32[1]{0}', space=sflag, size = 0x4, scoped, tag = 'scoped memory for decoder_block_forward.1']
    #allocation11 [shape = 'u8[512]{0}', space=smem, size = 0x200, scoped, tag = 'input window, operand 2, single buffered']
    #allocation12 [shape = 'u8[32768]{0}', space=vmem, size = 0x8000, scoped, tag = 'output window, operand 0']
    %16 = vsyncpa [#allocation8], 0
    %17 = vsyncpa [#allocation10], 0
    %18 = vsyncpa [#allocation7], 0
    %s19 = scalar_lea.sflag [#allocation7], 1
    %20 = vsyncpa %s19, 0
    loop: start=0, step=1, limit=10
    $region2: #{decoder_block_forward.1} parent=1 // loop_pre_header
      _
    $region3: #{decoder_block_forward.1} parent=1 // loop_header
      %s22 = sphi 0, %s26
      %p23 = scmp.ge.s32.totalorder %s22, 10
      %s29 = sphi 0, %s41
      %s30 = sphi 0, %s37
      %s31 = sphi 0, %s29
      %s32 = sphi 0, %s30
      %s33 = sphi 0, %s31
      %s34 = sphi 0, %s32
      %s42 = sphi 0, %s42
      %s44 = sphi 0, %s42
      %s45 = sphi 0, %s44
      %s59 = sphi 0, %s45
      %s63 = sphi 0, %s63
      %s65 = sphi 0, %s63
      %s66 = sphi 0, %s65
      %s80 = sphi 0, %s66
      %s84 = sphi 0, %s84
      %s86 = sphi 0, %s84
      %s87 = sphi 0, %s86
      %s101 = sphi 0, %s87
      %s107 = sphi 0, %s109
      %s110 = sphi 0, %s107
      %s111 = sphi 0, %s110
      %s127 = sphi 0, %s111
      %s133 = sphi 0, %s135
      %s136 = sphi 0, %s133
      %s137 = sphi 0, %s136
      %s153 = sphi 0, %s137
      %s157 = sphi 0, %s157
      %s159 = sphi 0, %s157
      %s160 = sphi 0, %s159
      %s174 = sphi 0, %s160
      %s178 = sphi 0, %s178
      %s180 = sphi 0, %s178
      %s181 = sphi 0, %s180
      %s195 = sphi 0, %s181
      %s199 = sphi 0, %s199
      %s201 = sphi 0, %s199
      %s202 = sphi 0, %s201
      %s216 = sphi 0, %s202
      %s220 = sphi 0, %s220
      %s222 = sphi 0, %s220
      %s223 = sphi 0, %s222
      %s237 = sphi 0, %s223
      %s241 = sphi 0, %s241
      %s243 = sphi 0, %s241
      %s244 = sphi 0, %s243
      %s258 = sphi 0, %s244
      %s262 = sphi 0, %s262
      %s264 = sphi 0, %s262
      %s265 = sphi 0, %s264
      %s279 = sphi 0, %s265
      %s287 = sphi 0, %s289
      %s290 = sphi 0, %s287
      %s291 = sphi 0, %s290
      %s307 = sphi 0, %s291
    $region4: #{decoder_block_forward.1} parent=1 // loop_header_branch
      %25 = sbr.rel (%p23) target = $region8
    $region5: #{decoder_block_forward.1} parent=1 // loop_body
      %s27 = ssub.s32 %s22, 1
      %s28 = ssub.s32 %s22, 2
      %s35 = sadd.s32 1, %s30
      %p36 = scmp.ge.s32.totalorder %s35, 4
      %s37 = scalar_select %p36, 0, %s35
      %s38 = sadd.s32 1, %s29
      %s39 = scalar_select %p36, %s38, %s29
      %p40 = scmp.ge.s32.totalorder %s39, 2
      %s41 = scalar_select %p40, 0, %s39
      %s43 = sadd.s32 %s42, 1
      %p46 = scmp.eq.s32.totalorder %s22, 7
      %p47 = scmp.ne.s32.totalorder %s42, %s44
      %p48 = scmp.eq.s32.totalorder %s22, 0
      %p49 = por %p47, %p48
      %p50 = scmp.ne.s32.totalorder %s42, %s44
      %p51 = scmp.eq.s32.totalorder %s27, 7
      %p52 = por %p50, %p51
      %p53 = scmp.ne.s32.totalorder %s44, %s45
      %p54 = scmp.eq.s32.totalorder %s27, 0
      %p55 = por %p53, %p54
      %p56 = scmp.ne.s32.totalorder %s44, %s45
      %p57 = scmp.eq.s32.totalorder %s28, 7
      %p58 = por %p56, %p57
      %p60 = scmp.ne.s32.totalorder %s45, %s59
      %p61 = scmp.eq.s32.totalorder %s28, 0
      %p62 = por %p60, %p61
      %s64 = sadd.s32 %s63, 1
      %p67 = scmp.eq.s32.totalorder %s22, 7
      %p68 = scmp.ne.s32.totalorder %s63, %s65
      %p69 = scmp.eq.s32.totalorder %s22, 0
      %p70 = por %p68, %p69
      %p71 = scmp.ne.s32.totalorder %s63, %s65
      %p72 = scmp.eq.s32.totalorder %s27, 7
      %p73 = por %p71, %p72
      %p74 = scmp.ne.s32.totalorder %s65, %s66
      %p75 = scmp.eq.s32.totalorder %s27, 0
      %p76 = por %p74, %p75
      %p77 = scmp.ne.s32.totalorder %s65, %s66
      %p78 = scmp.eq.s32.totalorder %s28, 7
      %p79 = por %p77, %p78
      %p81 = scmp.ne.s32.totalorder %s66, %s80
      %p82 = scmp.eq.s32.totalorder %s28, 0
      %p83 = por %p81, %p82
      %s85 = sadd.s32 %s84, 1
      %p88 = scmp.eq.s32.totalorder %s22, 7
      %p89 = scmp.ne.s32.totalorder %s84, %s86
      %p90 = scmp.eq.s32.totalorder %s22, 0
      %p91 = por %p89, %p90
      %p92 = scmp.ne.s32.totalorder %s84, %s86
      %p93 = scmp.eq.s32.totalorder %s27, 7
      %p94 = por %p92, %p93
      %p95 = scmp.ne.s32.totalorder %s86, %s87
      %p96 = scmp.eq.s32.totalorder %s27, 0
      %p97 = por %p95, %p96
      %p98 = scmp.ne.s32.totalorder %s86, %s87
      %p99 = scmp.eq.s32.totalorder %s28, 7
      %p100 = por %p98, %p99
      %p102 = scmp.ne.s32.totalorder %s87, %s101
      %p103 = scmp.eq.s32.totalorder %s28, 0
      %p104 = por %p102, %p103
      %s105 = ssub.s32 %s29, %s41
      %p106 = scmp.eq.s32.totalorder %s105, 0
      %s108 = sadd.s32 %s107, 1
      %s109 = scalar_select %p106, %s107, %s108
      %p112 = pneg %p106
      %p113 = scmp.eq.s32.totalorder %s22, 7
      %p114 = por %p112, %p113
      %p115 = scmp.ne.s32.totalorder %s107, %s110
      %p116 = scmp.eq.s32.totalorder %s22, 0
      %p117 = por %p115, %p116
      %p118 = scmp.ne.s32.totalorder %s107, %s110
      %p119 = scmp.eq.s32.totalorder %s27, 7
      %p120 = por %p118, %p119
      %p121 = scmp.ne.s32.totalorder %s110, %s111
      %p122 = scmp.eq.s32.totalorder %s27, 0
      %p123 = por %p121, %p122
      %p124 = scmp.ne.s32.totalorder %s110, %s111
      %p125 = scmp.eq.s32.totalorder %s28, 7
      %p126 = por %p124, %p125
      %p128 = scmp.ne.s32.totalorder %s111, %s127
      %p129 = scmp.eq.s32.totalorder %s28, 0
      %p130 = por %p128, %p129
      %s131 = ssub.s32 %s29, %s41
      %p132 = scmp.eq.s32.totalorder %s131, 0
      %s134 = sadd.s32 %s133, 1
      %s135 = scalar_select %p132, %s133, %s134
      %p138 = pneg %p132
      %p139 = scmp.eq.s32.totalorder %s22, 7
      %p140 = por %p138, %p139
      %p141 = scmp.ne.s32.totalorder %s133, %s136
      %p142 = scmp.eq.s32.totalorder %s22, 0
      %p143 = por %p141, %p142
      %p144 = scmp.ne.s32.totalorder %s133, %s136
      %p145 = scmp.eq.s32.totalorder %s27, 7
      %p146 = por %p144, %p145
      %p147 = scmp.ne.s32.totalorder %s136, %s137
      %p148 = scmp.eq.s32.totalorder %s27, 0
      %p149 = por %p147, %p148
      %p150 = scmp.ne.s32.totalorder %s136, %s137
      %p151 = scmp.eq.s32.totalorder %s28, 7
      %p152 = por %p150, %p151
      %p154 = scmp.ne.s32.totalorder %s137, %s153
      %p155 = scmp.eq.s32.totalorder %s28, 0
      %p156 = por %p154, %p155
      %s158 = sadd.s32 %s157, 1
      %p161 = scmp.eq.s32.totalorder %s22, 7
      %p162 = scmp.ne.s32.totalorder %s157, %s159
      %p163 = scmp.eq.s32.totalorder %s22, 0
      %p164 = por %p162, %p163
      %p165 = scmp.ne.s32.totalorder %s157, %s159
      %p166 = scmp.eq.s32.totalorder %s27, 7
      %p167 = por %p165, %p166
      %p168 = scmp.ne.s32.totalorder %s159, %s160
      %p169 = scmp.eq.s32.totalorder %s27, 0
      %p170 = por %p168, %p169
      %p171 = scmp.ne.s32.totalorder %s159, %s160
      %p172 = scmp.eq.s32.totalorder %s28, 7
      %p173 = por %p171, %p172
      %p175 = scmp.ne.s32.totalorder %s160, %s174
      %p176 = scmp.eq.s32.totalorder %s28, 0
      %p177 = por %p175, %p176
      %s179 = sadd.s32 %s178, 1
      %p182 = scmp.eq.s32.totalorder %s22, 7
      %p183 = scmp.ne.s32.totalorder %s178, %s180
      %p184 = scmp.eq.s32.totalorder %s22, 0
      %p185 = por %p183, %p184
      %p186 = scmp.ne.s32.totalorder %s178, %s180
      %p187 = scmp.eq.s32.totalorder %s27, 7
      %p188 = por %p186, %p187
      %p189 = scmp.ne.s32.totalorder %s180, %s181
      %p190 = scmp.eq.s32.totalorder %s27, 0
      %p191 = por %p189, %p190
      %p192 = scmp.ne.s32.totalorder %s180, %s181
      %p193 = scmp.eq.s32.totalorder %s28, 7
      %p194 = por %p192, %p193
      %p196 = scmp.ne.s32.totalorder %s181, %s195
      %p197 = scmp.eq.s32.totalorder %s28, 0
      %p198 = por %p196, %p197
      %s200 = sadd.s32 %s199, 1
      %p203 = scmp.eq.s32.totalorder %s22, 7
      %p204 = scmp.ne.s32.totalorder %s199, %s201
      %p205 = scmp.eq.s32.totalorder %s22, 0
      %p206 = por %p204, %p205
      %p207 = scmp.ne.s32.totalorder %s199, %s201
      %p208 = scmp.eq.s32.totalorder %s27, 7
      %p209 = por %p207, %p208
      %p210 = scmp.ne.s32.totalorder %s201, %s202
      %p211 = scmp.eq.s32.totalorder %s27, 0
      %p212 = por %p210, %p211
      %p213 = scmp.ne.s32.totalorder %s201, %s202
      %p214 = scmp.eq.s32.totalorder %s28, 7
      %p215 = por %p213, %p214
      %p217 = scmp.ne.s32.totalorder %s202, %s216
      %p218 = scmp.eq.s32.totalorder %s28, 0
      %p219 = por %p217, %p218
      %s221 = sadd.s32 %s220, 1
      %p224 = scmp.eq.s32.totalorder %s22, 7
      %p225 = scmp.ne.s32.totalorder %s220, %s222
      %p226 = scmp.eq.s32.totalorder %s22, 0
      %p227 = por %p225, %p226
      %p228 = scmp.ne.s32.totalorder %s220, %s222
      %p229 = scmp.eq.s32.totalorder %s27, 7
      %p230 = por %p228, %p229
      %p231 = scmp.ne.s32.totalorder %s222, %s223
      %p232 = scmp.eq.s32.totalorder %s27, 0
      %p233 = por %p231, %p232
      %p234 = scmp.ne.s32.totalorder %s222, %s223
      %p235 = scmp.eq.s32.totalorder %s28, 7
      %p236 = por %p234, %p235
      %p238 = scmp.ne.s32.totalorder %s223, %s237
      %p239 = scmp.eq.s32.totalorder %s28, 0
      %p240 = por %p238, %p239
      %s242 = sadd.s32 %s241, 1
      %p245 = scmp.eq.s32.totalorder %s22, 7
      %p246 = scmp.ne.s32.totalorder %s241, %s243
      %p247 = scmp.eq.s32.totalorder %s22, 0
      %p248 = por %p246, %p247
      %p249 = scmp.ne.s32.totalorder %s241, %s243
      %p250 = scmp.eq.s32.totalorder %s27, 7
      %p251 = por %p249, %p250
      %p252 = scmp.ne.s32.totalorder %s243, %s244
      %p253 = scmp.eq.s32.totalorder %s27, 0
      %p254 = por %p252, %p253
      %p255 = scmp.ne.s32.totalorder %s243, %s244
      %p256 = scmp.eq.s32.totalorder %s28, 7
      %p257 = por %p255, %p256
      %p259 = scmp.ne.s32.totalorder %s244, %s258
      %p260 = scmp.eq.s32.totalorder %s28, 0
      %p261 = por %p259, %p260
      %s263 = sadd.s32 %s262, 1
      %p266 = scmp.eq.s32.totalorder %s22, 7
      %p267 = scmp.ne.s32.totalorder %s262, %s264
      %p268 = scmp.eq.s32.totalorder %s22, 0
      %p269 = por %p267, %p268
      %p270 = scmp.ne.s32.totalorder %s262, %s264
      %p271 = scmp.eq.s32.totalorder %s27, 7
      %p272 = por %p270, %p271
      %p273 = scmp.ne.s32.totalorder %s264, %s265
      %p274 = scmp.eq.s32.totalorder %s27, 0
      %p275 = por %p273, %p274
      %p276 = scmp.ne.s32.totalorder %s264, %s265
      %p277 = scmp.eq.s32.totalorder %s28, 7
      %p278 = por %p276, %p277
      %p280 = scmp.ne.s32.totalorder %s265, %s279
      %p281 = scmp.eq.s32.totalorder %s28, 0
      %p282 = por %p280, %p281
      %s283 = ssub.s32 %s29, %s41
      %s284 = ssub.s32 %s30, %s37
      %s285 = sor.u32 %s283, %s284
      %p286 = scmp.eq.s32.totalorder %s285, 0
      %s288 = sadd.s32 %s287, 1
      %s289 = scalar_select %p286, %s287, %s288
      %p292 = pneg %p286
      %p293 = scmp.eq.s32.totalorder %s22, 7
      %p294 = por %p292, %p293
      %p295 = scmp.ne.s32.totalorder %s287, %s290
      %p296 = scmp.eq.s32.totalorder %s22, 0
      %p297 = por %p295, %p296
      %p298 = scmp.ne.s32.totalorder %s287, %s290
      %p299 = scmp.eq.s32.totalorder %s27, 7
      %p300 = por %p298, %p299
      %p301 = scmp.ne.s32.totalorder %s290, %s291
      %p302 = scmp.eq.s32.totalorder %s27, 0
      %p303 = por %p301, %p302
      %p304 = scmp.ne.s32.totalorder %s290, %s291
      %p305 = scmp.eq.s32.totalorder %s28, 7
      %p306 = por %p304, %p305
      %p308 = scmp.ne.s32.totalorder %s291, %s307
      %p309 = scmp.eq.s32.totalorder %s28, 0
      %p310 = por %p308, %p309
      %p311 = scmp.le.s32.totalorder 1, %s22
      %p312 = scmp.lt.s32.totalorder %s22, 9
      %p313 = pnand %p311, %p312
      %p314 = pneg %p313
      // Predicated region
      $region9: #{decoder_block_forward.1} parent=5 // pred_check
        _
      $region10: #{decoder_block_forward.1} parent=5 // pred_check_branch
        %316 = sbr.rel (%p313) target = $region12
      $region11: #{decoder_block_forward.1} parent=5 // pred_region
        %s317 = ssub.s32 %s22, 1
        // Predicated region
        $region13: #{decoder_block_forward.1} parent=11 // pred_check
          %p318 = pneg %p55
        $region14: #{decoder_block_forward.1} parent=11 // pred_check_branch
          %320 = sbr.rel (%p318) target = $region16
        $region15: #{decoder_block_forward.1} parent=11 // pred_region
          %s322 = ssub.s32 16, 16
          %323 = vsyncadd [#allocation8], %s322
          %s325 = sshll.u32 %s0, 4
          %s326 = int_to_ptr.vmem [resolvable:$true] %s325
          %328 = dma.vmem_to_smem %s326, 16, [#allocation6], [#allocation8]
        $region16: #{decoder_block_forward.1} parent=11 // pred_fallthru
          _
        // Predicated region
        $region17: #{decoder_block_forward.1} parent=11 // pred_check
          %p329 = pneg %p76
        $region18: #{decoder_block_forward.1} parent=11 // pred_check_branch
          %331 = sbr.rel (%p329) target = $region20
        $region19: #{decoder_block_forward.1} parent=11 // pred_region
          %s333 = ssub.s32 16, 16
          %334 = vsyncadd [#allocation10], %s333
          %s336 = sshll.u32 %s1, 4
          %s337 = int_to_ptr.vmem [resolvable:$true] %s336
          %339 = dma.vmem_to_smem %s337, 16, [#allocation9], [#allocation10]
        $region20: #{decoder_block_forward.1} parent=11 // pred_fallthru
          _
        // Predicated region
        $region21: #{decoder_block_forward.1} parent=11 // pred_check
          %p340 = pneg %p97
        $region22: #{decoder_block_forward.1} parent=11 // pred_check_branch
          %342 = sbr.rel (%p340) target = $region24
        $region23: #{decoder_block_forward.1} parent=11 // pred_region
          %s344 = ssub.s32 16, 16
          %345 = vsyncadd [#allocation10], %s344
          %s347 = sshll.u32 %s2, 4
          %s348 = int_to_ptr.vmem [resolvable:$true] %s347
          %350 = dma.vmem_to_smem %s348, 16, [#allocation11], [#allocation10]
        $region24: #{decoder_block_forward.1} parent=11 // pred_fallthru
          _
        // Predicated region
        $region25: #{decoder_block_forward.1} parent=11 // pred_check
          %p351 = pneg %p170
        $region26: #{decoder_block_forward.1} parent=11 // pred_check_branch
          %353 = sbr.rel (%p351) target = $region28
        $region27: #{decoder_block_forward.1} parent=11 // pred_region
          _
        $region28: #{decoder_block_forward.1} parent=11 // pred_fallthru
          _
        // Predicated region
        $region29: #{decoder_block_forward.1} parent=11 // pred_check
          %p354 = pneg %p191
        $region30: #{decoder_block_forward.1} parent=11 // pred_check_branch
          %356 = sbr.rel (%p354) target = $region32
        $region31: #{decoder_block_forward.1} parent=11 // pred_region
          _
        $region32: #{decoder_block_forward.1} parent=11 // pred_fallthru
          _
        // Predicated region
        $region33: #{decoder_block_forward.1} parent=11 // pred_check
          %p357 = pneg %p212
        $region34: #{decoder_block_forward.1} parent=11 // pred_check_branch
          %359 = sbr.rel (%p357) target = $region36
        $region35: #{decoder_block_forward.1} parent=11 // pred_region
          _
        $region36: #{decoder_block_forward.1} parent=11 // pred_fallthru
          _
        // Predicated region
        $region37: #{decoder_block_forward.1} parent=11 // pred_check
          %p360 = pneg %p233
        $region38: #{decoder_block_forward.1} parent=11 // pred_check_branch
          %362 = sbr.rel (%p360) target = $region40
        $region39: #{decoder_block_forward.1} parent=11 // pred_region
          _
        $region40: #{decoder_block_forward.1} parent=11 // pred_fallthru
          _
        // Predicated region
        $region41: #{decoder_block_forward.1} parent=11 // pred_check
          %p363 = pneg %p254
        $region42: #{decoder_block_forward.1} parent=11 // pred_check_branch
          %365 = sbr.rel (%p363) target = $region44
        $region43: #{decoder_block_forward.1} parent=11 // pred_region
          _
        $region44: #{decoder_block_forward.1} parent=11 // pred_fallthru
          _
        // Predicated region
        $region45: #{decoder_block_forward.1} parent=11 // pred_check
          %p366 = pneg %p275
        $region46: #{decoder_block_forward.1} parent=11 // pred_check_branch
          %368 = sbr.rel (%p366) target = $region48
        $region47: #{decoder_block_forward.1} parent=11 // pred_region
          _
        $region48: #{decoder_block_forward.1} parent=11 // pred_fallthru
          _
      $region12: #{decoder_block_forward.1} parent=5 // pred_fallthru
        _
      %p369 = scmp.lt.s32.totalorder %s22, 8
      // Predicated region
      $region49: #{decoder_block_forward.1} parent=5 // pred_check
        %p370 = pneg %p369
      $region50: #{decoder_block_forward.1} parent=5 // pred_check_branch
        %372 = sbr.rel (%p370) target = $region52
      $region51: #{decoder_block_forward.1} parent=5 // pred_region
        // Predicated region
        $region53: #{decoder_block_forward.1} parent=51 // pred_check
          %p373 = pneg %p117
        $region54: #{decoder_block_forward.1} parent=51 // pred_check_branch
          %375 = sbr.rel (%p373) target = $region56
        $region55: #{decoder_block_forward.1} parent=51 // pred_region
          %p376 = scmp.lt.s32.totalorder %s29, 1
          %s377 = scalar_select %p376, %s29, 1
          %s378 = smul.addr %s377, 8
          %s379 = smul.addr %s378, 4
          %s380 = scalar_lea.vmem %s3, %s379
        $region56: #{decoder_block_forward.1} parent=51 // pred_fallthru
          _
        // Predicated region
        $region57: #{decoder_block_forward.1} parent=51 // pred_check
          %p381 = pneg %p143
        $region58: #{decoder_block_forward.1} parent=51 // pred_check_branch
          %383 = sbr.rel (%p381) target = $region60
        $region59: #{decoder_block_forward.1} parent=51 // pred_region
          %p384 = scmp.lt.s32.totalorder %s29, 1
          %s385 = scalar_select %p384, %s29, 1
          %s386 = smul.addr %s385, 32
          %s387 = smul.addr %s386, 4
          %s388 = scalar_lea.vmem %s4, %s387
        $region60: #{decoder_block_forward.1} parent=51 // pred_fallthru
          _
      $region52: #{decoder_block_forward.1} parent=5 // pred_fallthru
        _
      %p389 = scmp.le.s32.totalorder 1, %s22
      %p390 = scmp.lt.s32.totalorder %s22, 9
      %p391 = pnand %p389, %p390
      %p392 = pneg %p391
      // Predicated region
      $region61: #{decoder_block_forward.1} parent=5 // pred_check
        _
      $region62: #{decoder_block_forward.1} parent=5 // pred_check_branch
        %394 = sbr.rel (%p391) target = $region64
      $region63: #{decoder_block_forward.1} parent=5 // pred_region
        %s395 = ssub.s32 %s22, 1
        // Predicated region
        $region65: #{decoder_block_forward.1} parent=63 // pred_check
          %p396 = pneg %p55
        $region66: #{decoder_block_forward.1} parent=63 // pred_check_branch
          %398 = sbr.rel (%p396) target = $region68
        $region67: #{decoder_block_forward.1} parent=63 // pred_region
          %399 = dma.done [#allocation8], 16
        $region68: #{decoder_block_forward.1} parent=63 // pred_fallthru
          _
        // Predicated region
        $region69: #{decoder_block_forward.1} parent=63 // pred_check
          %p400 = pneg %p76
        $region70: #{decoder_block_forward.1} parent=63 // pred_check_branch
          %402 = sbr.rel (%p400) target = $region72
        $region71: #{decoder_block_forward.1} parent=63 // pred_region
          %403 = dma.done [#allocation10], 16
        $region72: #{decoder_block_forward.1} parent=63 // pred_fallthru
          _
        // Predicated region
        $region73: #{decoder_block_forward.1} parent=63 // pred_check
          %p404 = pneg %p97
        $region74: #{decoder_block_forward.1} parent=63 // pred_check_branch
          %406 = sbr.rel (%p404) target = $region76
        $region75: #{decoder_block_forward.1} parent=63 // pred_region
          %407 = dma.done [#allocation10], 16
        $region76: #{decoder_block_forward.1} parent=63 // pred_fallthru
          _
        %408 = sfence
        %p409 = pneg %p55
        %p410 = pneg %p52
        %p411 = pneg %p76
        %p412 = pneg %p73
        %p413 = pneg %p97
        %p414 = pneg %p94
        %p415 = scmp.lt.s32.totalorder %s31, 1
        %s416 = scalar_select %p415, %s31, 1
        %s417 = smul.addr %s416, 8
        %s418 = smul.addr %s417, 4
        %s419 = scalar_lea.vmem %s3, %s418
        %p420 = pneg %p123
        %p421 = pneg %p120
        %p422 = scmp.lt.s32.totalorder %s31, 1
        %s423 = scalar_select %p422, %s31, 1
        %s424 = smul.addr %s423, 32
        %s425 = smul.addr %s424, 4
        %s426 = scalar_lea.vmem %s4, %s425
        %p427 = pneg %p149
        %p428 = pneg %p146
        %p429 = pneg %p170
        %p430 = pneg %p167
        %p431 = pneg %p191
        %p432 = pneg %p188
        %p433 = pneg %p212
        %p434 = pneg %p209
        %p435 = pneg %p233
        %p436 = pneg %p230
        %p437 = pneg %p254
        %p438 = pneg %p251
        %p439 = pneg %p275
        %p440 = pneg %p272
        %p441 = pneg %p303
        %p442 = pneg %p300
        %s443 = sand.u32 %s290, 1
        %s444 = scalar_lea.sflag [#allocation7], %s443
        %s445 = sand.u32 %s290, 1
        %s446 = smul.addr %s445, 32
        %s447 = scalar_lea.vmem [#allocation12], %s446
        %p448 = scmp.lt.s32.totalorder %s31, 1
        %s449 = scalar_select %p448, %s31, 1
        %s450 = smul.addr %s449, 8
        %s451 = smul.addr %s450, 4
        %s452 = scalar_lea.vmem %s3, %s451
        %p453 = scmp.lt.s32.totalorder %s31, 1
        %s454 = scalar_select %p453, %s31, 1
        %s455 = smul.addr %s454, 32
        %s456 = smul.addr %s455, 4
        %s457 = scalar_lea.vmem %s4, %s456
        %s458 = smul.u32 4, %s32
        %s460 = smul.u32 %s32, 4
        %p461 = scmp.eq.s32.totalorder %s32, 0
        // Predicated region
        $region77: #{decoder_block_forward.1} parent=63 // pred_check
          %p462 = pneg %p461
        $region78: #{decoder_block_forward.1} parent=63 // pred_check_branch
          %464 = sbr.rel (%p462) target = $region80
        $region79: #{decoder_block_forward.1} parent=63 // pred_region
          %v465 = vld [vmem:[%s5] sm:$0xf]
          %v466 = vld [vmem:[%s5 + $0x4] sm:$0xf]
          %v467 = vld [vmem:[%s452] sm:$0xf]
          %v470 = vunpack.c.l.b16 %v465
          %v471 = vunpack.c.l.b16 %v466
          %v472 = vpack.c.b16 %v471, %v470
          %vm473 = vcmask 64512
          %v475 = vsel %vm473, %v472, 0
          %vm477 = vcmask 1043456
          %v479 = vsel %vm477, %v467, 0
          %481 = vmatprep.subr.bf16.mxu0 0
          %482 = vmatpush1.bf16.msra.mxu0 0
          %483 = vmatprep.subr.bf16.mxu0 0
          %484 = vmatpush1.bf16.msra.mxu0 0
          %485 = vmatprep.subr.bf16.mxu0 0
          %486 = vmatpush1.bf16.msra.mxu0 0
          %487 = vmatprep.subr.bf16.mxu0 0
          %488 = vmatpush1.bf16.msra.mxu0 0
          %489 = vmatprep.subr.bf16.mxu0 0
          %490 = vmatpush1.bf16.msra.mxu0 0
          %491 = vmatprep.subr.bf16.mxu0 0
          %492 = vmatpush1.bf16.msra.mxu0 0
          %493 = vmatprep.subr.bf16.mxu0 0
          %494 = vmatpush1.bf16.msra.mxu0 0
          %495 = vmatprep.subr.bf16.mxu0 0
          %496 = vmatpush1.bf16.msra.mxu0 %v479
          %497 = vmatprep.subr.bf16.mxu0 0
          %498 = vmatpush2.bf16.msra.mxu0 0
          %499 = vmatprep.subr.bf16.mxu0 0
          %500 = vmatpush2.bf16.msra.mxu0 0
          %501 = vmatprep.subr.bf16.mxu0 0
          %502 = vmatpush2.bf16.msra.mxu0 0
          %503 = vmatprep.subr.bf16.mxu0 0
          %504 = vmatpush2.bf16.msra.mxu0 0
          %505 = vmatprep.subr.bf16.mxu0 0
          %506 = vmatpush2.bf16.msra.mxu0 0
          %507 = vmatprep.subr.bf16.mxu0 0
          %508 = vmatpush2.bf16.msra.mxu0 0
          %509 = vmatprep.subr.bf16.mxu0 0
          %510 = vmatpush2.bf16.msra.mxu0 0
          %511 = vmatprep.subr.bf16.mxu0 0
          %512 = vmatpush2.bf16.msra.mxu0 0
          %513 = vmatprep.mubr.bf16.mxu0 0
          %514 = vmatmul.mubr.bf16.gmra.mxu0 %v475
          %v515 = vpop.f32.mrf.mxu0
          %v516 = vadd.f32 0.0, %v515
          %v517 = vpop.f32.mrf.mxu0
          %v518 = vpop.f32.mrf.mxu0
          %v519 = vadd.f32 0.0, %v518
          %v520 = vpop.f32.mrf.mxu0
          %521 = vdwg.mxu0
          %v522 = vpack.c.bf16 %v519, %v516
          %v524 = vunpack.c.l.b16 %v522
          %v525 = vunpack.c.h.b16 %v522
          %v526 = vpack.c.b16 %v524, %v524
          %v527 = vpack.c.b16 %v525, %v525
          %530 = vst [vmem:[#allocation2] sm:$0xf] %v526
          %531 = vst [vmem:[#allocation2 + $0x4] sm:$0xf] %v527
          %v532 = vld [vmem:[%s5] sm:$0xf]
          %v533 = vld [vmem:[%s5 + $0x4] sm:$0xf]
          %s534 = scalar_lea.vmem %s452, 4
          %v535 = vld [vmem:[%s534] sm:$0xf]
          %v538 = vunpack.c.l.b16 %v532
          %v539 = vunpack.c.l.b16 %v533
          %v540 = vpack.c.b16 %v539, %v538
          %v542 = vsel %vm473, %v540, 0
          %v545 = vsel %vm477, %v535, 0
          %547 = vmatprep.subr.bf16.mxu0 0
          %548 = vmatpush1.bf16.msra.mxu0 0
          %549 = vmatprep.subr.bf16.mxu0 0
          %550 = vmatpush1.bf16.msra.mxu0 0
          %551 = vmatprep.subr.bf16.mxu0 0
          %552 = vmatpush1.bf16.msra.mxu0 0
          %553 = vmatprep.subr.bf16.mxu0 0
          %554 = vmatpush1.bf16.msra.mxu0 0
          %555 = vmatprep.subr.bf16.mxu0 0
          %556 = vmatpush1.bf16.msra.mxu0 0
          %557 = vmatprep.subr.bf16.mxu0 0
          %558 = vmatpush1.bf16.msra.mxu0 0
          %559 = vmatprep.subr.bf16.mxu0 0
          %560 = vmatpush1.bf16.msra.mxu0 0
          %561 = vmatprep.subr.bf16.mxu0 0
          %562 = vmatpush1.bf16.msra.mxu0 %v545
          %563 = vmatprep.subr.bf16.mxu0 0
          %564 = vmatpush2.bf16.msra.mxu0 0
          %565 = vmatprep.subr.bf16.mxu0 0
          %566 = vmatpush2.bf16.msra.mxu0 0
          %567 = vmatprep.subr.bf16.mxu0 0
          %568 = vmatpush2.bf16.msra.mxu0 0
          %569 = vmatprep.subr.bf16.mxu0 0
          %570 = vmatpush2.bf16.msra.mxu0 0
          %571 = vmatprep.subr.bf16.mxu0 0
          %572 = vmatpush2.bf16.msra.mxu0 0
          %573 = vmatprep.subr.bf16.mxu0 0
          %574 = vmatpush2.bf16.msra.mxu0 0
          %575 = vmatprep.subr.bf16.mxu0 0
          %576 = vmatpush2.bf16.msra.mxu0 0
          %577 = vmatprep.subr.bf16.mxu0 0
          %578 = vmatpush2.bf16.msra.mxu0 0
          %579 = vmatprep.mubr.bf16.mxu0 0
          %580 = vmatmul.mubr.bf16.gmra.mxu0 %v542
          %v581 = vpop.f32.mrf.mxu0
          %v582 = vadd.f32 0.0, %v581
          %v583 = vpop.f32.mrf.mxu0
          %v584 = vpop.f32.mrf.mxu0
          %v585 = vadd.f32 0.0, %v584
          %v586 = vpop.f32.mrf.mxu0
          %587 = vdwg.mxu0
          %v588 = vpack.c.bf16 %v585, %v582
          %v590 = vunpack.c.l.b16 %v588
          %v591 = vunpack.c.h.b16 %v588
          %v592 = vpack.c.b16 %v590, %v590
          %v593 = vpack.c.b16 %v591, %v591
          %s596 = scalar_lea.vmem [#allocation2], 8
          %597 = vst [vmem:[%s596] sm:$0xf] %v592
          %598 = vst [vmem:[%s596 + $0x4] sm:$0xf] %v593
          %v599 = vld [vmem:[%s5] sm:$0xf]
          %v600 = vld [vmem:[%s5 + $0x4] sm:$0xf]
          %s601 = scalar_lea.vmem %s452, 8
          %v602 = vld [vmem:[%s601] sm:$0xf]
          %v605 = vunpack.c.l.b16 %v599
          %v606 = vunpack.c.l.b16 %v600
          %v607 = vpack.c.b16 %v606, %v605
          %v609 = vsel %vm473, %v607, 0
          %v612 = vsel %vm477, %v602, 0
          %614 = vmatprep.subr.bf16.mxu0 0
          %615 = vmatpush1.bf16.msra.mxu0 0
          %616 = vmatprep.subr.bf16.mxu0 0
          %617 = vmatpush1.bf16.msra.mxu0 0
          %618 = vmatprep.subr.bf16.mxu0 0
          %619 = vmatpush1.bf16.msra.mxu0 0
          %620 = vmatprep.subr.bf16.mxu0 0
          %621 = vmatpush1.bf16.msra.mxu0 0
          %622 = vmatprep.subr.bf16.mxu0 0
          %623 = vmatpush1.bf16.msra.mxu0 0
          %624 = vmatprep.subr.bf16.mxu0 0
          %625 = vmatpush1.bf16.msra.mxu0 0
          %626 = vmatprep.subr.bf16.mxu0 0
          %627 = vmatpush1.bf16.msra.mxu0 0
          %628 = vmatprep.subr.bf16.mxu0 0
          %629 = vmatpush1.bf16.msra.mxu0 %v612
          %630 = vmatprep.subr.bf16.mxu0 0
          %631 = vmatpush2.bf16.msra.mxu0 0
          %632 = vmatprep.subr.bf16.mxu0 0
          %633 = vmatpush2.bf16.msra.mxu0 0
          %634 = vmatprep.subr.bf16.mxu0 0
          %635 = vmatpush2.bf16.msra.mxu0 0
          %636 = vmatprep.subr.bf16.mxu0 0
          %637 = vmatpush2.bf16.msra.mxu0 0
          %638 = vmatprep.subr.bf16.mxu0 0
          %639 = vmatpush2.bf16.msra.mxu0 0
          %640 = vmatprep.subr.bf16.mxu0 0
          %641 = vmatpush2.bf16.msra.mxu0 0
          %642 = vmatprep.subr.bf16.mxu0 0
          %643 = vmatpush2.bf16.msra.mxu0 0
          %644 = vmatprep.subr.bf16.mxu0 0
          %645 = vmatpush2.bf16.msra.mxu0 0
          %646 = vmatprep.mubr.bf16.mxu0 0
          %647 = vmatmul.mubr.bf16.gmra.mxu0 %v609
          %v648 = vpop.f32.mrf.mxu0
          %v649 = vadd.f32 0.0, %v648
          %v650 = vpop.f32.mrf.mxu0
          %v651 = vpop.f32.mrf.mxu0
          %v652 = vadd.f32 0.0, %v651
          %v653 = vpop.f32.mrf.mxu0
          %654 = vdwg.mxu0
          %v655 = vpack.c.bf16 %v652, %v649
          %v657 = vunpack.c.l.b16 %v655
          %v658 = vunpack.c.h.b16 %v655
          %v659 = vpack.c.b16 %v657, %v657
          %v660 = vpack.c.b16 %v658, %v658
          %s663 = scalar_lea.vmem [#allocation2], 16
          %664 = vst [vmem:[%s663] sm:$0xf] %v659
          %665 = vst [vmem:[%s663 + $0x4] sm:$0xf] %v660
          %v666 = vld [vmem:[%s5] sm:$0xf]
          %v667 = vld [vmem:[%s5 + $0x4] sm:$0xf]
          %s668 = scalar_lea.vmem %s452, 12
          %v669 = vld [vmem:[%s668] sm:$0xf]
          %v672 = vunpack.c.l.b16 %v666
          %v673 = vunpack.c.l.b16 %v667
          %v674 = vpack.c.b16 %v673, %v672
          %v676 = vsel %vm473, %v674, 0
          %v679 = vsel %vm477, %v669, 0
          %681 = vmatprep.subr.bf16.mxu0 0
          %682 = vmatpush1.bf16.msra.mxu0 0
          %683 = vmatprep.subr.bf16.mxu0 0
          %684 = vmatpush1.bf16.msra.mxu0 0
          %685 = vmatprep.subr.bf16.mxu0 0
          %686 = vmatpush1.bf16.msra.mxu0 0
          %687 = vmatprep.subr.bf16.mxu0 0
          %688 = vmatpush1.bf16.msra.mxu0 0
          %689 = vmatprep.subr.bf16.mxu0 0
          %690 = vmatpush1.bf16.msra.mxu0 0
          %691 = vmatprep.subr.bf16.mxu0 0
          %692 = vmatpush1.bf16.msra.mxu0 0
          %693 = vmatprep.subr.bf16.mxu0 0
          %694 = vmatpush1.bf16.msra.mxu0 0
          %695 = vmatprep.subr.bf16.mxu0 0
          %696 = vmatpush1.bf16.msra.mxu0 %v679
          %697 = vmatprep.subr.bf16.mxu0 0
          %698 = vmatpush2.bf16.msra.mxu0 0
          %699 = vmatprep.subr.bf16.mxu0 0
          %700 = vmatpush2.bf16.msra.mxu0 0
          %701 = vmatprep.subr.bf16.mxu0 0
          %702 = vmatpush2.bf16.msra.mxu0 0
          %703 = vmatprep.subr.bf16.mxu0 0
          %704 = vmatpush2.bf16.msra.mxu0 0
          %705 = vmatprep.subr.bf16.mxu0 0
          %706 = vmatpush2.bf16.msra.mxu0 0
          %707 = vmatprep.subr.bf16.mxu0 0
          %708 = vmatpush2.bf16.msra.mxu0 0
          %709 = vmatprep.subr.bf16.mxu0 0
          %710 = vmatpush2.bf16.msra.mxu0 0
          %711 = vmatprep.subr.bf16.mxu0 0
          %712 = vmatpush2.bf16.msra.mxu0 0
          %713 = vmatprep.mubr.bf16.mxu0 0
          %714 = vmatmul.mubr.bf16.gmra.mxu0 %v676
          %v715 = vpop.f32.mrf.mxu0
          %v716 = vadd.f32 0.0, %v715
          %v717 = vpop.f32.mrf.mxu0
          %v718 = vpop.f32.mrf.mxu0
          %v719 = vadd.f32 0.0, %v718
          %v720 = vpop.f32.mrf.mxu0
          %721 = vdwg.mxu0
          %v722 = vpack.c.bf16 %v719, %v716
          %v724 = vunpack.c.l.b16 %v722
          %v725 = vunpack.c.h.b16 %v722
          %v726 = vpack.c.b16 %v724, %v724
          %v727 = vpack.c.b16 %v725, %v725
          %s730 = scalar_lea.vmem [#allocation2], 24
          %731 = vst [vmem:[%s730] sm:$0xf] %v726
          %732 = vst [vmem:[%s730 + $0x4] sm:$0xf] %v727
          %v733 = vld [vmem:[%s5] sm:$0xf]
          %v734 = vld [vmem:[%s5 + $0x4] sm:$0xf]
          %s735 = scalar_lea.vmem %s452, 16
          %v736 = vld [vmem:[%s735] sm:$0xf]
          %v739 = vunpack.c.l.b16 %v733
          %v740 = vunpack.c.l.b16 %v734
          %v741 = vpack.c.b16 %v740, %v739
          %v743 = vsel %vm473, %v741, 0
          %v746 = vsel %vm477, %v736, 0
          %748 = vmatprep.subr.bf16.mxu0 0
          %749 = vmatpush1.bf16.msra.mxu0 0
          %750 = vmatprep.subr.bf16.mxu0 0
          %751 = vmatpush1.bf16.msra.mxu0 0
          %752 = vmatprep.subr.bf16.mxu0 0
          %753 = vmatpush1.bf16.msra.mxu0 0
          %754 = vmatprep.subr.bf16.mxu0 0
          %755 = vmatpush1.bf16.msra.mxu0 0
          %756 = vmatprep.subr.bf16.mxu0 0
          %757 = vmatpush1.bf16.msra.mxu0 0
          %758 = vmatprep.subr.bf16.mxu0 0
          %759 = vmatpush1.bf16.msra.mxu0 0
          %760 = vmatprep.subr.bf16.mxu0 0
          %761 = vmatpush1.bf16.msra.mxu0 0
          %762 = vmatprep.subr.bf16.mxu0 0
          %763 = vmatpush1.bf16.msra.mxu0 %v746
          %764 = vmatprep.subr.bf16.mxu0 0
          %765 = vmatpush2.bf16.msra.mxu0 0
          %766 = vmatprep.subr.bf16.mxu0 0
          %767 = vmatpush2.bf16.msra.mxu0 0
          %768 = vmatprep.subr.bf16.mxu0 0
          %769 = vmatpush2.bf16.msra.mxu0 0
          %770 = vmatprep.subr.bf16.mxu0 0
          %771 = vmatpush2.bf16.msra.mxu0 0
          %772 = vmatprep.subr.bf16.mxu0 0
          %773 = vmatpush2.bf16.msra.mxu0 0
          %774 = vmatprep.subr.bf16.mxu0 0
          %775 = vmatpush2.bf16.msra.mxu0 0
          %776 = vmatprep.subr.bf16.mxu0 0
          %777 = vmatpush2.bf16.msra.mxu0 0
          %778 = vmatprep.subr.bf16.mxu0 0
          %779 = vmatpush2.bf16.msra.mxu0 0
          %780 = vmatprep.mubr.bf16.mxu0 0
          %781 = vmatmul.mubr.bf16.gmra.mxu0 %v743
          %v782 = vpop.f32.mrf.mxu0
          %v783 = vadd.f32 0.0, %v782
          %v784 = vpop.f32.mrf.mxu0
          %v785 = vpop.f32.mrf.mxu0
          %v786 = vadd.f32 0.0, %v785
          %v787 = vpop.f32.mrf.mxu0
          %788 = vdwg.mxu0
          %v789 = vpack.c.bf16 %v786, %v783
          %v791 = vunpack.c.l.b16 %v789
          %v792 = vunpack.c.h.b16 %v789
          %v793 = vpack.c.b16 %v791, %v791
          %v794 = vpack.c.b16 %v792, %v792
          %s797 = scalar_lea.vmem [#allocation2], 32
          %798 = vst [vmem:[%s797] sm:$0xf] %v793
          %799 = vst [vmem:[%s797 + $0x4] sm:$0xf] %v794
          %v800 = vld [vmem:[%s5] sm:$0xf]
          %v801 = vld [vmem:[%s5 + $0x4] sm:$0xf]
          %s802 = scalar_lea.vmem %s452, 20
          %v803 = vld [vmem:[%s802] sm:$0xf]
          %v806 = vunpack.c.l.b16 %v800
          %v807 = vunpack.c.l.b16 %v801
          %v808 = vpack.c.b16 %v807, %v806
          %v810 = vsel %vm473, %v808, 0
          %v813 = vsel %vm477, %v803, 0
          %815 = vmatprep.subr.bf16.mxu0 0
          %816 = vmatpush1.bf16.msra.mxu0 0
          %817 = vmatprep.subr.bf16.mxu0 0
          %818 = vmatpush1.bf16.msra.mxu0 0
          %819 = vmatprep.subr.bf16.mxu0 0
          %820 = vmatpush1.bf16.msra.mxu0 0
          %821 = vmatprep.subr.bf16.mxu0 0
          %822 = vmatpush1.bf16.msra.mxu0 0
          %823 = vmatprep.subr.bf16.mxu0 0
          %824 = vmatpush1.bf16.msra.mxu0 0
          %825 = vmatprep.subr.bf16.mxu0 0
          %826 = vmatpush1.bf16.msra.mxu0 0
          %827 = vmatprep.subr.bf16.mxu0 0
          %828 = vmatpush1.bf16.msra.mxu0 0
          %829 = vmatprep.subr.bf16.mxu0 0
          %830 = vmatpush1.bf16.msra.mxu0 %v813
          %831 = vmatprep.subr.bf16.mxu0 0
          %832 = vmatpush2.bf16.msra.mxu0 0
          %833 = vmatprep.subr.bf16.mxu0 0
          %834 = vmatpush2.bf16.msra.mxu0 0
          %835 = vmatprep.subr.bf16.mxu0 0
          %836 = vmatpush2.bf16.msra.mxu0 0
          %837 = vmatprep.subr.bf16.mxu0 0
          %838 = vmatpush2.bf16.msra.mxu0 0
          %839 = vmatprep.subr.bf16.mxu0 0
          %840 = vmatpush2.bf16.msra.mxu0 0
          %841 = vmatprep.subr.bf16.mxu0 0
          %842 = vmatpush2.bf16.msra.mxu0 0
          %843 = vmatprep.subr.bf16.mxu0 0
          %844 = vmatpush2.bf16.msra.mxu0 0
          %845 = vmatprep.subr.bf16.mxu0 0
          %846 = vmatpush2.bf16.msra.mxu0 0
          %847 = vmatprep.mubr.bf16.mxu0 0
          %848 = vmatmul.mubr.bf16.gmra.mxu0 %v810
          %v849 = vpop.f32.mrf.mxu0
          %v850 = vadd.f32 0.0, %v849
          %v851 = vpop.f32.mrf.mxu0
          %v852 = vpop.f32.mrf.mxu0
          %v853 = vadd.f32 0.0, %v852
          %v854 = vpop.f32.mrf.mxu0
          %855 = vdwg.mxu0
          %v856 = vpack.c.bf16 %v853, %v850
          %v858 = vunpack.c.l.b16 %v856
          %v859 = vunpack.c.h.b16 %v856
          %v860 = vpack.c.b16 %v858, %v858
          %v861 = vpack.c.b16 %v859, %v859
          %s864 = scalar_lea.vmem [#allocation2], 40
          %865 = vst [vmem:[%s864] sm:$0xf] %v860
          %866 = vst [vmem:[%s864 + $0x4] sm:$0xf] %v861
          %v867 = vld [vmem:[%s5] sm:$0xf]
          %v868 = vld [vmem:[%s5 + $0x4] sm:$0xf]
          %s869 = scalar_lea.vmem %s452, 24
          %v870 = vld [vmem:[%s869] sm:$0xf]
          %v873 = vunpack.c.l.b16 %v867
          %v874 = vunpack.c.l.b16 %v868
          %v875 = vpack.c.b16 %v874, %v873
          %v877 = vsel %vm473, %v875, 0
          %v880 = vsel %vm477, %v870, 0
          %882 = vmatprep.subr.bf16.mxu0 0
          %883 = vmatpush1.bf16.msra.mxu0 0
          %884 = vmatprep.subr.bf16.mxu0 0
          %885 = vmatpush1.bf16.msra.mxu0 0
          %886 = vmatprep.subr.bf16.mxu0 0
          %887 = vmatpush1.bf16.msra.mxu0 0
          %888 = vmatprep.subr.bf16.mxu0 0
          %889 = vmatpush1.bf16.msra.mxu0 0
          %890 = vmatprep.subr.bf16.mxu0 0
          %891 = vmatpush1.bf16.msra.mxu0 0
          %892 = vmatprep.subr.bf16.mxu0 0
          %893 = vmatpush1.bf16.msra.mxu0 0
          %894 = vmatprep.subr.bf16.mxu0 0
          %895 = vmatpush1.bf16.msra.mxu0 0
          %896 = vmatprep.subr.bf16.mxu0 0
          %897 = vmatpush1.bf16.msra.mxu0 %v880
          %898 = vmatprep.subr.bf16.mxu0 0
          %899 = vmatpush2.bf16.msra.mxu0 0
          %900 = vmatprep.subr.bf16.mxu0 0
          %901 = vmatpush2.bf16.msra.mxu0 0
          %902 = vmatprep.subr.bf16.mxu0 0
          %903 = vmatpush2.bf16.msra.mxu0 0
          %904 = vmatprep.subr.bf16.mxu0 0
          %905 = vmatpush2.bf16.msra.mxu0 0
          %906 = vmatprep.subr.bf16.mxu0 0
          %907 = vmatpush2.bf16.msra.mxu0 0
          %908 = vmatprep.subr.bf16.mxu0 0
          %909 = vmatpush2.bf16.msra.mxu0 0
          %910 = vmatprep.subr.bf16.mxu0 0
          %911 = vmatpush2.bf16.msra.mxu0 0
          %912 = vmatprep.subr.bf16.mxu0 0
          %913 = vmatpush2.bf16.msra.mxu0 0
          %914 = vmatprep.mubr.bf16.mxu0 0
          %915 = vmatmul.mubr.bf16.gmra.mxu0 %v877
          %v916 = vpop.f32.mrf.mxu0
          %v917 = vadd.f32 0.0, %v916
          %v918 = vpop.f32.mrf.mxu0
          %v919 = vpop.f32.mrf.mxu0
          %v920 = vadd.f32 0.0, %v919
          %v921 = vpop.f32.mrf.mxu0
          %922 = vdwg.mxu0
          %v923 = vpack.c.bf16 %v920, %v917
          %v925 = vunpack.c.l.b16 %v923
          %v926 = vunpack.c.h.b16 %v923
          %v927 = vpack.c.b16 %v925, %v925
          %v928 = vpack.c.b16 %v926, %v926
          %s931 = scalar_lea.vmem [#allocation2], 48
          %932 = vst [vmem:[%s931] sm:$0xf] %v927
          %933 = vst [vmem:[%s931 + $0x4] sm:$0xf] %v928
          %v934 = vld [vmem:[%s5] sm:$0xf]
          %v935 = vld [vmem:[%s5 + $0x4] sm:$0xf]
          %s936 = scalar_lea.vmem %s452, 28
          %v937 = vld [vmem:[%s936] sm:$0xf]
          %v940 = vunpack.c.l.b16 %v934
          %v941 = vunpack.c.l.b16 %v935
          %v942 = vpack.c.b16 %v941, %v940
          %v944 = vsel %vm473, %v942, 0
          %v947 = vsel %vm477, %v937, 0
          %949 = vmatprep.subr.bf16.mxu0 0
          %950 = vmatpush1.bf16.msra.mxu0 0
          %951 = vmatprep.subr.bf16.mxu0 0
          %952 = vmatpush1.bf16.msra.mxu0 0
          %953 = vmatprep.subr.bf16.mxu0 0
          %954 = vmatpush1.bf16.msra.mxu0 0
          %955 = vmatprep.subr.bf16.mxu0 0
          %956 = vmatpush1.bf16.msra.mxu0 0
          %957 = vmatprep.subr.bf16.mxu0 0
          %958 = vmatpush1.bf16.msra.mxu0 0
          %959 = vmatprep.subr.bf16.mxu0 0
          %960 = vmatpush1.bf16.msra.mxu0 0
          %961 = vmatprep.subr.bf16.mxu0 0
          %962 = vmatpush1.bf16.msra.mxu0 0
          %963 = vmatprep.subr.bf16.mxu0 0
          %964 = vmatpush1.bf16.msra.mxu0 %v947
          %965 = vmatprep.subr.bf16.mxu0 0
          %966 = vmatpush2.bf16.msra.mxu0 0
          %967 = vmatprep.subr.bf16.mxu0 0
          %968 = vmatpush2.bf16.msra.mxu0 0
          %969 = vmatprep.subr.bf16.mxu0 0
          %970 = vmatpush2.bf16.msra.mxu0 0
          %971 = vmatprep.subr.bf16.mxu0 0
          %972 = vmatpush2.bf16.msra.mxu0 0
          %973 = vmatprep.subr.bf16.mxu0 0
          %974 = vmatpush2.bf16.msra.mxu0 0
          %975 = vmatprep.subr.bf16.mxu0 0
          %976 = vmatpush2.bf16.msra.mxu0 0
          %977 = vmatprep.subr.bf16.mxu0 0
          %978 = vmatpush2.bf16.msra.mxu0 0
          %979 = vmatprep.subr.bf16.mxu0 0
          %980 = vmatpush2.bf16.msra.mxu0 0
          %981 = vmatprep.mubr.bf16.mxu0 0
          %982 = vmatmul.mubr.bf16.gmra.mxu0 %v944
          %v983 = vpop.f32.mrf.mxu0
          %v984 = vadd.f32 0.0, %v983
          %v985 = vpop.f32.mrf.mxu0
          %v986 = vpop.f32.mrf.mxu0
          %v987 = vadd.f32 0.0, %v986
          %v988 = vpop.f32.mrf.mxu0
          %989 = vdwg.mxu0
          %v990 = vpack.c.bf16 %v987, %v984
          %v992 = vunpack.c.l.b16 %v990
          %v993 = vunpack.c.h.b16 %v990
          %v994 = vpack.c.b16 %v992, %v992
          %v995 = vpack.c.b16 %v993, %v993
          %s998 = scalar_lea.vmem [#allocation2], 56
          %999 = vst [vmem:[%s998] sm:$0xf] %v994
          %1000 = vst [vmem:[%s998 + $0x4] sm:$0xf] %v995
          %1001 = vst [vmem:[#allocation3] sm:$0xf] 0
          %1002 = vst [vmem:[#allocation3 + $0x10] sm:$0xf] 0
          %1003 = vst [vmem:[#allocation3 + $0x20] sm:$0xf] 0
          %1004 = vst [vmem:[#allocation3 + $0x30] sm:$0xf] 0
          %1005 = vst [vmem:[#allocation3 + $0x40] sm:$0xf] 0
          %1006 = vst [vmem:[#allocation3 + $0x50] sm:$0xf] 0
          %1007 = vst [vmem:[#allocation3 + $0x60] sm:$0xf] 0
          %1008 = vst [vmem:[#allocation3 + $0x70] sm:$0xf] 0
          %1009 = vst [vmem:[#allocation3 + $0xc] sm:$0xf] 0
          %1010 = vst [vmem:[#allocation3 + $0x1c] sm:$0xf] 0
          %1011 = vst [vmem:[#allocation3 + $0x2c] sm:$0xf] 0
          %1012 = vst [vmem:[#allocation3 + $0x3c] sm:$0xf] 0
          %1013 = vst [vmem:[#allocation3 + $0x4c] sm:$0xf] 0
          %1014 = vst [vmem:[#allocation3 + $0x5c] sm:$0xf] 0
          %1015 = vst [vmem:[#allocation3 + $0x6c] sm:$0xf] 0
          %1016 = vst [vmem:[#allocation3 + $0x7c] sm:$0xf] 0
          %1017 = vst [vmem:[#allocation5] sm:$0xf] 0
          %1018 = vst [vmem:[#allocation5 + $0x10] sm:$0xf] 0
          %1019 = vst [vmem:[#allocation5 + $0x20] sm:$0xf] 0
          %1020 = vst [vmem:[#allocation5 + $0x30] sm:$0xf] 0
          %1021 = vst [vmem:[#allocation5 + $0x40] sm:$0xf] 0
          %1022 = vst [vmem:[#allocation5 + $0x50] sm:$0xf] 0
          %1023 = vst [vmem:[#allocation5 + $0xc] sm:$0xf] 0
          %1024 = vst [vmem:[#allocation5 + $0x1c] sm:$0xf] 0
          %1025 = vst [vmem:[#allocation5 + $0x2c] sm:$0xf] 0
          %1026 = vst [vmem:[#allocation5 + $0x3c] sm:$0xf] 0
          %1027 = vst [vmem:[#allocation5 + $0x4c] sm:$0xf] 0
          %1028 = vst [vmem:[#allocation5 + $0x5c] sm:$0xf] 0
          %1029 = vst [vmem:[#allocation4] sm:$0xf] 0
          %1030 = vst [vmem:[#allocation4 + $0x10] sm:$0xf] 0
          %1031 = vst [vmem:[#allocation4 + $0x20] sm:$0xf] 0
          %1032 = vst [vmem:[#allocation4 + $0x30] sm:$0xf] 0
          %1033 = vst [vmem:[#allocation4 + $0x40] sm:$0xf] 0
          %1034 = vst [vmem:[#allocation4 + $0x50] sm:$0xf] 0
          %1035 = vst [vmem:[#allocation4 + $0x60] sm:$0xf] 0
          %1036 = vst [vmem:[#allocation4 + $0x70] sm:$0xf] 0
          %1037 = vst [vmem:[#allocation4 + $0x80] sm:$0xf] 0
          %1038 = vst [vmem:[#allocation4 + $0x90] sm:$0xf] 0
          %1039 = vst [vmem:[#allocation4 + $0xa0] sm:$0xf] 0
          %1040 = vst [vmem:[#allocation4 + $0xb0] sm:$0xf] 0
          %1041 = vst [vmem:[#allocation4 + $0xc0] sm:$0xf] 0
          %1042 = vst [vmem:[#allocation4 + $0xd0] sm:$0xf] 0
          %1043 = vst [vmem:[#allocation4 + $0xe0] sm:$0xf] 0
          %1044 = vst [vmem:[#allocation4 + $0xf0] sm:$0xf] 0
          %1045 = vst [vmem:[#allocation4 + $0x100] sm:$0xf] 0
          %1046 = vst [vmem:[#allocation4 + $0x110] sm:$0xf] 0
          %1047 = vst [vmem:[#allocation4 + $0x120] sm:$0xf] 0
          %1048 = vst [vmem:[#allocation4 + $0x130] sm:$0xf] 0
          %1049 = vst [vmem:[#allocation4 + $0xc] sm:$0xf] 0
          %1050 = vst [vmem:[#allocation4 + $0x1c] sm:$0xf] 0
          %1051 = vst [vmem:[#allocation4 + $0x2c] sm:$0xf] 0
          %1052 = vst [vmem:[#allocation4 + $0x3c] sm:$0xf] 0
          %1053 = vst [vmem:[#allocation4 + $0x4c] sm:$0xf] 0
          %1054 = vst [vmem:[#allocation4 + $0x5c] sm:$0xf] 0
          %1055 = vst [vmem:[#allocation4 + $0x6c] sm:$0xf] 0
          %1056 = vst [vmem:[#allocation4 + $0x7c] sm:$0xf] 0
          %1057 = vst [vmem:[#allocation4 + $0x8c] sm:$0xf] 0
          %1058 = vst [vmem:[#allocation4 + $0x9c] sm:$0xf] 0
          %1059 = vst [vmem:[#allocation4 + $0xac] sm:$0xf] 0
          %1060 = vst [vmem:[#allocation4 + $0xbc] sm:$0xf] 0
          %1061 = vst [vmem:[#allocation4 + $0xcc] sm:$0xf] 0
          %1062 = vst [vmem:[#allocation4 + $0xdc] sm:$0xf] 0
          %1063 = vst [vmem:[#allocation4 + $0xec] sm:$0xf] 0
          %1064 = vst [vmem:[#allocation4 + $0xfc] sm:$0xf] 0
          %1065 = vst [vmem:[#allocation4 + $0x10c] sm:$0xf] 0
          %1066 = vst [vmem:[#allocation4 + $0x11c] sm:$0xf] 0
          %1067 = vst [vmem:[#allocation4 + $0x12c] sm:$0xf] 0
          %1068 = vst [vmem:[#allocation4 + $0x13c] sm:$0xf] 0
          %1069 = vst [vmem:[#allocation4] sm:$0xf] 0
          %1070 = vst [vmem:[#allocation4 + $0x4] sm:$0xf] 0
          %1071 = vst [vmem:[#allocation4 + $0x8] sm:$0xf] 0
          %1072 = vst [vmem:[#allocation4 + $0xc] sm:$0xf] 0
          %1073 = vst [vmem:[#allocation4 + $0x10] sm:$0xf] 0
          %1074 = vst [vmem:[#allocation4 + $0x14] sm:$0xf] 0
          %1075 = vst [vmem:[#allocation4 + $0x18] sm:$0xf] 0
          %1076 = vst [vmem:[#allocation4 + $0x1c] sm:$0xf] 0
          %s1077 = scalar_lea.vmem [#allocation4], 288
          %1078 = vst [vmem:[%s1077] sm:$0xf] 0
          %1079 = vst [vmem:[%s1077 + $0x4] sm:$0xf] 0
          %1080 = vst [vmem:[%s1077 + $0x8] sm:$0xf] 0
          %1081 = vst [vmem:[%s1077 + $0xc] sm:$0xf] 0
          %1082 = vst [vmem:[%s1077 + $0x10] sm:$0xf] 0
          %1083 = vst [vmem:[%s1077 + $0x14] sm:$0xf] 0
          %1084 = vst [vmem:[%s1077 + $0x18] sm:$0xf] 0
          %1085 = vst [vmem:[%s1077 + $0x1c] sm:$0xf] 0
          %v1086 = vld [vmem:[%s457] sm:$0xf]
          %v1087 = vld [vmem:[%s457 + $0x4] sm:$0xf]
          %v1088 = vld [vmem:[%s457 + $0x8] sm:$0xf]
          %v1089 = vld [vmem:[%s457 + $0xc] sm:$0xf]
          %v1090 = vld [vmem:[%s457 + $0x10] sm:$0xf]
          %v1091 = vld [vmem:[%s457 + $0x14] sm:$0xf]
          %v1092 = vld [vmem:[%s457 + $0x18] sm:$0xf]
          %v1093 = vld [vmem:[%s457 + $0x1c] sm:$0xf]
          %v1094 = vld [vmem:[%s457 + $0x20] sm:$0xf]
          %v1095 = vld [vmem:[%s457 + $0x24] sm:$0xf]
          %v1096 = vld [vmem:[%s457 + $0x28] sm:$0xf]
          %v1097 = vld [vmem:[%s457 + $0x2c] sm:$0xf]
          %v1098 = vld [vmem:[%s457 + $0x30] sm:$0xf]
          %v1099 = vld [vmem:[%s457 + $0x34] sm:$0xf]
          %v1100 = vld [vmem:[%s457 + $0x38] sm:$0xf]
          %v1101 = vld [vmem:[%s457 + $0x3c] sm:$0xf]
          %v1102 = vld [vmem:[%s457 + $0x40] sm:$0xf]
          %v1103 = vld [vmem:[%s457 + $0x44] sm:$0xf]
          %v1104 = vld [vmem:[%s457 + $0x48] sm:$0xf]
          %v1105 = vld [vmem:[%s457 + $0x4c] sm:$0xf]
          %v1106 = vld [vmem:[%s457 + $0x50] sm:$0xf]
          %v1107 = vld [vmem:[%s457 + $0x54] sm:$0xf]
          %v1108 = vld [vmem:[%s457 + $0x58] sm:$0xf]
          %v1109 = vld [vmem:[%s457 + $0x5c] sm:$0xf]
          %v1110 = vld [vmem:[%s457 + $0x60] sm:$0xf]
          %v1111 = vld [vmem:[%s457 + $0x64] sm:$0xf]
          %v1112 = vld [vmem:[%s457 + $0x68] sm:$0xf]
          %v1113 = vld [vmem:[%s457 + $0x6c] sm:$0xf]
          %v1114 = vld [vmem:[%s457 + $0x70] sm:$0xf]
          %v1115 = vld [vmem:[%s457 + $0x74] sm:$0xf]
          %v1116 = vld [vmem:[%s457 + $0x78] sm:$0xf]
          %v1117 = vld [vmem:[%s457 + $0x7c] sm:$0xf]
          %s1118 = scalar_lea.vmem [#allocation4], 32
          %1119 = vst [vmem:[%s1118 + $0x4] sm:$0xf] %v1086
          %1120 = vst [vmem:[%s1118 + $0x8] sm:$0xf] %v1087
          %1121 = vst [vmem:[%s1118 + $0x14] sm:$0xf] %v1088
          %1122 = vst [vmem:[%s1118 + $0x18] sm:$0xf] %v1089
          %1123 = vst [vmem:[%s1118 + $0x24] sm:$0xf] %v1090
          %1124 = vst [vmem:[%s1118 + $0x28] sm:$0xf] %v1091
          %1125 = vst [vmem:[%s1118 + $0x34] sm:$0xf] %v1092
          %1126 = vst [vmem:[%s1118 + $0x38] sm:$0xf] %v1093
          %1127 = vst [vmem:[%s1118 + $0x44] sm:$0xf] %v1094
          %1128 = vst [vmem:[%s1118 + $0x48] sm:$0xf] %v1095
          %1129 = vst [vmem:[%s1118 + $0x54] sm:$0xf] %v1096
          %1130 = vst [vmem:[%s1118 + $0x58] sm:$0xf] %v1097
          %1131 = vst [vmem:[%s1118 + $0x64] sm:$0xf] %v1098
          %1132 = vst [vmem:[%s1118 + $0x68] sm:$0xf] %v1099
          %1133 = vst [vmem:[%s1118 + $0x74] sm:$0xf] %v1100
          %1134 = vst [vmem:[%s1118 + $0x78] sm:$0xf] %v1101
          %1135 = vst [vmem:[%s1118 + $0x84] sm:$0xf] %v1102
          %1136 = vst [vmem:[%s1118 + $0x88] sm:$0xf] %v1103
          %1137 = vst [vmem:[%s1118 + $0x94] sm:$0xf] %v1104
          %1138 = vst [vmem:[%s1118 + $0x98] sm:$0xf] %v1105
          %1139 = vst [vmem:[%s1118 + $0xa4] sm:$0xf] %v1106
          %1140 = vst [vmem:[%s1118 + $0xa8] sm:$0xf] %v1107
          %1141 = vst [vmem:[%s1118 + $0xb4] sm:$0xf] %v1108
          %1142 = vst [vmem:[%s1118 + $0xb8] sm:$0xf] %v1109
          %1143 = vst [vmem:[%s1118 + $0xc4] sm:$0xf] %v1110
          %1144 = vst [vmem:[%s1118 + $0xc8] sm:$0xf] %v1111
          %1145 = vst [vmem:[%s1118 + $0xd4] sm:$0xf] %v1112
          %1146 = vst [vmem:[%s1118 + $0xd8] sm:$0xf] %v1113
          %1147 = vst [vmem:[%s1118 + $0xe4] sm:$0xf] %v1114
          %1148 = vst [vmem:[%s1118 + $0xe8] sm:$0xf] %v1115
          %1149 = vst [vmem:[%s1118 + $0xf4] sm:$0xf] %v1116
          %1150 = vst [vmem:[%s1118 + $0xf8] sm:$0xf] %v1117
        $region80: #{decoder_block_forward.1} parent=63 // pred_fallthru
          _
        %s1151 = sld [smem:[#allocation6 + %s460]]
        %s1152 = sld [smem:[#allocation9 + %s460]]
        %s1153 = sld [smem:[#allocation11 + %s460]]
        %s1154 = smul.u32 %s1151, 2
        %s1155 = smul.addr %s1154, 4
        %s1156 = scalar_lea.vmem [#allocation2], %s1155
        %v1157 = vld [vmem:[%s1156] sm:$0xf]
        %v1158 = vld [vmem:[%s1156 + $0x4] sm:$0xf]
        %v1159 = vunpack.c.l.bf16 %v1157
        %v1160 = vunpack.c.l.bf16 %v1158
        %v1161 = vstv %s1152
        %v1162 = vmul.f32 %v1161, %v1159
        %v1163 = vmul.f32 %v1161, %v1160
        %s1164 = sadd.s32 %s1151, 1
        %s1165 = smul.u32 %s1164, 2
        %s1166 = smul.addr %s1165, 4
        %s1167 = scalar_lea.vmem [#allocation2], %s1166
        %v1168 = vld [vmem:[%s1167] sm:$0xf]
        %v1169 = vld [vmem:[%s1167 + $0x4] sm:$0xf]
        %v1170 = vunpack.c.l.bf16 %v1168
        %v1171 = vunpack.c.l.bf16 %v1169
        %v1172 = vstv %s1153
        %v1173 = vmul.f32 %v1172, %v1170
        %v1174 = vmul.f32 %v1172, %v1171
        %v1175 = vadd.f32 %v1162, %v1173
        %v1176 = vadd.f32 %v1163, %v1174
        %v1177 = vpack.c.bf16 %v1176, %v1175
        %v1179 = vunpack.c.l.b16 %v1177
        %v1180 = vunpack.c.h.b16 %v1177
        %v1181 = vpack.c.b16 %v1179, %v1179
        %v1182 = vpack.c.b16 %v1180, %v1180
        %1185 = vst [vmem:[#allocation3 + $0x4] sm:$0xf] %v1181
        %1186 = vst [vmem:[#allocation3 + $0x8] sm:$0xf] %v1182
        %s1187 = sadd.s32 %s460, 1
        %s1188 = sld [smem:[#allocation6 + %s1187]]
        %s1189 = sld [smem:[#allocation9 + %s1187]]
        %s1190 = sld [smem:[#allocation11 + %s1187]]
        %s1191 = smul.u32 %s1188, 2
        %s1192 = smul.addr %s1191, 4
        %s1193 = scalar_lea.vmem [#allocation2], %s1192
        %v1194 = vld [vmem:[%s1193] sm:$0xf]
        %v1195 = vld [vmem:[%s1193 + $0x4] sm:$0xf]
        %v1196 = vunpack.c.l.bf16 %v1194
        %v1197 = vunpack.c.l.bf16 %v1195
        %v1198 = vstv %s1189
        %v1199 = vmul.f32 %v1198, %v1196
        %v1200 = vmul.f32 %v1198, %v1197
        %s1201 = sadd.s32 %s1188, 1
        %s1202 = smul.u32 %s1201, 2
        %s1203 = smul.addr %s1202, 4
        %s1204 = scalar_lea.vmem [#allocation2], %s1203
        %v1205 = vld [vmem:[%s1204] sm:$0xf]
        %v1206 = vld [vmem:[%s1204 + $0x4] sm:$0xf]
        %v1207 = vunpack.c.l.bf16 %v1205
        %v1208 = vunpack.c.l.bf16 %v1206
        %v1209 = vstv %s1190
        %v1210 = vmul.f32 %v1209, %v1207
        %v1211 = vmul.f32 %v1209, %v1208
        %v1212 = vadd.f32 %v1199, %v1210
        %v1213 = vadd.f32 %v1200, %v1211
        %v1214 = vpack.c.bf16 %v1213, %v1212
        %v1216 = vunpack.c.l.b16 %v1214
        %v1217 = vunpack.c.h.b16 %v1214
        %v1218 = vpack.c.b16 %v1216, %v1216
        %v1219 = vpack.c.b16 %v1217, %v1217
        %s1222 = scalar_lea.vmem [#allocation3], 16
        %1223 = vst [vmem:[%s1222 + $0x4] sm:$0xf] %v1218
        %1224 = vst [vmem:[%s1222 + $0x8] sm:$0xf] %v1219
        %s1225 = sadd.s32 %s460, 2
        %s1226 = sld [smem:[#allocation6 + %s1225]]
        %s1227 = sld [smem:[#allocation9 + %s1225]]
        %s1228 = sld [smem:[#allocation11 + %s1225]]
        %s1229 = smul.u32 %s1226, 2
        %s1230 = smul.addr %s1229, 4
        %s1231 = scalar_lea.vmem [#allocation2], %s1230
        %v1232 = vld [vmem:[%s1231] sm:$0xf]
        %v1233 = vld [vmem:[%s1231 + $0x4] sm:$0xf]
        %v1234 = vunpack.c.l.bf16 %v1232
        %v1235 = vunpack.c.l.bf16 %v1233
        %v1236 = vstv %s1227
        %v1237 = vmul.f32 %v1236, %v1234
        %v1238 = vmul.f32 %v1236, %v1235
        %s1239 = sadd.s32 %s1226, 1
        %s1240 = smul.u32 %s1239, 2
        %s1241 = smul.addr %s1240, 4
        %s1242 = scalar_lea.vmem [#allocation2], %s1241
        %v1243 = vld [vmem:[%s1242] sm:$0xf]
        %v1244 = vld [vmem:[%s1242 + $0x4] sm:$0xf]
        %v1245 = vunpack.c.l.bf16 %v1243
        %v1246 = vunpack.c.l.bf16 %v1244
        %v1247 = vstv %s1228
        %v1248 = vmul.f32 %v1247, %v1245
        %v1249 = vmul.f32 %v1247, %v1246
        %v1250 = vadd.f32 %v1237, %v1248
        %v1251 = vadd.f32 %v1238, %v1249
        %v1252 = vpack.c.bf16 %v1251, %v1250
        %v1254 = vunpack.c.l.b16 %v1252
        %v1255 = vunpack.c.h.b16 %v1252
        %v1256 = vpack.c.b16 %v1254, %v1254
        %v1257 = vpack.c.b16 %v1255, %v1255
        %s1260 = scalar_lea.vmem [#allocation3], 32
        %1261 = vst [vmem:[%s1260 + $0x4] sm:$0xf] %v1256
        %1262 = vst [vmem:[%s1260 + $0x8] sm:$0xf] %v1257
        %s1263 = sadd.s32 %s460, 3
        %s1264 = sld [smem:[#allocation6 + %s1263]]
        %s1265 = sld [smem:[#allocation9 + %s1263]]
        %s1266 = sld [smem:[#allocation11 + %s1263]]
        %s1267 = smul.u32 %s1264, 2
        %s1268 = smul.addr %s1267, 4
        %s1269 = scalar_lea.vmem [#allocation2], %s1268
        %v1270 = vld [vmem:[%s1269] sm:$0xf]
        %v1271 = vld [vmem:[%s1269 + $0x4] sm:$0xf]
        %v1272 = vunpack.c.l.bf16 %v1270
        %v1273 = vunpack.c.l.bf16 %v1271
        %v1274 = vstv %s1265
        %v1275 = vmul.f32 %v1274, %v1272
        %v1276 = vmul.f32 %v1274, %v1273
        %s1277 = sadd.s32 %s1264, 1
        %s1278 = smul.u32 %s1277, 2
        %s1279 = smul.addr %s1278, 4
        %s1280 = scalar_lea.vmem [#allocation2], %s1279
        %v1281 = vld [vmem:[%s1280] sm:$0xf]
        %v1282 = vld [vmem:[%s1280 + $0x4] sm:$0xf]
        %v1283 = vunpack.c.l.bf16 %v1281
        %v1284 = vunpack.c.l.bf16 %v1282
        %v1285 = vstv %s1266
        %v1286 = vmul.f32 %v1285, %v1283
        %v1287 = vmul.f32 %v1285, %v1284
        %v1288 = vadd.f32 %v1275, %v1286
        %v1289 = vadd.f32 %v1276, %v1287
        %v1290 = vpack.c.bf16 %v1289, %v1288
        %v1292 = vunpack.c.l.b16 %v1290
        %v1293 = vunpack.c.h.b16 %v1290
        %v1294 = vpack.c.b16 %v1292, %v1292
        %v1295 = vpack.c.b16 %v1293, %v1293
        %s1298 = scalar_lea.vmem [#allocation3], 48
        %1299 = vst [vmem:[%s1298 + $0x4] sm:$0xf] %v1294
        %1300 = vst [vmem:[%s1298 + $0x8] sm:$0xf] %v1295
        %s1301 = sadd.s32 %s460, 4
        %s1302 = sld [smem:[#allocation6 + %s1301]]
        %s1303 = sld [smem:[#allocation9 + %s1301]]
        %s1304 = sld [smem:[#allocation11 + %s1301]]
        %s1305 = smul.u32 %s1302, 2
        %s1306 = smul.addr %s1305, 4
        %s1307 = scalar_lea.vmem [#allocation2], %s1306
        %v1308 = vld [vmem:[%s1307] sm:$0xf]
        %v1309 = vld [vmem:[%s1307 + $0x4] sm:$0xf]
        %v1310 = vunpack.c.l.bf16 %v1308
        %v1311 = vunpack.c.l.bf16 %v1309
        %v1312 = vstv %s1303
        %v1313 = vmul.f32 %v1312, %v1310
        %v1314 = vmul.f32 %v1312, %v1311
        %s1315 = sadd.s32 %s1302, 1
        %s1316 = smul.u32 %s1315, 2
        %s1317 = smul.addr %s1316, 4
        %s1318 = scalar_lea.vmem [#allocation2], %s1317
        %v1319 = vld [vmem:[%s1318] sm:$0xf]
        %v1320 = vld [vmem:[%s1318 + $0x4] sm:$0xf]
        %v1321 = vunpack.c.l.bf16 %v1319
        %v1322 = vunpack.c.l.bf16 %v1320
        %v1323 = vstv %s1304
        %v1324 = vmul.f32 %v1323, %v1321
        %v1325 = vmul.f32 %v1323, %v1322
        %v1326 = vadd.f32 %v1313, %v1324
        %v1327 = vadd.f32 %v1314, %v1325
        %v1328 = vpack.c.bf16 %v1327, %v1326
        %v1330 = vunpack.c.l.b16 %v1328
        %v1331 = vunpack.c.h.b16 %v1328
        %v1332 = vpack.c.b16 %v1330, %v1330
        %v1333 = vpack.c.b16 %v1331, %v1331
        %s1336 = scalar_lea.vmem [#allocation3], 64
        %1337 = vst [vmem:[%s1336 + $0x4] sm:$0xf] %v1332
        %1338 = vst [vmem:[%s1336 + $0x8] sm:$0xf] %v1333
        %s1339 = sadd.s32 %s460, 5
        %s1340 = sld [smem:[#allocation6 + %s1339]]
        %s1341 = sld [smem:[#allocation9 + %s1339]]
        %s1342 = sld [smem:[#allocation11 + %s1339]]
        %s1343 = smul.u32 %s1340, 2
        %s1344 = smul.addr %s1343, 4
        %s1345 = scalar_lea.vmem [#allocation2], %s1344
        %v1346 = vld [vmem:[%s1345] sm:$0xf]
        %v1347 = vld [vmem:[%s1345 + $0x4] sm:$0xf]
        %v1348 = vunpack.c.l.bf16 %v1346
        %v1349 = vunpack.c.l.bf16 %v1347
        %v1350 = vstv %s1341
        %v1351 = vmul.f32 %v1350, %v1348
        %v1352 = vmul.f32 %v1350, %v1349
        %s1353 = sadd.s32 %s1340, 1
        %s1354 = smul.u32 %s1353, 2
        %s1355 = smul.addr %s1354, 4
        %s1356 = scalar_lea.vmem [#allocation2], %s1355
        %v1357 = vld [vmem:[%s1356] sm:$0xf]
        %v1358 = vld [vmem:[%s1356 + $0x4] sm:$0xf]
        %v1359 = vunpack.c.l.bf16 %v1357
        %v1360 = vunpack.c.l.bf16 %v1358
        %v1361 = vstv %s1342
        %v1362 = vmul.f32 %v1361, %v1359
        %v1363 = vmul.f32 %v1361, %v1360
        %v1364 = vadd.f32 %v1351, %v1362
        %v1365 = vadd.f32 %v1352, %v1363
        %v1366 = vpack.c.bf16 %v1365, %v1364
        %v1368 = vunpack.c.l.b16 %v1366
        %v1369 = vunpack.c.h.b16 %v1366
        %v1370 = vpack.c.b16 %v1368, %v1368
        %v1371 = vpack.c.b16 %v1369, %v1369
        %s1374 = scalar_lea.vmem [#allocation3], 80
        %1375 = vst [vmem:[%s1374 + $0x4] sm:$0xf] %v1370
        %1376 = vst [vmem:[%s1374 + $0x8] sm:$0xf] %v1371
        %s1377 = sadd.s32 %s460, 6
        %s1378 = sld [smem:[#allocation6 + %s1377]]
        %s1379 = sld [smem:[#allocation9 + %s1377]]
        %s1380 = sld [smem:[#allocation11 + %s1377]]
        %s1381 = smul.u32 %s1378, 2
        %s1382 = smul.addr %s1381, 4
        %s1383 = scalar_lea.vmem [#allocation2], %s1382
        %v1384 = vld [vmem:[%s1383] sm:$0xf]
        %v1385 = vld [vmem:[%s1383 + $0x4] sm:$0xf]
        %v1386 = vunpack.c.l.bf16 %v1384
        %v1387 = vunpack.c.l.bf16 %v1385
        %v1388 = vstv %s1379
        %v1389 = vmul.f32 %v1388, %v1386
        %v1390 = vmul.f32 %v1388, %v1387
        %s1391 = sadd.s32 %s1378, 1
        %s1392 = smul.u32 %s1391, 2
        %s1393 = smul.addr %s1392, 4
        %s1394 = scalar_lea.vmem [#allocation2], %s1393
        %v1395 = vld [vmem:[%s1394] sm:$0xf]
        %v1396 = vld [vmem:[%s1394 + $0x4] sm:$0xf]
        %v1397 = vunpack.c.l.bf16 %v1395
        %v1398 = vunpack.c.l.bf16 %v1396
        %v1399 = vstv %s1380
        %v1400 = vmul.f32 %v1399, %v1397
        %v1401 = vmul.f32 %v1399, %v1398
        %v1402 = vadd.f32 %v1389, %v1400
        %v1403 = vadd.f32 %v1390, %v1401
        %v1404 = vpack.c.bf16 %v1403, %v1402
        %v1406 = vunpack.c.l.b16 %v1404
        %v1407 = vunpack.c.h.b16 %v1404
        %v1408 = vpack.c.b16 %v1406, %v1406
        %v1409 = vpack.c.b16 %v1407, %v1407
        %s1412 = scalar_lea.vmem [#allocation3], 96
        %1413 = vst [vmem:[%s1412 + $0x4] sm:$0xf] %v1408
        %1414 = vst [vmem:[%s1412 + $0x8] sm:$0xf] %v1409
        %s1415 = sadd.s32 %s460, 7
        %s1416 = sld [smem:[#allocation6 + %s1415]]
        %s1417 = sld [smem:[#allocation9 + %s1415]]
        %s1418 = sld [smem:[#allocation11 + %s1415]]
        %s1419 = smul.u32 %s1416, 2
        %s1420 = smul.addr %s1419, 4
        %s1421 = scalar_lea.vmem [#allocation2], %s1420
        %v1422 = vld [vmem:[%s1421] sm:$0xf]
        %v1423 = vld [vmem:[%s1421 + $0x4] sm:$0xf]
        %v1424 = vunpack.c.l.bf16 %v1422
        %v1425 = vunpack.c.l.bf16 %v1423
        %v1426 = vstv %s1417
        %v1427 = vmul.f32 %v1426, %v1424
        %v1428 = vmul.f32 %v1426, %v1425
        %s1429 = sadd.s32 %s1416, 1
        %s1430 = smul.u32 %s1429, 2
        %s1431 = smul.addr %s1430, 4
        %s1432 = scalar_lea.vmem [#allocation2], %s1431
        %v1433 = vld [vmem:[%s1432] sm:$0xf]
        %v1434 = vld [vmem:[%s1432 + $0x4] sm:$0xf]
        %v1435 = vunpack.c.l.bf16 %v1433
        %v1436 = vunpack.c.l.bf16 %v1434
        %v1437 = vstv %s1418
        %v1438 = vmul.f32 %v1437, %v1435
        %v1439 = vmul.f32 %v1437, %v1436
        %v1440 = vadd.f32 %v1427, %v1438
        %v1441 = vadd.f32 %v1428, %v1439
        %v1442 = vpack.c.bf16 %v1441, %v1440
        %v1444 = vunpack.c.l.b16 %v1442
        %v1445 = vunpack.c.h.b16 %v1442
        %v1446 = vpack.c.b16 %v1444, %v1444
        %v1447 = vpack.c.b16 %v1445, %v1445
        %s1450 = scalar_lea.vmem [#allocation3], 112
        %1451 = vst [vmem:[%s1450 + $0x4] sm:$0xf] %v1446
        %1452 = vst [vmem:[%s1450 + $0x8] sm:$0xf] %v1447
        %v1453 = vld [vmem:[#allocation3] sm:$0x8]
        %v1454 = vld [vmem:[#allocation3 + $0x4] sm:$0xf]
        %v1455 = vld [vmem:[#allocation3 + $0x8] sm:$0xf]
        %v1456 = vld [vmem:[#allocation3 + $0x10] sm:$0x8]
        %v1457 = vld [vmem:[#allocation3 + $0x14] sm:$0xf]
        %v1458 = vld [vmem:[#allocation3 + $0x18] sm:$0xf]
        %v1459 = vld [vmem:[#allocation3 + $0x20] sm:$0x8]
        %v1460 = vld [vmem:[#allocation3 + $0x24] sm:$0xf]
        %v1461 = vld [vmem:[#allocation3 + $0x28] sm:$0xf]
        %v1462 = vld [vmem:[#allocation3 + $0x30] sm:$0x8]
        %v1463 = vld [vmem:[#allocation3 + $0x34] sm:$0xf]
        %v1464 = vld [vmem:[#allocation3 + $0x38] sm:$0xf]
        %v1465 = vld [vmem:[#allocation3 + $0x40] sm:$0x8]
        %v1466 = vld [vmem:[#allocation3 + $0x44] sm:$0xf]
        %v1467 = vld [vmem:[#allocation3 + $0x48] sm:$0xf]
        %v1468 = vld [vmem:[#allocation3 + $0x50] sm:$0x8]
        %v1469 = vld [vmem:[#allocation3 + $0x54] sm:$0xf]
        %v1470 = vld [vmem:[#allocation3 + $0x58] sm:$0xf]
        %vm1471 = vsmask.f32 256
        %vm1472 = vsmask.f32 4368
        %vm1473 = vmor %vm1471, %vm1472
        %v1475 = vshrl.u32 %v1453, 16
        %v1477 = vrot.slane %v1475, 7
        %v1478 = vrot.slane %v1477, 4
        %v1480 = vshrl.u32 %v1454, 16
        %v1482 = vrot.slane %v1480, 7
        %v1483 = vshll.u32 %v1454, 16
        %v1485 = vor.u32 %v1482, %v1483
        %v1486 = vsel %vm1473, %v1478, %v1485
        %v1487 = vrot.slane %v1482, 4
        %v1489 = vshrl.u32 %v1455, 16
        %v1491 = vrot.slane %v1489, 7
        %v1492 = vshll.u32 %v1455, 16
        %v1494 = vor.u32 %v1491, %v1492
        %v1495 = vsel %vm1473, %v1487, %v1494
        %v1497 = vshrl.u32 %v1456, 16
        %v1499 = vrot.slane %v1497, 7
        %v1500 = vrot.slane %v1499, 4
        %v1502 = vshrl.u32 %v1457, 16
        %v1504 = vrot.slane %v1502, 7
        %v1505 = vshll.u32 %v1457, 16
        %v1507 = vor.u32 %v1504, %v1505
        %v1508 = vsel %vm1473, %v1500, %v1507
        %v1509 = vrot.slane %v1504, 4
        %v1511 = vshrl.u32 %v1458, 16
        %v1513 = vrot.slane %v1511, 7
        %v1514 = vshll.u32 %v1458, 16
        %v1516 = vor.u32 %v1513, %v1514
        %v1517 = vsel %vm1473, %v1509, %v1516
        %v1519 = vshrl.u32 %v1459, 16
        %v1521 = vrot.slane %v1519, 7
        %v1522 = vrot.slane %v1521, 4
        %v1524 = vshrl.u32 %v1460, 16
        %v1526 = vrot.slane %v1524, 7
        %v1527 = vshll.u32 %v1460, 16
        %v1529 = vor.u32 %v1526, %v1527
        %v1530 = vsel %vm1473, %v1522, %v1529
        %v1531 = vrot.slane %v1526, 4
        %v1533 = vshrl.u32 %v1461, 16
        %v1535 = vrot.slane %v1533, 7
        %v1536 = vshll.u32 %v1461, 16
        %v1538 = vor.u32 %v1535, %v1536
        %v1539 = vsel %vm1473, %v1531, %v1538
        %v1541 = vshrl.u32 %v1462, 16
        %v1543 = vrot.slane %v1541, 7
        %v1544 = vrot.slane %v1543, 4
        %v1546 = vshrl.u32 %v1463, 16
        %v1548 = vrot.slane %v1546, 7
        %v1549 = vshll.u32 %v1463, 16
        %v1551 = vor.u32 %v1548, %v1549
        %v1552 = vsel %vm1473, %v1544, %v1551
        %v1553 = vrot.slane %v1548, 4
        %v1555 = vshrl.u32 %v1464, 16
        %v1557 = vrot.slane %v1555, 7
        %v1558 = vshll.u32 %v1464, 16
        %v1560 = vor.u32 %v1557, %v1558
        %v1561 = vsel %vm1473, %v1553, %v1560
        %v1563 = vshrl.u32 %v1465, 16
        %v1565 = vrot.slane %v1563, 7
        %v1566 = vrot.slane %v1565, 4
        %v1568 = vshrl.u32 %v1466, 16
        %v1570 = vrot.slane %v1568, 7
        %v1571 = vshll.u32 %v1466, 16
        %v1573 = vor.u32 %v1570, %v1571
        %v1574 = vsel %vm1473, %v1566, %v1573
        %v1575 = vrot.slane %v1570, 4
        %v1577 = vshrl.u32 %v1467, 16
        %v1579 = vrot.slane %v1577, 7
        %v1580 = vshll.u32 %v1467, 16
        %v1582 = vor.u32 %v1579, %v1580
        %v1583 = vsel %vm1473, %v1575, %v1582
        %v1585 = vshrl.u32 %v1468, 16
        %v1587 = vrot.slane %v1585, 7
        %v1588 = vrot.slane %v1587, 4
        %v1590 = vshrl.u32 %v1469, 16
        %v1592 = vrot.slane %v1590, 7
        %v1593 = vshll.u32 %v1469, 16
        %v1595 = vor.u32 %v1592, %v1593
        %v1596 = vsel %vm1473, %v1588, %v1595
        %v1597 = vrot.slane %v1592, 4
        %v1599 = vshrl.u32 %v1470, 16
        %v1601 = vrot.slane %v1599, 7
        %v1602 = vshll.u32 %v1470, 16
        %v1604 = vor.u32 %v1601, %v1602
        %v1605 = vsel %vm1473, %v1597, %v1604
        %v1606 = vld [vmem:[#allocation3 + $0xc] sm:$0x1]
        %v1607 = vld [vmem:[#allocation3 + $0x1c] sm:$0x1]
        %v1608 = vld [vmem:[#allocation3 + $0x2c] sm:$0x1]
        %v1609 = vld [vmem:[#allocation3 + $0x3c] sm:$0x1]
        %v1610 = vld [vmem:[#allocation3 + $0x4c] sm:$0x1]
        %v1611 = vld [vmem:[#allocation3 + $0x5c] sm:$0x1]
        %vm1612 = vsmask.f32 3328
        %vm1613 = vsmask.f32 7440
        %vm1614 = vmor %vm1612, %vm1613
        %v1615 = vrot.slane %v1480, 4
        %v1616 = vrot.slane %v1483, 5
        %v1617 = vor.u32 %v1615, %v1616
        %v1618 = vrot.slane %v1617, 4
        %v1619 = vrot.slane %v1492, 5
        %v1620 = vsel %vm1614, %v1618, %v1619
        %v1621 = vrot.slane %v1489, 4
        %v1622 = vor.u32 %v1621, %v1619
        %v1623 = vrot.slane %v1622, 4
        %v1625 = vshll.u32 %v1606, 16
        %v1627 = vrot.slane %v1625, 5
        %v1628 = vsel %vm1614, %v1623, %v1627
        %v1629 = vrot.slane %v1502, 4
        %v1630 = vrot.slane %v1505, 5
        %v1631 = vor.u32 %v1629, %v1630
        %v1632 = vrot.slane %v1631, 4
        %v1633 = vrot.slane %v1514, 5
        %v1634 = vsel %vm1614, %v1632, %v1633
        %v1635 = vrot.slane %v1511, 4
        %v1636 = vor.u32 %v1635, %v1633
        %v1637 = vrot.slane %v1636, 4
        %v1639 = vshll.u32 %v1607, 16
        %v1641 = vrot.slane %v1639, 5
        %v1642 = vsel %vm1614, %v1637, %v1641
        %v1643 = vrot.slane %v1524, 4
        %v1644 = vrot.slane %v1527, 5
        %v1645 = vor.u32 %v1643, %v1644
        %v1646 = vrot.slane %v1645, 4
        %v1647 = vrot.slane %v1536, 5
        %v1648 = vsel %vm1614, %v1646, %v1647
        %v1649 = vrot.slane %v1533, 4
        %v1650 = vor.u32 %v1649, %v1647
        %v1651 = vrot.slane %v1650, 4
        %v1653 = vshll.u32 %v1608, 16
        %v1655 = vrot.slane %v1653, 5
        %v1656 = vsel %vm1614, %v1651, %v1655
        %v1657 = vrot.slane %v1546, 4
        %v1658 = vrot.slane %v1549, 5
        %v1659 = vor.u32 %v1657, %v1658
        %v1660 = vrot.slane %v1659, 4
        %v1661 = vrot.slane %v1558, 5
        %v1662 = vsel %vm1614, %v1660, %v1661
        %v1663 = vrot.slane %v1555, 4
        %v1664 = vor.u32 %v1663, %v1661
        %v1665 = vrot.slane %v1664, 4
        %v1667 = vshll.u32 %v1609, 16
        %v1669 = vrot.slane %v1667, 5
        %v1670 = vsel %vm1614, %v1665, %v1669
        %v1671 = vrot.slane %v1568, 4
        %v1672 = vrot.slane %v1571, 5
        %v1673 = vor.u32 %v1671, %v1672
        %v1674 = vrot.slane %v1673, 4
        %v1675 = vrot.slane %v1580, 5
        %v1676 = vsel %vm1614, %v1674, %v1675
        %v1677 = vrot.slane %v1577, 4
        %v1678 = vor.u32 %v1677, %v1675
        %v1679 = vrot.slane %v1678, 4
        %v1681 = vshll.u32 %v1610, 16
        %v1683 = vrot.slane %v1681, 5
        %v1684 = vsel %vm1614, %v1679, %v1683
        %v1685 = vrot.slane %v1590, 4
        %v1686 = vrot.slane %v1593, 5
        %v1687 = vor.u32 %v1685, %v1686
        %v1688 = vrot.slane %v1687, 4
        %v1689 = vrot.slane %v1602, 5
        %v1690 = vsel %vm1614, %v1688, %v1689
        %v1691 = vrot.slane %v1599, 4
        %v1692 = vor.u32 %v1691, %v1689
        %v1693 = vrot.slane %v1692, 4
        %v1695 = vshll.u32 %v1611, 16
        %v1697 = vrot.slane %v1695, 5
        %v1698 = vsel %vm1614, %v1693, %v1697
        %v1699 = vld [vmem:[%s1222] sm:$0x8]
        %v1700 = vld [vmem:[%s1222 + $0x4] sm:$0xf]
        %v1701 = vld [vmem:[%s1222 + $0x8] sm:$0xf]
        %v1702 = vld [vmem:[%s1222 + $0x10] sm:$0x8]
        %v1703 = vld [vmem:[%s1222 + $0x14] sm:$0xf]
        %v1704 = vld [vmem:[%s1222 + $0x18] sm:$0xf]
        %v1705 = vld [vmem:[%s1222 + $0x20] sm:$0x8]
        %v1706 = vld [vmem:[%s1222 + $0x24] sm:$0xf]
        %v1707 = vld [vmem:[%s1222 + $0x28] sm:$0xf]
        %v1708 = vld [vmem:[%s1222 + $0x30] sm:$0x8]
        %v1709 = vld [vmem:[%s1222 + $0x34] sm:$0xf]
        %v1710 = vld [vmem:[%s1222 + $0x38] sm:$0xf]
        %v1711 = vld [vmem:[%s1222 + $0x40] sm:$0x8]
        %v1712 = vld [vmem:[%s1222 + $0x44] sm:$0xf]
        %v1713 = vld [vmem:[%s1222 + $0x48] sm:$0xf]
        %v1714 = vld [vmem:[%s1222 + $0x50] sm:$0x8]
        %v1715 = vld [vmem:[%s1222 + $0x54] sm:$0xf]
        %v1716 = vld [vmem:[%s1222 + $0x58] sm:$0xf]
        %v1718 = vshrl.u32 %v1699, 16
        %v1720 = vrot.slane %v1718, 7
        %v1721 = vrot.slane %v1720, 4
        %v1723 = vshrl.u32 %v1700, 16
        %v1725 = vrot.slane %v1723, 7
        %v1726 = vshll.u32 %v1700, 16
        %v1728 = vor.u32 %v1725, %v1726
        %v1729 = vsel %vm1473, %v1721, %v1728
        %v1730 = vrot.slane %v1725, 4
        %v1732 = vshrl.u32 %v1701, 16
        %v1734 = vrot.slane %v1732, 7
        %v1735 = vshll.u32 %v1701, 16
        %v1737 = vor.u32 %v1734, %v1735
        %v1738 = vsel %vm1473, %v1730, %v1737
        %v1740 = vshrl.u32 %v1702, 16
        %v1742 = vrot.slane %v1740, 7
        %v1743 = vrot.slane %v1742, 4
        %v1745 = vshrl.u32 %v1703, 16
        %v1747 = vrot.slane %v1745, 7
        %v1748 = vshll.u32 %v1703, 16
        %v1750 = vor.u32 %v1747, %v1748
        %v1751 = vsel %vm1473, %v1743, %v1750
        %v1752 = vrot.slane %v1747, 4
        %v1754 = vshrl.u32 %v1704, 16
        %v1756 = vrot.slane %v1754, 7
        %v1757 = vshll.u32 %v1704, 16
        %v1759 = vor.u32 %v1756, %v1757
        %v1760 = vsel %vm1473, %v1752, %v1759
        %v1762 = vshrl.u32 %v1705, 16
        %v1764 = vrot.slane %v1762, 7
        %v1765 = vrot.slane %v1764, 4
        %v1767 = vshrl.u32 %v1706, 16
        %v1769 = vrot.slane %v1767, 7
        %v1770 = vshll.u32 %v1706, 16
        %v1772 = vor.u32 %v1769, %v1770
        %v1773 = vsel %vm1473, %v1765, %v1772
        %v1774 = vrot.slane %v1769, 4
        %v1776 = vshrl.u32 %v1707, 16
        %v1778 = vrot.slane %v1776, 7
        %v1779 = vshll.u32 %v1707, 16
        %v1781 = vor.u32 %v1778, %v1779
        %v1782 = vsel %vm1473, %v1774, %v1781
        %v1784 = vshrl.u32 %v1708, 16
        %v1786 = vrot.slane %v1784, 7
        %v1787 = vrot.slane %v1786, 4
        %v1789 = vshrl.u32 %v1709, 16
        %v1791 = vrot.slane %v1789, 7
        %v1792 = vshll.u32 %v1709, 16
        %v1794 = vor.u32 %v1791, %v1792
        %v1795 = vsel %vm1473, %v1787, %v1794
        %v1796 = vrot.slane %v1791, 4
        %v1798 = vshrl.u32 %v1710, 16
        %v1800 = vrot.slane %v1798, 7
        %v1801 = vshll.u32 %v1710, 16
        %v1803 = vor.u32 %v1800, %v1801
        %v1804 = vsel %vm1473, %v1796, %v1803
        %v1806 = vshrl.u32 %v1711, 16
        %v1808 = vrot.slane %v1806, 7
        %v1809 = vrot.slane %v1808, 4
        %v1811 = vshrl.u32 %v1712, 16
        %v1813 = vrot.slane %v1811, 7
        %v1814 = vshll.u32 %v1712, 16
        %v1816 = vor.u32 %v1813, %v1814
        %v1817 = vsel %vm1473, %v1809, %v1816
        %v1818 = vrot.slane %v1813, 4
        %v1820 = vshrl.u32 %v1713, 16
        %v1822 = vrot.slane %v1820, 7
        %v1823 = vshll.u32 %v1713, 16
        %v1825 = vor.u32 %v1822, %v1823
        %v1826 = vsel %vm1473, %v1818, %v1825
        %v1828 = vshrl.u32 %v1714, 16
        %v1830 = vrot.slane %v1828, 7
        %v1831 = vrot.slane %v1830, 4
        %v1833 = vshrl.u32 %v1715, 16
        %v1835 = vrot.slane %v1833, 7
        %v1836 = vshll.u32 %v1715, 16
        %v1838 = vor.u32 %v1835, %v1836
        %v1839 = vsel %vm1473, %v1831, %v1838
        %v1840 = vrot.slane %v1835, 4
        %v1842 = vshrl.u32 %v1716, 16
        %v1844 = vrot.slane %v1842, 7
        %v1845 = vshll.u32 %v1716, 16
        %v1847 = vor.u32 %v1844, %v1845
        %v1848 = vsel %vm1473, %v1840, %v1847
        %v1849 = vld [vmem:[%s1222 + $0xc] sm:$0x1]
        %v1850 = vld [vmem:[%s1222 + $0x1c] sm:$0x1]
        %v1851 = vld [vmem:[%s1222 + $0x2c] sm:$0x1]
        %v1852 = vld [vmem:[%s1222 + $0x3c] sm:$0x1]
        %v1853 = vld [vmem:[%s1222 + $0x4c] sm:$0x1]
        %v1854 = vld [vmem:[%s1222 + $0x5c] sm:$0x1]
        %v1855 = vrot.slane %v1723, 4
        %v1856 = vrot.slane %v1726, 5
        %v1857 = vor.u32 %v1855, %v1856
        %v1858 = vrot.slane %v1857, 4
        %v1859 = vrot.slane %v1735, 5
        %v1860 = vsel %vm1614, %v1858, %v1859
        %v1861 = vrot.slane %v1732, 4
        %v1862 = vor.u32 %v1861, %v1859
        %v1863 = vrot.slane %v1862, 4
        %v1865 = vshll.u32 %v1849, 16
        %v1867 = vrot.slane %v1865, 5
        %v1868 = vsel %vm1614, %v1863, %v1867
        %v1869 = vrot.slane %v1745, 4
        %v1870 = vrot.slane %v1748, 5
        %v1871 = vor.u32 %v1869, %v1870
        %v1872 = vrot.slane %v1871, 4
        %v1873 = vrot.slane %v1757, 5
        %v1874 = vsel %vm1614, %v1872, %v1873
        %v1875 = vrot.slane %v1754, 4
        %v1876 = vor.u32 %v1875, %v1873
        %v1877 = vrot.slane %v1876, 4
        %v1879 = vshll.u32 %v1850, 16
        %v1881 = vrot.slane %v1879, 5
        %v1882 = vsel %vm1614, %v1877, %v1881
        %v1883 = vrot.slane %v1767, 4
        %v1884 = vrot.slane %v1770, 5
        %v1885 = vor.u32 %v1883, %v1884
        %v1886 = vrot.slane %v1885, 4
        %v1887 = vrot.slane %v1779, 5
        %v1888 = vsel %vm1614, %v1886, %v1887
        %v1889 = vrot.slane %v1776, 4
        %v1890 = vor.u32 %v1889, %v1887
        %v1891 = vrot.slane %v1890, 4
        %v1893 = vshll.u32 %v1851, 16
        %v1895 = vrot.slane %v1893, 5
        %v1896 = vsel %vm1614, %v1891, %v1895
        %v1897 = vrot.slane %v1789, 4
        %v1898 = vrot.slane %v1792, 5
        %v1899 = vor.u32 %v1897, %v1898
        %v1900 = vrot.slane %v1899, 4
        %v1901 = vrot.slane %v1801, 5
        %v1902 = vsel %vm1614, %v1900, %v1901
        %v1903 = vrot.slane %v1798, 4
        %v1904 = vor.u32 %v1903, %v1901
        %v1905 = vrot.slane %v1904, 4
        %v1907 = vshll.u32 %v1852, 16
        %v1909 = vrot.slane %v1907, 5
        %v1910 = vsel %vm1614, %v1905, %v1909
        %v1911 = vrot.slane %v1811, 4
        %v1912 = vrot.slane %v1814, 5
        %v1913 = vor.u32 %v1911, %v1912
        %v1914 = vrot.slane %v1913, 4
        %v1915 = vrot.slane %v1823, 5
        %v1916 = vsel %vm1614, %v1914, %v1915
        %v1917 = vrot.slane %v1820, 4
        %v1918 = vor.u32 %v1917, %v1915
        %v1919 = vrot.slane %v1918, 4
        %v1921 = vshll.u32 %v1853, 16
        %v1923 = vrot.slane %v1921, 5
        %v1924 = vsel %vm1614, %v1919, %v1923
        %v1925 = vrot.slane %v1833, 4
        %v1926 = vrot.slane %v1836, 5
        %v1927 = vor.u32 %v1925, %v1926
        %v1928 = vrot.slane %v1927, 4
        %v1929 = vrot.slane %v1845, 5
        %v1930 = vsel %vm1614, %v1928, %v1929
        %v1931 = vrot.slane %v1842, 4
        %v1932 = vor.u32 %v1931, %v1929
        %v1933 = vrot.slane %v1932, 4
        %v1935 = vshll.u32 %v1854, 16
        %v1937 = vrot.slane %v1935, 5
        %v1938 = vsel %vm1614, %v1933, %v1937
        %v1939 = vld [vmem:[%s1260] sm:$0x8]
        %v1940 = vld [vmem:[%s1260 + $0x4] sm:$0xf]
        %v1941 = vld [vmem:[%s1260 + $0x8] sm:$0xf]
        %v1942 = vld [vmem:[%s1260 + $0x10] sm:$0x8]
        %v1943 = vld [vmem:[%s1260 + $0x14] sm:$0xf]
        %v1944 = vld [vmem:[%s1260 + $0x18] sm:$0xf]
        %v1945 = vld [vmem:[%s1260 + $0x20] sm:$0x8]
        %v1946 = vld [vmem:[%s1260 + $0x24] sm:$0xf]
        %v1947 = vld [vmem:[%s1260 + $0x28] sm:$0xf]
        %v1948 = vld [vmem:[%s1260 + $0x30] sm:$0x8]
        %v1949 = vld [vmem:[%s1260 + $0x34] sm:$0xf]
        %v1950 = vld [vmem:[%s1260 + $0x38] sm:$0xf]
        %v1951 = vld [vmem:[%s1260 + $0x40] sm:$0x8]
        %v1952 = vld [vmem:[%s1260 + $0x44] sm:$0xf]
        %v1953 = vld [vmem:[%s1260 + $0x48] sm:$0xf]
        %v1954 = vld [vmem:[%s1260 + $0x50] sm:$0x8]
        %v1955 = vld [vmem:[%s1260 + $0x54] sm:$0xf]
        %v1956 = vld [vmem:[%s1260 + $0x58] sm:$0xf]
        %v1958 = vshrl.u32 %v1939, 16
        %v1960 = vrot.slane %v1958, 7
        %v1961 = vrot.slane %v1960, 4
        %v1963 = vshrl.u32 %v1940, 16
        %v1965 = vrot.slane %v1963, 7
        %v1966 = vshll.u32 %v1940, 16
        %v1968 = vor.u32 %v1965, %v1966
        %v1969 = vsel %vm1473, %v1961, %v1968
        %v1970 = vrot.slane %v1965, 4
        %v1972 = vshrl.u32 %v1941, 16
        %v1974 = vrot.slane %v1972, 7
        %v1975 = vshll.u32 %v1941, 16
        %v1977 = vor.u32 %v1974, %v1975
        %v1978 = vsel %vm1473, %v1970, %v1977
        %v1980 = vshrl.u32 %v1942, 16
        %v1982 = vrot.slane %v1980, 7
        %v1983 = vrot.slane %v1982, 4
        %v1985 = vshrl.u32 %v1943, 16
        %v1987 = vrot.slane %v1985, 7
        %v1988 = vshll.u32 %v1943, 16
        %v1990 = vor.u32 %v1987, %v1988
        %v1991 = vsel %vm1473, %v1983, %v1990
        %v1992 = vrot.slane %v1987, 4
        %v1994 = vshrl.u32 %v1944, 16
        %v1996 = vrot.slane %v1994, 7
        %v1997 = vshll.u32 %v1944, 16
        %v1999 = vor.u32 %v1996, %v1997
        %v2000 = vsel %vm1473, %v1992, %v1999
        %v2002 = vshrl.u32 %v1945, 16
        %v2004 = vrot.slane %v2002, 7
        %v2005 = vrot.slane %v2004, 4
        %v2007 = vshrl.u32 %v1946, 16
        %v2009 = vrot.slane %v2007, 7
        %v2010 = vshll.u32 %v1946, 16
        %v2012 = vor.u32 %v2009, %v2010
        %v2013 = vsel %vm1473, %v2005, %v2012
        %v2014 = vrot.slane %v2009, 4
        %v2016 = vshrl.u32 %v1947, 16
        %v2018 = vrot.slane %v2016, 7
        %v2019 = vshll.u32 %v1947, 16
        %v2021 = vor.u32 %v2018, %v2019
        %v2022 = vsel %vm1473, %v2014, %v2021
        %v2024 = vshrl.u32 %v1948, 16
        %v2026 = vrot.slane %v2024, 7
        %v2027 = vrot.slane %v2026, 4
        %v2029 = vshrl.u32 %v1949, 16
        %v2031 = vrot.slane %v2029, 7
        %v2032 = vshll.u32 %v1949, 16
        %v2034 = vor.u32 %v2031, %v2032
        %v2035 = vsel %vm1473, %v2027, %v2034
        %v2036 = vrot.slane %v2031, 4
        %v2038 = vshrl.u32 %v1950, 16
        %v2040 = vrot.slane %v2038, 7
        %v2041 = vshll.u32 %v1950, 16
        %v2043 = vor.u32 %v2040, %v2041
        %v2044 = vsel %vm1473, %v2036, %v2043
        %v2046 = vshrl.u32 %v1951, 16
        %v2048 = vrot.slane %v2046, 7
        %v2049 = vrot.slane %v2048, 4
        %v2051 = vshrl.u32 %v1952, 16
        %v2053 = vrot.slane %v2051, 7
        %v2054 = vshll.u32 %v1952, 16
        %v2056 = vor.u32 %v2053, %v2054
        %v2057 = vsel %vm1473, %v2049, %v2056
        %v2058 = vrot.slane %v2053, 4
        %v2060 = vshrl.u32 %v1953, 16
        %v2062 = vrot.slane %v2060, 7
        %v2063 = vshll.u32 %v1953, 16
        %v2065 = vor.u32 %v2062, %v2063
        %v2066 = vsel %vm1473, %v2058, %v2065
        %v2068 = vshrl.u32 %v1954, 16
        %v2070 = vrot.slane %v2068, 7
        %v2071 = vrot.slane %v2070, 4
        %v2073 = vshrl.u32 %v1955, 16
        %v2075 = vrot.slane %v2073, 7
        %v2076 = vshll.u32 %v1955, 16
        %v2078 = vor.u32 %v2075, %v2076
        %v2079 = vsel %vm1473, %v2071, %v2078
        %v2080 = vrot.slane %v2075, 4
        %v2082 = vshrl.u32 %v1956, 16
        %v2084 = vrot.slane %v2082, 7
        %v2085 = vshll.u32 %v1956, 16
        %v2087 = vor.u32 %v2084, %v2085
        %v2088 = vsel %vm1473, %v2080, %v2087
        %v2089 = vld [vmem:[%s1260 + $0xc] sm:$0x1]
        %v2090 = vld [vmem:[%s1260 + $0x1c] sm:$0x1]
        %v2091 = vld [vmem:[%s1260 + $0x2c] sm:$0x1]
        %v2092 = vld [vmem:[%s1260 + $0x3c] sm:$0x1]
        %v2093 = vld [vmem:[%s1260 + $0x4c] sm:$0x1]
        %v2094 = vld [vmem:[%s1260 + $0x5c] sm:$0x1]
        %v2095 = vrot.slane %v1963, 4
        %v2096 = vrot.slane %v1966, 5
        %v2097 = vor.u32 %v2095, %v2096
        %v2098 = vrot.slane %v2097, 4
        %v2099 = vrot.slane %v1975, 5
        %v2100 = vsel %vm1614, %v2098, %v2099
        %v2101 = vrot.slane %v1972, 4
        %v2102 = vor.u32 %v2101, %v2099
        %v2103 = vrot.slane %v2102, 4
        %v2105 = vshll.u32 %v2089, 16
        %v2107 = vrot.slane %v2105, 5
        %v2108 = vsel %vm1614, %v2103, %v2107
        %v2109 = vrot.slane %v1985, 4
        %v2110 = vrot.slane %v1988, 5
        %v2111 = vor.u32 %v2109, %v2110
        %v2112 = vrot.slane %v2111, 4
        %v2113 = vrot.slane %v1997, 5
        %v2114 = vsel %vm1614, %v2112, %v2113
        %v2115 = vrot.slane %v1994, 4
        %v2116 = vor.u32 %v2115, %v2113
        %v2117 = vrot.slane %v2116, 4
        %v2119 = vshll.u32 %v2090, 16
        %v2121 = vrot.slane %v2119, 5
        %v2122 = vsel %vm1614, %v2117, %v2121
        %v2123 = vrot.slane %v2007, 4
        %v2124 = vrot.slane %v2010, 5
        %v2125 = vor.u32 %v2123, %v2124
        %v2126 = vrot.slane %v2125, 4
        %v2127 = vrot.slane %v2019, 5
        %v2128 = vsel %vm1614, %v2126, %v2127
        %v2129 = vrot.slane %v2016, 4
        %v2130 = vor.u32 %v2129, %v2127
        %v2131 = vrot.slane %v2130, 4
        %v2133 = vshll.u32 %v2091, 16
        %v2135 = vrot.slane %v2133, 5
        %v2136 = vsel %vm1614, %v2131, %v2135
        %v2137 = vrot.slane %v2029, 4
        %v2138 = vrot.slane %v2032, 5
        %v2139 = vor.u32 %v2137, %v2138
        %v2140 = vrot.slane %v2139, 4
        %v2141 = vrot.slane %v2041, 5
        %v2142 = vsel %vm1614, %v2140, %v2141
        %v2143 = vrot.slane %v2038, 4
        %v2144 = vor.u32 %v2143, %v2141
        %v2145 = vrot.slane %v2144, 4
        %v2147 = vshll.u32 %v2092, 16
        %v2149 = vrot.slane %v2147, 5
        %v2150 = vsel %vm1614, %v2145, %v2149
        %v2151 = vrot.slane %v2051, 4
        %v2152 = vrot.slane %v2054, 5
        %v2153 = vor.u32 %v2151, %v2152
        %v2154 = vrot.slane %v2153, 4
        %v2155 = vrot.slane %v2063, 5
        %v2156 = vsel %vm1614, %v2154, %v2155
        %v2157 = vrot.slane %v2060, 4
        %v2158 = vor.u32 %v2157, %v2155
        %v2159 = vrot.slane %v2158, 4
        %v2161 = vshll.u32 %v2093, 16
        %v2163 = vrot.slane %v2161, 5
        %v2164 = vsel %vm1614, %v2159, %v2163
        %v2165 = vrot.slane %v2073, 4
        %v2166 = vrot.slane %v2076, 5
        %v2167 = vor.u32 %v2165, %v2166
        %v2168 = vrot.slane %v2167, 4
        %v2169 = vrot.slane %v2085, 5
        %v2170 = vsel %vm1614, %v2168, %v2169
        %v2171 = vrot.slane %v2082, 4
        %v2172 = vor.u32 %v2171, %v2169
        %v2173 = vrot.slane %v2172, 4
        %v2175 = vshll.u32 %v2094, 16
        %v2177 = vrot.slane %v2175, 5
        %v2178 = vsel %vm1614, %v2173, %v2177
        %v2179 = vunpack.c.l.b16 %v1486
        %v2180 = vunpack.c.l.b16 %v1495
        %v2181 = vunpack.c.l.b16 %v1508
        %v2182 = vunpack.c.l.b16 %v1517
        %v2183 = vunpack.c.l.b16 %v1530
        %v2184 = vunpack.c.l.b16 %v1539
        %v2185 = vunpack.c.l.b16 %v1552
        %v2186 = vunpack.c.l.b16 %v1561
        %v2187 = vunpack.c.l.b16 %v1574
        %v2188 = vunpack.c.l.b16 %v1583
        %v2189 = vunpack.c.l.b16 %v1596
        %v2190 = vunpack.c.l.b16 %v1605
        %v2191 = vpack.c.b16 %v2180, %v2179
        %v2192 = vpack.c.b16 %v2182, %v2181
        %v2193 = vpack.c.b16 %v2184, %v2183
        %v2194 = vpack.c.b16 %v2186, %v2185
        %v2195 = vpack.c.b16 %v2188, %v2187
        %v2196 = vpack.c.b16 %v2190, %v2189
        %v2215 = vunpack.c.l.b16 %v1454
        %v2216 = vunpack.c.l.b16 %v1455
        %v2217 = vunpack.c.l.b16 %v1457
        %v2218 = vunpack.c.l.b16 %v1458
        %v2219 = vunpack.c.l.b16 %v1460
        %v2220 = vunpack.c.l.b16 %v1461
        %v2221 = vunpack.c.l.b16 %v1463
        %v2222 = vunpack.c.l.b16 %v1464
        %v2223 = vunpack.c.l.b16 %v1466
        %v2224 = vunpack.c.l.b16 %v1467
        %v2225 = vunpack.c.l.b16 %v1469
        %v2226 = vunpack.c.l.b16 %v1470
        %v2227 = vpack.c.b16 %v2216, %v2215
        %v2228 = vpack.c.b16 %v2218, %v2217
        %v2229 = vpack.c.b16 %v2220, %v2219
        %v2230 = vpack.c.b16 %v2222, %v2221
        %v2231 = vpack.c.b16 %v2224, %v2223
        %v2232 = vpack.c.b16 %v2226, %v2225
        %v2239 = vunpack.c.l.b16 %v1620
        %v2240 = vunpack.c.l.b16 %v1628
        %v2241 = vunpack.c.l.b16 %v1634
        %v2242 = vunpack.c.l.b16 %v1642
        %v2243 = vunpack.c.l.b16 %v1648
        %v2244 = vunpack.c.l.b16 %v1656
        %v2245 = vunpack.c.l.b16 %v1662
        %v2246 = vunpack.c.l.b16 %v1670
        %v2247 = vunpack.c.l.b16 %v1676
        %v2248 = vunpack.c.l.b16 %v1684
        %v2249 = vunpack.c.l.b16 %v1690
        %v2250 = vunpack.c.l.b16 %v1698
        %v2251 = vpack.c.b16 %v2240, %v2239
        %v2252 = vpack.c.b16 %v2242, %v2241
        %v2253 = vpack.c.b16 %v2244, %v2243
        %v2254 = vpack.c.b16 %v2246, %v2245
        %v2255 = vpack.c.b16 %v2248, %v2247
        %v2256 = vpack.c.b16 %v2250, %v2249
        %v2263 = vunpack.c.l.b16 %v1729
        %v2264 = vunpack.c.l.b16 %v1738
        %v2265 = vunpack.c.l.b16 %v1751
        %v2266 = vunpack.c.l.b16 %v1760
        %v2267 = vunpack.c.l.b16 %v1773
        %v2268 = vunpack.c.l.b16 %v1782
        %v2269 = vunpack.c.l.b16 %v1795
        %v2270 = vunpack.c.l.b16 %v1804
        %v2271 = vunpack.c.l.b16 %v1817
        %v2272 = vunpack.c.l.b16 %v1826
        %v2273 = vunpack.c.l.b16 %v1839
        %v2274 = vunpack.c.l.b16 %v1848
        %v2275 = vpack.c.b16 %v2264, %v2263
        %v2276 = vpack.c.b16 %v2266, %v2265
        %v2277 = vpack.c.b16 %v2268, %v2267
        %v2278 = vpack.c.b16 %v2270, %v2269
        %v2279 = vpack.c.b16 %v2272, %v2271
        %v2280 = vpack.c.b16 %v2274, %v2273
        %v2299 = vunpack.c.l.b16 %v1700
        %v2300 = vunpack.c.l.b16 %v1701
        %v2301 = vunpack.c.l.b16 %v1703
        %v2302 = vunpack.c.l.b16 %v1704
        %v2303 = vunpack.c.l.b16 %v1706
        %v2304 = vunpack.c.l.b16 %v1707
        %v2305 = vunpack.c.l.b16 %v1709
        %v2306 = vunpack.c.l.b16 %v1710
        %v2307 = vunpack.c.l.b16 %v1712
        %v2308 = vunpack.c.l.b16 %v1713
        %v2309 = vunpack.c.l.b16 %v1715
        %v2310 = vunpack.c.l.b16 %v1716
        %v2311 = vpack.c.b16 %v2300, %v2299
        %v2312 = vpack.c.b16 %v2302, %v2301
        %v2313 = vpack.c.b16 %v2304, %v2303
        %v2314 = vpack.c.b16 %v2306, %v2305
        %v2315 = vpack.c.b16 %v2308, %v2307
        %v2316 = vpack.c.b16 %v2310, %v2309
        %v2323 = vunpack.c.l.b16 %v1860
        %v2324 = vunpack.c.l.b16 %v1868
        %v2325 = vunpack.c.l.b16 %v1874
        %v2326 = vunpack.c.l.b16 %v1882
        %v2327 = vunpack.c.l.b16 %v1888
        %v2328 = vunpack.c.l.b16 %v1896
        %v2329 = vunpack.c.l.b16 %v1902
        %v2330 = vunpack.c.l.b16 %v1910
        %v2331 = vunpack.c.l.b16 %v1916
        %v2332 = vunpack.c.l.b16 %v1924
        %v2333 = vunpack.c.l.b16 %v1930
        %v2334 = vunpack.c.l.b16 %v1938
        %v2335 = vpack.c.b16 %v2324, %v2323
        %v2336 = vpack.c.b16 %v2326, %v2325
        %v2337 = vpack.c.b16 %v2328, %v2327
        %v2338 = vpack.c.b16 %v2330, %v2329
        %v2339 = vpack.c.b16 %v2332, %v2331
        %v2340 = vpack.c.b16 %v2334, %v2333
        %v2347 = vunpack.c.l.b16 %v1969
        %v2348 = vunpack.c.l.b16 %v1978
        %v2349 = vunpack.c.l.b16 %v1991
        %v2350 = vunpack.c.l.b16 %v2000
        %v2351 = vunpack.c.l.b16 %v2013
        %v2352 = vunpack.c.l.b16 %v2022
        %v2353 = vunpack.c.l.b16 %v2035
        %v2354 = vunpack.c.l.b16 %v2044
        %v2355 = vunpack.c.l.b16 %v2057
        %v2356 = vunpack.c.l.b16 %v2066
        %v2357 = vunpack.c.l.b16 %v2079
        %v2358 = vunpack.c.l.b16 %v2088
        %v2359 = vpack.c.b16 %v2348, %v2347
        %v2360 = vpack.c.b16 %v2350, %v2349
        %v2361 = vpack.c.b16 %v2352, %v2351
        %v2362 = vpack.c.b16 %v2354, %v2353
        %v2363 = vpack.c.b16 %v2356, %v2355
        %v2364 = vpack.c.b16 %v2358, %v2357
        %v2383 = vunpack.c.l.b16 %v1940
        %v2384 = vunpack.c.l.b16 %v1941
        %v2385 = vunpack.c.l.b16 %v1943
        %v2386 = vunpack.c.l.b16 %v1944
        %v2387 = vunpack.c.l.b16 %v1946
        %v2388 = vunpack.c.l.b16 %v1947
        %v2389 = vunpack.c.l.b16 %v1949
        %v2390 = vunpack.c.l.b16 %v1950
        %v2391 = vunpack.c.l.b16 %v1952
        %v2392 = vunpack.c.l.b16 %v1953
        %v2393 = vunpack.c.l.b16 %v1955
        %v2394 = vunpack.c.l.b16 %v1956
        %v2395 = vpack.c.b16 %v2384, %v2383
        %v2396 = vpack.c.b16 %v2386, %v2385
        %v2397 = vpack.c.b16 %v2388, %v2387
        %v2398 = vpack.c.b16 %v2390, %v2389
        %v2399 = vpack.c.b16 %v2392, %v2391
        %v2400 = vpack.c.b16 %v2394, %v2393
        %v2407 = vunpack.c.l.b16 %v2100
        %v2408 = vunpack.c.l.b16 %v2108
        %v2409 = vunpack.c.l.b16 %v2114
        %v2410 = vunpack.c.l.b16 %v2122
        %v2411 = vunpack.c.l.b16 %v2128
        %v2412 = vunpack.c.l.b16 %v2136
        %v2413 = vunpack.c.l.b16 %v2142
        %v2414 = vunpack.c.l.b16 %v2150
        %v2415 = vunpack.c.l.b16 %v2156
        %v2416 = vunpack.c.l.b16 %v2164
        %v2417 = vunpack.c.l.b16 %v2170
        %v2418 = vunpack.c.l.b16 %v2178
        %v2419 = vpack.c.b16 %v2408, %v2407
        %v2420 = vpack.c.b16 %v2410, %v2409
        %v2421 = vpack.c.b16 %v2412, %v2411
        %v2422 = vpack.c.b16 %v2414, %v2413
        %v2423 = vpack.c.b16 %v2416, %v2415
        %v2424 = vpack.c.b16 %v2418, %v2417
        %v2431 = vld [vmem:[%s6] sm:$0xf]
        %v2432 = vld [vmem:[%s6 + $0x4] sm:$0xf]
        %v2433 = vld [vmem:[%s6 + $0x8] sm:$0xf]
        %v2434 = vld [vmem:[%s6 + $0xc] sm:$0xf]
        %v2435 = vld [vmem:[%s6 + $0x10] sm:$0xf]
        %v2436 = vld [vmem:[%s6 + $0x14] sm:$0xf]
        %v2437 = vld [vmem:[%s6 + $0x18] sm:$0xf]
        %v2438 = vld [vmem:[%s6 + $0x1c] sm:$0xf]
        %v2439 = vld [vmem:[%s6 + $0x20] sm:$0xf]
        %v2440 = vld [vmem:[%s6 + $0x24] sm:$0xf]
        %v2441 = vld [vmem:[%s6 + $0x28] sm:$0xf]
        %v2442 = vld [vmem:[%s6 + $0x2c] sm:$0xf]
        %v2443 = vld [vmem:[%s6 + $0x30] sm:$0xf]
        %v2444 = vld [vmem:[%s6 + $0x34] sm:$0xf]
        %v2445 = vld [vmem:[%s6 + $0x38] sm:$0xf]
        %v2446 = vld [vmem:[%s6 + $0x3c] sm:$0xf]
        %v2447 = vld [vmem:[%s6 + $0x40] sm:$0xf]
        %v2448 = vld [vmem:[%s6 + $0x44] sm:$0xf]
        %v2449 = vld [vmem:[%s6 + $0x48] sm:$0xf]
        %v2450 = vld [vmem:[%s6 + $0x4c] sm:$0xf]
        %v2451 = vld [vmem:[%s6 + $0x50] sm:$0xf]
        %v2452 = vld [vmem:[%s6 + $0x54] sm:$0xf]
        %v2453 = vld [vmem:[%s6 + $0x58] sm:$0xf]
        %v2454 = vld [vmem:[%s6 + $0x5c] sm:$0xf]
        %v2455 = vld [vmem:[%s6 + $0x60] sm:$0xf]
        %v2456 = vld [vmem:[%s6 + $0x64] sm:$0xf]
        %v2457 = vld [vmem:[%s6 + $0x68] sm:$0xf]
        %v2458 = vld [vmem:[%s6 + $0x6c] sm:$0xf]
        %v2459 = vld [vmem:[%s6 + $0x70] sm:$0xf]
        %v2460 = vld [vmem:[%s6 + $0x74] sm:$0xf]
        %v2461 = vld [vmem:[%s6 + $0x78] sm:$0xf]
        %v2462 = vld [vmem:[%s6 + $0x7c] sm:$0xf]
        %v2463 = vld [vmem:[%s6 + $0x80] sm:$0xf]
        %v2464 = vld [vmem:[%s6 + $0x84] sm:$0xf]
        %v2465 = vld [vmem:[%s6 + $0x88] sm:$0xf]
        %v2466 = vld [vmem:[%s6 + $0x8c] sm:$0xf]
        %v2467 = vld [vmem:[%s6 + $0x90] sm:$0xf]
        %v2468 = vld [vmem:[%s6 + $0x94] sm:$0xf]
        %v2469 = vld [vmem:[%s6 + $0x98] sm:$0xf]
        %v2470 = vld [vmem:[%s6 + $0x9c] sm:$0xf]
        %v2471 = vld [vmem:[%s6 + $0xa0] sm:$0xf]
        %v2472 = vld [vmem:[%s6 + $0xa4] sm:$0xf]
        %v2473 = vld [vmem:[%s6 + $0xa8] sm:$0xf]
        %v2474 = vld [vmem:[%s6 + $0xac] sm:$0xf]
        %v2475 = vld [vmem:[%s6 + $0xb0] sm:$0xf]
        %v2476 = vld [vmem:[%s6 + $0xb4] sm:$0xf]
        %v2477 = vld [vmem:[%s6 + $0xb8] sm:$0xf]
        %v2478 = vld [vmem:[%s6 + $0xbc] sm:$0xf]
        %v2479 = vld [vmem:[%s6 + $0xc0] sm:$0xf]
        %v2480 = vld [vmem:[%s6 + $0xc4] sm:$0xf]
        %v2481 = vld [vmem:[%s6 + $0xc8] sm:$0xf]
        %v2482 = vld [vmem:[%s6 + $0xcc] sm:$0xf]
        %v2483 = vld [vmem:[%s6 + $0xd0] sm:$0xf]
        %v2484 = vld [vmem:[%s6 + $0xd4] sm:$0xf]
        %v2485 = vld [vmem:[%s6 + $0xd8] sm:$0xf]
        %v2486 = vld [vmem:[%s6 + $0xdc] sm:$0xf]
        %v2487 = vld [vmem:[%s6 + $0xe0] sm:$0xf]
        %v2488 = vld [vmem:[%s6 + $0xe4] sm:$0xf]
        %v2489 = vld [vmem:[%s6 + $0xe8] sm:$0xf]
        %v2490 = vld [vmem:[%s6 + $0xec] sm:$0xf]
        %v2491 = vld [vmem:[%s6 + $0xf0] sm:$0xf]
        %v2492 = vld [vmem:[%s6 + $0xf4] sm:$0xf]
        %v2493 = vld [vmem:[%s6 + $0xf8] sm:$0xf]
        %v2494 = vld [vmem:[%s6 + $0xfc] sm:$0xf]
        %v2495 = vld [vmem:[%s6 + $0x100] sm:$0xf]
        %v2496 = vld [vmem:[%s6 + $0x104] sm:$0xf]
        %v2497 = vld [vmem:[%s6 + $0x108] sm:$0xf]
        %v2498 = vld [vmem:[%s6 + $0x10c] sm:$0xf]
        %v2499 = vld [vmem:[%s6 + $0x110] sm:$0xf]
        %v2500 = vld [vmem:[%s6 + $0x114] sm:$0xf]
        %v2501 = vld [vmem:[%s6 + $0x118] sm:$0xf]
        %v2502 = vld [vmem:[%s6 + $0x11c] sm:$0xf]
        %v2503 = vld [vmem:[%s6 + $0x120] sm:$0xf]
        %v2504 = vld [vmem:[%s6 + $0x124] sm:$0xf]
        %v2505 = vld [vmem:[%s6 + $0x128] sm:$0xf]
        %v2506 = vld [vmem:[%s6 + $0x12c] sm:$0xf]
        %v2507 = vld [vmem:[%s6 + $0x130] sm:$0xf]
        %v2508 = vld [vmem:[%s6 + $0x134] sm:$0xf]
        %v2509 = vld [vmem:[%s6 + $0x138] sm:$0xf]
        %v2510 = vld [vmem:[%s6 + $0x13c] sm:$0xf]
        %v2511 = vld [vmem:[%s6 + $0x140] sm:$0xf]
        %v2512 = vld [vmem:[%s6 + $0x144] sm:$0xf]
        %v2513 = vld [vmem:[%s6 + $0x148] sm:$0xf]
        %v2514 = vld [vmem:[%s6 + $0x14c] sm:$0xf]
        %v2515 = vld [vmem:[%s6 + $0x150] sm:$0xf]
        %v2516 = vld [vmem:[%s6 + $0x154] sm:$0xf]
        %v2517 = vld [vmem:[%s6 + $0x158] sm:$0xf]
        %v2518 = vld [vmem:[%s6 + $0x15c] sm:$0xf]
        %v2519 = vld [vmem:[%s6 + $0x160] sm:$0xf]
        %v2520 = vld [vmem:[%s6 + $0x164] sm:$0xf]
        %v2521 = vld [vmem:[%s6 + $0x168] sm:$0xf]
        %v2522 = vld [vmem:[%s6 + $0x16c] sm:$0xf]
        %v2523 = vld [vmem:[%s6 + $0x170] sm:$0xf]
        %v2524 = vld [vmem:[%s6 + $0x174] sm:$0xf]
        %v2525 = vld [vmem:[%s6 + $0x178] sm:$0xf]
        %v2526 = vld [vmem:[%s6 + $0x17c] sm:$0xf]
        %v2527 = vld [vmem:[%s6 + $0x180] sm:$0xf]
        %v2528 = vld [vmem:[%s6 + $0x184] sm:$0xf]
        %v2529 = vld [vmem:[%s6 + $0x188] sm:$0xf]
        %v2530 = vld [vmem:[%s6 + $0x18c] sm:$0xf]
        %v2531 = vld [vmem:[%s6 + $0x190] sm:$0xf]
        %v2532 = vld [vmem:[%s6 + $0x194] sm:$0xf]
        %v2533 = vld [vmem:[%s6 + $0x198] sm:$0xf]
        %v2534 = vld [vmem:[%s6 + $0x19c] sm:$0xf]
        %v2535 = vld [vmem:[%s6 + $0x1a0] sm:$0xf]
        %v2536 = vld [vmem:[%s6 + $0x1a4] sm:$0xf]
        %v2537 = vld [vmem:[%s6 + $0x1a8] sm:$0xf]
        %v2538 = vld [vmem:[%s6 + $0x1ac] sm:$0xf]
        %v2539 = vld [vmem:[%s6 + $0x1b0] sm:$0xf]
        %v2540 = vld [vmem:[%s6 + $0x1b4] sm:$0xf]
        %v2541 = vld [vmem:[%s6 + $0x1b8] sm:$0xf]
        %v2542 = vld [vmem:[%s6 + $0x1bc] sm:$0xf]
        %v2543 = vld [vmem:[%s6 + $0x1c0] sm:$0xf]
        %v2544 = vld [vmem:[%s6 + $0x1c4] sm:$0xf]
        %v2545 = vld [vmem:[%s6 + $0x1c8] sm:$0xf]
        %v2546 = vld [vmem:[%s6 + $0x1cc] sm:$0xf]
        %v2547 = vld [vmem:[%s6 + $0x1d0] sm:$0xf]
        %v2548 = vld [vmem:[%s6 + $0x1d4] sm:$0xf]
        %v2549 = vld [vmem:[%s6 + $0x1d8] sm:$0xf]
        %v2550 = vld [vmem:[%s6 + $0x1dc] sm:$0xf]
        %v2551 = vld [vmem:[%s6 + $0x1e0] sm:$0xf]
        %v2552 = vld [vmem:[%s6 + $0x1e4] sm:$0xf]
        %v2553 = vld [vmem:[%s6 + $0x1e8] sm:$0xf]
        %v2554 = vld [vmem:[%s6 + $0x1ec] sm:$0xf]
        %v2555 = vld [vmem:[%s6 + $0x1f0] sm:$0xf]
        %v2556 = vld [vmem:[%s6 + $0x1f4] sm:$0xf]
        %v2557 = vld [vmem:[%s6 + $0x1f8] sm:$0xf]
        %v2558 = vld [vmem:[%s6 + $0x1fc] sm:$0xf]
        %v2559 = vld [vmem:[%s6 + $0x200] sm:$0xf]
        %v2560 = vld [vmem:[%s6 + $0x204] sm:$0xf]
        %v2561 = vld [vmem:[%s6 + $0x208] sm:$0xf]
        %v2562 = vld [vmem:[%s6 + $0x20c] sm:$0xf]
        %v2563 = vld [vmem:[%s6 + $0x210] sm:$0xf]
        %v2564 = vld [vmem:[%s6 + $0x214] sm:$0xf]
        %v2565 = vld [vmem:[%s6 + $0x218] sm:$0xf]
        %v2566 = vld [vmem:[%s6 + $0x21c] sm:$0xf]
        %v2567 = vld [vmem:[%s6 + $0x220] sm:$0xf]
        %v2568 = vld [vmem:[%s6 + $0x224] sm:$0xf]
        %v2569 = vld [vmem:[%s6 + $0x228] sm:$0xf]
        %v2570 = vld [vmem:[%s6 + $0x22c] sm:$0xf]
        %v2571 = vld [vmem:[%s6 + $0x230] sm:$0xf]
        %v2572 = vld [vmem:[%s6 + $0x234] sm:$0xf]
        %v2573 = vld [vmem:[%s6 + $0x238] sm:$0xf]
        %v2574 = vld [vmem:[%s6 + $0x23c] sm:$0xf]
        %s2575 = smul.u32 %s460, 4
        %s2576 = smul.addr %s2575, 4
        %s2577 = scalar_lea.vmem [#allocation4], %s2576
        %v2578 = vld [vmem:[%s2577] sm:$0x8]
        %v2579 = vld [vmem:[%s2577 + $0x4] sm:$0xf]
        %v2580 = vld [vmem:[%s2577 + $0x8] sm:$0xf]
        %v2581 = vld [vmem:[%s2577 + $0x10] sm:$0x8]
        %v2582 = vld [vmem:[%s2577 + $0x14] sm:$0xf]
        %v2583 = vld [vmem:[%s2577 + $0x18] sm:$0xf]
        %v2584 = vld [vmem:[%s2577 + $0x20] sm:$0x8]
        %v2585 = vld [vmem:[%s2577 + $0x24] sm:$0xf]
        %v2586 = vld [vmem:[%s2577 + $0x28] sm:$0xf]
        %v2587 = vld [vmem:[%s2577 + $0x30] sm:$0x8]
        %v2588 = vld [vmem:[%s2577 + $0x34] sm:$0xf]
        %v2589 = vld [vmem:[%s2577 + $0x38] sm:$0xf]
        %v2590 = vld [vmem:[%s2577 + $0x40] sm:$0x8]
        %v2591 = vld [vmem:[%s2577 + $0x44] sm:$0xf]
        %v2592 = vld [vmem:[%s2577 + $0x48] sm:$0xf]
        %v2593 = vld [vmem:[%s2577 + $0x50] sm:$0x8]
        %v2594 = vld [vmem:[%s2577 + $0x54] sm:$0xf]
        %v2595 = vld [vmem:[%s2577 + $0x58] sm:$0xf]
        %v2597 = vshrl.u32 %v2578, 16
        %v2599 = vrot.slane %v2597, 7
        %v2600 = vrot.slane %v2599, 4
        %v2602 = vshrl.u32 %v2579, 16
        %v2604 = vrot.slane %v2602, 7
        %v2605 = vshll.u32 %v2579, 16
        %v2607 = vor.u32 %v2604, %v2605
        %v2608 = vsel %vm1473, %v2600, %v2607
        %v2609 = vrot.slane %v2604, 4
        %v2611 = vshrl.u32 %v2580, 16
        %v2613 = vrot.slane %v2611, 7
        %v2614 = vshll.u32 %v2580, 16
        %v2616 = vor.u32 %v2613, %v2614
        %v2617 = vsel %vm1473, %v2609, %v2616
        %v2619 = vshrl.u32 %v2581, 16
        %v2621 = vrot.slane %v2619, 7
        %v2622 = vrot.slane %v2621, 4
        %v2624 = vshrl.u32 %v2582, 16
        %v2626 = vrot.slane %v2624, 7
        %v2627 = vshll.u32 %v2582, 16
        %v2629 = vor.u32 %v2626, %v2627
        %v2630 = vsel %vm1473, %v2622, %v2629
        %v2631 = vrot.slane %v2626, 4
        %v2633 = vshrl.u32 %v2583, 16
        %v2635 = vrot.slane %v2633, 7
        %v2636 = vshll.u32 %v2583, 16
        %v2638 = vor.u32 %v2635, %v2636
        %v2639 = vsel %vm1473, %v2631, %v2638
        %v2641 = vshrl.u32 %v2584, 16
        %v2643 = vrot.slane %v2641, 7
        %v2644 = vrot.slane %v2643, 4
        %v2646 = vshrl.u32 %v2585, 16
        %v2648 = vrot.slane %v2646, 7
        %v2649 = vshll.u32 %v2585, 16
        %v2651 = vor.u32 %v2648, %v2649
        %v2652 = vsel %vm1473, %v2644, %v2651
        %v2653 = vrot.slane %v2648, 4
        %v2655 = vshrl.u32 %v2586, 16
        %v2657 = vrot.slane %v2655, 7
        %v2658 = vshll.u32 %v2586, 16
        %v2660 = vor.u32 %v2657, %v2658
        %v2661 = vsel %vm1473, %v2653, %v2660
        %v2663 = vshrl.u32 %v2587, 16
        %v2665 = vrot.slane %v2663, 7
        %v2666 = vrot.slane %v2665, 4
        %v2668 = vshrl.u32 %v2588, 16
        %v2670 = vrot.slane %v2668, 7
        %v2671 = vshll.u32 %v2588, 16
        %v2673 = vor.u32 %v2670, %v2671
        %v2674 = vsel %vm1473, %v2666, %v2673
        %v2675 = vrot.slane %v2670, 4
        %v2677 = vshrl.u32 %v2589, 16
        %v2679 = vrot.slane %v2677, 7
        %v2680 = vshll.u32 %v2589, 16
        %v2682 = vor.u32 %v2679, %v2680
        %v2683 = vsel %vm1473, %v2675, %v2682
        %v2685 = vshrl.u32 %v2590, 16
        %v2687 = vrot.slane %v2685, 7
        %v2688 = vrot.slane %v2687, 4
        %v2690 = vshrl.u32 %v2591, 16
        %v2692 = vrot.slane %v2690, 7
        %v2693 = vshll.u32 %v2591, 16
        %v2695 = vor.u32 %v2692, %v2693
        %v2696 = vsel %vm1473, %v2688, %v2695
        %v2697 = vrot.slane %v2692, 4
        %v2699 = vshrl.u32 %v2592, 16
        %v2701 = vrot.slane %v2699, 7
        %v2702 = vshll.u32 %v2592, 16
        %v2704 = vor.u32 %v2701, %v2702
        %v2705 = vsel %vm1473, %v2697, %v2704
        %v2707 = vshrl.u32 %v2593, 16
        %v2709 = vrot.slane %v2707, 7
        %v2710 = vrot.slane %v2709, 4
        %v2712 = vshrl.u32 %v2594, 16
        %v2714 = vrot.slane %v2712, 7
        %v2715 = vshll.u32 %v2594, 16
        %v2717 = vor.u32 %v2714, %v2715
        %v2718 = vsel %vm1473, %v2710, %v2717
        %v2719 = vrot.slane %v2714, 4
        %v2721 = vshrl.u32 %v2595, 16
        %v2723 = vrot.slane %v2721, 7
        %v2724 = vshll.u32 %v2595, 16
        %v2726 = vor.u32 %v2723, %v2724
        %v2727 = vsel %vm1473, %v2719, %v2726
        %v2728 = vld [vmem:[%s2577 + $0xc] sm:$0x1]
        %v2729 = vld [vmem:[%s2577 + $0x1c] sm:$0x1]
        %v2730 = vld [vmem:[%s2577 + $0x2c] sm:$0x1]
        %v2731 = vld [vmem:[%s2577 + $0x3c] sm:$0x1]
        %v2732 = vld [vmem:[%s2577 + $0x4c] sm:$0x1]
        %v2733 = vld [vmem:[%s2577 + $0x5c] sm:$0x1]
        %v2734 = vrot.slane %v2602, 4
        %v2735 = vrot.slane %v2605, 5
        %v2736 = vor.u32 %v2734, %v2735
        %v2737 = vrot.slane %v2736, 4
        %v2738 = vrot.slane %v2614, 5
        %v2739 = vsel %vm1614, %v2737, %v2738
        %v2740 = vrot.slane %v2611, 4
        %v2741 = vor.u32 %v2740, %v2738
        %v2742 = vrot.slane %v2741, 4
        %v2744 = vshll.u32 %v2728, 16
        %v2746 = vrot.slane %v2744, 5
        %v2747 = vsel %vm1614, %v2742, %v2746
        %v2748 = vrot.slane %v2624, 4
        %v2749 = vrot.slane %v2627, 5
        %v2750 = vor.u32 %v2748, %v2749
        %v2751 = vrot.slane %v2750, 4
        %v2752 = vrot.slane %v2636, 5
        %v2753 = vsel %vm1614, %v2751, %v2752
        %v2754 = vrot.slane %v2633, 4
        %v2755 = vor.u32 %v2754, %v2752
        %v2756 = vrot.slane %v2755, 4
        %v2758 = vshll.u32 %v2729, 16
        %v2760 = vrot.slane %v2758, 5
        %v2761 = vsel %vm1614, %v2756, %v2760
        %v2762 = vrot.slane %v2646, 4
        %v2763 = vrot.slane %v2649, 5
        %v2764 = vor.u32 %v2762, %v2763
        %v2765 = vrot.slane %v2764, 4
        %v2766 = vrot.slane %v2658, 5
        %v2767 = vsel %vm1614, %v2765, %v2766
        %v2768 = vrot.slane %v2655, 4
        %v2769 = vor.u32 %v2768, %v2766
        %v2770 = vrot.slane %v2769, 4
        %v2772 = vshll.u32 %v2730, 16
        %v2774 = vrot.slane %v2772, 5
        %v2775 = vsel %vm1614, %v2770, %v2774
        %v2776 = vrot.slane %v2668, 4
        %v2777 = vrot.slane %v2671, 5
        %v2778 = vor.u32 %v2776, %v2777
        %v2779 = vrot.slane %v2778, 4
        %v2780 = vrot.slane %v2680, 5
        %v2781 = vsel %vm1614, %v2779, %v2780
        %v2782 = vrot.slane %v2677, 4
        %v2783 = vor.u32 %v2782, %v2780
        %v2784 = vrot.slane %v2783, 4
        %v2786 = vshll.u32 %v2731, 16
        %v2788 = vrot.slane %v2786, 5
        %v2789 = vsel %vm1614, %v2784, %v2788
        %v2790 = vrot.slane %v2690, 4
        %v2791 = vrot.slane %v2693, 5
        %v2792 = vor.u32 %v2790, %v2791
        %v2793 = vrot.slane %v2792, 4
        %v2794 = vrot.slane %v2702, 5
        %v2795 = vsel %vm1614, %v2793, %v2794
        %v2796 = vrot.slane %v2699, 4
        %v2797 = vor.u32 %v2796, %v2794
        %v2798 = vrot.slane %v2797, 4
        %v2800 = vshll.u32 %v2732, 16
        %v2802 = vrot.slane %v2800, 5
        %v2803 = vsel %vm1614, %v2798, %v2802
        %v2804 = vrot.slane %v2712, 4
        %v2805 = vrot.slane %v2715, 5
        %v2806 = vor.u32 %v2804, %v2805
        %v2807 = vrot.slane %v2806, 4
        %v2808 = vrot.slane %v2724, 5
        %v2809 = vsel %vm1614, %v2807, %v2808
        %v2810 = vrot.slane %v2721, 4
        %v2811 = vor.u32 %v2810, %v2808
        %v2812 = vrot.slane %v2811, 4
        %v2814 = vshll.u32 %v2733, 16
        %v2816 = vrot.slane %v2814, 5
        %v2817 = vsel %vm1614, %v2812, %v2816
        %s2818 = smul.u32 %s1187, 4
        %s2819 = smul.addr %s2818, 4
        %s2820 = scalar_lea.vmem [#allocation4], %s2819
        %v2821 = vld [vmem:[%s2820] sm:$0x8]
        %v2822 = vld [vmem:[%s2820 + $0x4] sm:$0xf]
        %v2823 = vld [vmem:[%s2820 + $0x8] sm:$0xf]
        %v2824 = vld [vmem:[%s2820 + $0x10] sm:$0x8]
        %v2825 = vld [vmem:[%s2820 + $0x14] sm:$0xf]
        %v2826 = vld [vmem:[%s2820 + $0x18] sm:$0xf]
        %v2827 = vld [vmem:[%s2820 + $0x20] sm:$0x8]
        %v2828 = vld [vmem:[%s2820 + $0x24] sm:$0xf]
        %v2829 = vld [vmem:[%s2820 + $0x28] sm:$0xf]
        %v2830 = vld [vmem:[%s2820 + $0x30] sm:$0x8]
        %v2831 = vld [vmem:[%s2820 + $0x34] sm:$0xf]
        %v2832 = vld [vmem:[%s2820 + $0x38] sm:$0xf]
        %v2833 = vld [vmem:[%s2820 + $0x40] sm:$0x8]
        %v2834 = vld [vmem:[%s2820 + $0x44] sm:$0xf]
        %v2835 = vld [vmem:[%s2820 + $0x48] sm:$0xf]
        %v2836 = vld [vmem:[%s2820 + $0x50] sm:$0x8]
        %v2837 = vld [vmem:[%s2820 + $0x54] sm:$0xf]
        %v2838 = vld [vmem:[%s2820 + $0x58] sm:$0xf]
        %v2840 = vshrl.u32 %v2821, 16
        %v2842 = vrot.slane %v2840, 7
        %v2843 = vrot.slane %v2842, 4
        %v2845 = vshrl.u32 %v2822, 16
        %v2847 = vrot.slane %v2845, 7
        %v2848 = vshll.u32 %v2822, 16
        %v2850 = vor.u32 %v2847, %v2848
        %v2851 = vsel %vm1473, %v2843, %v2850
        %v2852 = vrot.slane %v2847, 4
        %v2854 = vshrl.u32 %v2823, 16
        %v2856 = vrot.slane %v2854, 7
        %v2857 = vshll.u32 %v2823, 16
        %v2859 = vor.u32 %v2856, %v2857
        %v2860 = vsel %vm1473, %v2852, %v2859
        %v2862 = vshrl.u32 %v2824, 16
        %v2864 = vrot.slane %v2862, 7
        %v2865 = vrot.slane %v2864, 4
        %v2867 = vshrl.u32 %v2825, 16
        %v2869 = vrot.slane %v2867, 7
        %v2870 = vshll.u32 %v2825, 16
        %v2872 = vor.u32 %v2869, %v2870
        %v2873 = vsel %vm1473, %v2865, %v2872
        %v2874 = vrot.slane %v2869, 4
        %v2876 = vshrl.u32 %v2826, 16
        %v2878 = vrot.slane %v2876, 7
        %v2879 = vshll.u32 %v2826, 16
        %v2881 = vor.u32 %v2878, %v2879
        %v2882 = vsel %vm1473, %v2874, %v2881
        %v2884 = vshrl.u32 %v2827, 16
        %v2886 = vrot.slane %v2884, 7
        %v2887 = vrot.slane %v2886, 4
        %v2889 = vshrl.u32 %v2828, 16
        %v2891 = vrot.slane %v2889, 7
        %v2892 = vshll.u32 %v2828, 16
        %v2894 = vor.u32 %v2891, %v2892
        %v2895 = vsel %vm1473, %v2887, %v2894
        %v2896 = vrot.slane %v2891, 4
        %v2898 = vshrl.u32 %v2829, 16
        %v2900 = vrot.slane %v2898, 7
        %v2901 = vshll.u32 %v2829, 16
        %v2903 = vor.u32 %v2900, %v2901
        %v2904 = vsel %vm1473, %v2896, %v2903
        %v2906 = vshrl.u32 %v2830, 16
        %v2908 = vrot.slane %v2906, 7
        %v2909 = vrot.slane %v2908, 4
        %v2911 = vshrl.u32 %v2831, 16
        %v2913 = vrot.slane %v2911, 7
        %v2914 = vshll.u32 %v2831, 16
        %v2916 = vor.u32 %v2913, %v2914
        %v2917 = vsel %vm1473, %v2909, %v2916
        %v2918 = vrot.slane %v2913, 4
        %v2920 = vshrl.u32 %v2832, 16
        %v2922 = vrot.slane %v2920, 7
        %v2923 = vshll.u32 %v2832, 16
        %v2925 = vor.u32 %v2922, %v2923
        %v2926 = vsel %vm1473, %v2918, %v2925
        %v2928 = vshrl.u32 %v2833, 16
        %v2930 = vrot.slane %v2928, 7
        %v2931 = vrot.slane %v2930, 4
        %v2933 = vshrl.u32 %v2834, 16
        %v2935 = vrot.slane %v2933, 7
        %v2936 = vshll.u32 %v2834, 16
        %v2938 = vor.u32 %v2935, %v2936
        %v2939 = vsel %vm1473, %v2931, %v2938
        %v2940 = vrot.slane %v2935, 4
        %v2942 = vshrl.u32 %v2835, 16
        %v2944 = vrot.slane %v2942, 7
        %v2945 = vshll.u32 %v2835, 16
        %v2947 = vor.u32 %v2944, %v2945
        %v2948 = vsel %vm1473, %v2940, %v2947
        %v2950 = vshrl.u32 %v2836, 16
        %v2952 = vrot.slane %v2950, 7
        %v2953 = vrot.slane %v2952, 4
        %v2955 = vshrl.u32 %v2837, 16
        %v2957 = vrot.slane %v2955, 7
        %v2958 = vshll.u32 %v2837, 16
        %v2960 = vor.u32 %v2957, %v2958
        %v2961 = vsel %vm1473, %v2953, %v2960
        %v2962 = vrot.slane %v2957, 4
        %v2964 = vshrl.u32 %v2838, 16
        %v2966 = vrot.slane %v2964, 7
        %v2967 = vshll.u32 %v2838, 16
        %v2969 = vor.u32 %v2966, %v2967
        %v2970 = vsel %vm1473, %v2962, %v2969
        %v2971 = vld [vmem:[%s2820 + $0xc] sm:$0x1]
        %v2972 = vld [vmem:[%s2820 + $0x1c] sm:$0x1]
        %v2973 = vld [vmem:[%s2820 + $0x2c] sm:$0x1]
        %v2974 = vld [vmem:[%s2820 + $0x3c] sm:$0x1]
        %v2975 = vld [vmem:[%s2820 + $0x4c] sm:$0x1]
        %v2976 = vld [vmem:[%s2820 + $0x5c] sm:$0x1]
        %v2977 = vrot.slane %v2845, 4
        %v2978 = vrot.slane %v2848, 5
        %v2979 = vor.u32 %v2977, %v2978
        %v2980 = vrot.slane %v2979, 4
        %v2981 = vrot.slane %v2857, 5
        %v2982 = vsel %vm1614, %v2980, %v2981
        %v2983 = vrot.slane %v2854, 4
        %v2984 = vor.u32 %v2983, %v2981
        %v2985 = vrot.slane %v2984, 4
        %v2987 = vshll.u32 %v2971, 16
        %v2989 = vrot.slane %v2987, 5
        %v2990 = vsel %vm1614, %v2985, %v2989
        %v2991 = vrot.slane %v2867, 4
        %v2992 = vrot.slane %v2870, 5
        %v2993 = vor.u32 %v2991, %v2992
        %v2994 = vrot.slane %v2993, 4
        %v2995 = vrot.slane %v2879, 5
        %v2996 = vsel %vm1614, %v2994, %v2995
        %v2997 = vrot.slane %v2876, 4
        %v2998 = vor.u32 %v2997, %v2995
        %v2999 = vrot.slane %v2998, 4
        %v3001 = vshll.u32 %v2972, 16
        %v3003 = vrot.slane %v3001, 5
        %v3004 = vsel %vm1614, %v2999, %v3003
        %v3005 = vrot.slane %v2889, 4
        %v3006 = vrot.slane %v2892, 5
        %v3007 = vor.u32 %v3005, %v3006
        %v3008 = vrot.slane %v3007, 4
        %v3009 = vrot.slane %v2901, 5
        %v3010 = vsel %vm1614, %v3008, %v3009
        %v3011 = vrot.slane %v2898, 4
        %v3012 = vor.u32 %v3011, %v3009
        %v3013 = vrot.slane %v3012, 4
        %v3015 = vshll.u32 %v2973, 16
        %v3017 = vrot.slane %v3015, 5
        %v3018 = vsel %vm1614, %v3013, %v3017
        %v3019 = vrot.slane %v2911, 4
        %v3020 = vrot.slane %v2914, 5
        %v3021 = vor.u32 %v3019, %v3020
        %v3022 = vrot.slane %v3021, 4
        %v3023 = vrot.slane %v2923, 5
        %v3024 = vsel %vm1614, %v3022, %v3023
        %v3025 = vrot.slane %v2920, 4
        %v3026 = vor.u32 %v3025, %v3023
        %v3027 = vrot.slane %v3026, 4
        %v3029 = vshll.u32 %v2974, 16
        %v3031 = vrot.slane %v3029, 5
        %v3032 = vsel %vm1614, %v3027, %v3031
        %v3033 = vrot.slane %v2933, 4
        %v3034 = vrot.slane %v2936, 5
        %v3035 = vor.u32 %v3033, %v3034
        %v3036 = vrot.slane %v3035, 4
        %v3037 = vrot.slane %v2945, 5
        %v3038 = vsel %vm1614, %v3036, %v3037
        %v3039 = vrot.slane %v2942, 4
        %v3040 = vor.u32 %v3039, %v3037
        %v3041 = vrot.slane %v3040, 4
        %v3043 = vshll.u32 %v2975, 16
        %v3045 = vrot.slane %v3043, 5
        %v3046 = vsel %vm1614, %v3041, %v3045
        %v3047 = vrot.slane %v2955, 4
        %v3048 = vrot.slane %v2958, 5
        %v3049 = vor.u32 %v3047, %v3048
        %v3050 = vrot.slane %v3049, 4
        %v3051 = vrot.slane %v2967, 5
        %v3052 = vsel %vm1614, %v3050, %v3051
        %v3053 = vrot.slane %v2964, 4
        %v3054 = vor.u32 %v3053, %v3051
        %v3055 = vrot.slane %v3054, 4
        %v3057 = vshll.u32 %v2976, 16
        %v3059 = vrot.slane %v3057, 5
        %v3060 = vsel %vm1614, %v3055, %v3059
        %s3061 = smul.u32 %s1225, 4
        %s3062 = smul.addr %s3061, 4
        %s3063 = scalar_lea.vmem [#allocation4], %s3062
        %v3064 = vld [vmem:[%s3063] sm:$0x8]
        %v3065 = vld [vmem:[%s3063 + $0x4] sm:$0xf]
        %v3066 = vld [vmem:[%s3063 + $0x8] sm:$0xf]
        %v3067 = vld [vmem:[%s3063 + $0x10] sm:$0x8]
        %v3068 = vld [vmem:[%s3063 + $0x14] sm:$0xf]
        %v3069 = vld [vmem:[%s3063 + $0x18] sm:$0xf]
        %v3070 = vld [vmem:[%s3063 + $0x20] sm:$0x8]
        %v3071 = vld [vmem:[%s3063 + $0x24] sm:$0xf]
        %v3072 = vld [vmem:[%s3063 + $0x28] sm:$0xf]
        %v3073 = vld [vmem:[%s3063 + $0x30] sm:$0x8]
        %v3074 = vld [vmem:[%s3063 + $0x34] sm:$0xf]
        %v3075 = vld [vmem:[%s3063 + $0x38] sm:$0xf]
        %v3076 = vld [vmem:[%s3063 + $0x40] sm:$0x8]
        %v3077 = vld [vmem:[%s3063 + $0x44] sm:$0xf]
        %v3078 = vld [vmem:[%s3063 + $0x48] sm:$0xf]
        %v3079 = vld [vmem:[%s3063 + $0x50] sm:$0x8]
        %v3080 = vld [vmem:[%s3063 + $0x54] sm:$0xf]
        %v3081 = vld [vmem:[%s3063 + $0x58] sm:$0xf]
        %v3083 = vshrl.u32 %v3064, 16
        %v3085 = vrot.slane %v3083, 7
        %v3086 = vrot.slane %v3085, 4
        %v3088 = vshrl.u32 %v3065, 16
        %v3090 = vrot.slane %v3088, 7
        %v3091 = vshll.u32 %v3065, 16
        %v3093 = vor.u32 %v3090, %v3091
        %v3094 = vsel %vm1473, %v3086, %v3093
        %v3095 = vrot.slane %v3090, 4
        %v3097 = vshrl.u32 %v3066, 16
        %v3099 = vrot.slane %v3097, 7
        %v3100 = vshll.u32 %v3066, 16
        %v3102 = vor.u32 %v3099, %v3100
        %v3103 = vsel %vm1473, %v3095, %v3102
        %v3105 = vshrl.u32 %v3067, 16
        %v3107 = vrot.slane %v3105, 7
        %v3108 = vrot.slane %v3107, 4
        %v3110 = vshrl.u32 %v3068, 16
        %v3112 = vrot.slane %v3110, 7
        %v3113 = vshll.u32 %v3068, 16
        %v3115 = vor.u32 %v3112, %v3113
        %v3116 = vsel %vm1473, %v3108, %v3115
        %v3117 = vrot.slane %v3112, 4
        %v3119 = vshrl.u32 %v3069, 16
        %v3121 = vrot.slane %v3119, 7
        %v3122 = vshll.u32 %v3069, 16
        %v3124 = vor.u32 %v3121, %v3122
        %v3125 = vsel %vm1473, %v3117, %v3124
        %v3127 = vshrl.u32 %v3070, 16
        %v3129 = vrot.slane %v3127, 7
        %v3130 = vrot.slane %v3129, 4
        %v3132 = vshrl.u32 %v3071, 16
        %v3134 = vrot.slane %v3132, 7
        %v3135 = vshll.u32 %v3071, 16
        %v3137 = vor.u32 %v3134, %v3135
        %v3138 = vsel %vm1473, %v3130, %v3137
        %v3139 = vrot.slane %v3134, 4
        %v3141 = vshrl.u32 %v3072, 16
        %v3143 = vrot.slane %v3141, 7
        %v3144 = vshll.u32 %v3072, 16
        %v3146 = vor.u32 %v3143, %v3144
        %v3147 = vsel %vm1473, %v3139, %v3146
        %v3149 = vshrl.u32 %v3073, 16
        %v3151 = vrot.slane %v3149, 7
        %v3152 = vrot.slane %v3151, 4
        %v3154 = vshrl.u32 %v3074, 16
        %v3156 = vrot.slane %v3154, 7
        %v3157 = vshll.u32 %v3074, 16
        %v3159 = vor.u32 %v3156, %v3157
        %v3160 = vsel %vm1473, %v3152, %v3159
        %v3161 = vrot.slane %v3156, 4
        %v3163 = vshrl.u32 %v3075, 16
        %v3165 = vrot.slane %v3163, 7
        %v3166 = vshll.u32 %v3075, 16
        %v3168 = vor.u32 %v3165, %v3166
        %v3169 = vsel %vm1473, %v3161, %v3168
        %v3171 = vshrl.u32 %v3076, 16
        %v3173 = vrot.slane %v3171, 7
        %v3174 = vrot.slane %v3173, 4
        %v3176 = vshrl.u32 %v3077, 16
        %v3178 = vrot.slane %v3176, 7
        %v3179 = vshll.u32 %v3077, 16
        %v3181 = vor.u32 %v3178, %v3179
        %v3182 = vsel %vm1473, %v3174, %v3181
        %v3183 = vrot.slane %v3178, 4
        %v3185 = vshrl.u32 %v3078, 16
        %v3187 = vrot.slane %v3185, 7
        %v3188 = vshll.u32 %v3078, 16
        %v3190 = vor.u32 %v3187, %v3188
        %v3191 = vsel %vm1473, %v3183, %v3190
        %v3193 = vshrl.u32 %v3079, 16
        %v3195 = vrot.slane %v3193, 7
        %v3196 = vrot.slane %v3195, 4
        %v3198 = vshrl.u32 %v3080, 16
        %v3200 = vrot.slane %v3198, 7
        %v3201 = vshll.u32 %v3080, 16
        %v3203 = vor.u32 %v3200, %v3201
        %v3204 = vsel %vm1473, %v3196, %v3203
        %v3205 = vrot.slane %v3200, 4
        %v3207 = vshrl.u32 %v3081, 16
        %v3209 = vrot.slane %v3207, 7
        %v3210 = vshll.u32 %v3081, 16
        %v3212 = vor.u32 %v3209, %v3210
        %v3213 = vsel %vm1473, %v3205, %v3212
        %v3214 = vld [vmem:[%s3063 + $0xc] sm:$0x1]
        %v3215 = vld [vmem:[%s3063 + $0x1c] sm:$0x1]
        %v3216 = vld [vmem:[%s3063 + $0x2c] sm:$0x1]
        %v3217 = vld [vmem:[%s3063 + $0x3c] sm:$0x1]
        %v3218 = vld [vmem:[%s3063 + $0x4c] sm:$0x1]
        %v3219 = vld [vmem:[%s3063 + $0x5c] sm:$0x1]
        %v3220 = vrot.slane %v3088, 4
        %v3221 = vrot.slane %v3091, 5
        %v3222 = vor.u32 %v3220, %v3221
        %v3223 = vrot.slane %v3222, 4
        %v3224 = vrot.slane %v3100, 5
        %v3225 = vsel %vm1614, %v3223, %v3224
        %v3226 = vrot.slane %v3097, 4
        %v3227 = vor.u32 %v3226, %v3224
        %v3228 = vrot.slane %v3227, 4
        %v3230 = vshll.u32 %v3214, 16
        %v3232 = vrot.slane %v3230, 5
        %v3233 = vsel %vm1614, %v3228, %v3232
        %v3234 = vrot.slane %v3110, 4
        %v3235 = vrot.slane %v3113, 5
        %v3236 = vor.u32 %v3234, %v3235
        %v3237 = vrot.slane %v3236, 4
        %v3238 = vrot.slane %v3122, 5
        %v3239 = vsel %vm1614, %v3237, %v3238
        %v3240 = vrot.slane %v3119, 4
        %v3241 = vor.u32 %v3240, %v3238
        %v3242 = vrot.slane %v3241, 4
        %v3244 = vshll.u32 %v3215, 16
        %v3246 = vrot.slane %v3244, 5
        %v3247 = vsel %vm1614, %v3242, %v3246
        %v3248 = vrot.slane %v3132, 4
        %v3249 = vrot.slane %v3135, 5
        %v3250 = vor.u32 %v3248, %v3249
        %v3251 = vrot.slane %v3250, 4
        %v3252 = vrot.slane %v3144, 5
        %v3253 = vsel %vm1614, %v3251, %v3252
        %v3254 = vrot.slane %v3141, 4
        %v3255 = vor.u32 %v3254, %v3252
        %v3256 = vrot.slane %v3255, 4
        %v3258 = vshll.u32 %v3216, 16
        %v3260 = vrot.slane %v3258, 5
        %v3261 = vsel %vm1614, %v3256, %v3260
        %v3262 = vrot.slane %v3154, 4
        %v3263 = vrot.slane %v3157, 5
        %v3264 = vor.u32 %v3262, %v3263
        %v3265 = vrot.slane %v3264, 4
        %v3266 = vrot.slane %v3166, 5
        %v3267 = vsel %vm1614, %v3265, %v3266
        %v3268 = vrot.slane %v3163, 4
        %v3269 = vor.u32 %v3268, %v3266
        %v3270 = vrot.slane %v3269, 4
        %v3272 = vshll.u32 %v3217, 16
        %v3274 = vrot.slane %v3272, 5
        %v3275 = vsel %vm1614, %v3270, %v3274
        %v3276 = vrot.slane %v3176, 4
        %v3277 = vrot.slane %v3179, 5
        %v3278 = vor.u32 %v3276, %v3277
        %v3279 = vrot.slane %v3278, 4
        %v3280 = vrot.slane %v3188, 5
        %v3281 = vsel %vm1614, %v3279, %v3280
        %v3282 = vrot.slane %v3185, 4
        %v3283 = vor.u32 %v3282, %v3280
        %v3284 = vrot.slane %v3283, 4
        %v3286 = vshll.u32 %v3218, 16
        %v3288 = vrot.slane %v3286, 5
        %v3289 = vsel %vm1614, %v3284, %v3288
        %v3290 = vrot.slane %v3198, 4
        %v3291 = vrot.slane %v3201, 5
        %v3292 = vor.u32 %v3290, %v3291
        %v3293 = vrot.slane %v3292, 4
        %v3294 = vrot.slane %v3210, 5
        %v3295 = vsel %vm1614, %v3293, %v3294
        %v3296 = vrot.slane %v3207, 4
        %v3297 = vor.u32 %v3296, %v3294
        %v3298 = vrot.slane %v3297, 4
        %v3300 = vshll.u32 %v3219, 16
        %v3302 = vrot.slane %v3300, 5
        %v3303 = vsel %vm1614, %v3298, %v3302
        %v3304 = vunpack.c.l.b16 %v2608
        %v3305 = vunpack.c.l.b16 %v2617
        %v3306 = vunpack.c.l.b16 %v2630
        %v3307 = vunpack.c.l.b16 %v2639
        %v3308 = vunpack.c.l.b16 %v2652
        %v3309 = vunpack.c.l.b16 %v2661
        %v3310 = vunpack.c.l.b16 %v2674
        %v3311 = vunpack.c.l.b16 %v2683
        %v3312 = vunpack.c.l.b16 %v2696
        %v3313 = vunpack.c.l.b16 %v2705
        %v3314 = vunpack.c.l.b16 %v2718
        %v3315 = vunpack.c.l.b16 %v2727
        %v3316 = vpack.c.b16 %v3305, %v3304
        %v3317 = vpack.c.b16 %v3307, %v3306
        %v3318 = vpack.c.b16 %v3309, %v3308
        %v3319 = vpack.c.b16 %v3311, %v3310
        %v3320 = vpack.c.b16 %v3313, %v3312
        %v3321 = vpack.c.b16 %v3315, %v3314
        %v3340 = vunpack.c.l.b16 %v2579
        %v3341 = vunpack.c.l.b16 %v2580
        %v3342 = vunpack.c.l.b16 %v2582
        %v3343 = vunpack.c.l.b16 %v2583
        %v3344 = vunpack.c.l.b16 %v2585
        %v3345 = vunpack.c.l.b16 %v2586
        %v3346 = vunpack.c.l.b16 %v2588
        %v3347 = vunpack.c.l.b16 %v2589
        %v3348 = vunpack.c.l.b16 %v2591
        %v3349 = vunpack.c.l.b16 %v2592
        %v3350 = vunpack.c.l.b16 %v2594
        %v3351 = vunpack.c.l.b16 %v2595
        %v3352 = vpack.c.b16 %v3341, %v3340
        %v3353 = vpack.c.b16 %v3343, %v3342
        %v3354 = vpack.c.b16 %v3345, %v3344
        %v3355 = vpack.c.b16 %v3347, %v3346
        %v3356 = vpack.c.b16 %v3349, %v3348
        %v3357 = vpack.c.b16 %v3351, %v3350
        %v3364 = vunpack.c.l.b16 %v2739
        %v3365 = vunpack.c.l.b16 %v2747
        %v3366 = vunpack.c.l.b16 %v2753
        %v3367 = vunpack.c.l.b16 %v2761
        %v3368 = vunpack.c.l.b16 %v2767
        %v3369 = vunpack.c.l.b16 %v2775
        %v3370 = vunpack.c.l.b16 %v2781
        %v3371 = vunpack.c.l.b16 %v2789
        %v3372 = vunpack.c.l.b16 %v2795
        %v3373 = vunpack.c.l.b16 %v2803
        %v3374 = vunpack.c.l.b16 %v2809
        %v3375 = vunpack.c.l.b16 %v2817
        %v3376 = vpack.c.b16 %v3365, %v3364
        %v3377 = vpack.c.b16 %v3367, %v3366
        %v3378 = vpack.c.b16 %v3369, %v3368
        %v3379 = vpack.c.b16 %v3371, %v3370
        %v3380 = vpack.c.b16 %v3373, %v3372
        %v3381 = vpack.c.b16 %v3375, %v3374
        %v3388 = vunpack.c.l.b16 %v2851
        %v3389 = vunpack.c.l.b16 %v2860
        %v3390 = vunpack.c.l.b16 %v2873
        %v3391 = vunpack.c.l.b16 %v2882
        %v3392 = vunpack.c.l.b16 %v2895
        %v3393 = vunpack.c.l.b16 %v2904
        %v3394 = vunpack.c.l.b16 %v2917
        %v3395 = vunpack.c.l.b16 %v2926
        %v3396 = vunpack.c.l.b16 %v2939
        %v3397 = vunpack.c.l.b16 %v2948
        %v3398 = vunpack.c.l.b16 %v2961
        %v3399 = vunpack.c.l.b16 %v2970
        %v3400 = vpack.c.b16 %v3389, %v3388
        %v3401 = vpack.c.b16 %v3391, %v3390
        %v3402 = vpack.c.b16 %v3393, %v3392
        %v3403 = vpack.c.b16 %v3395, %v3394
        %v3404 = vpack.c.b16 %v3397, %v3396
        %v3405 = vpack.c.b16 %v3399, %v3398
        %v3424 = vunpack.c.l.b16 %v2822
        %v3425 = vunpack.c.l.b16 %v2823
        %v3426 = vunpack.c.l.b16 %v2825
        %v3427 = vunpack.c.l.b16 %v2826
        %v3428 = vunpack.c.l.b16 %v2828
        %v3429 = vunpack.c.l.b16 %v2829
        %v3430 = vunpack.c.l.b16 %v2831
        %v3431 = vunpack.c.l.b16 %v2832
        %v3432 = vunpack.c.l.b16 %v2834
        %v3433 = vunpack.c.l.b16 %v2835
        %v3434 = vunpack.c.l.b16 %v2837
        %v3435 = vunpack.c.l.b16 %v2838
        %v3436 = vpack.c.b16 %v3425, %v3424
        %v3437 = vpack.c.b16 %v3427, %v3426
        %v3438 = vpack.c.b16 %v3429, %v3428
        %v3439 = vpack.c.b16 %v3431, %v3430
        %v3440 = vpack.c.b16 %v3433, %v3432
        %v3441 = vpack.c.b16 %v3435, %v3434
        %v3448 = vunpack.c.l.b16 %v2982
        %v3449 = vunpack.c.l.b16 %v2990
        %v3450 = vunpack.c.l.b16 %v2996
        %v3451 = vunpack.c.l.b16 %v3004
        %v3452 = vunpack.c.l.b16 %v3010
        %v3453 = vunpack.c.l.b16 %v3018
        %v3454 = vunpack.c.l.b16 %v3024
        %v3455 = vunpack.c.l.b16 %v3032
        %v3456 = vunpack.c.l.b16 %v3038
        %v3457 = vunpack.c.l.b16 %v3046
        %v3458 = vunpack.c.l.b16 %v3052
        %v3459 = vunpack.c.l.b16 %v3060
        %v3460 = vpack.c.b16 %v3449, %v3448
        %v3461 = vpack.c.b16 %v3451, %v3450
        %v3462 = vpack.c.b16 %v3453, %v3452
        %v3463 = vpack.c.b16 %v3455, %v3454
        %v3464 = vpack.c.b16 %v3457, %v3456
        %v3465 = vpack.c.b16 %v3459, %v3458
        %v3472 = vunpack.c.l.b16 %v3094
        %v3473 = vunpack.c.l.b16 %v3103
        %v3474 = vunpack.c.l.b16 %v3116
        %v3475 = vunpack.c.l.b16 %v3125
        %v3476 = vunpack.c.l.b16 %v3138
        %v3477 = vunpack.c.l.b16 %v3147
        %v3478 = vunpack.c.l.b16 %v3160
        %v3479 = vunpack.c.l.b16 %v3169
        %v3480 = vunpack.c.l.b16 %v3182
        %v3481 = vunpack.c.l.b16 %v3191
        %v3482 = vunpack.c.l.b16 %v3204
        %v3483 = vunpack.c.l.b16 %v3213
        %v3484 = vpack.c.b16 %v3473, %v3472
        %v3485 = vpack.c.b16 %v3475, %v3474
        %v3486 = vpack.c.b16 %v3477, %v3476
        %v3487 = vpack.c.b16 %v3479, %v3478
        %v3488 = vpack.c.b16 %v3481, %v3480
        %v3489 = vpack.c.b16 %v3483, %v3482
        %v3508 = vunpack.c.l.b16 %v3065
        %v3509 = vunpack.c.l.b16 %v3066
        %v3510 = vunpack.c.l.b16 %v3068
        %v3511 = vunpack.c.l.b16 %v3069
        %v3512 = vunpack.c.l.b16 %v3071
        %v3513 = vunpack.c.l.b16 %v3072
        %v3514 = vunpack.c.l.b16 %v3074
        %v3515 = vunpack.c.l.b16 %v3075
        %v3516 = vunpack.c.l.b16 %v3077
        %v3517 = vunpack.c.l.b16 %v3078
        %v3518 = vunpack.c.l.b16 %v3080
        %v3519 = vunpack.c.l.b16 %v3081
        %v3520 = vpack.c.b16 %v3509, %v3508
        %v3521 = vpack.c.b16 %v3511, %v3510
        %v3522 = vpack.c.b16 %v3513, %v3512
        %v3523 = vpack.c.b16 %v3515, %v3514
        %v3524 = vpack.c.b16 %v3517, %v3516
        %v3525 = vpack.c.b16 %v3519, %v3518
        %v3532 = vunpack.c.l.b16 %v3225
        %v3533 = vunpack.c.l.b16 %v3233
        %v3534 = vunpack.c.l.b16 %v3239
        %v3535 = vunpack.c.l.b16 %v3247
        %v3536 = vunpack.c.l.b16 %v3253
        %v3537 = vunpack.c.l.b16 %v3261
        %v3538 = vunpack.c.l.b16 %v3267
        %v3539 = vunpack.c.l.b16 %v3275
        %v3540 = vunpack.c.l.b16 %v3281
        %v3541 = vunpack.c.l.b16 %v3289
        %v3542 = vunpack.c.l.b16 %v3295
        %v3543 = vunpack.c.l.b16 %v3303
        %v3544 = vpack.c.b16 %v3533, %v3532
        %v3545 = vpack.c.b16 %v3535, %v3534
        %v3546 = vpack.c.b16 %v3537, %v3536
        %v3547 = vpack.c.b16 %v3539, %v3538
        %v3548 = vpack.c.b16 %v3541, %v3540
        %v3549 = vpack.c.b16 %v3543, %v3542
        %v3556 = vld [vmem:[%s7] sm:$0xf]
        %v3557 = vld [vmem:[%s7 + $0x4] sm:$0xf]
        %v3558 = vld [vmem:[%s7 + $0x8] sm:$0xf]
        %v3559 = vld [vmem:[%s7 + $0xc] sm:$0xf]
        %v3560 = vld [vmem:[%s7 + $0x10] sm:$0xf]
        %v3561 = vld [vmem:[%s7 + $0x14] sm:$0xf]
        %v3562 = vld [vmem:[%s7 + $0x18] sm:$0xf]
        %v3563 = vld [vmem:[%s7 + $0x1c] sm:$0xf]
        %v3564 = vld [vmem:[%s7 + $0x20] sm:$0xf]
        %v3565 = vld [vmem:[%s7 + $0x24] sm:$0xf]
        %v3566 = vld [vmem:[%s7 + $0x28] sm:$0xf]
        %v3567 = vld [vmem:[%s7 + $0x2c] sm:$0xf]
        %v3568 = vld [vmem:[%s7 + $0x30] sm:$0xf]
        %v3569 = vld [vmem:[%s7 + $0x34] sm:$0xf]
        %v3570 = vld [vmem:[%s7 + $0x38] sm:$0xf]
        %v3571 = vld [vmem:[%s7 + $0x3c] sm:$0xf]
        %v3572 = vld [vmem:[%s7 + $0x40] sm:$0xf]
        %v3573 = vld [vmem:[%s7 + $0x44] sm:$0xf]
        %v3574 = vld [vmem:[%s7 + $0x48] sm:$0xf]
        %v3575 = vld [vmem:[%s7 + $0x4c] sm:$0xf]
        %v3576 = vld [vmem:[%s7 + $0x50] sm:$0xf]
        %v3577 = vld [vmem:[%s7 + $0x54] sm:$0xf]
        %v3578 = vld [vmem:[%s7 + $0x58] sm:$0xf]
        %v3579 = vld [vmem:[%s7 + $0x5c] sm:$0xf]
        %v3580 = vld [vmem:[%s7 + $0x60] sm:$0xf]
        %v3581 = vld [vmem:[%s7 + $0x64] sm:$0xf]
        %v3582 = vld [vmem:[%s7 + $0x68] sm:$0xf]
        %v3583 = vld [vmem:[%s7 + $0x6c] sm:$0xf]
        %v3584 = vld [vmem:[%s7 + $0x70] sm:$0xf]
        %v3585 = vld [vmem:[%s7 + $0x74] sm:$0xf]
        %v3586 = vld [vmem:[%s7 + $0x78] sm:$0xf]
        %v3587 = vld [vmem:[%s7 + $0x7c] sm:$0xf]
        %v3588 = vld [vmem:[%s7 + $0x80] sm:$0xf]
        %v3589 = vld [vmem:[%s7 + $0x84] sm:$0xf]
        %v3590 = vld [vmem:[%s7 + $0x88] sm:$0xf]
        %v3591 = vld [vmem:[%s7 + $0x8c] sm:$0xf]
        %v3592 = vld [vmem:[%s7 + $0x90] sm:$0xf]
        %v3593 = vld [vmem:[%s7 + $0x94] sm:$0xf]
        %v3594 = vld [vmem:[%s7 + $0x98] sm:$0xf]
        %v3595 = vld [vmem:[%s7 + $0x9c] sm:$0xf]
        %v3596 = vld [vmem:[%s7 + $0xa0] sm:$0xf]
        %v3597 = vld [vmem:[%s7 + $0xa4] sm:$0xf]
        %v3598 = vld [vmem:[%s7 + $0xa8] sm:$0xf]
        %v3599 = vld [vmem:[%s7 + $0xac] sm:$0xf]
        %v3600 = vld [vmem:[%s7 + $0xb0] sm:$0xf]
        %v3601 = vld [vmem:[%s7 + $0xb4] sm:$0xf]
        %v3602 = vld [vmem:[%s7 + $0xb8] sm:$0xf]
        %v3603 = vld [vmem:[%s7 + $0xbc] sm:$0xf]
        %v3604 = vld [vmem:[%s7 + $0xc0] sm:$0xf]
        %v3605 = vld [vmem:[%s7 + $0xc4] sm:$0xf]
        %v3606 = vld [vmem:[%s7 + $0xc8] sm:$0xf]
        %v3607 = vld [vmem:[%s7 + $0xcc] sm:$0xf]
        %v3608 = vld [vmem:[%s7 + $0xd0] sm:$0xf]
        %v3609 = vld [vmem:[%s7 + $0xd4] sm:$0xf]
        %v3610 = vld [vmem:[%s7 + $0xd8] sm:$0xf]
        %v3611 = vld [vmem:[%s7 + $0xdc] sm:$0xf]
        %v3612 = vld [vmem:[%s7 + $0xe0] sm:$0xf]
        %v3613 = vld [vmem:[%s7 + $0xe4] sm:$0xf]
        %v3614 = vld [vmem:[%s7 + $0xe8] sm:$0xf]
        %v3615 = vld [vmem:[%s7 + $0xec] sm:$0xf]
        %v3616 = vld [vmem:[%s7 + $0xf0] sm:$0xf]
        %v3617 = vld [vmem:[%s7 + $0xf4] sm:$0xf]
        %v3618 = vld [vmem:[%s7 + $0xf8] sm:$0xf]
        %v3619 = vld [vmem:[%s7 + $0xfc] sm:$0xf]
        %v3620 = vld [vmem:[%s7 + $0x100] sm:$0xf]
        %v3621 = vld [vmem:[%s7 + $0x104] sm:$0xf]
        %v3622 = vld [vmem:[%s7 + $0x108] sm:$0xf]
        %v3623 = vld [vmem:[%s7 + $0x10c] sm:$0xf]
        %v3624 = vld [vmem:[%s7 + $0x110] sm:$0xf]
        %v3625 = vld [vmem:[%s7 + $0x114] sm:$0xf]
        %v3626 = vld [vmem:[%s7 + $0x118] sm:$0xf]
        %v3627 = vld [vmem:[%s7 + $0x11c] sm:$0xf]
        %v3628 = vld [vmem:[%s7 + $0x120] sm:$0xf]
        %v3629 = vld [vmem:[%s7 + $0x124] sm:$0xf]
        %v3630 = vld [vmem:[%s7 + $0x128] sm:$0xf]
        %v3631 = vld [vmem:[%s7 + $0x12c] sm:$0xf]
        %v3632 = vld [vmem:[%s7 + $0x130] sm:$0xf]
        %v3633 = vld [vmem:[%s7 + $0x134] sm:$0xf]
        %v3634 = vld [vmem:[%s7 + $0x138] sm:$0xf]
        %v3635 = vld [vmem:[%s7 + $0x13c] sm:$0xf]
        %v3636 = vld [vmem:[%s7 + $0x140] sm:$0xf]
        %v3637 = vld [vmem:[%s7 + $0x144] sm:$0xf]
        %v3638 = vld [vmem:[%s7 + $0x148] sm:$0xf]
        %v3639 = vld [vmem:[%s7 + $0x14c] sm:$0xf]
        %v3640 = vld [vmem:[%s7 + $0x150] sm:$0xf]
        %v3641 = vld [vmem:[%s7 + $0x154] sm:$0xf]
        %v3642 = vld [vmem:[%s7 + $0x158] sm:$0xf]
        %v3643 = vld [vmem:[%s7 + $0x15c] sm:$0xf]
        %v3644 = vld [vmem:[%s7 + $0x160] sm:$0xf]
        %v3645 = vld [vmem:[%s7 + $0x164] sm:$0xf]
        %v3646 = vld [vmem:[%s7 + $0x168] sm:$0xf]
        %v3647 = vld [vmem:[%s7 + $0x16c] sm:$0xf]
        %v3648 = vld [vmem:[%s7 + $0x170] sm:$0xf]
        %v3649 = vld [vmem:[%s7 + $0x174] sm:$0xf]
        %v3650 = vld [vmem:[%s7 + $0x178] sm:$0xf]
        %v3651 = vld [vmem:[%s7 + $0x17c] sm:$0xf]
        %v3652 = vld [vmem:[%s7 + $0x180] sm:$0xf]
        %v3653 = vld [vmem:[%s7 + $0x184] sm:$0xf]
        %v3654 = vld [vmem:[%s7 + $0x188] sm:$0xf]
        %v3655 = vld [vmem:[%s7 + $0x18c] sm:$0xf]
        %v3656 = vld [vmem:[%s7 + $0x190] sm:$0xf]
        %v3657 = vld [vmem:[%s7 + $0x194] sm:$0xf]
        %v3658 = vld [vmem:[%s7 + $0x198] sm:$0xf]
        %v3659 = vld [vmem:[%s7 + $0x19c] sm:$0xf]
        %v3660 = vld [vmem:[%s7 + $0x1a0] sm:$0xf]
        %v3661 = vld [vmem:[%s7 + $0x1a4] sm:$0xf]
        %v3662 = vld [vmem:[%s7 + $0x1a8] sm:$0xf]
        %v3663 = vld [vmem:[%s7 + $0x1ac] sm:$0xf]
        %v3664 = vld [vmem:[%s7 + $0x1b0] sm:$0xf]
        %v3665 = vld [vmem:[%s7 + $0x1b4] sm:$0xf]
        %v3666 = vld [vmem:[%s7 + $0x1b8] sm:$0xf]
        %v3667 = vld [vmem:[%s7 + $0x1bc] sm:$0xf]
        %v3668 = vld [vmem:[%s7 + $0x1c0] sm:$0xf]
        %v3669 = vld [vmem:[%s7 + $0x1c4] sm:$0xf]
        %v3670 = vld [vmem:[%s7 + $0x1c8] sm:$0xf]
        %v3671 = vld [vmem:[%s7 + $0x1cc] sm:$0xf]
        %v3672 = vld [vmem:[%s7 + $0x1d0] sm:$0xf]
        %v3673 = vld [vmem:[%s7 + $0x1d4] sm:$0xf]
        %v3674 = vld [vmem:[%s7 + $0x1d8] sm:$0xf]
        %v3675 = vld [vmem:[%s7 + $0x1dc] sm:$0xf]
        %v3676 = vld [vmem:[%s7 + $0x1e0] sm:$0xf]
        %v3677 = vld [vmem:[%s7 + $0x1e4] sm:$0xf]
        %v3678 = vld [vmem:[%s7 + $0x1e8] sm:$0xf]
        %v3679 = vld [vmem:[%s7 + $0x1ec] sm:$0xf]
        %v3680 = vld [vmem:[%s7 + $0x1f0] sm:$0xf]
        %v3681 = vld [vmem:[%s7 + $0x1f4] sm:$0xf]
        %v3682 = vld [vmem:[%s7 + $0x1f8] sm:$0xf]
        %v3683 = vld [vmem:[%s7 + $0x1fc] sm:$0xf]
        %v3684 = vld [vmem:[%s7 + $0x200] sm:$0xf]
        %v3685 = vld [vmem:[%s7 + $0x204] sm:$0xf]
        %v3686 = vld [vmem:[%s7 + $0x208] sm:$0xf]
        %v3687 = vld [vmem:[%s7 + $0x20c] sm:$0xf]
        %v3688 = vld [vmem:[%s7 + $0x210] sm:$0xf]
        %v3689 = vld [vmem:[%s7 + $0x214] sm:$0xf]
        %v3690 = vld [vmem:[%s7 + $0x218] sm:$0xf]
        %v3691 = vld [vmem:[%s7 + $0x21c] sm:$0xf]
        %v3692 = vld [vmem:[%s7 + $0x220] sm:$0xf]
        %v3693 = vld [vmem:[%s7 + $0x224] sm:$0xf]
        %v3694 = vld [vmem:[%s7 + $0x228] sm:$0xf]
        %v3695 = vld [vmem:[%s7 + $0x22c] sm:$0xf]
        %v3696 = vld [vmem:[%s7 + $0x230] sm:$0xf]
        %v3697 = vld [vmem:[%s7 + $0x234] sm:$0xf]
        %v3698 = vld [vmem:[%s7 + $0x238] sm:$0xf]
        %v3699 = vld [vmem:[%s7 + $0x23c] sm:$0xf]
        %v3844 = vunpack.c.l.b16 %v3556
        %v3845 = vunpack.c.l.b16 %v3557
        %v3846 = vunpack.c.l.b16 %v3558
        %v3847 = vunpack.c.l.b16 %v3559
        %v3848 = vunpack.c.l.b16 %v3560
        %v3849 = vunpack.c.l.b16 %v3561
        %v3850 = vunpack.c.l.b16 %v3562
        %v3851 = vunpack.c.l.b16 %v3563
        %v3852 = vunpack.c.l.b16 %v3564
        %v3853 = vunpack.c.l.b16 %v3565
        %v3854 = vunpack.c.l.b16 %v3566
        %v3855 = vunpack.c.l.b16 %v3567
        %v3856 = vunpack.c.l.b16 %v3568
        %v3857 = vunpack.c.l.b16 %v3569
        %v3858 = vunpack.c.l.b16 %v3570
        %v3859 = vunpack.c.l.b16 %v3571
        %v3860 = vunpack.c.l.b16 %v3572
        %v3861 = vunpack.c.l.b16 %v3573
        %v3862 = vunpack.c.l.b16 %v3574
        %v3863 = vunpack.c.l.b16 %v3575
        %v3864 = vunpack.c.l.b16 %v3576
        %v3865 = vunpack.c.l.b16 %v3577
        %v3866 = vunpack.c.l.b16 %v3578
        %v3867 = vunpack.c.l.b16 %v3579
        %v3868 = vunpack.c.l.b16 %v3580
        %v3869 = vunpack.c.l.b16 %v3581
        %v3870 = vunpack.c.l.b16 %v3582
        %v3871 = vunpack.c.l.b16 %v3583
        %v3872 = vunpack.c.l.b16 %v3584
        %v3873 = vunpack.c.l.b16 %v3585
        %v3874 = vunpack.c.l.b16 %v3586
        %v3875 = vunpack.c.l.b16 %v3587
        %v3876 = vunpack.c.l.b16 %v3588
        %v3877 = vunpack.c.l.b16 %v3589
        %v3878 = vunpack.c.l.b16 %v3590
        %v3879 = vunpack.c.l.b16 %v3591
        %v3880 = vunpack.c.l.b16 %v3592
        %v3881 = vunpack.c.l.b16 %v3593
        %v3882 = vunpack.c.l.b16 %v3594
        %v3883 = vunpack.c.l.b16 %v3595
        %v3884 = vunpack.c.l.b16 %v3596
        %v3885 = vunpack.c.l.b16 %v3597
        %v3886 = vunpack.c.l.b16 %v3598
        %v3887 = vunpack.c.l.b16 %v3599
        %v3888 = vunpack.c.l.b16 %v3600
        %v3889 = vunpack.c.l.b16 %v3601
        %v3890 = vunpack.c.l.b16 %v3602
        %v3891 = vunpack.c.l.b16 %v3603
        %v3892 = vunpack.c.l.b16 %v3604
        %v3893 = vunpack.c.l.b16 %v3605
        %v3894 = vunpack.c.l.b16 %v3606
        %v3895 = vunpack.c.l.b16 %v3607
        %v3896 = vunpack.c.l.b16 %v3608
        %v3897 = vunpack.c.l.b16 %v3609
        %v3898 = vunpack.c.l.b16 %v3610
        %v3899 = vunpack.c.l.b16 %v3611
        %v3900 = vunpack.c.l.b16 %v3612
        %v3901 = vunpack.c.l.b16 %v3613
        %v3902 = vunpack.c.l.b16 %v3614
        %v3903 = vunpack.c.l.b16 %v3615
        %v3904 = vunpack.c.l.b16 %v3616
        %v3905 = vunpack.c.l.b16 %v3617
        %v3906 = vunpack.c.l.b16 %v3618
        %v3907 = vunpack.c.l.b16 %v3619
        %v3908 = vunpack.c.l.b16 %v3620
        %v3909 = vunpack.c.l.b16 %v3621
        %v3910 = vunpack.c.l.b16 %v3622
        %v3911 = vunpack.c.l.b16 %v3623
        %v3912 = vunpack.c.l.b16 %v3624
        %v3913 = vunpack.c.l.b16 %v3625
        %v3914 = vunpack.c.l.b16 %v3626
        %v3915 = vunpack.c.l.b16 %v3627
        %v3916 = vunpack.c.l.b16 %v3628
        %v3917 = vunpack.c.l.b16 %v3629
        %v3918 = vunpack.c.l.b16 %v3630
        %v3919 = vunpack.c.l.b16 %v3631
        %v3920 = vunpack.c.l.b16 %v3632
        %v3921 = vunpack.c.l.b16 %v3633
        %v3922 = vunpack.c.l.b16 %v3634
        %v3923 = vunpack.c.l.b16 %v3635
        %v3924 = vunpack.c.l.b16 %v3636
        %v3925 = vunpack.c.l.b16 %v3637
        %v3926 = vunpack.c.l.b16 %v3638
        %v3927 = vunpack.c.l.b16 %v3639
        %v3928 = vunpack.c.l.b16 %v3640
        %v3929 = vunpack.c.l.b16 %v3641
        %v3930 = vunpack.c.l.b16 %v3642
        %v3931 = vunpack.c.l.b16 %v3643
        %v3932 = vunpack.c.l.b16 %v3644
        %v3933 = vunpack.c.l.b16 %v3645
        %v3934 = vunpack.c.l.b16 %v3646
        %v3935 = vunpack.c.l.b16 %v3647
        %v3936 = vunpack.c.l.b16 %v3648
        %v3937 = vunpack.c.l.b16 %v3649
        %v3938 = vunpack.c.l.b16 %v3650
        %v3939 = vunpack.c.l.b16 %v3651
        %v3940 = vunpack.c.l.b16 %v3652
        %v3941 = vunpack.c.l.b16 %v3653
        %v3942 = vunpack.c.l.b16 %v3654
        %v3943 = vunpack.c.l.b16 %v3655
        %v3944 = vunpack.c.l.b16 %v3656
        %v3945 = vunpack.c.l.b16 %v3657
        %v3946 = vunpack.c.l.b16 %v3658
        %v3947 = vunpack.c.l.b16 %v3659
        %v3948 = vunpack.c.l.b16 %v3660
        %v3949 = vunpack.c.l.b16 %v3661
        %v3950 = vunpack.c.l.b16 %v3662
        %v3951 = vunpack.c.l.b16 %v3663
        %v3952 = vunpack.c.l.b16 %v3664
        %v3953 = vunpack.c.l.b16 %v3665
        %v3954 = vunpack.c.l.b16 %v3666
        %v3955 = vunpack.c.l.b16 %v3667
        %v3956 = vunpack.c.l.b16 %v3668
        %v3957 = vunpack.c.l.b16 %v3669
        %v3958 = vunpack.c.l.b16 %v3670
        %v3959 = vunpack.c.l.b16 %v3671
        %v3960 = vunpack.c.l.b16 %v3672
        %v3961 = vunpack.c.l.b16 %v3673
        %v3962 = vunpack.c.l.b16 %v3674
        %v3963 = vunpack.c.l.b16 %v3675
        %v3964 = vunpack.c.l.b16 %v3676
        %v3965 = vunpack.c.l.b16 %v3677
        %v3966 = vunpack.c.l.b16 %v3678
        %v3967 = vunpack.c.l.b16 %v3679
        %v3968 = vunpack.c.l.b16 %v3680
        %v3969 = vunpack.c.l.b16 %v3681
        %v3970 = vunpack.c.l.b16 %v3682
        %v3971 = vunpack.c.l.b16 %v3683
        %v3972 = vunpack.c.l.b16 %v3684
        %v3973 = vunpack.c.l.b16 %v3685
        %v3974 = vunpack.c.l.b16 %v3686
        %v3975 = vunpack.c.l.b16 %v3687
        %v3976 = vunpack.c.l.b16 %v3688
        %v3977 = vunpack.c.l.b16 %v3689
        %v3978 = vunpack.c.l.b16 %v3690
        %v3979 = vunpack.c.l.b16 %v3691
        %v3980 = vunpack.c.l.b16 %v3692
        %v3981 = vunpack.c.l.b16 %v3693
        %v3982 = vunpack.c.l.b16 %v3694
        %v3983 = vunpack.c.l.b16 %v3695
        %v3984 = vunpack.c.l.b16 %v3696
        %v3985 = vunpack.c.l.b16 %v3697
        %v3986 = vunpack.c.l.b16 %v3698
        %v3987 = vunpack.c.l.b16 %v3699
        %v3988 = vpack.c.b16 %v3845, %v3844
        %v3989 = vpack.c.b16 %v3847, %v3846
        %v3990 = vpack.c.b16 %v3849, %v3848
        %v3991 = vpack.c.b16 %v3851, %v3850
        %v3992 = vpack.c.b16 %v3853, %v3852
        %v3993 = vpack.c.b16 %v3855, %v3854
        %v3994 = vpack.c.b16 %v3857, %v3856
        %v3995 = vpack.c.b16 %v3859, %v3858
        %v3996 = vpack.c.b16 %v3861, %v3860
        %v3997 = vpack.c.b16 %v3863, %v3862
        %v3998 = vpack.c.b16 %v3865, %v3864
        %v3999 = vpack.c.b16 %v3867, %v3866
        %v4000 = vpack.c.b16 %v3869, %v3868
        %v4001 = vpack.c.b16 %v3871, %v3870
        %v4002 = vpack.c.b16 %v3873, %v3872
        %v4003 = vpack.c.b16 %v3875, %v3874
        %v4004 = vpack.c.b16 %v3877, %v3876
        %v4005 = vpack.c.b16 %v3879, %v3878
        %v4006 = vpack.c.b16 %v3881, %v3880
        %v4007 = vpack.c.b16 %v3883, %v3882
        %v4008 = vpack.c.b16 %v3885, %v3884
        %v4009 = vpack.c.b16 %v3887, %v3886
        %v4010 = vpack.c.b16 %v3889, %v3888
        %v4011 = vpack.c.b16 %v3891, %v3890
        %v4012 = vpack.c.b16 %v3893, %v3892
        %v4013 = vpack.c.b16 %v3895, %v3894
        %v4014 = vpack.c.b16 %v3897, %v3896
        %v4015 = vpack.c.b16 %v3899, %v3898
        %v4016 = vpack.c.b16 %v3901, %v3900
        %v4017 = vpack.c.b16 %v3903, %v3902
        %v4018 = vpack.c.b16 %v3905, %v3904
        %v4019 = vpack.c.b16 %v3907, %v3906
        %v4020 = vpack.c.b16 %v3909, %v3908
        %v4021 = vpack.c.b16 %v3911, %v3910
        %v4022 = vpack.c.b16 %v3913, %v3912
        %v4023 = vpack.c.b16 %v3915, %v3914
        %v4024 = vpack.c.b16 %v3917, %v3916
        %v4025 = vpack.c.b16 %v3919, %v3918
        %v4026 = vpack.c.b16 %v3921, %v3920
        %v4027 = vpack.c.b16 %v3923, %v3922
        %v4028 = vpack.c.b16 %v3925, %v3924
        %v4029 = vpack.c.b16 %v3927, %v3926
        %v4030 = vpack.c.b16 %v3929, %v3928
        %v4031 = vpack.c.b16 %v3931, %v3930
        %v4032 = vpack.c.b16 %v3933, %v3932
        %v4033 = vpack.c.b16 %v3935, %v3934
        %v4034 = vpack.c.b16 %v3937, %v3936
        %v4035 = vpack.c.b16 %v3939, %v3938
        %v4036 = vpack.c.b16 %v3941, %v3940
        %v4037 = vpack.c.b16 %v3943, %v3942
        %v4038 = vpack.c.b16 %v3945, %v3944
        %v4039 = vpack.c.b16 %v3947, %v3946
        %v4040 = vpack.c.b16 %v3949, %v3948
        %v4041 = vpack.c.b16 %v3951, %v3950
        %v4042 = vpack.c.b16 %v3953, %v3952
        %v4043 = vpack.c.b16 %v3955, %v3954
        %v4044 = vpack.c.b16 %v3957, %v3956
        %v4045 = vpack.c.b16 %v3959, %v3958
        %v4046 = vpack.c.b16 %v3961, %v3960
        %v4047 = vpack.c.b16 %v3963, %v3962
        %v4048 = vpack.c.b16 %v3965, %v3964
        %v4049 = vpack.c.b16 %v3967, %v3966
        %v4050 = vpack.c.b16 %v3969, %v3968
        %v4051 = vpack.c.b16 %v3971, %v3970
        %v4052 = vpack.c.b16 %v3973, %v3972
        %v4053 = vpack.c.b16 %v3975, %v3974
        %v4054 = vpack.c.b16 %v3977, %v3976
        %v4055 = vpack.c.b16 %v3979, %v3978
        %v4056 = vpack.c.b16 %v3981, %v3980
        %v4057 = vpack.c.b16 %v3983, %v3982
        %v4058 = vpack.c.b16 %v3985, %v3984
        %v4059 = vpack.c.b16 %v3987, %v3986
        %4132 = vmatprep.subr.bf16.mxu0 0
        %4133 = vmatpush1.bf16.msra.mxu0 %v3995
        %4134 = vmatprep.subr.bf16.mxu0 0
        %4135 = vmatpush1.bf16.msra.mxu0 %v3994
        %4136 = vmatprep.subr.bf16.mxu0 0
        %4137 = vmatpush1.bf16.msra.mxu0 %v3993
        %4138 = vmatprep.subr.bf16.mxu0 0
        %4139 = vmatpush1.bf16.msra.mxu0 %v3992
        %4140 = vmatprep.subr.bf16.mxu0 0
        %4141 = vmatpush1.bf16.msra.mxu0 %v3991
        %4142 = vmatprep.subr.bf16.mxu0 0
        %4143 = vmatpush1.bf16.msra.mxu0 %v3990
        %4144 = vmatprep.subr.bf16.mxu0 0
        %4145 = vmatpush1.bf16.msra.mxu0 %v3989
        %4146 = vmatprep.subr.bf16.mxu0 0
        %4147 = vmatpush1.bf16.msra.mxu0 %v3988
        %4148 = vmatprep.subr.bf16.mxu0 0
        %4149 = vmatpush2.bf16.msra.mxu0 %v4003
        %4150 = vmatprep.subr.bf16.mxu0 0
        %4151 = vmatpush2.bf16.msra.mxu0 %v4002
        %4152 = vmatprep.subr.bf16.mxu0 0
        %4153 = vmatpush2.bf16.msra.mxu0 %v4001
        %4154 = vmatprep.subr.bf16.mxu0 0
        %4155 = vmatpush2.bf16.msra.mxu0 %v4000
        %4156 = vmatprep.subr.bf16.mxu0 0
        %4157 = vmatpush2.bf16.msra.mxu0 %v3999
        %4158 = vmatprep.subr.bf16.mxu0 0
        %4159 = vmatpush2.bf16.msra.mxu0 %v3998
        %4160 = vmatprep.subr.bf16.mxu0 0
        %4161 = vmatpush2.bf16.msra.mxu0 %v3997
        %4162 = vmatprep.subr.bf16.mxu0 0
        %4163 = vmatpush2.bf16.msra.mxu0 %v3996
        %4164 = vmatprep.mubr.bf16.mxu0 %v3352
        %4165 = vmatmul.mubr.bf16.gmra.mxu0 %v3316
        %v4166 = vpop.f32.mrf.mxu0
        %v4167 = vadd.f32 0.0, %v4166
        %v4168 = vpop.f32.mrf.mxu0
        %v4169 = vpop.f32.mrf.mxu0
        %v4170 = vadd.f32 0.0, %v4169
        %v4171 = vpop.f32.mrf.mxu0
        %4172 = vmatprep.mubr.bf16.mxu0 %v3353
        %4173 = vmatmul.mubr.bf16.gmra.mxu0 %v3317
        %v4174 = vpop.f32.mrf.mxu0
        %v4175 = vadd.f32 0.0, %v4174
        %v4176 = vpop.f32.mrf.mxu0
        %v4177 = vpop.f32.mrf.mxu0
        %v4178 = vadd.f32 0.0, %v4177
        %v4179 = vpop.f32.mrf.mxu0
        %4180 = vmatprep.mubr.bf16.mxu0 %v3354
        %4181 = vmatmul.mubr.bf16.gmra.mxu0 %v3318
        %v4182 = vpop.f32.mrf.mxu0
        %v4183 = vadd.f32 0.0, %v4182
        %v4184 = vpop.f32.mrf.mxu0
        %v4185 = vpop.f32.mrf.mxu0
        %v4186 = vadd.f32 0.0, %v4185
        %v4187 = vpop.f32.mrf.mxu0
        %4188 = vmatprep.mubr.bf16.mxu0 %v3355
        %4189 = vmatmul.mubr.bf16.gmra.mxu0 %v3319
        %v4190 = vpop.f32.mrf.mxu0
        %v4191 = vadd.f32 0.0, %v4190
        %v4192 = vpop.f32.mrf.mxu0
        %v4193 = vpop.f32.mrf.mxu0
        %v4194 = vadd.f32 0.0, %v4193
        %v4195 = vpop.f32.mrf.mxu0
        %4196 = vmatprep.mubr.bf16.mxu0 %v3356
        %4197 = vmatmul.mubr.bf16.gmra.mxu0 %v3320
        %v4198 = vpop.f32.mrf.mxu0
        %v4199 = vadd.f32 0.0, %v4198
        %v4200 = vpop.f32.mrf.mxu0
        %v4201 = vpop.f32.mrf.mxu0
        %v4202 = vadd.f32 0.0, %v4201
        %v4203 = vpop.f32.mrf.mxu0
        %4204 = vmatprep.mubr.bf16.mxu0 %v3357
        %4205 = vmatmul.mubr.bf16.gmra.mxu0 %v3321
        %v4206 = vpop.f32.mrf.mxu0
        %v4207 = vadd.f32 0.0, %v4206
        %v4208 = vpop.f32.mrf.mxu0
        %v4209 = vpop.f32.mrf.mxu0
        %v4210 = vadd.f32 0.0, %v4209
        %v4211 = vpop.f32.mrf.mxu0
        %4212 = vdwg.mxu0
        %4213 = vmatprep.subr.bf16.mxu0 0
        %4214 = vmatpush1.bf16.msra.mxu0 %v4011
        %4215 = vmatprep.subr.bf16.mxu0 0
        %4216 = vmatpush1.bf16.msra.mxu0 %v4010
        %4217 = vmatprep.subr.bf16.mxu0 0
        %4218 = vmatpush1.bf16.msra.mxu0 %v4009
        %4219 = vmatprep.subr.bf16.mxu0 0
        %4220 = vmatpush1.bf16.msra.mxu0 %v4008
        %4221 = vmatprep.subr.bf16.mxu0 0
        %4222 = vmatpush1.bf16.msra.mxu0 %v4007
        %4223 = vmatprep.subr.bf16.mxu0 0
        %4224 = vmatpush1.bf16.msra.mxu0 %v4006
        %4225 = vmatprep.subr.bf16.mxu0 0
        %4226 = vmatpush1.bf16.msra.mxu0 %v4005
        %4227 = vmatprep.subr.bf16.mxu0 0
        %4228 = vmatpush1.bf16.msra.mxu0 %v4004
        %4229 = vmatprep.subr.bf16.mxu0 0
        %4230 = vmatpush2.bf16.msra.mxu0 %v4019
        %4231 = vmatprep.subr.bf16.mxu0 0
        %4232 = vmatpush2.bf16.msra.mxu0 %v4018
        %4233 = vmatprep.subr.bf16.mxu0 0
        %4234 = vmatpush2.bf16.msra.mxu0 %v4017
        %4235 = vmatprep.subr.bf16.mxu0 0
        %4236 = vmatpush2.bf16.msra.mxu0 %v4016
        %4237 = vmatprep.subr.bf16.mxu0 0
        %4238 = vmatpush2.bf16.msra.mxu0 %v4015
        %4239 = vmatprep.subr.bf16.mxu0 0
        %4240 = vmatpush2.bf16.msra.mxu0 %v4014
        %4241 = vmatprep.subr.bf16.mxu0 0
        %4242 = vmatpush2.bf16.msra.mxu0 %v4013
        %4243 = vmatprep.subr.bf16.mxu0 0
        %4244 = vmatpush2.bf16.msra.mxu0 %v4012
        %4245 = vmatprep.mubr.bf16.mxu0 %v3400
        %4246 = vmatmul.mubr.bf16.gmra.mxu0 %v3376
        %v4247 = vpop.f32.mrf.mxu0
        %v4248 = vadd.f32 %v4167, %v4247
        %v4249 = vpop.f32.mrf.mxu0
        %v4250 = vpop.f32.mrf.mxu0
        %v4251 = vadd.f32 %v4170, %v4250
        %v4252 = vpop.f32.mrf.mxu0
        %4253 = vmatprep.mubr.bf16.mxu0 %v3401
        %4254 = vmatmul.mubr.bf16.gmra.mxu0 %v3377
        %v4255 = vpop.f32.mrf.mxu0
        %v4256 = vadd.f32 %v4175, %v4255
        %v4257 = vpop.f32.mrf.mxu0
        %v4258 = vpop.f32.mrf.mxu0
        %v4259 = vadd.f32 %v4178, %v4258
        %v4260 = vpop.f32.mrf.mxu0
        %4261 = vmatprep.mubr.bf16.mxu0 %v3402
        %4262 = vmatmul.mubr.bf16.gmra.mxu0 %v3378
        %v4263 = vpop.f32.mrf.mxu0
        %v4264 = vadd.f32 %v4183, %v4263
        %v4265 = vpop.f32.mrf.mxu0
        %v4266 = vpop.f32.mrf.mxu0
        %v4267 = vadd.f32 %v4186, %v4266
        %v4268 = vpop.f32.mrf.mxu0
        %4269 = vmatprep.mubr.bf16.mxu0 %v3403
        %4270 = vmatmul.mubr.bf16.gmra.mxu0 %v3379
        %v4271 = vpop.f32.mrf.mxu0
        %v4272 = vadd.f32 %v4191, %v4271
        %v4273 = vpop.f32.mrf.mxu0
        %v4274 = vpop.f32.mrf.mxu0
        %v4275 = vadd.f32 %v4194, %v4274
        %v4276 = vpop.f32.mrf.mxu0
        %4277 = vmatprep.mubr.bf16.mxu0 %v3404
        %4278 = vmatmul.mubr.bf16.gmra.mxu0 %v3380
        %v4279 = vpop.f32.mrf.mxu0
        %v4280 = vadd.f32 %v4199, %v4279
        %v4281 = vpop.f32.mrf.mxu0
        %v4282 = vpop.f32.mrf.mxu0
        %v4283 = vadd.f32 %v4202, %v4282
        %v4284 = vpop.f32.mrf.mxu0
        %4285 = vmatprep.mubr.bf16.mxu0 %v3405
        %4286 = vmatmul.mubr.bf16.gmra.mxu0 %v3381
        %v4287 = vpop.f32.mrf.mxu0
        %v4288 = vadd.f32 %v4207, %v4287
        %v4289 = vpop.f32.mrf.mxu0
        %v4290 = vpop.f32.mrf.mxu0
        %v4291 = vadd.f32 %v4210, %v4290
        %v4292 = vpop.f32.mrf.mxu0
        %4293 = vdwg.mxu0
        %4294 = vmatprep.subr.bf16.mxu0 0
        %4295 = vmatpush1.bf16.msra.mxu0 %v4027
        %4296 = vmatprep.subr.bf16.mxu0 0
        %4297 = vmatpush1.bf16.msra.mxu0 %v4026
        %4298 = vmatprep.subr.bf16.mxu0 0
        %4299 = vmatpush1.bf16.msra.mxu0 %v4025
        %4300 = vmatprep.subr.bf16.mxu0 0
        %4301 = vmatpush1.bf16.msra.mxu0 %v4024
        %4302 = vmatprep.subr.bf16.mxu0 0
        %4303 = vmatpush1.bf16.msra.mxu0 %v4023
        %4304 = vmatprep.subr.bf16.mxu0 0
        %4305 = vmatpush1.bf16.msra.mxu0 %v4022
        %4306 = vmatprep.subr.bf16.mxu0 0
        %4307 = vmatpush1.bf16.msra.mxu0 %v4021
        %4308 = vmatprep.subr.bf16.mxu0 0
        %4309 = vmatpush1.bf16.msra.mxu0 %v4020
        %4310 = vmatprep.subr.bf16.mxu0 0
        %4311 = vmatpush2.bf16.msra.mxu0 %v4035
        %4312 = vmatprep.subr.bf16.mxu0 0
        %4313 = vmatpush2.bf16.msra.mxu0 %v4034
        %4314 = vmatprep.subr.bf16.mxu0 0
        %4315 = vmatpush2.bf16.msra.mxu0 %v4033
        %4316 = vmatprep.subr.bf16.mxu0 0
        %4317 = vmatpush2.bf16.msra.mxu0 %v4032
        %4318 = vmatprep.subr.bf16.mxu0 0
        %4319 = vmatpush2.bf16.msra.mxu0 %v4031
        %4320 = vmatprep.subr.bf16.mxu0 0
        %4321 = vmatpush2.bf16.msra.mxu0 %v4030
        %4322 = vmatprep.subr.bf16.mxu0 0
        %4323 = vmatpush2.bf16.msra.mxu0 %v4029
        %4324 = vmatprep.subr.bf16.mxu0 0
        %4325 = vmatpush2.bf16.msra.mxu0 %v4028
        %4326 = vmatprep.mubr.bf16.mxu0 %v3460
        %4327 = vmatmul.mubr.bf16.gmra.mxu0 %v3436
        %v4328 = vpop.f32.mrf.mxu0
        %v4329 = vadd.f32 %v4248, %v4328
        %v4330 = vpop.f32.mrf.mxu0
        %v4331 = vpop.f32.mrf.mxu0
        %v4332 = vadd.f32 %v4251, %v4331
        %v4333 = vpop.f32.mrf.mxu0
        %4334 = vmatprep.mubr.bf16.mxu0 %v3461
        %4335 = vmatmul.mubr.bf16.gmra.mxu0 %v3437
        %v4336 = vpop.f32.mrf.mxu0
        %v4337 = vadd.f32 %v4256, %v4336
        %v4338 = vpop.f32.mrf.mxu0
        %v4339 = vpop.f32.mrf.mxu0
        %v4340 = vadd.f32 %v4259, %v4339
        %v4341 = vpop.f32.mrf.mxu0
        %4342 = vmatprep.mubr.bf16.mxu0 %v3462
        %4343 = vmatmul.mubr.bf16.gmra.mxu0 %v3438
        %v4344 = vpop.f32.mrf.mxu0
        %v4345 = vadd.f32 %v4264, %v4344
        %v4346 = vpop.f32.mrf.mxu0
        %v4347 = vpop.f32.mrf.mxu0
        %v4348 = vadd.f32 %v4267, %v4347
        %v4349 = vpop.f32.mrf.mxu0
        %4350 = vmatprep.mubr.bf16.mxu0 %v3463
        %4351 = vmatmul.mubr.bf16.gmra.mxu0 %v3439
        %v4352 = vpop.f32.mrf.mxu0
        %v4353 = vadd.f32 %v4272, %v4352
        %v4354 = vpop.f32.mrf.mxu0
        %v4355 = vpop.f32.mrf.mxu0
        %v4356 = vadd.f32 %v4275, %v4355
        %v4357 = vpop.f32.mrf.mxu0
        %4358 = vmatprep.mubr.bf16.mxu0 %v3464
        %4359 = vmatmul.mubr.bf16.gmra.mxu0 %v3440
        %v4360 = vpop.f32.mrf.mxu0
        %v4361 = vadd.f32 %v4280, %v4360
        %v4362 = vpop.f32.mrf.mxu0
        %v4363 = vpop.f32.mrf.mxu0
        %v4364 = vadd.f32 %v4283, %v4363
        %v4365 = vpop.f32.mrf.mxu0
        %4366 = vmatprep.mubr.bf16.mxu0 %v3465
        %4367 = vmatmul.mubr.bf16.gmra.mxu0 %v3441
        %v4368 = vpop.f32.mrf.mxu0
        %v4369 = vadd.f32 %v4288, %v4368
        %v4370 = vpop.f32.mrf.mxu0
        %v4371 = vpop.f32.mrf.mxu0
        %v4372 = vadd.f32 %v4291, %v4371
        %v4373 = vpop.f32.mrf.mxu0
        %4374 = vdwg.mxu0
        %4375 = vmatprep.subr.bf16.mxu0 0
        %4376 = vmatpush1.bf16.msra.mxu0 %v4043
        %4377 = vmatprep.subr.bf16.mxu0 0
        %4378 = vmatpush1.bf16.msra.mxu0 %v4042
        %4379 = vmatprep.subr.bf16.mxu0 0
        %4380 = vmatpush1.bf16.msra.mxu0 %v4041
        %4381 = vmatprep.subr.bf16.mxu0 0
        %4382 = vmatpush1.bf16.msra.mxu0 %v4040
        %4383 = vmatprep.subr.bf16.mxu0 0
        %4384 = vmatpush1.bf16.msra.mxu0 %v4039
        %4385 = vmatprep.subr.bf16.mxu0 0
        %4386 = vmatpush1.bf16.msra.mxu0 %v4038
        %4387 = vmatprep.subr.bf16.mxu0 0
        %4388 = vmatpush1.bf16.msra.mxu0 %v4037
        %4389 = vmatprep.subr.bf16.mxu0 0
        %4390 = vmatpush1.bf16.msra.mxu0 %v4036
        %4391 = vmatprep.subr.bf16.mxu0 0
        %4392 = vmatpush2.bf16.msra.mxu0 %v4051
        %4393 = vmatprep.subr.bf16.mxu0 0
        %4394 = vmatpush2.bf16.msra.mxu0 %v4050
        %4395 = vmatprep.subr.bf16.mxu0 0
        %4396 = vmatpush2.bf16.msra.mxu0 %v4049
        %4397 = vmatprep.subr.bf16.mxu0 0
        %4398 = vmatpush2.bf16.msra.mxu0 %v4048
        %4399 = vmatprep.subr.bf16.mxu0 0
        %4400 = vmatpush2.bf16.msra.mxu0 %v4047
        %4401 = vmatprep.subr.bf16.mxu0 0
        %4402 = vmatpush2.bf16.msra.mxu0 %v4046
        %4403 = vmatprep.subr.bf16.mxu0 0
        %4404 = vmatpush2.bf16.msra.mxu0 %v4045
        %4405 = vmatprep.subr.bf16.mxu0 0
        %4406 = vmatpush2.bf16.msra.mxu0 %v4044
        %4407 = vmatprep.mubr.bf16.mxu0 %v3520
        %4408 = vmatmul.mubr.bf16.gmra.mxu0 %v3484
        %v4409 = vpop.f32.mrf.mxu0
        %v4410 = vadd.f32 %v4329, %v4409
        %v4411 = vpop.f32.mrf.mxu0
        %v4412 = vpop.f32.mrf.mxu0
        %v4413 = vadd.f32 %v4332, %v4412
        %v4414 = vpop.f32.mrf.mxu0
        %4415 = vmatprep.mubr.bf16.mxu0 %v3521
        %4416 = vmatmul.mubr.bf16.gmra.mxu0 %v3485
        %v4417 = vpop.f32.mrf.mxu0
        %v4418 = vadd.f32 %v4337, %v4417
        %v4419 = vpop.f32.mrf.mxu0
        %v4420 = vpop.f32.mrf.mxu0
        %v4421 = vadd.f32 %v4340, %v4420
        %v4422 = vpop.f32.mrf.mxu0
        %4423 = vmatprep.mubr.bf16.mxu0 %v3522
        %4424 = vmatmul.mubr.bf16.gmra.mxu0 %v3486
        %v4425 = vpop.f32.mrf.mxu0
        %v4426 = vadd.f32 %v4345, %v4425
        %v4427 = vpop.f32.mrf.mxu0
        %v4428 = vpop.f32.mrf.mxu0
        %v4429 = vadd.f32 %v4348, %v4428
        %v4430 = vpop.f32.mrf.mxu0
        %4431 = vmatprep.mubr.bf16.mxu0 %v3523
        %4432 = vmatmul.mubr.bf16.gmra.mxu0 %v3487
        %v4433 = vpop.f32.mrf.mxu0
        %v4434 = vadd.f32 %v4353, %v4433
        %v4435 = vpop.f32.mrf.mxu0
        %v4436 = vpop.f32.mrf.mxu0
        %v4437 = vadd.f32 %v4356, %v4436
        %v4438 = vpop.f32.mrf.mxu0
        %4439 = vmatprep.mubr.bf16.mxu0 %v3524
        %4440 = vmatmul.mubr.bf16.gmra.mxu0 %v3488
        %v4441 = vpop.f32.mrf.mxu0
        %v4442 = vadd.f32 %v4361, %v4441
        %v4443 = vpop.f32.mrf.mxu0
        %v4444 = vpop.f32.mrf.mxu0
        %v4445 = vadd.f32 %v4364, %v4444
        %v4446 = vpop.f32.mrf.mxu0
        %4447 = vmatprep.mubr.bf16.mxu0 %v3525
        %4448 = vmatmul.mubr.bf16.gmra.mxu0 %v3489
        %v4449 = vpop.f32.mrf.mxu0
        %v4450 = vadd.f32 %v4369, %v4449
        %v4451 = vpop.f32.mrf.mxu0
        %v4452 = vpop.f32.mrf.mxu0
        %v4453 = vadd.f32 %v4372, %v4452
        %v4454 = vpop.f32.mrf.mxu0
        %4455 = vdwg.mxu0
        %4456 = vmatprep.subr.bf16.mxu0 0
        %4457 = vmatpush1.bf16.msra.mxu0 %v4059
        %4458 = vmatprep.subr.bf16.mxu0 0
        %4459 = vmatpush1.bf16.msra.mxu0 %v4058
        %4460 = vmatprep.subr.bf16.mxu0 0
        %4461 = vmatpush1.bf16.msra.mxu0 %v4057
        %4462 = vmatprep.subr.bf16.mxu0 0
        %4463 = vmatpush1.bf16.msra.mxu0 %v4056
        %4464 = vmatprep.subr.bf16.mxu0 0
        %4465 = vmatpush1.bf16.msra.mxu0 %v4055
        %4466 = vmatprep.subr.bf16.mxu0 0
        %4467 = vmatpush1.bf16.msra.mxu0 %v4054
        %4468 = vmatprep.subr.bf16.mxu0 0
        %4469 = vmatpush1.bf16.msra.mxu0 %v4053
        %4470 = vmatprep.subr.bf16.mxu0 0
        %4471 = vmatpush1.bf16.msra.mxu0 %v4052
        %4472 = vmatprep.subr.bf16.mxu0 0
        %4473 = vmatpush2.bf16.msra.mxu0 0
        %4474 = vmatprep.subr.bf16.mxu0 0
        %4475 = vmatpush2.bf16.msra.mxu0 0
        %4476 = vmatprep.subr.bf16.mxu0 0
        %4477 = vmatpush2.bf16.msra.mxu0 0
        %4478 = vmatprep.subr.bf16.mxu0 0
        %4479 = vmatpush2.bf16.msra.mxu0 0
        %4480 = vmatprep.subr.bf16.mxu0 0
        %4481 = vmatpush2.bf16.msra.mxu0 0
        %4482 = vmatprep.subr.bf16.mxu0 0
        %4483 = vmatpush2.bf16.msra.mxu0 0
        %4484 = vmatprep.subr.bf16.mxu0 0
        %4485 = vmatpush2.bf16.msra.mxu0 0
        %4486 = vmatprep.subr.bf16.mxu0 0
        %4487 = vmatpush2.bf16.msra.mxu0 0
        %4488 = vmatprep.mubr.bf16.mxu0 0
        %4489 = vmatmul.mubr.bf16.gmra.mxu0 %v3544
        %v4490 = vpop.f32.mrf.mxu0
        %v4491 = vadd.f32 %v4410, %v4490
        %v4492 = vpop.f32.mrf.mxu0
        %v4493 = vpop.f32.mrf.mxu0
        %v4494 = vadd.f32 %v4413, %v4493
        %v4495 = vpop.f32.mrf.mxu0
        %4496 = vmatprep.mubr.bf16.mxu0 0
        %4497 = vmatmul.mubr.bf16.gmra.mxu0 %v3545
        %v4498 = vpop.f32.mrf.mxu0
        %v4499 = vadd.f32 %v4418, %v4498
        %v4500 = vpop.f32.mrf.mxu0
        %v4501 = vpop.f32.mrf.mxu0
        %v4502 = vadd.f32 %v4421, %v4501
        %v4503 = vpop.f32.mrf.mxu0
        %4504 = vmatprep.mubr.bf16.mxu0 0
        %4505 = vmatmul.mubr.bf16.gmra.mxu0 %v3546
        %v4506 = vpop.f32.mrf.mxu0
        %v4507 = vadd.f32 %v4426, %v4506
        %v4508 = vpop.f32.mrf.mxu0
        %v4509 = vpop.f32.mrf.mxu0
        %v4510 = vadd.f32 %v4429, %v4509
        %v4511 = vpop.f32.mrf.mxu0
        %4512 = vmatprep.mubr.bf16.mxu0 0
        %4513 = vmatmul.mubr.bf16.gmra.mxu0 %v3547
        %v4514 = vpop.f32.mrf.mxu0
        %v4515 = vadd.f32 %v4434, %v4514
        %v4516 = vpop.f32.mrf.mxu0
        %v4517 = vpop.f32.mrf.mxu0
        %v4518 = vadd.f32 %v4437, %v4517
        %v4519 = vpop.f32.mrf.mxu0
        %4520 = vmatprep.mubr.bf16.mxu0 0
        %4521 = vmatmul.mubr.bf16.gmra.mxu0 %v3548
        %v4522 = vpop.f32.mrf.mxu0
        %v4523 = vadd.f32 %v4442, %v4522
        %v4524 = vpop.f32.mrf.mxu0
        %v4525 = vpop.f32.mrf.mxu0
        %v4526 = vadd.f32 %v4445, %v4525
        %v4527 = vpop.f32.mrf.mxu0
        %4528 = vmatprep.mubr.bf16.mxu0 0
        %4529 = vmatmul.mubr.bf16.gmra.mxu0 %v3549
        %v4530 = vpop.f32.mrf.mxu0
        %v4531 = vadd.f32 %v4450, %v4530
        %v4532 = vpop.f32.mrf.mxu0
        %v4533 = vpop.f32.mrf.mxu0
        %v4534 = vadd.f32 %v4453, %v4533
        %v4535 = vpop.f32.mrf.mxu0
        %4536 = vdwg.mxu0
        %v4681 = vunpack.c.l.b16 %v2431
        %v4682 = vunpack.c.l.b16 %v2432
        %v4683 = vunpack.c.l.b16 %v2433
        %v4684 = vunpack.c.l.b16 %v2434
        %v4685 = vunpack.c.l.b16 %v2435
        %v4686 = vunpack.c.l.b16 %v2436
        %v4687 = vunpack.c.l.b16 %v2437
        %v4688 = vunpack.c.l.b16 %v2438
        %v4689 = vunpack.c.l.b16 %v2439
        %v4690 = vunpack.c.l.b16 %v2440
        %v4691 = vunpack.c.l.b16 %v2441
        %v4692 = vunpack.c.l.b16 %v2442
        %v4693 = vunpack.c.l.b16 %v2443
        %v4694 = vunpack.c.l.b16 %v2444
        %v4695 = vunpack.c.l.b16 %v2445
        %v4696 = vunpack.c.l.b16 %v2446
        %v4697 = vunpack.c.l.b16 %v2447
        %v4698 = vunpack.c.l.b16 %v2448
        %v4699 = vunpack.c.l.b16 %v2449
        %v4700 = vunpack.c.l.b16 %v2450
        %v4701 = vunpack.c.l.b16 %v2451
        %v4702 = vunpack.c.l.b16 %v2452
        %v4703 = vunpack.c.l.b16 %v2453
        %v4704 = vunpack.c.l.b16 %v2454
        %v4705 = vunpack.c.l.b16 %v2455
        %v4706 = vunpack.c.l.b16 %v2456
        %v4707 = vunpack.c.l.b16 %v2457
        %v4708 = vunpack.c.l.b16 %v2458
        %v4709 = vunpack.c.l.b16 %v2459
        %v4710 = vunpack.c.l.b16 %v2460
        %v4711 = vunpack.c.l.b16 %v2461
        %v4712 = vunpack.c.l.b16 %v2462
        %v4713 = vunpack.c.l.b16 %v2463
        %v4714 = vunpack.c.l.b16 %v2464
        %v4715 = vunpack.c.l.b16 %v2465
        %v4716 = vunpack.c.l.b16 %v2466
        %v4717 = vunpack.c.l.b16 %v2467
        %v4718 = vunpack.c.l.b16 %v2468
        %v4719 = vunpack.c.l.b16 %v2469
        %v4720 = vunpack.c.l.b16 %v2470
        %v4721 = vunpack.c.l.b16 %v2471
        %v4722 = vunpack.c.l.b16 %v2472
        %v4723 = vunpack.c.l.b16 %v2473
        %v4724 = vunpack.c.l.b16 %v2474
        %v4725 = vunpack.c.l.b16 %v2475
        %v4726 = vunpack.c.l.b16 %v2476
        %v4727 = vunpack.c.l.b16 %v2477
        %v4728 = vunpack.c.l.b16 %v2478
        %v4729 = vunpack.c.l.b16 %v2479
        %v4730 = vunpack.c.l.b16 %v2480
        %v4731 = vunpack.c.l.b16 %v2481
        %v4732 = vunpack.c.l.b16 %v2482
        %v4733 = vunpack.c.l.b16 %v2483
        %v4734 = vunpack.c.l.b16 %v2484
        %v4735 = vunpack.c.l.b16 %v2485
        %v4736 = vunpack.c.l.b16 %v2486
        %v4737 = vunpack.c.l.b16 %v2487
        %v4738 = vunpack.c.l.b16 %v2488
        %v4739 = vunpack.c.l.b16 %v2489
        %v4740 = vunpack.c.l.b16 %v2490
        %v4741 = vunpack.c.l.b16 %v2491
        %v4742 = vunpack.c.l.b16 %v2492
        %v4743 = vunpack.c.l.b16 %v2493
        %v4744 = vunpack.c.l.b16 %v2494
        %v4745 = vunpack.c.l.b16 %v2495
        %v4746 = vunpack.c.l.b16 %v2496
        %v4747 = vunpack.c.l.b16 %v2497
        %v4748 = vunpack.c.l.b16 %v2498
        %v4749 = vunpack.c.l.b16 %v2499
        %v4750 = vunpack.c.l.b16 %v2500
        %v4751 = vunpack.c.l.b16 %v2501
        %v4752 = vunpack.c.l.b16 %v2502
        %v4753 = vunpack.c.l.b16 %v2503
        %v4754 = vunpack.c.l.b16 %v2504
        %v4755 = vunpack.c.l.b16 %v2505
        %v4756 = vunpack.c.l.b16 %v2506
        %v4757 = vunpack.c.l.b16 %v2507
        %v4758 = vunpack.c.l.b16 %v2508
        %v4759 = vunpack.c.l.b16 %v2509
        %v4760 = vunpack.c.l.b16 %v2510
        %v4761 = vunpack.c.l.b16 %v2511
        %v4762 = vunpack.c.l.b16 %v2512
        %v4763 = vunpack.c.l.b16 %v2513
        %v4764 = vunpack.c.l.b16 %v2514
        %v4765 = vunpack.c.l.b16 %v2515
        %v4766 = vunpack.c.l.b16 %v2516
        %v4767 = vunpack.c.l.b16 %v2517
        %v4768 = vunpack.c.l.b16 %v2518
        %v4769 = vunpack.c.l.b16 %v2519
        %v4770 = vunpack.c.l.b16 %v2520
        %v4771 = vunpack.c.l.b16 %v2521
        %v4772 = vunpack.c.l.b16 %v2522
        %v4773 = vunpack.c.l.b16 %v2523
        %v4774 = vunpack.c.l.b16 %v2524
        %v4775 = vunpack.c.l.b16 %v2525
        %v4776 = vunpack.c.l.b16 %v2526
        %v4777 = vunpack.c.l.b16 %v2527
        %v4778 = vunpack.c.l.b16 %v2528
        %v4779 = vunpack.c.l.b16 %v2529
        %v4780 = vunpack.c.l.b16 %v2530
        %v4781 = vunpack.c.l.b16 %v2531
        %v4782 = vunpack.c.l.b16 %v2532
        %v4783 = vunpack.c.l.b16 %v2533
        %v4784 = vunpack.c.l.b16 %v2534
        %v4785 = vunpack.c.l.b16 %v2535
        %v4786 = vunpack.c.l.b16 %v2536
        %v4787 = vunpack.c.l.b16 %v2537
        %v4788 = vunpack.c.l.b16 %v2538
        %v4789 = vunpack.c.l.b16 %v2539
        %v4790 = vunpack.c.l.b16 %v2540
        %v4791 = vunpack.c.l.b16 %v2541
        %v4792 = vunpack.c.l.b16 %v2542
        %v4793 = vunpack.c.l.b16 %v2543
        %v4794 = vunpack.c.l.b16 %v2544
        %v4795 = vunpack.c.l.b16 %v2545
        %v4796 = vunpack.c.l.b16 %v2546
        %v4797 = vunpack.c.l.b16 %v2547
        %v4798 = vunpack.c.l.b16 %v2548
        %v4799 = vunpack.c.l.b16 %v2549
        %v4800 = vunpack.c.l.b16 %v2550
        %v4801 = vunpack.c.l.b16 %v2551
        %v4802 = vunpack.c.l.b16 %v2552
        %v4803 = vunpack.c.l.b16 %v2553
        %v4804 = vunpack.c.l.b16 %v2554
        %v4805 = vunpack.c.l.b16 %v2555
        %v4806 = vunpack.c.l.b16 %v2556
        %v4807 = vunpack.c.l.b16 %v2557
        %v4808 = vunpack.c.l.b16 %v2558
        %v4809 = vunpack.c.l.b16 %v2559
        %v4810 = vunpack.c.l.b16 %v2560
        %v4811 = vunpack.c.l.b16 %v2561
        %v4812 = vunpack.c.l.b16 %v2562
        %v4813 = vunpack.c.l.b16 %v2563
        %v4814 = vunpack.c.l.b16 %v2564
        %v4815 = vunpack.c.l.b16 %v2565
        %v4816 = vunpack.c.l.b16 %v2566
        %v4817 = vunpack.c.l.b16 %v2567
        %v4818 = vunpack.c.l.b16 %v2568
        %v4819 = vunpack.c.l.b16 %v2569
        %v4820 = vunpack.c.l.b16 %v2570
        %v4821 = vunpack.c.l.b16 %v2571
        %v4822 = vunpack.c.l.b16 %v2572
        %v4823 = vunpack.c.l.b16 %v2573
        %v4824 = vunpack.c.l.b16 %v2574
        %v4825 = vpack.c.b16 %v4682, %v4681
        %v4826 = vpack.c.b16 %v4684, %v4683
        %v4827 = vpack.c.b16 %v4686, %v4685
        %v4828 = vpack.c.b16 %v4688, %v4687
        %v4829 = vpack.c.b16 %v4690, %v4689
        %v4830 = vpack.c.b16 %v4692, %v4691
        %v4831 = vpack.c.b16 %v4694, %v4693
        %v4832 = vpack.c.b16 %v4696, %v4695
        %v4833 = vpack.c.b16 %v4698, %v4697
        %v4834 = vpack.c.b16 %v4700, %v4699
        %v4835 = vpack.c.b16 %v4702, %v4701
        %v4836 = vpack.c.b16 %v4704, %v4703
        %v4837 = vpack.c.b16 %v4706, %v4705
        %v4838 = vpack.c.b16 %v4708, %v4707
        %v4839 = vpack.c.b16 %v4710, %v4709
        %v4840 = vpack.c.b16 %v4712, %v4711
        %v4841 = vpack.c.b16 %v4714, %v4713
        %v4842 = vpack.c.b16 %v4716, %v4715
        %v4843 = vpack.c.b16 %v4718, %v4717
        %v4844 = vpack.c.b16 %v4720, %v4719
        %v4845 = vpack.c.b16 %v4722, %v4721
        %v4846 = vpack.c.b16 %v4724, %v4723
        %v4847 = vpack.c.b16 %v4726, %v4725
        %v4848 = vpack.c.b16 %v4728, %v4727
        %v4849 = vpack.c.b16 %v4730, %v4729
        %v4850 = vpack.c.b16 %v4732, %v4731
        %v4851 = vpack.c.b16 %v4734, %v4733
        %v4852 = vpack.c.b16 %v4736, %v4735
        %v4853 = vpack.c.b16 %v4738, %v4737
        %v4854 = vpack.c.b16 %v4740, %v4739
        %v4855 = vpack.c.b16 %v4742, %v4741
        %v4856 = vpack.c.b16 %v4744, %v4743
        %v4857 = vpack.c.b16 %v4746, %v4745
        %v4858 = vpack.c.b16 %v4748, %v4747
        %v4859 = vpack.c.b16 %v4750, %v4749
        %v4860 = vpack.c.b16 %v4752, %v4751
        %v4861 = vpack.c.b16 %v4754, %v4753
        %v4862 = vpack.c.b16 %v4756, %v4755
        %v4863 = vpack.c.b16 %v4758, %v4757
        %v4864 = vpack.c.b16 %v4760, %v4759
        %v4865 = vpack.c.b16 %v4762, %v4761
        %v4866 = vpack.c.b16 %v4764, %v4763
        %v4867 = vpack.c.b16 %v4766, %v4765
        %v4868 = vpack.c.b16 %v4768, %v4767
        %v4869 = vpack.c.b16 %v4770, %v4769
        %v4870 = vpack.c.b16 %v4772, %v4771
        %v4871 = vpack.c.b16 %v4774, %v4773
        %v4872 = vpack.c.b16 %v4776, %v4775
        %v4873 = vpack.c.b16 %v4778, %v4777
        %v4874 = vpack.c.b16 %v4780, %v4779
        %v4875 = vpack.c.b16 %v4782, %v4781
        %v4876 = vpack.c.b16 %v4784, %v4783
        %v4877 = vpack.c.b16 %v4786, %v4785
        %v4878 = vpack.c.b16 %v4788, %v4787
        %v4879 = vpack.c.b16 %v4790, %v4789
        %v4880 = vpack.c.b16 %v4792, %v4791
        %v4881 = vpack.c.b16 %v4794, %v4793
        %v4882 = vpack.c.b16 %v4796, %v4795
        %v4883 = vpack.c.b16 %v4798, %v4797
        %v4884 = vpack.c.b16 %v4800, %v4799
        %v4885 = vpack.c.b16 %v4802, %v4801
        %v4886 = vpack.c.b16 %v4804, %v4803
        %v4887 = vpack.c.b16 %v4806, %v4805
        %v4888 = vpack.c.b16 %v4808, %v4807
        %v4889 = vpack.c.b16 %v4810, %v4809
        %v4890 = vpack.c.b16 %v4812, %v4811
        %v4891 = vpack.c.b16 %v4814, %v4813
        %v4892 = vpack.c.b16 %v4816, %v4815
        %v4893 = vpack.c.b16 %v4818, %v4817
        %v4894 = vpack.c.b16 %v4820, %v4819
        %v4895 = vpack.c.b16 %v4822, %v4821
        %v4896 = vpack.c.b16 %v4824, %v4823
        %4969 = vmatprep.subr.bf16.mxu0 0
        %4970 = vmatpush1.bf16.msra.mxu0 %v4832
        %4971 = vmatprep.subr.bf16.mxu0 0
        %4972 = vmatpush1.bf16.msra.mxu0 %v4831
        %4973 = vmatprep.subr.bf16.mxu0 0
        %4974 = vmatpush1.bf16.msra.mxu0 %v4830
        %4975 = vmatprep.subr.bf16.mxu0 0
        %4976 = vmatpush1.bf16.msra.mxu0 %v4829
        %4977 = vmatprep.subr.bf16.mxu0 0
        %4978 = vmatpush1.bf16.msra.mxu0 %v4828
        %4979 = vmatprep.subr.bf16.mxu0 0
        %4980 = vmatpush1.bf16.msra.mxu0 %v4827
        %4981 = vmatprep.subr.bf16.mxu0 0
        %4982 = vmatpush1.bf16.msra.mxu0 %v4826
        %4983 = vmatprep.subr.bf16.mxu0 0
        %4984 = vmatpush1.bf16.msra.mxu0 %v4825
        %4985 = vmatprep.subr.bf16.mxu0 0
        %4986 = vmatpush2.bf16.msra.mxu0 %v4840
        %4987 = vmatprep.subr.bf16.mxu0 0
        %4988 = vmatpush2.bf16.msra.mxu0 %v4839
        %4989 = vmatprep.subr.bf16.mxu0 0
        %4990 = vmatpush2.bf16.msra.mxu0 %v4838
        %4991 = vmatprep.subr.bf16.mxu0 0
        %4992 = vmatpush2.bf16.msra.mxu0 %v4837
        %4993 = vmatprep.subr.bf16.mxu0 0
        %4994 = vmatpush2.bf16.msra.mxu0 %v4836
        %4995 = vmatprep.subr.bf16.mxu0 0
        %4996 = vmatpush2.bf16.msra.mxu0 %v4835
        %4997 = vmatprep.subr.bf16.mxu0 0
        %4998 = vmatpush2.bf16.msra.mxu0 %v4834
        %4999 = vmatprep.subr.bf16.mxu0 0
        %5000 = vmatpush2.bf16.msra.mxu0 %v4833
        %5001 = vmatprep.mubr.bf16.mxu0 %v2227
        %5002 = vmatmul.mubr.bf16.gmra.mxu0 %v2191
        %v5003 = vpop.f32.mrf.mxu0
        %v5004 = vadd.f32 %v4491, %v5003
        %v5005 = vpop.f32.mrf.mxu0
        %v5006 = vpop.f32.mrf.mxu0
        %v5007 = vadd.f32 %v4494, %v5006
        %v5008 = vpop.f32.mrf.mxu0
        %5009 = vmatprep.mubr.bf16.mxu0 %v2228
        %5010 = vmatmul.mubr.bf16.gmra.mxu0 %v2192
        %v5011 = vpop.f32.mrf.mxu0
        %v5012 = vadd.f32 %v4499, %v5011
        %v5013 = vpop.f32.mrf.mxu0
        %v5014 = vpop.f32.mrf.mxu0
        %v5015 = vadd.f32 %v4502, %v5014
        %v5016 = vpop.f32.mrf.mxu0
        %5017 = vmatprep.mubr.bf16.mxu0 %v2229
        %5018 = vmatmul.mubr.bf16.gmra.mxu0 %v2193
        %v5019 = vpop.f32.mrf.mxu0
        %v5020 = vadd.f32 %v4507, %v5019
        %v5021 = vpop.f32.mrf.mxu0
        %v5022 = vpop.f32.mrf.mxu0
        %v5023 = vadd.f32 %v4510, %v5022
        %v5024 = vpop.f32.mrf.mxu0
        %5025 = vmatprep.mubr.bf16.mxu0 %v2230
        %5026 = vmatmul.mubr.bf16.gmra.mxu0 %v2194
        %v5027 = vpop.f32.mrf.mxu0
        %v5028 = vadd.f32 %v4515, %v5027
        %v5029 = vpop.f32.mrf.mxu0
        %v5030 = vpop.f32.mrf.mxu0
        %v5031 = vadd.f32 %v4518, %v5030
        %v5032 = vpop.f32.mrf.mxu0
        %5033 = vmatprep.mubr.bf16.mxu0 %v2231
        %5034 = vmatmul.mubr.bf16.gmra.mxu0 %v2195
        %v5035 = vpop.f32.mrf.mxu0
        %v5036 = vadd.f32 %v4523, %v5035
        %v5037 = vpop.f32.mrf.mxu0
        %v5038 = vpop.f32.mrf.mxu0
        %v5039 = vadd.f32 %v4526, %v5038
        %v5040 = vpop.f32.mrf.mxu0
        %5041 = vmatprep.mubr.bf16.mxu0 %v2232
        %5042 = vmatmul.mubr.bf16.gmra.mxu0 %v2196
        %v5043 = vpop.f32.mrf.mxu0
        %v5044 = vadd.f32 %v4531, %v5043
        %v5045 = vpop.f32.mrf.mxu0
        %v5046 = vpop.f32.mrf.mxu0
        %v5047 = vadd.f32 %v4534, %v5046
        %v5048 = vpop.f32.mrf.mxu0
        %5049 = vdwg.mxu0
        %5050 = vmatprep.subr.bf16.mxu0 0
        %5051 = vmatpush1.bf16.msra.mxu0 %v4848
        %5052 = vmatprep.subr.bf16.mxu0 0
        %5053 = vmatpush1.bf16.msra.mxu0 %v4847
        %5054 = vmatprep.subr.bf16.mxu0 0
        %5055 = vmatpush1.bf16.msra.mxu0 %v4846
        %5056 = vmatprep.subr.bf16.mxu0 0
        %5057 = vmatpush1.bf16.msra.mxu0 %v4845
        %5058 = vmatprep.subr.bf16.mxu0 0
        %5059 = vmatpush1.bf16.msra.mxu0 %v4844
        %5060 = vmatprep.subr.bf16.mxu0 0
        %5061 = vmatpush1.bf16.msra.mxu0 %v4843
        %5062 = vmatprep.subr.bf16.mxu0 0
        %5063 = vmatpush1.bf16.msra.mxu0 %v4842
        %5064 = vmatprep.subr.bf16.mxu0 0
        %5065 = vmatpush1.bf16.msra.mxu0 %v4841
        %5066 = vmatprep.subr.bf16.mxu0 0
        %5067 = vmatpush2.bf16.msra.mxu0 %v4856
        %5068 = vmatprep.subr.bf16.mxu0 0
        %5069 = vmatpush2.bf16.msra.mxu0 %v4855
        %5070 = vmatprep.subr.bf16.mxu0 0
        %5071 = vmatpush2.bf16.msra.mxu0 %v4854
        %5072 = vmatprep.subr.bf16.mxu0 0
        %5073 = vmatpush2.bf16.msra.mxu0 %v4853
        %5074 = vmatprep.subr.bf16.mxu0 0
        %5075 = vmatpush2.bf16.msra.mxu0 %v4852
        %5076 = vmatprep.subr.bf16.mxu0 0
        %5077 = vmatpush2.bf16.msra.mxu0 %v4851
        %5078 = vmatprep.subr.bf16.mxu0 0
        %5079 = vmatpush2.bf16.msra.mxu0 %v4850
        %5080 = vmatprep.subr.bf16.mxu0 0
        %5081 = vmatpush2.bf16.msra.mxu0 %v4849
        %5082 = vmatprep.mubr.bf16.mxu0 %v2275
        %5083 = vmatmul.mubr.bf16.gmra.mxu0 %v2251
        %v5084 = vpop.f32.mrf.mxu0
        %v5085 = vadd.f32 %v5004, %v5084
        %v5086 = vpop.f32.mrf.mxu0
        %v5087 = vpop.f32.mrf.mxu0
        %v5088 = vadd.f32 %v5007, %v5087
        %v5089 = vpop.f32.mrf.mxu0
        %5090 = vmatprep.mubr.bf16.mxu0 %v2276
        %5091 = vmatmul.mubr.bf16.gmra.mxu0 %v2252
        %v5092 = vpop.f32.mrf.mxu0
        %v5093 = vadd.f32 %v5012, %v5092
        %v5094 = vpop.f32.mrf.mxu0
        %v5095 = vpop.f32.mrf.mxu0
        %v5096 = vadd.f32 %v5015, %v5095
        %v5097 = vpop.f32.mrf.mxu0
        %5098 = vmatprep.mubr.bf16.mxu0 %v2277
        %5099 = vmatmul.mubr.bf16.gmra.mxu0 %v2253
        %v5100 = vpop.f32.mrf.mxu0
        %v5101 = vadd.f32 %v5020, %v5100
        %v5102 = vpop.f32.mrf.mxu0
        %v5103 = vpop.f32.mrf.mxu0
        %v5104 = vadd.f32 %v5023, %v5103
        %v5105 = vpop.f32.mrf.mxu0
        %5106 = vmatprep.mubr.bf16.mxu0 %v2278
        %5107 = vmatmul.mubr.bf16.gmra.mxu0 %v2254
        %v5108 = vpop.f32.mrf.mxu0
        %v5109 = vadd.f32 %v5028, %v5108
        %v5110 = vpop.f32.mrf.mxu0
        %v5111 = vpop.f32.mrf.mxu0
        %v5112 = vadd.f32 %v5031, %v5111
        %v5113 = vpop.f32.mrf.mxu0
        %5114 = vmatprep.mubr.bf16.mxu0 %v2279
        %5115 = vmatmul.mubr.bf16.gmra.mxu0 %v2255
        %v5116 = vpop.f32.mrf.mxu0
        %v5117 = vadd.f32 %v5036, %v5116
        %v5118 = vpop.f32.mrf.mxu0
        %v5119 = vpop.f32.mrf.mxu0
        %v5120 = vadd.f32 %v5039, %v5119
        %v5121 = vpop.f32.mrf.mxu0
        %5122 = vmatprep.mubr.bf16.mxu0 %v2280
        %5123 = vmatmul.mubr.bf16.gmra.mxu0 %v2256
        %v5124 = vpop.f32.mrf.mxu0
        %v5125 = vadd.f32 %v5044, %v5124
        %v5126 = vpop.f32.mrf.mxu0
        %v5127 = vpop.f32.mrf.mxu0
        %v5128 = vadd.f32 %v5047, %v5127
        %v5129 = vpop.f32.mrf.mxu0
        %5130 = vdwg.mxu0
        %5131 = vmatprep.subr.bf16.mxu0 0
        %5132 = vmatpush1.bf16.msra.mxu0 %v4864
        %5133 = vmatprep.subr.bf16.mxu0 0
        %5134 = vmatpush1.bf16.msra.mxu0 %v4863
        %5135 = vmatprep.subr.bf16.mxu0 0
        %5136 = vmatpush1.bf16.msra.mxu0 %v4862
        %5137 = vmatprep.subr.bf16.mxu0 0
        %5138 = vmatpush1.bf16.msra.mxu0 %v4861
        %5139 = vmatprep.subr.bf16.mxu0 0
        %5140 = vmatpush1.bf16.msra.mxu0 %v4860
        %5141 = vmatprep.subr.bf16.mxu0 0
        %5142 = vmatpush1.bf16.msra.mxu0 %v4859
        %5143 = vmatprep.subr.bf16.mxu0 0
        %5144 = vmatpush1.bf16.msra.mxu0 %v4858
        %5145 = vmatprep.subr.bf16.mxu0 0
        %5146 = vmatpush1.bf16.msra.mxu0 %v4857
        %5147 = vmatprep.subr.bf16.mxu0 0
        %5148 = vmatpush2.bf16.msra.mxu0 %v4872
        %5149 = vmatprep.subr.bf16.mxu0 0
        %5150 = vmatpush2.bf16.msra.mxu0 %v4871
        %5151 = vmatprep.subr.bf16.mxu0 0
        %5152 = vmatpush2.bf16.msra.mxu0 %v4870
        %5153 = vmatprep.subr.bf16.mxu0 0
        %5154 = vmatpush2.bf16.msra.mxu0 %v4869
        %5155 = vmatprep.subr.bf16.mxu0 0
        %5156 = vmatpush2.bf16.msra.mxu0 %v4868
        %5157 = vmatprep.subr.bf16.mxu0 0
        %5158 = vmatpush2.bf16.msra.mxu0 %v4867
        %5159 = vmatprep.subr.bf16.mxu0 0
        %5160 = vmatpush2.bf16.msra.mxu0 %v4866
        %5161 = vmatprep.subr.bf16.mxu0 0
        %5162 = vmatpush2.bf16.msra.mxu0 %v4865
        %5163 = vmatprep.mubr.bf16.mxu0 %v2335
        %5164 = vmatmul.mubr.bf16.gmra.mxu0 %v2311
        %v5165 = vpop.f32.mrf.mxu0
        %v5166 = vadd.f32 %v5085, %v5165
        %v5167 = vpop.f32.mrf.mxu0
        %v5168 = vpop.f32.mrf.mxu0
        %v5169 = vadd.f32 %v5088, %v5168
        %v5170 = vpop.f32.mrf.mxu0
        %5171 = vmatprep.mubr.bf16.mxu0 %v2336
        %5172 = vmatmul.mubr.bf16.gmra.mxu0 %v2312
        %v5173 = vpop.f32.mrf.mxu0
        %v5174 = vadd.f32 %v5093, %v5173
        %v5175 = vpop.f32.mrf.mxu0
        %v5176 = vpop.f32.mrf.mxu0
        %v5177 = vadd.f32 %v5096, %v5176
        %v5178 = vpop.f32.mrf.mxu0
        %5179 = vmatprep.mubr.bf16.mxu0 %v2337
        %5180 = vmatmul.mubr.bf16.gmra.mxu0 %v2313
        %v5181 = vpop.f32.mrf.mxu0
        %v5182 = vadd.f32 %v5101, %v5181
        %v5183 = vpop.f32.mrf.mxu0
        %v5184 = vpop.f32.mrf.mxu0
        %v5185 = vadd.f32 %v5104, %v5184
        %v5186 = vpop.f32.mrf.mxu0
        %5187 = vmatprep.mubr.bf16.mxu0 %v2338
        %5188 = vmatmul.mubr.bf16.gmra.mxu0 %v2314
        %v5189 = vpop.f32.mrf.mxu0
        %v5190 = vadd.f32 %v5109, %v5189
        %v5191 = vpop.f32.mrf.mxu0
        %v5192 = vpop.f32.mrf.mxu0
        %v5193 = vadd.f32 %v5112, %v5192
        %v5194 = vpop.f32.mrf.mxu0
        %5195 = vmatprep.mubr.bf16.mxu0 %v2339
        %5196 = vmatmul.mubr.bf16.gmra.mxu0 %v2315
        %v5197 = vpop.f32.mrf.mxu0
        %v5198 = vadd.f32 %v5117, %v5197
        %v5199 = vpop.f32.mrf.mxu0
        %v5200 = vpop.f32.mrf.mxu0
        %v5201 = vadd.f32 %v5120, %v5200
        %v5202 = vpop.f32.mrf.mxu0
        %5203 = vmatprep.mubr.bf16.mxu0 %v2340
        %5204 = vmatmul.mubr.bf16.gmra.mxu0 %v2316
        %v5205 = vpop.f32.mrf.mxu0
        %v5206 = vadd.f32 %v5125, %v5205
        %v5207 = vpop.f32.mrf.mxu0
        %v5208 = vpop.f32.mrf.mxu0
        %v5209 = vadd.f32 %v5128, %v5208
        %v5210 = vpop.f32.mrf.mxu0
        %5211 = vdwg.mxu0
        %5212 = vmatprep.subr.bf16.mxu0 0
        %5213 = vmatpush1.bf16.msra.mxu0 %v4880
        %5214 = vmatprep.subr.bf16.mxu0 0
        %5215 = vmatpush1.bf16.msra.mxu0 %v4879
        %5216 = vmatprep.subr.bf16.mxu0 0
        %5217 = vmatpush1.bf16.msra.mxu0 %v4878
        %5218 = vmatprep.subr.bf16.mxu0 0
        %5219 = vmatpush1.bf16.msra.mxu0 %v4877
        %5220 = vmatprep.subr.bf16.mxu0 0
        %5221 = vmatpush1.bf16.msra.mxu0 %v4876
        %5222 = vmatprep.subr.bf16.mxu0 0
        %5223 = vmatpush1.bf16.msra.mxu0 %v4875
        %5224 = vmatprep.subr.bf16.mxu0 0
        %5225 = vmatpush1.bf16.msra.mxu0 %v4874
        %5226 = vmatprep.subr.bf16.mxu0 0
        %5227 = vmatpush1.bf16.msra.mxu0 %v4873
        %5228 = vmatprep.subr.bf16.mxu0 0
        %5229 = vmatpush2.bf16.msra.mxu0 %v4888
        %5230 = vmatprep.subr.bf16.mxu0 0
        %5231 = vmatpush2.bf16.msra.mxu0 %v4887
        %5232 = vmatprep.subr.bf16.mxu0 0
        %5233 = vmatpush2.bf16.msra.mxu0 %v4886
        %5234 = vmatprep.subr.bf16.mxu0 0
        %5235 = vmatpush2.bf16.msra.mxu0 %v4885
        %5236 = vmatprep.subr.bf16.mxu0 0
        %5237 = vmatpush2.bf16.msra.mxu0 %v4884
        %5238 = vmatprep.subr.bf16.mxu0 0
        %5239 = vmatpush2.bf16.msra.mxu0 %v4883
        %5240 = vmatprep.subr.bf16.mxu0 0
        %5241 = vmatpush2.bf16.msra.mxu0 %v4882
        %5242 = vmatprep.subr.bf16.mxu0 0
        %5243 = vmatpush2.bf16.msra.mxu0 %v4881
        %5244 = vmatprep.mubr.bf16.mxu0 %v2395
        %5245 = vmatmul.mubr.bf16.gmra.mxu0 %v2359
        %v5246 = vpop.f32.mrf.mxu0
        %v5247 = vadd.f32 %v5166, %v5246
        %v5248 = vpop.f32.mrf.mxu0
        %v5249 = vpop.f32.mrf.mxu0
        %v5250 = vadd.f32 %v5169, %v5249
        %v5251 = vpop.f32.mrf.mxu0
        %5252 = vmatprep.mubr.bf16.mxu0 %v2396
        %5253 = vmatmul.mubr.bf16.gmra.mxu0 %v2360
        %v5254 = vpop.f32.mrf.mxu0
        %v5255 = vadd.f32 %v5174, %v5254
        %v5256 = vpop.f32.mrf.mxu0
        %v5257 = vpop.f32.mrf.mxu0
        %v5258 = vadd.f32 %v5177, %v5257
        %v5259 = vpop.f32.mrf.mxu0
        %5260 = vmatprep.mubr.bf16.mxu0 %v2397
        %5261 = vmatmul.mubr.bf16.gmra.mxu0 %v2361
        %v5262 = vpop.f32.mrf.mxu0
        %v5263 = vadd.f32 %v5182, %v5262
        %v5264 = vpop.f32.mrf.mxu0
        %v5265 = vpop.f32.mrf.mxu0
        %v5266 = vadd.f32 %v5185, %v5265
        %v5267 = vpop.f32.mrf.mxu0
        %5268 = vmatprep.mubr.bf16.mxu0 %v2398
        %5269 = vmatmul.mubr.bf16.gmra.mxu0 %v2362
        %v5270 = vpop.f32.mrf.mxu0
        %v5271 = vadd.f32 %v5190, %v5270
        %v5272 = vpop.f32.mrf.mxu0
        %v5273 = vpop.f32.mrf.mxu0
        %v5274 = vadd.f32 %v5193, %v5273
        %v5275 = vpop.f32.mrf.mxu0
        %5276 = vmatprep.mubr.bf16.mxu0 %v2399
        %5277 = vmatmul.mubr.bf16.gmra.mxu0 %v2363
        %v5278 = vpop.f32.mrf.mxu0
        %v5279 = vadd.f32 %v5198, %v5278
        %v5280 = vpop.f32.mrf.mxu0
        %v5281 = vpop.f32.mrf.mxu0
        %v5282 = vadd.f32 %v5201, %v5281
        %v5283 = vpop.f32.mrf.mxu0
        %5284 = vmatprep.mubr.bf16.mxu0 %v2400
        %5285 = vmatmul.mubr.bf16.gmra.mxu0 %v2364
        %v5286 = vpop.f32.mrf.mxu0
        %v5287 = vadd.f32 %v5206, %v5286
        %v5288 = vpop.f32.mrf.mxu0
        %v5289 = vpop.f32.mrf.mxu0
        %v5290 = vadd.f32 %v5209, %v5289
        %v5291 = vpop.f32.mrf.mxu0
        %5292 = vdwg.mxu0
        %5293 = vmatprep.subr.bf16.mxu0 0
        %5294 = vmatpush1.bf16.msra.mxu0 %v4896
        %5295 = vmatprep.subr.bf16.mxu0 0
        %5296 = vmatpush1.bf16.msra.mxu0 %v4895
        %5297 = vmatprep.subr.bf16.mxu0 0
        %5298 = vmatpush1.bf16.msra.mxu0 %v4894
        %5299 = vmatprep.subr.bf16.mxu0 0
        %5300 = vmatpush1.bf16.msra.mxu0 %v4893
        %5301 = vmatprep.subr.bf16.mxu0 0
        %5302 = vmatpush1.bf16.msra.mxu0 %v4892
        %5303 = vmatprep.subr.bf16.mxu0 0
        %5304 = vmatpush1.bf16.msra.mxu0 %v4891
        %5305 = vmatprep.subr.bf16.mxu0 0
        %5306 = vmatpush1.bf16.msra.mxu0 %v4890
        %5307 = vmatprep.subr.bf16.mxu0 0
        %5308 = vmatpush1.bf16.msra.mxu0 %v4889
        %5309 = vmatprep.subr.bf16.mxu0 0
        %5310 = vmatpush2.bf16.msra.mxu0 0
        %5311 = vmatprep.subr.bf16.mxu0 0
        %5312 = vmatpush2.bf16.msra.mxu0 0
        %5313 = vmatprep.subr.bf16.mxu0 0
        %5314 = vmatpush2.bf16.msra.mxu0 0
        %5315 = vmatprep.subr.bf16.mxu0 0
        %5316 = vmatpush2.bf16.msra.mxu0 0
        %5317 = vmatprep.subr.bf16.mxu0 0
        %5318 = vmatpush2.bf16.msra.mxu0 0
        %5319 = vmatprep.subr.bf16.mxu0 0
        %5320 = vmatpush2.bf16.msra.mxu0 0
        %5321 = vmatprep.subr.bf16.mxu0 0
        %5322 = vmatpush2.bf16.msra.mxu0 0
        %5323 = vmatprep.subr.bf16.mxu0 0
        %5324 = vmatpush2.bf16.msra.mxu0 0
        %5325 = vmatprep.mubr.bf16.mxu0 0
        %5326 = vmatmul.mubr.bf16.gmra.mxu0 %v2419
        %v5327 = vpop.f32.mrf.mxu0
        %v5328 = vadd.f32 %v5247, %v5327
        %v5329 = vpop.f32.mrf.mxu0
        %v5330 = vpop.f32.mrf.mxu0
        %v5331 = vadd.f32 %v5250, %v5330
        %v5332 = vpop.f32.mrf.mxu0
        %5333 = vmatprep.mubr.bf16.mxu0 0
        %5334 = vmatmul.mubr.bf16.gmra.mxu0 %v2420
        %v5335 = vpop.f32.mrf.mxu0
        %v5336 = vadd.f32 %v5255, %v5335
        %v5337 = vpop.f32.mrf.mxu0
        %v5338 = vpop.f32.mrf.mxu0
        %v5339 = vadd.f32 %v5258, %v5338
        %v5340 = vpop.f32.mrf.mxu0
        %5341 = vmatprep.mubr.bf16.mxu0 0
        %5342 = vmatmul.mubr.bf16.gmra.mxu0 %v2421
        %v5343 = vpop.f32.mrf.mxu0
        %v5344 = vadd.f32 %v5263, %v5343
        %v5345 = vpop.f32.mrf.mxu0
        %v5346 = vpop.f32.mrf.mxu0
        %v5347 = vadd.f32 %v5266, %v5346
        %v5348 = vpop.f32.mrf.mxu0
        %5349 = vmatprep.mubr.bf16.mxu0 0
        %5350 = vmatmul.mubr.bf16.gmra.mxu0 %v2422
        %v5351 = vpop.f32.mrf.mxu0
        %v5352 = vadd.f32 %v5271, %v5351
        %v5353 = vpop.f32.mrf.mxu0
        %v5354 = vpop.f32.mrf.mxu0
        %v5355 = vadd.f32 %v5274, %v5354
        %v5356 = vpop.f32.mrf.mxu0
        %5357 = vmatprep.mubr.bf16.mxu0 0
        %5358 = vmatmul.mubr.bf16.gmra.mxu0 %v2423
        %v5359 = vpop.f32.mrf.mxu0
        %v5360 = vadd.f32 %v5279, %v5359
        %v5361 = vpop.f32.mrf.mxu0
        %v5362 = vpop.f32.mrf.mxu0
        %v5363 = vadd.f32 %v5282, %v5362
        %v5364 = vpop.f32.mrf.mxu0
        %5365 = vmatprep.mubr.bf16.mxu0 0
        %5366 = vmatmul.mubr.bf16.gmra.mxu0 %v2424
        %v5367 = vpop.f32.mrf.mxu0
        %v5368 = vadd.f32 %v5287, %v5367
        %v5369 = vpop.f32.mrf.mxu0
        %v5370 = vpop.f32.mrf.mxu0
        %v5371 = vadd.f32 %v5290, %v5370
        %v5372 = vpop.f32.mrf.mxu0
        %5373 = vdwg.mxu0
        %v5374 = vld [vmem:[%s8] sm:$0x1]
        %v5376 = vlaneseq
        %v5377 = vshrl.u32 %v5376, 7
        %v5378 = vsub.s32 0, %v5377
        %v5379 = vrot.slane %v5374, %v5378
        %v5381 = vadd.f32 %v5328, %v5379
        %v5382 = vadd.f32 %v5331, %v5379
        %v5383 = vadd.f32 %v5336, %v5379
        %v5384 = vadd.f32 %v5339, %v5379
        %v5385 = vadd.f32 %v5344, %v5379
        %v5386 = vadd.f32 %v5347, %v5379
        %v5387 = vadd.f32 %v5352, %v5379
        %v5388 = vadd.f32 %v5355, %v5379
        %v5389 = vadd.f32 %v5360, %v5379
        %v5390 = vadd.f32 %v5363, %v5379
        %v5391 = vadd.f32 %v5368, %v5379
        %v5392 = vadd.f32 %v5371, %v5379
        %v5393 = vmax.f32 %v5381, 0.0
        %v5394 = vmax.f32 %v5382, 0.0
        %v5395 = vmax.f32 %v5383, 0.0
        %v5396 = vmax.f32 %v5384, 0.0
        %v5397 = vmax.f32 %v5385, 0.0
        %v5398 = vmax.f32 %v5386, 0.0
        %v5399 = vmax.f32 %v5387, 0.0
        %v5400 = vmax.f32 %v5388, 0.0
        %v5401 = vmax.f32 %v5389, 0.0
        %v5402 = vmax.f32 %v5390, 0.0
        %v5403 = vmax.f32 %v5391, 0.0
        %v5404 = vmax.f32 %v5392, 0.0
        %v5405 = vpack.c.bf16 %v5394, %v5393
        %v5406 = vpack.c.bf16 %v5396, %v5395
        %v5407 = vpack.c.bf16 %v5398, %v5397
        %v5408 = vpack.c.bf16 %v5400, %v5399
        %v5409 = vpack.c.bf16 %v5402, %v5401
        %v5410 = vpack.c.bf16 %v5404, %v5403
        %v5417 = vunpack.c.l.b16 %v5405
        %v5418 = vunpack.c.h.b16 %v5405
        %v5419 = vunpack.c.l.b16 %v5406
        %v5420 = vunpack.c.h.b16 %v5406
        %v5421 = vunpack.c.l.b16 %v5407
        %v5422 = vunpack.c.h.b16 %v5407
        %v5423 = vunpack.c.l.b16 %v5408
        %v5424 = vunpack.c.h.b16 %v5408
        %v5425 = vunpack.c.l.b16 %v5409
        %v5426 = vunpack.c.h.b16 %v5409
        %v5427 = vunpack.c.l.b16 %v5410
        %v5428 = vunpack.c.h.b16 %v5410
        %v5429 = vpack.c.b16 %v5417, %v5417
        %v5430 = vpack.c.b16 %v5418, %v5418
        %v5431 = vpack.c.b16 %v5419, %v5419
        %v5432 = vpack.c.b16 %v5420, %v5420
        %v5433 = vpack.c.b16 %v5421, %v5421
        %v5434 = vpack.c.b16 %v5422, %v5422
        %v5435 = vpack.c.b16 %v5423, %v5423
        %v5436 = vpack.c.b16 %v5424, %v5424
        %v5437 = vpack.c.b16 %v5425, %v5425
        %v5438 = vpack.c.b16 %v5426, %v5426
        %v5439 = vpack.c.b16 %v5427, %v5427
        %v5440 = vpack.c.b16 %v5428, %v5428
        %5453 = vst [vmem:[#allocation5 + $0x4] sm:$0xf] %v5429
        %5454 = vst [vmem:[#allocation5 + $0x8] sm:$0xf] %v5430
        %5455 = vst [vmem:[#allocation5 + $0x14] sm:$0xf] %v5431
        %5456 = vst [vmem:[#allocation5 + $0x18] sm:$0xf] %v5432
        %5457 = vst [vmem:[#allocation5 + $0x24] sm:$0xf] %v5433
        %5458 = vst [vmem:[#allocation5 + $0x28] sm:$0xf] %v5434
        %5459 = vst [vmem:[#allocation5 + $0x34] sm:$0xf] %v5435
        %5460 = vst [vmem:[#allocation5 + $0x38] sm:$0xf] %v5436
        %5461 = vst [vmem:[#allocation5 + $0x44] sm:$0xf] %v5437
        %5462 = vst [vmem:[#allocation5 + $0x48] sm:$0xf] %v5438
        %5463 = vst [vmem:[#allocation5 + $0x54] sm:$0xf] %v5439
        %5464 = vst [vmem:[#allocation5 + $0x58] sm:$0xf] %v5440
        // Predicated region
        $region81: #{decoder_block_forward.1} parent=63 // pred_check
          %p5465 = pneg %p461
        $region82: #{decoder_block_forward.1} parent=63 // pred_check_branch
          %5467 = sbr.rel (%p5465) target = $region84
        $region83: #{decoder_block_forward.1} parent=63 // pred_region
          %5468 = vst [vmem:[#allocation5] sm:$0xf] 0
          %5469 = vst [vmem:[#allocation5 + $0x4] sm:$0xf] 0
          %5470 = vst [vmem:[#allocation5 + $0x8] sm:$0xf] 0
          %5471 = vst [vmem:[#allocation5 + $0xc] sm:$0xf] 0
        $region84: #{decoder_block_forward.1} parent=63 // pred_fallthru
          _
        %p5472 = scmp.eq.s32.totalorder %s32, 3
        // Predicated region
        $region85: #{decoder_block_forward.1} parent=63 // pred_check
          %p5473 = pneg %p5472
        $region86: #{decoder_block_forward.1} parent=63 // pred_check_branch
          %5475 = sbr.rel (%p5473) target = $region88
        $region87: #{decoder_block_forward.1} parent=63 // pred_region
          %s5476 = scalar_lea.vmem [#allocation5], 80
          %5477 = vst [vmem:[%s5476] sm:$0xf] 0
          %5478 = vst [vmem:[%s5476 + $0x4] sm:$0xf] 0
          %5479 = vst [vmem:[%s5476 + $0x8] sm:$0xf] 0
          %5480 = vst [vmem:[%s5476 + $0xc] sm:$0xf] 0
        $region88: #{decoder_block_forward.1} parent=63 // pred_fallthru
          _
        %v5481 = vld [vmem:[#allocation5] sm:$0x8]
        %v5482 = vld [vmem:[#allocation5 + $0x4] sm:$0xf]
        %v5483 = vld [vmem:[#allocation5 + $0x8] sm:$0xf]
        %v5484 = vld [vmem:[#allocation5 + $0x10] sm:$0x8]
        %v5485 = vld [vmem:[#allocation5 + $0x14] sm:$0xf]
        %v5486 = vld [vmem:[#allocation5 + $0x18] sm:$0xf]
        %v5487 = vld [vmem:[#allocation5 + $0x20] sm:$0x8]
        %v5488 = vld [vmem:[#allocation5 + $0x24] sm:$0xf]
        %v5489 = vld [vmem:[#allocation5 + $0x28] sm:$0xf]
        %v5490 = vld [vmem:[#allocation5 + $0x30] sm:$0x8]
        %v5491 = vld [vmem:[#allocation5 + $0x34] sm:$0xf]
        %v5492 = vld [vmem:[#allocation5 + $0x38] sm:$0xf]
        %v5494 = vshrl.u32 %v5481, 16
        %v5496 = vrot.slane %v5494, 7
        %v5497 = vrot.slane %v5496, 4
        %v5499 = vshrl.u32 %v5482, 16
        %v5501 = vrot.slane %v5499, 7
        %v5502 = vshll.u32 %v5482, 16
        %v5504 = vor.u32 %v5501, %v5502
        %v5505 = vsel %vm1473, %v5497, %v5504
        %v5506 = vrot.slane %v5501, 4
        %v5508 = vshrl.u32 %v5483, 16
        %v5510 = vrot.slane %v5508, 7
        %v5511 = vshll.u32 %v5483, 16
        %v5513 = vor.u32 %v5510, %v5511
        %v5514 = vsel %vm1473, %v5506, %v5513
        %v5516 = vshrl.u32 %v5484, 16
        %v5518 = vrot.slane %v5516, 7
        %v5519 = vrot.slane %v5518, 4
        %v5521 = vshrl.u32 %v5485, 16
        %v5523 = vrot.slane %v5521, 7
        %v5524 = vshll.u32 %v5485, 16
        %v5526 = vor.u32 %v5523, %v5524
        %v5527 = vsel %vm1473, %v5519, %v5526
        %v5528 = vrot.slane %v5523, 4
        %v5530 = vshrl.u32 %v5486, 16
        %v5532 = vrot.slane %v5530, 7
        %v5533 = vshll.u32 %v5486, 16
        %v5535 = vor.u32 %v5532, %v5533
        %v5536 = vsel %vm1473, %v5528, %v5535
        %v5538 = vshrl.u32 %v5487, 16
        %v5540 = vrot.slane %v5538, 7
        %v5541 = vrot.slane %v5540, 4
        %v5543 = vshrl.u32 %v5488, 16
        %v5545 = vrot.slane %v5543, 7
        %v5546 = vshll.u32 %v5488, 16
        %v5548 = vor.u32 %v5545, %v5546
        %v5549 = vsel %vm1473, %v5541, %v5548
        %v5550 = vrot.slane %v5545, 4
        %v5552 = vshrl.u32 %v5489, 16
        %v5554 = vrot.slane %v5552, 7
        %v5555 = vshll.u32 %v5489, 16
        %v5557 = vor.u32 %v5554, %v5555
        %v5558 = vsel %vm1473, %v5550, %v5557
        %v5560 = vshrl.u32 %v5490, 16
        %v5562 = vrot.slane %v5560, 7
        %v5563 = vrot.slane %v5562, 4
        %v5565 = vshrl.u32 %v5491, 16
        %v5567 = vrot.slane %v5565, 7
        %v5568 = vshll.u32 %v5491, 16
        %v5570 = vor.u32 %v5567, %v5568
        %v5571 = vsel %vm1473, %v5563, %v5570
        %v5572 = vrot.slane %v5567, 4
        %v5574 = vshrl.u32 %v5492, 16
        %v5576 = vrot.slane %v5574, 7
        %v5577 = vshll.u32 %v5492, 16
        %v5579 = vor.u32 %v5576, %v5577
        %v5580 = vsel %vm1473, %v5572, %v5579
        %v5581 = vld [vmem:[#allocation5 + $0xc] sm:$0x1]
        %v5582 = vld [vmem:[#allocation5 + $0x1c] sm:$0x1]
        %v5583 = vld [vmem:[#allocation5 + $0x2c] sm:$0x1]
        %v5584 = vld [vmem:[#allocation5 + $0x3c] sm:$0x1]
        %v5585 = vrot.slane %v5499, 4
        %v5586 = vrot.slane %v5502, 5
        %v5587 = vor.u32 %v5585, %v5586
        %v5588 = vrot.slane %v5587, 4
        %v5589 = vrot.slane %v5511, 5
        %v5590 = vsel %vm1614, %v5588, %v5589
        %v5591 = vrot.slane %v5508, 4
        %v5592 = vor.u32 %v5591, %v5589
        %v5593 = vrot.slane %v5592, 4
        %v5595 = vshll.u32 %v5581, 16
        %v5597 = vrot.slane %v5595, 5
        %v5598 = vsel %vm1614, %v5593, %v5597
        %v5599 = vrot.slane %v5521, 4
        %v5600 = vrot.slane %v5524, 5
        %v5601 = vor.u32 %v5599, %v5600
        %v5602 = vrot.slane %v5601, 4
        %v5603 = vrot.slane %v5533, 5
        %v5604 = vsel %vm1614, %v5602, %v5603
        %v5605 = vrot.slane %v5530, 4
        %v5606 = vor.u32 %v5605, %v5603
        %v5607 = vrot.slane %v5606, 4
        %v5609 = vshll.u32 %v5582, 16
        %v5611 = vrot.slane %v5609, 5
        %v5612 = vsel %vm1614, %v5607, %v5611
        %v5613 = vrot.slane %v5543, 4
        %v5614 = vrot.slane %v5546, 5
        %v5615 = vor.u32 %v5613, %v5614
        %v5616 = vrot.slane %v5615, 4
        %v5617 = vrot.slane %v5555, 5
        %v5618 = vsel %vm1614, %v5616, %v5617
        %v5619 = vrot.slane %v5552, 4
        %v5620 = vor.u32 %v5619, %v5617
        %v5621 = vrot.slane %v5620, 4
        %v5623 = vshll.u32 %v5583, 16
        %v5625 = vrot.slane %v5623, 5
        %v5626 = vsel %vm1614, %v5621, %v5625
        %v5627 = vrot.slane %v5565, 4
        %v5628 = vrot.slane %v5568, 5
        %v5629 = vor.u32 %v5627, %v5628
        %v5630 = vrot.slane %v5629, 4
        %v5631 = vrot.slane %v5577, 5
        %v5632 = vsel %vm1614, %v5630, %v5631
        %v5633 = vrot.slane %v5574, 4
        %v5634 = vor.u32 %v5633, %v5631
        %v5635 = vrot.slane %v5634, 4
        %v5637 = vshll.u32 %v5584, 16
        %v5639 = vrot.slane %v5637, 5
        %v5640 = vsel %vm1614, %v5635, %v5639
        %s5641 = scalar_lea.vmem [#allocation5], 16
        %v5642 = vld [vmem:[%s5641] sm:$0x8]
        %v5643 = vld [vmem:[%s5641 + $0x4] sm:$0xf]
        %v5644 = vld [vmem:[%s5641 + $0x8] sm:$0xf]
        %v5645 = vld [vmem:[%s5641 + $0x10] sm:$0x8]
        %v5646 = vld [vmem:[%s5641 + $0x14] sm:$0xf]
        %v5647 = vld [vmem:[%s5641 + $0x18] sm:$0xf]
        %v5648 = vld [vmem:[%s5641 + $0x20] sm:$0x8]
        %v5649 = vld [vmem:[%s5641 + $0x24] sm:$0xf]
        %v5650 = vld [vmem:[%s5641 + $0x28] sm:$0xf]
        %v5651 = vld [vmem:[%s5641 + $0x30] sm:$0x8]
        %v5652 = vld [vmem:[%s5641 + $0x34] sm:$0xf]
        %v5653 = vld [vmem:[%s5641 + $0x38] sm:$0xf]
        %v5655 = vshrl.u32 %v5642, 16
        %v5657 = vrot.slane %v5655, 7
        %v5658 = vrot.slane %v5657, 4
        %v5660 = vshrl.u32 %v5643, 16
        %v5662 = vrot.slane %v5660, 7
        %v5663 = vshll.u32 %v5643, 16
        %v5665 = vor.u32 %v5662, %v5663
        %v5666 = vsel %vm1473, %v5658, %v5665
        %v5667 = vrot.slane %v5662, 4
        %v5669 = vshrl.u32 %v5644, 16
        %v5671 = vrot.slane %v5669, 7
        %v5672 = vshll.u32 %v5644, 16
        %v5674 = vor.u32 %v5671, %v5672
        %v5675 = vsel %vm1473, %v5667, %v5674
        %v5677 = vshrl.u32 %v5645, 16
        %v5679 = vrot.slane %v5677, 7
        %v5680 = vrot.slane %v5679, 4
        %v5682 = vshrl.u32 %v5646, 16
        %v5684 = vrot.slane %v5682, 7
        %v5685 = vshll.u32 %v5646, 16
        %v5687 = vor.u32 %v5684, %v5685
        %v5688 = vsel %vm1473, %v5680, %v5687
        %v5689 = vrot.slane %v5684, 4
        %v5691 = vshrl.u32 %v5647, 16
        %v5693 = vrot.slane %v5691, 7
        %v5694 = vshll.u32 %v5647, 16
        %v5696 = vor.u32 %v5693, %v5694
        %v5697 = vsel %vm1473, %v5689, %v5696
        %v5699 = vshrl.u32 %v5648, 16
        %v5701 = vrot.slane %v5699, 7
        %v5702 = vrot.slane %v5701, 4
        %v5704 = vshrl.u32 %v5649, 16
        %v5706 = vrot.slane %v5704, 7
        %v5707 = vshll.u32 %v5649, 16
        %v5709 = vor.u32 %v5706, %v5707
        %v5710 = vsel %vm1473, %v5702, %v5709
        %v5711 = vrot.slane %v5706, 4
        %v5713 = vshrl.u32 %v5650, 16
        %v5715 = vrot.slane %v5713, 7
        %v5716 = vshll.u32 %v5650, 16
        %v5718 = vor.u32 %v5715, %v5716
        %v5719 = vsel %vm1473, %v5711, %v5718
        %v5721 = vshrl.u32 %v5651, 16
        %v5723 = vrot.slane %v5721, 7
        %v5724 = vrot.slane %v5723, 4
        %v5726 = vshrl.u32 %v5652, 16
        %v5728 = vrot.slane %v5726, 7
        %v5729 = vshll.u32 %v5652, 16
        %v5731 = vor.u32 %v5728, %v5729
        %v5732 = vsel %vm1473, %v5724, %v5731
        %v5733 = vrot.slane %v5728, 4
        %v5735 = vshrl.u32 %v5653, 16
        %v5737 = vrot.slane %v5735, 7
        %v5738 = vshll.u32 %v5653, 16
        %v5740 = vor.u32 %v5737, %v5738
        %v5741 = vsel %vm1473, %v5733, %v5740
        %v5742 = vld [vmem:[%s5641 + $0xc] sm:$0x1]
        %v5743 = vld [vmem:[%s5641 + $0x1c] sm:$0x1]
        %v5744 = vld [vmem:[%s5641 + $0x2c] sm:$0x1]
        %v5745 = vld [vmem:[%s5641 + $0x3c] sm:$0x1]
        %v5746 = vrot.slane %v5660, 4
        %v5747 = vrot.slane %v5663, 5
        %v5748 = vor.u32 %v5746, %v5747
        %v5749 = vrot.slane %v5748, 4
        %v5750 = vrot.slane %v5672, 5
        %v5751 = vsel %vm1614, %v5749, %v5750
        %v5752 = vrot.slane %v5669, 4
        %v5753 = vor.u32 %v5752, %v5750
        %v5754 = vrot.slane %v5753, 4
        %v5756 = vshll.u32 %v5742, 16
        %v5758 = vrot.slane %v5756, 5
        %v5759 = vsel %vm1614, %v5754, %v5758
        %v5760 = vrot.slane %v5682, 4
        %v5761 = vrot.slane %v5685, 5
        %v5762 = vor.u32 %v5760, %v5761
        %v5763 = vrot.slane %v5762, 4
        %v5764 = vrot.slane %v5694, 5
        %v5765 = vsel %vm1614, %v5763, %v5764
        %v5766 = vrot.slane %v5691, 4
        %v5767 = vor.u32 %v5766, %v5764
        %v5768 = vrot.slane %v5767, 4
        %v5770 = vshll.u32 %v5743, 16
        %v5772 = vrot.slane %v5770, 5
        %v5773 = vsel %vm1614, %v5768, %v5772
        %v5774 = vrot.slane %v5704, 4
        %v5775 = vrot.slane %v5707, 5
        %v5776 = vor.u32 %v5774, %v5775
        %v5777 = vrot.slane %v5776, 4
        %v5778 = vrot.slane %v5716, 5
        %v5779 = vsel %vm1614, %v5777, %v5778
        %v5780 = vrot.slane %v5713, 4
        %v5781 = vor.u32 %v5780, %v5778
        %v5782 = vrot.slane %v5781, 4
        %v5784 = vshll.u32 %v5744, 16
        %v5786 = vrot.slane %v5784, 5
        %v5787 = vsel %vm1614, %v5782, %v5786
        %v5788 = vrot.slane %v5726, 4
        %v5789 = vrot.slane %v5729, 5
        %v5790 = vor.u32 %v5788, %v5789
        %v5791 = vrot.slane %v5790, 4
        %v5792 = vrot.slane %v5738, 5
        %v5793 = vsel %vm1614, %v5791, %v5792
        %v5794 = vrot.slane %v5735, 4
        %v5795 = vor.u32 %v5794, %v5792
        %v5796 = vrot.slane %v5795, 4
        %v5798 = vshll.u32 %v5745, 16
        %v5800 = vrot.slane %v5798, 5
        %v5801 = vsel %vm1614, %v5796, %v5800
        %s5802 = scalar_lea.vmem [#allocation5], 32
        %v5803 = vld [vmem:[%s5802] sm:$0x8]
        %v5804 = vld [vmem:[%s5802 + $0x4] sm:$0xf]
        %v5805 = vld [vmem:[%s5802 + $0x8] sm:$0xf]
        %v5806 = vld [vmem:[%s5802 + $0x10] sm:$0x8]
        %v5807 = vld [vmem:[%s5802 + $0x14] sm:$0xf]
        %v5808 = vld [vmem:[%s5802 + $0x18] sm:$0xf]
        %v5809 = vld [vmem:[%s5802 + $0x20] sm:$0x8]
        %v5810 = vld [vmem:[%s5802 + $0x24] sm:$0xf]
        %v5811 = vld [vmem:[%s5802 + $0x28] sm:$0xf]
        %v5812 = vld [vmem:[%s5802 + $0x30] sm:$0x8]
        %v5813 = vld [vmem:[%s5802 + $0x34] sm:$0xf]
        %v5814 = vld [vmem:[%s5802 + $0x38] sm:$0xf]
        %v5816 = vshrl.u32 %v5803, 16
        %v5818 = vrot.slane %v5816, 7
        %v5819 = vrot.slane %v5818, 4
        %v5821 = vshrl.u32 %v5804, 16
        %v5823 = vrot.slane %v5821, 7
        %v5824 = vshll.u32 %v5804, 16
        %v5826 = vor.u32 %v5823, %v5824
        %v5827 = vsel %vm1473, %v5819, %v5826
        %v5828 = vrot.slane %v5823, 4
        %v5830 = vshrl.u32 %v5805, 16
        %v5832 = vrot.slane %v5830, 7
        %v5833 = vshll.u32 %v5805, 16
        %v5835 = vor.u32 %v5832, %v5833
        %v5836 = vsel %vm1473, %v5828, %v5835
        %v5838 = vshrl.u32 %v5806, 16
        %v5840 = vrot.slane %v5838, 7
        %v5841 = vrot.slane %v5840, 4
        %v5843 = vshrl.u32 %v5807, 16
        %v5845 = vrot.slane %v5843, 7
        %v5846 = vshll.u32 %v5807, 16
        %v5848 = vor.u32 %v5845, %v5846
        %v5849 = vsel %vm1473, %v5841, %v5848
        %v5850 = vrot.slane %v5845, 4
        %v5852 = vshrl.u32 %v5808, 16
        %v5854 = vrot.slane %v5852, 7
        %v5855 = vshll.u32 %v5808, 16
        %v5857 = vor.u32 %v5854, %v5855
        %v5858 = vsel %vm1473, %v5850, %v5857
        %v5860 = vshrl.u32 %v5809, 16
        %v5862 = vrot.slane %v5860, 7
        %v5863 = vrot.slane %v5862, 4
        %v5865 = vshrl.u32 %v5810, 16
        %v5867 = vrot.slane %v5865, 7
        %v5868 = vshll.u32 %v5810, 16
        %v5870 = vor.u32 %v5867, %v5868
        %v5871 = vsel %vm1473, %v5863, %v5870
        %v5872 = vrot.slane %v5867, 4
        %v5874 = vshrl.u32 %v5811, 16
        %v5876 = vrot.slane %v5874, 7
        %v5877 = vshll.u32 %v5811, 16
        %v5879 = vor.u32 %v5876, %v5877
        %v5880 = vsel %vm1473, %v5872, %v5879
        %v5882 = vshrl.u32 %v5812, 16
        %v5884 = vrot.slane %v5882, 7
        %v5885 = vrot.slane %v5884, 4
        %v5887 = vshrl.u32 %v5813, 16
        %v5889 = vrot.slane %v5887, 7
        %v5890 = vshll.u32 %v5813, 16
        %v5892 = vor.u32 %v5889, %v5890
        %v5893 = vsel %vm1473, %v5885, %v5892
        %v5894 = vrot.slane %v5889, 4
        %v5896 = vshrl.u32 %v5814, 16
        %v5898 = vrot.slane %v5896, 7
        %v5899 = vshll.u32 %v5814, 16
        %v5901 = vor.u32 %v5898, %v5899
        %v5902 = vsel %vm1473, %v5894, %v5901
        %v5903 = vld [vmem:[%s5802 + $0xc] sm:$0x1]
        %v5904 = vld [vmem:[%s5802 + $0x1c] sm:$0x1]
        %v5905 = vld [vmem:[%s5802 + $0x2c] sm:$0x1]
        %v5906 = vld [vmem:[%s5802 + $0x3c] sm:$0x1]
        %v5907 = vrot.slane %v5821, 4
        %v5908 = vrot.slane %v5824, 5
        %v5909 = vor.u32 %v5907, %v5908
        %v5910 = vrot.slane %v5909, 4
        %v5911 = vrot.slane %v5833, 5
        %v5912 = vsel %vm1614, %v5910, %v5911
        %v5913 = vrot.slane %v5830, 4
        %v5914 = vor.u32 %v5913, %v5911
        %v5915 = vrot.slane %v5914, 4
        %v5917 = vshll.u32 %v5903, 16
        %v5919 = vrot.slane %v5917, 5
        %v5920 = vsel %vm1614, %v5915, %v5919
        %v5921 = vrot.slane %v5843, 4
        %v5922 = vrot.slane %v5846, 5
        %v5923 = vor.u32 %v5921, %v5922
        %v5924 = vrot.slane %v5923, 4
        %v5925 = vrot.slane %v5855, 5
        %v5926 = vsel %vm1614, %v5924, %v5925
        %v5927 = vrot.slane %v5852, 4
        %v5928 = vor.u32 %v5927, %v5925
        %v5929 = vrot.slane %v5928, 4
        %v5931 = vshll.u32 %v5904, 16
        %v5933 = vrot.slane %v5931, 5
        %v5934 = vsel %vm1614, %v5929, %v5933
        %v5935 = vrot.slane %v5865, 4
        %v5936 = vrot.slane %v5868, 5
        %v5937 = vor.u32 %v5935, %v5936
        %v5938 = vrot.slane %v5937, 4
        %v5939 = vrot.slane %v5877, 5
        %v5940 = vsel %vm1614, %v5938, %v5939
        %v5941 = vrot.slane %v5874, 4
        %v5942 = vor.u32 %v5941, %v5939
        %v5943 = vrot.slane %v5942, 4
        %v5945 = vshll.u32 %v5905, 16
        %v5947 = vrot.slane %v5945, 5
        %v5948 = vsel %vm1614, %v5943, %v5947
        %v5949 = vrot.slane %v5887, 4
        %v5950 = vrot.slane %v5890, 5
        %v5951 = vor.u32 %v5949, %v5950
        %v5952 = vrot.slane %v5951, 4
        %v5953 = vrot.slane %v5899, 5
        %v5954 = vsel %vm1614, %v5952, %v5953
        %v5955 = vrot.slane %v5896, 4
        %v5956 = vor.u32 %v5955, %v5953
        %v5957 = vrot.slane %v5956, 4
        %v5959 = vshll.u32 %v5906, 16
        %v5961 = vrot.slane %v5959, 5
        %v5962 = vsel %vm1614, %v5957, %v5961
        %v5963 = vunpack.c.l.b16 %v5505
        %v5964 = vunpack.c.l.b16 %v5514
        %v5965 = vunpack.c.l.b16 %v5527
        %v5966 = vunpack.c.l.b16 %v5536
        %v5967 = vunpack.c.l.b16 %v5549
        %v5968 = vunpack.c.l.b16 %v5558
        %v5969 = vunpack.c.l.b16 %v5571
        %v5970 = vunpack.c.l.b16 %v5580
        %v5971 = vpack.c.b16 %v5964, %v5963
        %v5972 = vpack.c.b16 %v5966, %v5965
        %v5973 = vpack.c.b16 %v5968, %v5967
        %v5974 = vpack.c.b16 %v5970, %v5969
        %v5987 = vunpack.c.l.b16 %v5482
        %v5988 = vunpack.c.l.b16 %v5483
        %v5989 = vunpack.c.l.b16 %v5485
        %v5990 = vunpack.c.l.b16 %v5486
        %v5991 = vunpack.c.l.b16 %v5488
        %v5992 = vunpack.c.l.b16 %v5489
        %v5993 = vunpack.c.l.b16 %v5491
        %v5994 = vunpack.c.l.b16 %v5492
        %v5995 = vpack.c.b16 %v5988, %v5987
        %v5996 = vpack.c.b16 %v5990, %v5989
        %v5997 = vpack.c.b16 %v5992, %v5991
        %v5998 = vpack.c.b16 %v5994, %v5993
        %v6003 = vunpack.c.l.b16 %v5590
        %v6004 = vunpack.c.l.b16 %v5598
        %v6005 = vunpack.c.l.b16 %v5604
        %v6006 = vunpack.c.l.b16 %v5612
        %v6007 = vunpack.c.l.b16 %v5618
        %v6008 = vunpack.c.l.b16 %v5626
        %v6009 = vunpack.c.l.b16 %v5632
        %v6010 = vunpack.c.l.b16 %v5640
        %v6011 = vpack.c.b16 %v6004, %v6003
        %v6012 = vpack.c.b16 %v6006, %v6005
        %v6013 = vpack.c.b16 %v6008, %v6007
        %v6014 = vpack.c.b16 %v6010, %v6009
        %v6019 = vunpack.c.l.b16 %v5666
        %v6020 = vunpack.c.l.b16 %v5675
        %v6021 = vunpack.c.l.b16 %v5688
        %v6022 = vunpack.c.l.b16 %v5697
        %v6023 = vunpack.c.l.b16 %v5710
        %v6024 = vunpack.c.l.b16 %v5719
        %v6025 = vunpack.c.l.b16 %v5732
        %v6026 = vunpack.c.l.b16 %v5741
        %v6027 = vpack.c.b16 %v6020, %v6019
        %v6028 = vpack.c.b16 %v6022, %v6021
        %v6029 = vpack.c.b16 %v6024, %v6023
        %v6030 = vpack.c.b16 %v6026, %v6025
        %v6043 = vunpack.c.l.b16 %v5643
        %v6044 = vunpack.c.l.b16 %v5644
        %v6045 = vunpack.c.l.b16 %v5646
        %v6046 = vunpack.c.l.b16 %v5647
        %v6047 = vunpack.c.l.b16 %v5649
        %v6048 = vunpack.c.l.b16 %v5650
        %v6049 = vunpack.c.l.b16 %v5652
        %v6050 = vunpack.c.l.b16 %v5653
        %v6051 = vpack.c.b16 %v6044, %v6043
        %v6052 = vpack.c.b16 %v6046, %v6045
        %v6053 = vpack.c.b16 %v6048, %v6047
        %v6054 = vpack.c.b16 %v6050, %v6049
        %v6059 = vunpack.c.l.b16 %v5751
        %v6060 = vunpack.c.l.b16 %v5759
        %v6061 = vunpack.c.l.b16 %v5765
        %v6062 = vunpack.c.l.b16 %v5773
        %v6063 = vunpack.c.l.b16 %v5779
        %v6064 = vunpack.c.l.b16 %v5787
        %v6065 = vunpack.c.l.b16 %v5793
        %v6066 = vunpack.c.l.b16 %v5801
        %v6067 = vpack.c.b16 %v6060, %v6059
        %v6068 = vpack.c.b16 %v6062, %v6061
        %v6069 = vpack.c.b16 %v6064, %v6063
        %v6070 = vpack.c.b16 %v6066, %v6065
        %v6075 = vunpack.c.l.b16 %v5827
        %v6076 = vunpack.c.l.b16 %v5836
        %v6077 = vunpack.c.l.b16 %v5849
        %v6078 = vunpack.c.l.b16 %v5858
        %v6079 = vunpack.c.l.b16 %v5871
        %v6080 = vunpack.c.l.b16 %v5880
        %v6081 = vunpack.c.l.b16 %v5893
        %v6082 = vunpack.c.l.b16 %v5902
        %v6083 = vpack.c.b16 %v6076, %v6075
        %v6084 = vpack.c.b16 %v6078, %v6077
        %v6085 = vpack.c.b16 %v6080, %v6079
        %v6086 = vpack.c.b16 %v6082, %v6081
        %v6099 = vunpack.c.l.b16 %v5804
        %v6100 = vunpack.c.l.b16 %v5805
        %v6101 = vunpack.c.l.b16 %v5807
        %v6102 = vunpack.c.l.b16 %v5808
        %v6103 = vunpack.c.l.b16 %v5810
        %v6104 = vunpack.c.l.b16 %v5811
        %v6105 = vunpack.c.l.b16 %v5813
        %v6106 = vunpack.c.l.b16 %v5814
        %v6107 = vpack.c.b16 %v6100, %v6099
        %v6108 = vpack.c.b16 %v6102, %v6101
        %v6109 = vpack.c.b16 %v6104, %v6103
        %v6110 = vpack.c.b16 %v6106, %v6105
        %v6115 = vunpack.c.l.b16 %v5912
        %v6116 = vunpack.c.l.b16 %v5920
        %v6117 = vunpack.c.l.b16 %v5926
        %v6118 = vunpack.c.l.b16 %v5934
        %v6119 = vunpack.c.l.b16 %v5940
        %v6120 = vunpack.c.l.b16 %v5948
        %v6121 = vunpack.c.l.b16 %v5954
        %v6122 = vunpack.c.l.b16 %v5962
        %v6123 = vpack.c.b16 %v6116, %v6115
        %v6124 = vpack.c.b16 %v6118, %v6117
        %v6125 = vpack.c.b16 %v6120, %v6119
        %v6126 = vpack.c.b16 %v6122, %v6121
        %v6131 = vld [vmem:[%s9] sm:$0xf]
        %v6132 = vld [vmem:[%s9 + $0x4] sm:$0xf]
        %v6133 = vld [vmem:[%s9 + $0x8] sm:$0xf]
        %v6134 = vld [vmem:[%s9 + $0xc] sm:$0xf]
        %v6135 = vld [vmem:[%s9 + $0x10] sm:$0xf]
        %v6136 = vld [vmem:[%s9 + $0x14] sm:$0xf]
        %v6137 = vld [vmem:[%s9 + $0x18] sm:$0xf]
        %v6138 = vld [vmem:[%s9 + $0x1c] sm:$0xf]
        %v6139 = vld [vmem:[%s9 + $0x20] sm:$0xf]
        %v6140 = vld [vmem:[%s9 + $0x24] sm:$0xf]
        %v6141 = vld [vmem:[%s9 + $0x28] sm:$0xf]
        %v6142 = vld [vmem:[%s9 + $0x2c] sm:$0xf]
        %v6143 = vld [vmem:[%s9 + $0x30] sm:$0xf]
        %v6144 = vld [vmem:[%s9 + $0x34] sm:$0xf]
        %v6145 = vld [vmem:[%s9 + $0x38] sm:$0xf]
        %v6146 = vld [vmem:[%s9 + $0x3c] sm:$0xf]
        %v6147 = vld [vmem:[%s9 + $0x40] sm:$0xf]
        %v6148 = vld [vmem:[%s9 + $0x44] sm:$0xf]
        %v6149 = vld [vmem:[%s9 + $0x48] sm:$0xf]
        %v6150 = vld [vmem:[%s9 + $0x4c] sm:$0xf]
        %v6151 = vld [vmem:[%s9 + $0x50] sm:$0xf]
        %v6152 = vld [vmem:[%s9 + $0x54] sm:$0xf]
        %v6153 = vld [vmem:[%s9 + $0x58] sm:$0xf]
        %v6154 = vld [vmem:[%s9 + $0x5c] sm:$0xf]
        %v6155 = vld [vmem:[%s9 + $0x60] sm:$0xf]
        %v6156 = vld [vmem:[%s9 + $0x64] sm:$0xf]
        %v6157 = vld [vmem:[%s9 + $0x68] sm:$0xf]
        %v6158 = vld [vmem:[%s9 + $0x6c] sm:$0xf]
        %v6159 = vld [vmem:[%s9 + $0x70] sm:$0xf]
        %v6160 = vld [vmem:[%s9 + $0x74] sm:$0xf]
        %v6161 = vld [vmem:[%s9 + $0x78] sm:$0xf]
        %v6162 = vld [vmem:[%s9 + $0x7c] sm:$0xf]
        %v6163 = vld [vmem:[%s9 + $0x80] sm:$0xf]
        %v6164 = vld [vmem:[%s9 + $0x84] sm:$0xf]
        %v6165 = vld [vmem:[%s9 + $0x88] sm:$0xf]
        %v6166 = vld [vmem:[%s9 + $0x8c] sm:$0xf]
        %v6167 = vld [vmem:[%s9 + $0x90] sm:$0xf]
        %v6168 = vld [vmem:[%s9 + $0x94] sm:$0xf]
        %v6169 = vld [vmem:[%s9 + $0x98] sm:$0xf]
        %v6170 = vld [vmem:[%s9 + $0x9c] sm:$0xf]
        %v6171 = vld [vmem:[%s9 + $0xa0] sm:$0xf]
        %v6172 = vld [vmem:[%s9 + $0xa4] sm:$0xf]
        %v6173 = vld [vmem:[%s9 + $0xa8] sm:$0xf]
        %v6174 = vld [vmem:[%s9 + $0xac] sm:$0xf]
        %v6175 = vld [vmem:[%s9 + $0xb0] sm:$0xf]
        %v6176 = vld [vmem:[%s9 + $0xb4] sm:$0xf]
        %v6177 = vld [vmem:[%s9 + $0xb8] sm:$0xf]
        %v6178 = vld [vmem:[%s9 + $0xbc] sm:$0xf]
        %v6179 = vld [vmem:[%s9 + $0xc0] sm:$0xf]
        %v6180 = vld [vmem:[%s9 + $0xc4] sm:$0xf]
        %v6181 = vld [vmem:[%s9 + $0xc8] sm:$0xf]
        %v6182 = vld [vmem:[%s9 + $0xcc] sm:$0xf]
        %v6183 = vld [vmem:[%s9 + $0xd0] sm:$0xf]
        %v6184 = vld [vmem:[%s9 + $0xd4] sm:$0xf]
        %v6185 = vld [vmem:[%s9 + $0xd8] sm:$0xf]
        %v6186 = vld [vmem:[%s9 + $0xdc] sm:$0xf]
        %v6187 = vld [vmem:[%s9 + $0xe0] sm:$0xf]
        %v6188 = vld [vmem:[%s9 + $0xe4] sm:$0xf]
        %v6189 = vld [vmem:[%s9 + $0xe8] sm:$0xf]
        %v6190 = vld [vmem:[%s9 + $0xec] sm:$0xf]
        %v6191 = vld [vmem:[%s9 + $0xf0] sm:$0xf]
        %v6192 = vld [vmem:[%s9 + $0xf4] sm:$0xf]
        %v6193 = vld [vmem:[%s9 + $0xf8] sm:$0xf]
        %v6194 = vld [vmem:[%s9 + $0xfc] sm:$0xf]
        %v6195 = vld [vmem:[%s9 + $0x100] sm:$0xf]
        %v6196 = vld [vmem:[%s9 + $0x104] sm:$0xf]
        %v6197 = vld [vmem:[%s9 + $0x108] sm:$0xf]
        %v6198 = vld [vmem:[%s9 + $0x10c] sm:$0xf]
        %v6199 = vld [vmem:[%s9 + $0x110] sm:$0xf]
        %v6200 = vld [vmem:[%s9 + $0x114] sm:$0xf]
        %v6201 = vld [vmem:[%s9 + $0x118] sm:$0xf]
        %v6202 = vld [vmem:[%s9 + $0x11c] sm:$0xf]
        %v6203 = vld [vmem:[%s9 + $0x120] sm:$0xf]
        %v6204 = vld [vmem:[%s9 + $0x124] sm:$0xf]
        %v6205 = vld [vmem:[%s9 + $0x128] sm:$0xf]
        %v6206 = vld [vmem:[%s9 + $0x12c] sm:$0xf]
        %v6207 = vld [vmem:[%s9 + $0x130] sm:$0xf]
        %v6208 = vld [vmem:[%s9 + $0x134] sm:$0xf]
        %v6209 = vld [vmem:[%s9 + $0x138] sm:$0xf]
        %v6210 = vld [vmem:[%s9 + $0x13c] sm:$0xf]
        %v6211 = vld [vmem:[%s9 + $0x140] sm:$0xf]
        %v6212 = vld [vmem:[%s9 + $0x144] sm:$0xf]
        %v6213 = vld [vmem:[%s9 + $0x148] sm:$0xf]
        %v6214 = vld [vmem:[%s9 + $0x14c] sm:$0xf]
        %v6215 = vld [vmem:[%s9 + $0x150] sm:$0xf]
        %v6216 = vld [vmem:[%s9 + $0x154] sm:$0xf]
        %v6217 = vld [vmem:[%s9 + $0x158] sm:$0xf]
        %v6218 = vld [vmem:[%s9 + $0x15c] sm:$0xf]
        %v6219 = vld [vmem:[%s9 + $0x160] sm:$0xf]
        %v6220 = vld [vmem:[%s9 + $0x164] sm:$0xf]
        %v6221 = vld [vmem:[%s9 + $0x168] sm:$0xf]
        %v6222 = vld [vmem:[%s9 + $0x16c] sm:$0xf]
        %v6223 = vld [vmem:[%s9 + $0x170] sm:$0xf]
        %v6224 = vld [vmem:[%s9 + $0x174] sm:$0xf]
        %v6225 = vld [vmem:[%s9 + $0x178] sm:$0xf]
        %v6226 = vld [vmem:[%s9 + $0x17c] sm:$0xf]
        %v6227 = vld [vmem:[%s9 + $0x180] sm:$0xf]
        %v6228 = vld [vmem:[%s9 + $0x184] sm:$0xf]
        %v6229 = vld [vmem:[%s9 + $0x188] sm:$0xf]
        %v6230 = vld [vmem:[%s9 + $0x18c] sm:$0xf]
        %v6231 = vld [vmem:[%s9 + $0x190] sm:$0xf]
        %v6232 = vld [vmem:[%s9 + $0x194] sm:$0xf]
        %v6233 = vld [vmem:[%s9 + $0x198] sm:$0xf]
        %v6234 = vld [vmem:[%s9 + $0x19c] sm:$0xf]
        %v6235 = vld [vmem:[%s9 + $0x1a0] sm:$0xf]
        %v6236 = vld [vmem:[%s9 + $0x1a4] sm:$0xf]
        %v6237 = vld [vmem:[%s9 + $0x1a8] sm:$0xf]
        %v6238 = vld [vmem:[%s9 + $0x1ac] sm:$0xf]
        %v6239 = vld [vmem:[%s9 + $0x1b0] sm:$0xf]
        %v6240 = vld [vmem:[%s9 + $0x1b4] sm:$0xf]
        %v6241 = vld [vmem:[%s9 + $0x1b8] sm:$0xf]
        %v6242 = vld [vmem:[%s9 + $0x1bc] sm:$0xf]
        %v6243 = vld [vmem:[%s9 + $0x1c0] sm:$0xf]
        %v6244 = vld [vmem:[%s9 + $0x1c4] sm:$0xf]
        %v6245 = vld [vmem:[%s9 + $0x1c8] sm:$0xf]
        %v6246 = vld [vmem:[%s9 + $0x1cc] sm:$0xf]
        %v6247 = vld [vmem:[%s9 + $0x1d0] sm:$0xf]
        %v6248 = vld [vmem:[%s9 + $0x1d4] sm:$0xf]
        %v6249 = vld [vmem:[%s9 + $0x1d8] sm:$0xf]
        %v6250 = vld [vmem:[%s9 + $0x1dc] sm:$0xf]
        %v6251 = vld [vmem:[%s9 + $0x1e0] sm:$0xf]
        %v6252 = vld [vmem:[%s9 + $0x1e4] sm:$0xf]
        %v6253 = vld [vmem:[%s9 + $0x1e8] sm:$0xf]
        %v6254 = vld [vmem:[%s9 + $0x1ec] sm:$0xf]
        %v6255 = vld [vmem:[%s9 + $0x1f0] sm:$0xf]
        %v6256 = vld [vmem:[%s9 + $0x1f4] sm:$0xf]
        %v6257 = vld [vmem:[%s9 + $0x1f8] sm:$0xf]
        %v6258 = vld [vmem:[%s9 + $0x1fc] sm:$0xf]
        %v6259 = vld [vmem:[%s9 + $0x200] sm:$0xf]
        %v6260 = vld [vmem:[%s9 + $0x204] sm:$0xf]
        %v6261 = vld [vmem:[%s9 + $0x208] sm:$0xf]
        %v6262 = vld [vmem:[%s9 + $0x20c] sm:$0xf]
        %v6263 = vld [vmem:[%s9 + $0x210] sm:$0xf]
        %v6264 = vld [vmem:[%s9 + $0x214] sm:$0xf]
        %v6265 = vld [vmem:[%s9 + $0x218] sm:$0xf]
        %v6266 = vld [vmem:[%s9 + $0x21c] sm:$0xf]
        %v6267 = vld [vmem:[%s9 + $0x220] sm:$0xf]
        %v6268 = vld [vmem:[%s9 + $0x224] sm:$0xf]
        %v6269 = vld [vmem:[%s9 + $0x228] sm:$0xf]
        %v6270 = vld [vmem:[%s9 + $0x22c] sm:$0xf]
        %v6271 = vld [vmem:[%s9 + $0x230] sm:$0xf]
        %v6272 = vld [vmem:[%s9 + $0x234] sm:$0xf]
        %v6273 = vld [vmem:[%s9 + $0x238] sm:$0xf]
        %v6274 = vld [vmem:[%s9 + $0x23c] sm:$0xf]
        %v6275 = vld [vmem:[%s10] sm:$0x1]
        %v6277 = vlaneseq
        %v6278 = vshrl.u32 %v6277, 7
        %v6279 = vsub.s32 0, %v6278
        %v6280 = vrot.slane %v6275, %v6279
        %v6426 = vunpack.c.l.b16 %v6131
        %v6427 = vunpack.c.l.b16 %v6132
        %v6428 = vunpack.c.l.b16 %v6133
        %v6429 = vunpack.c.l.b16 %v6134
        %v6430 = vunpack.c.l.b16 %v6135
        %v6431 = vunpack.c.l.b16 %v6136
        %v6432 = vunpack.c.l.b16 %v6137
        %v6433 = vunpack.c.l.b16 %v6138
        %v6434 = vunpack.c.l.b16 %v6139
        %v6435 = vunpack.c.l.b16 %v6140
        %v6436 = vunpack.c.l.b16 %v6141
        %v6437 = vunpack.c.l.b16 %v6142
        %v6438 = vunpack.c.l.b16 %v6143
        %v6439 = vunpack.c.l.b16 %v6144
        %v6440 = vunpack.c.l.b16 %v6145
        %v6441 = vunpack.c.l.b16 %v6146
        %v6442 = vunpack.c.l.b16 %v6147
        %v6443 = vunpack.c.l.b16 %v6148
        %v6444 = vunpack.c.l.b16 %v6149
        %v6445 = vunpack.c.l.b16 %v6150
        %v6446 = vunpack.c.l.b16 %v6151
        %v6447 = vunpack.c.l.b16 %v6152
        %v6448 = vunpack.c.l.b16 %v6153
        %v6449 = vunpack.c.l.b16 %v6154
        %v6450 = vunpack.c.l.b16 %v6155
        %v6451 = vunpack.c.l.b16 %v6156
        %v6452 = vunpack.c.l.b16 %v6157
        %v6453 = vunpack.c.l.b16 %v6158
        %v6454 = vunpack.c.l.b16 %v6159
        %v6455 = vunpack.c.l.b16 %v6160
        %v6456 = vunpack.c.l.b16 %v6161
        %v6457 = vunpack.c.l.b16 %v6162
        %v6458 = vunpack.c.l.b16 %v6163
        %v6459 = vunpack.c.l.b16 %v6164
        %v6460 = vunpack.c.l.b16 %v6165
        %v6461 = vunpack.c.l.b16 %v6166
        %v6462 = vunpack.c.l.b16 %v6167
        %v6463 = vunpack.c.l.b16 %v6168
        %v6464 = vunpack.c.l.b16 %v6169
        %v6465 = vunpack.c.l.b16 %v6170
        %v6466 = vunpack.c.l.b16 %v6171
        %v6467 = vunpack.c.l.b16 %v6172
        %v6468 = vunpack.c.l.b16 %v6173
        %v6469 = vunpack.c.l.b16 %v6174
        %v6470 = vunpack.c.l.b16 %v6175
        %v6471 = vunpack.c.l.b16 %v6176
        %v6472 = vunpack.c.l.b16 %v6177
        %v6473 = vunpack.c.l.b16 %v6178
        %v6474 = vunpack.c.l.b16 %v6179
        %v6475 = vunpack.c.l.b16 %v6180
        %v6476 = vunpack.c.l.b16 %v6181
        %v6477 = vunpack.c.l.b16 %v6182
        %v6478 = vunpack.c.l.b16 %v6183
        %v6479 = vunpack.c.l.b16 %v6184
        %v6480 = vunpack.c.l.b16 %v6185
        %v6481 = vunpack.c.l.b16 %v6186
        %v6482 = vunpack.c.l.b16 %v6187
        %v6483 = vunpack.c.l.b16 %v6188
        %v6484 = vunpack.c.l.b16 %v6189
        %v6485 = vunpack.c.l.b16 %v6190
        %v6486 = vunpack.c.l.b16 %v6191
        %v6487 = vunpack.c.l.b16 %v6192
        %v6488 = vunpack.c.l.b16 %v6193
        %v6489 = vunpack.c.l.b16 %v6194
        %v6490 = vunpack.c.l.b16 %v6195
        %v6491 = vunpack.c.l.b16 %v6196
        %v6492 = vunpack.c.l.b16 %v6197
        %v6493 = vunpack.c.l.b16 %v6198
        %v6494 = vunpack.c.l.b16 %v6199
        %v6495 = vunpack.c.l.b16 %v6200
        %v6496 = vunpack.c.l.b16 %v6201
        %v6497 = vunpack.c.l.b16 %v6202
        %v6498 = vunpack.c.l.b16 %v6203
        %v6499 = vunpack.c.l.b16 %v6204
        %v6500 = vunpack.c.l.b16 %v6205
        %v6501 = vunpack.c.l.b16 %v6206
        %v6502 = vunpack.c.l.b16 %v6207
        %v6503 = vunpack.c.l.b16 %v6208
        %v6504 = vunpack.c.l.b16 %v6209
        %v6505 = vunpack.c.l.b16 %v6210
        %v6506 = vunpack.c.l.b16 %v6211
        %v6507 = vunpack.c.l.b16 %v6212
        %v6508 = vunpack.c.l.b16 %v6213
        %v6509 = vunpack.c.l.b16 %v6214
        %v6510 = vunpack.c.l.b16 %v6215
        %v6511 = vunpack.c.l.b16 %v6216
        %v6512 = vunpack.c.l.b16 %v6217
        %v6513 = vunpack.c.l.b16 %v6218
        %v6514 = vunpack.c.l.b16 %v6219
        %v6515 = vunpack.c.l.b16 %v6220
        %v6516 = vunpack.c.l.b16 %v6221
        %v6517 = vunpack.c.l.b16 %v6222
        %v6518 = vunpack.c.l.b16 %v6223
        %v6519 = vunpack.c.l.b16 %v6224
        %v6520 = vunpack.c.l.b16 %v6225
        %v6521 = vunpack.c.l.b16 %v6226
        %v6522 = vunpack.c.l.b16 %v6227
        %v6523 = vunpack.c.l.b16 %v6228
        %v6524 = vunpack.c.l.b16 %v6229
        %v6525 = vunpack.c.l.b16 %v6230
        %v6526 = vunpack.c.l.b16 %v6231
        %v6527 = vunpack.c.l.b16 %v6232
        %v6528 = vunpack.c.l.b16 %v6233
        %v6529 = vunpack.c.l.b16 %v6234
        %v6530 = vunpack.c.l.b16 %v6235
        %v6531 = vunpack.c.l.b16 %v6236
        %v6532 = vunpack.c.l.b16 %v6237
        %v6533 = vunpack.c.l.b16 %v6238
        %v6534 = vunpack.c.l.b16 %v6239
        %v6535 = vunpack.c.l.b16 %v6240
        %v6536 = vunpack.c.l.b16 %v6241
        %v6537 = vunpack.c.l.b16 %v6242
        %v6538 = vunpack.c.l.b16 %v6243
        %v6539 = vunpack.c.l.b16 %v6244
        %v6540 = vunpack.c.l.b16 %v6245
        %v6541 = vunpack.c.l.b16 %v6246
        %v6542 = vunpack.c.l.b16 %v6247
        %v6543 = vunpack.c.l.b16 %v6248
        %v6544 = vunpack.c.l.b16 %v6249
        %v6545 = vunpack.c.l.b16 %v6250
        %v6546 = vunpack.c.l.b16 %v6251
        %v6547 = vunpack.c.l.b16 %v6252
        %v6548 = vunpack.c.l.b16 %v6253
        %v6549 = vunpack.c.l.b16 %v6254
        %v6550 = vunpack.c.l.b16 %v6255
        %v6551 = vunpack.c.l.b16 %v6256
        %v6552 = vunpack.c.l.b16 %v6257
        %v6553 = vunpack.c.l.b16 %v6258
        %v6554 = vunpack.c.l.b16 %v6259
        %v6555 = vunpack.c.l.b16 %v6260
        %v6556 = vunpack.c.l.b16 %v6261
        %v6557 = vunpack.c.l.b16 %v6262
        %v6558 = vunpack.c.l.b16 %v6263
        %v6559 = vunpack.c.l.b16 %v6264
        %v6560 = vunpack.c.l.b16 %v6265
        %v6561 = vunpack.c.l.b16 %v6266
        %v6562 = vunpack.c.l.b16 %v6267
        %v6563 = vunpack.c.l.b16 %v6268
        %v6564 = vunpack.c.l.b16 %v6269
        %v6565 = vunpack.c.l.b16 %v6270
        %v6566 = vunpack.c.l.b16 %v6271
        %v6567 = vunpack.c.l.b16 %v6272
        %v6568 = vunpack.c.l.b16 %v6273
        %v6569 = vunpack.c.l.b16 %v6274
        %v6570 = vpack.c.b16 %v6427, %v6426
        %v6571 = vpack.c.b16 %v6429, %v6428
        %v6572 = vpack.c.b16 %v6431, %v6430
        %v6573 = vpack.c.b16 %v6433, %v6432
        %v6574 = vpack.c.b16 %v6435, %v6434
        %v6575 = vpack.c.b16 %v6437, %v6436
        %v6576 = vpack.c.b16 %v6439, %v6438
        %v6577 = vpack.c.b16 %v6441, %v6440
        %v6578 = vpack.c.b16 %v6443, %v6442
        %v6579 = vpack.c.b16 %v6445, %v6444
        %v6580 = vpack.c.b16 %v6447, %v6446
        %v6581 = vpack.c.b16 %v6449, %v6448
        %v6582 = vpack.c.b16 %v6451, %v6450
        %v6583 = vpack.c.b16 %v6453, %v6452
        %v6584 = vpack.c.b16 %v6455, %v6454
        %v6585 = vpack.c.b16 %v6457, %v6456
        %v6586 = vpack.c.b16 %v6459, %v6458
        %v6587 = vpack.c.b16 %v6461, %v6460
        %v6588 = vpack.c.b16 %v6463, %v6462
        %v6589 = vpack.c.b16 %v6465, %v6464
        %v6590 = vpack.c.b16 %v6467, %v6466
        %v6591 = vpack.c.b16 %v6469, %v6468
        %v6592 = vpack.c.b16 %v6471, %v6470
        %v6593 = vpack.c.b16 %v6473, %v6472
        %v6594 = vpack.c.b16 %v6475, %v6474
        %v6595 = vpack.c.b16 %v6477, %v6476
        %v6596 = vpack.c.b16 %v6479, %v6478
        %v6597 = vpack.c.b16 %v6481, %v6480
        %v6598 = vpack.c.b16 %v6483, %v6482
        %v6599 = vpack.c.b16 %v6485, %v6484
        %v6600 = vpack.c.b16 %v6487, %v6486
        %v6601 = vpack.c.b16 %v6489, %v6488
        %v6602 = vpack.c.b16 %v6491, %v6490
        %v6603 = vpack.c.b16 %v6493, %v6492
        %v6604 = vpack.c.b16 %v6495, %v6494
        %v6605 = vpack.c.b16 %v6497, %v6496
        %v6606 = vpack.c.b16 %v6499, %v6498
        %v6607 = vpack.c.b16 %v6501, %v6500
        %v6608 = vpack.c.b16 %v6503, %v6502
        %v6609 = vpack.c.b16 %v6505, %v6504
        %v6610 = vpack.c.b16 %v6507, %v6506
        %v6611 = vpack.c.b16 %v6509, %v6508
        %v6612 = vpack.c.b16 %v6511, %v6510
        %v6613 = vpack.c.b16 %v6513, %v6512
        %v6614 = vpack.c.b16 %v6515, %v6514
        %v6615 = vpack.c.b16 %v6517, %v6516
        %v6616 = vpack.c.b16 %v6519, %v6518
        %v6617 = vpack.c.b16 %v6521, %v6520
        %v6618 = vpack.c.b16 %v6523, %v6522
        %v6619 = vpack.c.b16 %v6525, %v6524
        %v6620 = vpack.c.b16 %v6527, %v6526
        %v6621 = vpack.c.b16 %v6529, %v6528
        %v6622 = vpack.c.b16 %v6531, %v6530
        %v6623 = vpack.c.b16 %v6533, %v6532
        %v6624 = vpack.c.b16 %v6535, %v6534
        %v6625 = vpack.c.b16 %v6537, %v6536
        %v6626 = vpack.c.b16 %v6539, %v6538
        %v6627 = vpack.c.b16 %v6541, %v6540
        %v6628 = vpack.c.b16 %v6543, %v6542
        %v6629 = vpack.c.b16 %v6545, %v6544
        %v6630 = vpack.c.b16 %v6547, %v6546
        %v6631 = vpack.c.b16 %v6549, %v6548
        %v6632 = vpack.c.b16 %v6551, %v6550
        %v6633 = vpack.c.b16 %v6553, %v6552
        %v6634 = vpack.c.b16 %v6555, %v6554
        %v6635 = vpack.c.b16 %v6557, %v6556
        %v6636 = vpack.c.b16 %v6559, %v6558
        %v6637 = vpack.c.b16 %v6561, %v6560
        %v6638 = vpack.c.b16 %v6563, %v6562
        %v6639 = vpack.c.b16 %v6565, %v6564
        %v6640 = vpack.c.b16 %v6567, %v6566
        %v6641 = vpack.c.b16 %v6569, %v6568
        %6714 = vmatprep.subr.bf16.mxu0 0
        %6715 = vmatpush1.bf16.msra.mxu0 %v6577
        %6716 = vmatprep.subr.bf16.mxu0 0
        %6717 = vmatpush1.bf16.msra.mxu0 %v6576
        %6718 = vmatprep.subr.bf16.mxu0 0
        %6719 = vmatpush1.bf16.msra.mxu0 %v6575
        %6720 = vmatprep.subr.bf16.mxu0 0
        %6721 = vmatpush1.bf16.msra.mxu0 %v6574
        %6722 = vmatprep.subr.bf16.mxu0 0
        %6723 = vmatpush1.bf16.msra.mxu0 %v6573
        %6724 = vmatprep.subr.bf16.mxu0 0
        %6725 = vmatpush1.bf16.msra.mxu0 %v6572
        %6726 = vmatprep.subr.bf16.mxu0 0
        %6727 = vmatpush1.bf16.msra.mxu0 %v6571
        %6728 = vmatprep.subr.bf16.mxu0 0
        %6729 = vmatpush1.bf16.msra.mxu0 %v6570
        %6730 = vmatprep.subr.bf16.mxu0 0
        %6731 = vmatpush2.bf16.msra.mxu0 %v6585
        %6732 = vmatprep.subr.bf16.mxu0 0
        %6733 = vmatpush2.bf16.msra.mxu0 %v6584
        %6734 = vmatprep.subr.bf16.mxu0 0
        %6735 = vmatpush2.bf16.msra.mxu0 %v6583
        %6736 = vmatprep.subr.bf16.mxu0 0
        %6737 = vmatpush2.bf16.msra.mxu0 %v6582
        %6738 = vmatprep.subr.bf16.mxu0 0
        %6739 = vmatpush2.bf16.msra.mxu0 %v6581
        %6740 = vmatprep.subr.bf16.mxu0 0
        %6741 = vmatpush2.bf16.msra.mxu0 %v6580
        %6742 = vmatprep.subr.bf16.mxu0 0
        %6743 = vmatpush2.bf16.msra.mxu0 %v6579
        %6744 = vmatprep.subr.bf16.mxu0 0
        %6745 = vmatpush2.bf16.msra.mxu0 %v6578
        %6746 = vmatprep.mubr.bf16.mxu0 %v5995
        %6747 = vmatmul.mubr.bf16.gmra.mxu0 %v5971
        %v6748 = vpop.f32.mrf.mxu0
        %v6749 = vadd.f32 %v6280, %v6748
        %v6750 = vpop.f32.mrf.mxu0
        %v6751 = vpop.f32.mrf.mxu0
        %v6752 = vadd.f32 %v6280, %v6751
        %v6753 = vpop.f32.mrf.mxu0
        %6754 = vmatprep.mubr.bf16.mxu0 %v5996
        %6755 = vmatmul.mubr.bf16.gmra.mxu0 %v5972
        %v6756 = vpop.f32.mrf.mxu0
        %v6757 = vadd.f32 %v6280, %v6756
        %v6758 = vpop.f32.mrf.mxu0
        %v6759 = vpop.f32.mrf.mxu0
        %v6760 = vadd.f32 %v6280, %v6759
        %v6761 = vpop.f32.mrf.mxu0
        %6762 = vmatprep.mubr.bf16.mxu0 %v5997
        %6763 = vmatmul.mubr.bf16.gmra.mxu0 %v5973
        %v6764 = vpop.f32.mrf.mxu0
        %v6765 = vadd.f32 %v6280, %v6764
        %v6766 = vpop.f32.mrf.mxu0
        %v6767 = vpop.f32.mrf.mxu0
        %v6768 = vadd.f32 %v6280, %v6767
        %v6769 = vpop.f32.mrf.mxu0
        %6770 = vmatprep.mubr.bf16.mxu0 %v5998
        %6771 = vmatmul.mubr.bf16.gmra.mxu0 %v5974
        %v6772 = vpop.f32.mrf.mxu0
        %v6773 = vadd.f32 %v6280, %v6772
        %v6774 = vpop.f32.mrf.mxu0
        %v6775 = vpop.f32.mrf.mxu0
        %v6776 = vadd.f32 %v6280, %v6775
        %v6777 = vpop.f32.mrf.mxu0
        %6778 = vdwg.mxu0
        %6779 = vmatprep.subr.bf16.mxu0 0
        %6780 = vmatpush1.bf16.msra.mxu0 %v6593
        %6781 = vmatprep.subr.bf16.mxu0 0
        %6782 = vmatpush1.bf16.msra.mxu0 %v6592
        %6783 = vmatprep.subr.bf16.mxu0 0
        %6784 = vmatpush1.bf16.msra.mxu0 %v6591
        %6785 = vmatprep.subr.bf16.mxu0 0
        %6786 = vmatpush1.bf16.msra.mxu0 %v6590
        %6787 = vmatprep.subr.bf16.mxu0 0
        %6788 = vmatpush1.bf16.msra.mxu0 %v6589
        %6789 = vmatprep.subr.bf16.mxu0 0
        %6790 = vmatpush1.bf16.msra.mxu0 %v6588
        %6791 = vmatprep.subr.bf16.mxu0 0
        %6792 = vmatpush1.bf16.msra.mxu0 %v6587
        %6793 = vmatprep.subr.bf16.mxu0 0
        %6794 = vmatpush1.bf16.msra.mxu0 %v6586
        %6795 = vmatprep.subr.bf16.mxu0 0
        %6796 = vmatpush2.bf16.msra.mxu0 %v6601
        %6797 = vmatprep.subr.bf16.mxu0 0
        %6798 = vmatpush2.bf16.msra.mxu0 %v6600
        %6799 = vmatprep.subr.bf16.mxu0 0
        %6800 = vmatpush2.bf16.msra.mxu0 %v6599
        %6801 = vmatprep.subr.bf16.mxu0 0
        %6802 = vmatpush2.bf16.msra.mxu0 %v6598
        %6803 = vmatprep.subr.bf16.mxu0 0
        %6804 = vmatpush2.bf16.msra.mxu0 %v6597
        %6805 = vmatprep.subr.bf16.mxu0 0
        %6806 = vmatpush2.bf16.msra.mxu0 %v6596
        %6807 = vmatprep.subr.bf16.mxu0 0
        %6808 = vmatpush2.bf16.msra.mxu0 %v6595
        %6809 = vmatprep.subr.bf16.mxu0 0
        %6810 = vmatpush2.bf16.msra.mxu0 %v6594
        %6811 = vmatprep.mubr.bf16.mxu0 %v6027
        %6812 = vmatmul.mubr.bf16.gmra.mxu0 %v6011
        %v6813 = vpop.f32.mrf.mxu0
        %v6814 = vadd.f32 %v6749, %v6813
        %v6815 = vpop.f32.mrf.mxu0
        %v6816 = vpop.f32.mrf.mxu0
        %v6817 = vadd.f32 %v6752, %v6816
        %v6818 = vpop.f32.mrf.mxu0
        %6819 = vmatprep.mubr.bf16.mxu0 %v6028
        %6820 = vmatmul.mubr.bf16.gmra.mxu0 %v6012
        %v6821 = vpop.f32.mrf.mxu0
        %v6822 = vadd.f32 %v6757, %v6821
        %v6823 = vpop.f32.mrf.mxu0
        %v6824 = vpop.f32.mrf.mxu0
        %v6825 = vadd.f32 %v6760, %v6824
        %v6826 = vpop.f32.mrf.mxu0
        %6827 = vmatprep.mubr.bf16.mxu0 %v6029
        %6828 = vmatmul.mubr.bf16.gmra.mxu0 %v6013
        %v6829 = vpop.f32.mrf.mxu0
        %v6830 = vadd.f32 %v6765, %v6829
        %v6831 = vpop.f32.mrf.mxu0
        %v6832 = vpop.f32.mrf.mxu0
        %v6833 = vadd.f32 %v6768, %v6832
        %v6834 = vpop.f32.mrf.mxu0
        %6835 = vmatprep.mubr.bf16.mxu0 %v6030
        %6836 = vmatmul.mubr.bf16.gmra.mxu0 %v6014
        %v6837 = vpop.f32.mrf.mxu0
        %v6838 = vadd.f32 %v6773, %v6837
        %v6839 = vpop.f32.mrf.mxu0
        %v6840 = vpop.f32.mrf.mxu0
        %v6841 = vadd.f32 %v6776, %v6840
        %v6842 = vpop.f32.mrf.mxu0
        %6843 = vdwg.mxu0
        %6844 = vmatprep.subr.bf16.mxu0 0
        %6845 = vmatpush1.bf16.msra.mxu0 %v6609
        %6846 = vmatprep.subr.bf16.mxu0 0
        %6847 = vmatpush1.bf16.msra.mxu0 %v6608
        %6848 = vmatprep.subr.bf16.mxu0 0
        %6849 = vmatpush1.bf16.msra.mxu0 %v6607
        %6850 = vmatprep.subr.bf16.mxu0 0
        %6851 = vmatpush1.bf16.msra.mxu0 %v6606
        %6852 = vmatprep.subr.bf16.mxu0 0
        %6853 = vmatpush1.bf16.msra.mxu0 %v6605
        %6854 = vmatprep.subr.bf16.mxu0 0
        %6855 = vmatpush1.bf16.msra.mxu0 %v6604
        %6856 = vmatprep.subr.bf16.mxu0 0
        %6857 = vmatpush1.bf16.msra.mxu0 %v6603
        %6858 = vmatprep.subr.bf16.mxu0 0
        %6859 = vmatpush1.bf16.msra.mxu0 %v6602
        %6860 = vmatprep.subr.bf16.mxu0 0
        %6861 = vmatpush2.bf16.msra.mxu0 %v6617
        %6862 = vmatprep.subr.bf16.mxu0 0
        %6863 = vmatpush2.bf16.msra.mxu0 %v6616
        %6864 = vmatprep.subr.bf16.mxu0 0
        %6865 = vmatpush2.bf16.msra.mxu0 %v6615
        %6866 = vmatprep.subr.bf16.mxu0 0
        %6867 = vmatpush2.bf16.msra.mxu0 %v6614
        %6868 = vmatprep.subr.bf16.mxu0 0
        %6869 = vmatpush2.bf16.msra.mxu0 %v6613
        %6870 = vmatprep.subr.bf16.mxu0 0
        %6871 = vmatpush2.bf16.msra.mxu0 %v6612
        %6872 = vmatprep.subr.bf16.mxu0 0
        %6873 = vmatpush2.bf16.msra.mxu0 %v6611
        %6874 = vmatprep.subr.bf16.mxu0 0
        %6875 = vmatpush2.bf16.msra.mxu0 %v6610
        %6876 = vmatprep.mubr.bf16.mxu0 %v6067
        %6877 = vmatmul.mubr.bf16.gmra.mxu0 %v6051
        %v6878 = vpop.f32.mrf.mxu0
        %v6879 = vadd.f32 %v6814, %v6878
        %v6880 = vpop.f32.mrf.mxu0
        %v6881 = vpop.f32.mrf.mxu0
        %v6882 = vadd.f32 %v6817, %v6881
        %v6883 = vpop.f32.mrf.mxu0
        %6884 = vmatprep.mubr.bf16.mxu0 %v6068
        %6885 = vmatmul.mubr.bf16.gmra.mxu0 %v6052
        %v6886 = vpop.f32.mrf.mxu0
        %v6887 = vadd.f32 %v6822, %v6886
        %v6888 = vpop.f32.mrf.mxu0
        %v6889 = vpop.f32.mrf.mxu0
        %v6890 = vadd.f32 %v6825, %v6889
        %v6891 = vpop.f32.mrf.mxu0
        %6892 = vmatprep.mubr.bf16.mxu0 %v6069
        %6893 = vmatmul.mubr.bf16.gmra.mxu0 %v6053
        %v6894 = vpop.f32.mrf.mxu0
        %v6895 = vadd.f32 %v6830, %v6894
        %v6896 = vpop.f32.mrf.mxu0
        %v6897 = vpop.f32.mrf.mxu0
        %v6898 = vadd.f32 %v6833, %v6897
        %v6899 = vpop.f32.mrf.mxu0
        %6900 = vmatprep.mubr.bf16.mxu0 %v6070
        %6901 = vmatmul.mubr.bf16.gmra.mxu0 %v6054
        %v6902 = vpop.f32.mrf.mxu0
        %v6903 = vadd.f32 %v6838, %v6902
        %v6904 = vpop.f32.mrf.mxu0
        %v6905 = vpop.f32.mrf.mxu0
        %v6906 = vadd.f32 %v6841, %v6905
        %v6907 = vpop.f32.mrf.mxu0
        %6908 = vdwg.mxu0
        %6909 = vmatprep.subr.bf16.mxu0 0
        %6910 = vmatpush1.bf16.msra.mxu0 %v6625
        %6911 = vmatprep.subr.bf16.mxu0 0
        %6912 = vmatpush1.bf16.msra.mxu0 %v6624
        %6913 = vmatprep.subr.bf16.mxu0 0
        %6914 = vmatpush1.bf16.msra.mxu0 %v6623
        %6915 = vmatprep.subr.bf16.mxu0 0
        %6916 = vmatpush1.bf16.msra.mxu0 %v6622
        %6917 = vmatprep.subr.bf16.mxu0 0
        %6918 = vmatpush1.bf16.msra.mxu0 %v6621
        %6919 = vmatprep.subr.bf16.mxu0 0
        %6920 = vmatpush1.bf16.msra.mxu0 %v6620
        %6921 = vmatprep.subr.bf16.mxu0 0
        %6922 = vmatpush1.bf16.msra.mxu0 %v6619
        %6923 = vmatprep.subr.bf16.mxu0 0
        %6924 = vmatpush1.bf16.msra.mxu0 %v6618
        %6925 = vmatprep.subr.bf16.mxu0 0
        %6926 = vmatpush2.bf16.msra.mxu0 %v6633
        %6927 = vmatprep.subr.bf16.mxu0 0
        %6928 = vmatpush2.bf16.msra.mxu0 %v6632
        %6929 = vmatprep.subr.bf16.mxu0 0
        %6930 = vmatpush2.bf16.msra.mxu0 %v6631
        %6931 = vmatprep.subr.bf16.mxu0 0
        %6932 = vmatpush2.bf16.msra.mxu0 %v6630
        %6933 = vmatprep.subr.bf16.mxu0 0
        %6934 = vmatpush2.bf16.msra.mxu0 %v6629
        %6935 = vmatprep.subr.bf16.mxu0 0
        %6936 = vmatpush2.bf16.msra.mxu0 %v6628
        %6937 = vmatprep.subr.bf16.mxu0 0
        %6938 = vmatpush2.bf16.msra.mxu0 %v6627
        %6939 = vmatprep.subr.bf16.mxu0 0
        %6940 = vmatpush2.bf16.msra.mxu0 %v6626
        %6941 = vmatprep.mubr.bf16.mxu0 %v6107
        %6942 = vmatmul.mubr.bf16.gmra.mxu0 %v6083
        %v6943 = vpop.f32.mrf.mxu0
        %v6944 = vadd.f32 %v6879, %v6943
        %v6945 = vpop.f32.mrf.mxu0
        %v6946 = vpop.f32.mrf.mxu0
        %v6947 = vadd.f32 %v6882, %v6946
        %v6948 = vpop.f32.mrf.mxu0
        %6949 = vmatprep.mubr.bf16.mxu0 %v6108
        %6950 = vmatmul.mubr.bf16.gmra.mxu0 %v6084
        %v6951 = vpop.f32.mrf.mxu0
        %v6952 = vadd.f32 %v6887, %v6951
        %v6953 = vpop.f32.mrf.mxu0
        %v6954 = vpop.f32.mrf.mxu0
        %v6955 = vadd.f32 %v6890, %v6954
        %v6956 = vpop.f32.mrf.mxu0
        %6957 = vmatprep.mubr.bf16.mxu0 %v6109
        %6958 = vmatmul.mubr.bf16.gmra.mxu0 %v6085
        %v6959 = vpop.f32.mrf.mxu0
        %v6960 = vadd.f32 %v6895, %v6959
        %v6961 = vpop.f32.mrf.mxu0
        %v6962 = vpop.f32.mrf.mxu0
        %v6963 = vadd.f32 %v6898, %v6962
        %v6964 = vpop.f32.mrf.mxu0
        %6965 = vmatprep.mubr.bf16.mxu0 %v6110
        %6966 = vmatmul.mubr.bf16.gmra.mxu0 %v6086
        %v6967 = vpop.f32.mrf.mxu0
        %v6968 = vadd.f32 %v6903, %v6967
        %v6969 = vpop.f32.mrf.mxu0
        %v6970 = vpop.f32.mrf.mxu0
        %v6971 = vadd.f32 %v6906, %v6970
        %v6972 = vpop.f32.mrf.mxu0
        %6973 = vdwg.mxu0
        %6974 = vmatprep.subr.bf16.mxu0 0
        %6975 = vmatpush1.bf16.msra.mxu0 %v6641
        %6976 = vmatprep.subr.bf16.mxu0 0
        %6977 = vmatpush1.bf16.msra.mxu0 %v6640
        %6978 = vmatprep.subr.bf16.mxu0 0
        %6979 = vmatpush1.bf16.msra.mxu0 %v6639
        %6980 = vmatprep.subr.bf16.mxu0 0
        %6981 = vmatpush1.bf16.msra.mxu0 %v6638
        %6982 = vmatprep.subr.bf16.mxu0 0
        %6983 = vmatpush1.bf16.msra.mxu0 %v6637
        %6984 = vmatprep.subr.bf16.mxu0 0
        %6985 = vmatpush1.bf16.msra.mxu0 %v6636
        %6986 = vmatprep.subr.bf16.mxu0 0
        %6987 = vmatpush1.bf16.msra.mxu0 %v6635
        %6988 = vmatprep.subr.bf16.mxu0 0
        %6989 = vmatpush1.bf16.msra.mxu0 %v6634
        %6990 = vmatprep.subr.bf16.mxu0 0
        %6991 = vmatpush2.bf16.msra.mxu0 0
        %6992 = vmatprep.subr.bf16.mxu0 0
        %6993 = vmatpush2.bf16.msra.mxu0 0
        %6994 = vmatprep.subr.bf16.mxu0 0
        %6995 = vmatpush2.bf16.msra.mxu0 0
        %6996 = vmatprep.subr.bf16.mxu0 0
        %6997 = vmatpush2.bf16.msra.mxu0 0
        %6998 = vmatprep.subr.bf16.mxu0 0
        %6999 = vmatpush2.bf16.msra.mxu0 0
        %7000 = vmatprep.subr.bf16.mxu0 0
        %7001 = vmatpush2.bf16.msra.mxu0 0
        %7002 = vmatprep.subr.bf16.mxu0 0
        %7003 = vmatpush2.bf16.msra.mxu0 0
        %7004 = vmatprep.subr.bf16.mxu0 0
        %7005 = vmatpush2.bf16.msra.mxu0 0
        %7006 = vmatprep.mubr.bf16.mxu0 0
        %7007 = vmatmul.mubr.bf16.gmra.mxu0 %v6123
        %v7008 = vpop.f32.mrf.mxu0
        %v7009 = vadd.f32 %v6944, %v7008
        %v7010 = vpop.f32.mrf.mxu0
        %v7011 = vpop.f32.mrf.mxu0
        %v7012 = vadd.f32 %v6947, %v7011
        %v7013 = vpop.f32.mrf.mxu0
        %7014 = vmatprep.mubr.bf16.mxu0 0
        %7015 = vmatmul.mubr.bf16.gmra.mxu0 %v6124
        %v7016 = vpop.f32.mrf.mxu0
        %v7017 = vadd.f32 %v6952, %v7016
        %v7018 = vpop.f32.mrf.mxu0
        %v7019 = vpop.f32.mrf.mxu0
        %v7020 = vadd.f32 %v6955, %v7019
        %v7021 = vpop.f32.mrf.mxu0
        %7022 = vmatprep.mubr.bf16.mxu0 0
        %7023 = vmatmul.mubr.bf16.gmra.mxu0 %v6125
        %v7024 = vpop.f32.mrf.mxu0
        %v7025 = vadd.f32 %v6960, %v7024
        %v7026 = vpop.f32.mrf.mxu0
        %v7027 = vpop.f32.mrf.mxu0
        %v7028 = vadd.f32 %v6963, %v7027
        %v7029 = vpop.f32.mrf.mxu0
        %7030 = vmatprep.mubr.bf16.mxu0 0
        %7031 = vmatmul.mubr.bf16.gmra.mxu0 %v6126
        %v7032 = vpop.f32.mrf.mxu0
        %v7033 = vadd.f32 %v6968, %v7032
        %v7034 = vpop.f32.mrf.mxu0
        %v7035 = vpop.f32.mrf.mxu0
        %v7036 = vadd.f32 %v6971, %v7035
        %v7037 = vpop.f32.mrf.mxu0
        %7038 = vdwg.mxu0
        %v7039 = vmax.f32 %v7009, 0.0
        %v7040 = vmax.f32 %v7012, 0.0
        %v7041 = vmax.f32 %v7017, 0.0
        %v7042 = vmax.f32 %v7020, 0.0
        %v7043 = vmax.f32 %v7025, 0.0
        %v7044 = vmax.f32 %v7028, 0.0
        %v7045 = vmax.f32 %v7033, 0.0
        %v7046 = vmax.f32 %v7036, 0.0
        %v7047 = vpack.c.bf16 %v7040, %v7039
        %v7048 = vpack.c.bf16 %v7042, %v7041
        %v7049 = vpack.c.bf16 %v7044, %v7043
        %v7050 = vpack.c.bf16 %v7046, %v7045
        %v7055 = vunpack.c.l.b16 %v7047
        %v7056 = vunpack.c.h.b16 %v7047
        %v7057 = vunpack.c.l.b16 %v7048
        %v7058 = vunpack.c.h.b16 %v7048
        %v7059 = vunpack.c.l.b16 %v7049
        %v7060 = vunpack.c.h.b16 %v7049
        %v7061 = vunpack.c.l.b16 %v7050
        %v7062 = vunpack.c.h.b16 %v7050
        %v7063 = vpack.c.b16 %v7055, %v7055
        %v7064 = vpack.c.b16 %v7056, %v7056
        %v7065 = vpack.c.b16 %v7057, %v7057
        %v7066 = vpack.c.b16 %v7058, %v7058
        %v7067 = vpack.c.b16 %v7059, %v7059
        %v7068 = vpack.c.b16 %v7060, %v7060
        %v7069 = vpack.c.b16 %v7061, %v7061
        %v7070 = vpack.c.b16 %v7062, %v7062
        %7079 = vst [vmem:[%s447] sm:$0xf] %v7063
        %7080 = vst [vmem:[%s447 + $0x4] sm:$0xf] %v7064
        %7081 = vst [vmem:[%s447 + $0x8] sm:$0xf] %v7065
        %7082 = vst [vmem:[%s447 + $0xc] sm:$0xf] %v7066
        %7083 = vst [vmem:[%s447 + $0x10] sm:$0xf] %v7067
        %7084 = vst [vmem:[%s447 + $0x14] sm:$0xf] %v7068
        %7085 = vst [vmem:[%s447 + $0x18] sm:$0xf] %v7069
        %7086 = vst [vmem:[%s447 + $0x1c] sm:$0xf] %v7070
        %s7087 = sand.u32 %s290, 1
        %s7088 = scalar_lea.sflag [#allocation7], %s7087
        %s7089 = sand.u32 %s290, 1
        %s7090 = smul.addr %s7089, 32
        %s7091 = scalar_lea.vmem [#allocation12], %s7090
        // Predicated region
        $region89: #{decoder_block_forward.1} parent=63 // pred_check
          %p7092 = pneg %p300
        $region90: #{decoder_block_forward.1} parent=63 // pred_check_branch
          %7094 = sbr.rel (%p7092) target = $region92
        $region91: #{decoder_block_forward.1} parent=63 // pred_region
          %s7095 = smul.u32 4, %s32
          %s7097 = ssub.s32 512, 512
          %7098 = vsyncadd %s7088, %s7097
          %s7099 = smul.addr %s7095, 2
          %s7100 = smul.addr %s31, 32
          %s7101 = sadd.s32 %s7099, %s7100
          %s7102 = smul.addr %s7101, 64
          %s7103 = scalar_lea.hbm %s11, %s7102
          %s7104 = sshll.u32 %s7091, 4
          %s7105 = int_to_ptr.vmem [resolvable:$true] %s7104
          %7110 = dma.vmem_to_hbm [thread:$0]  %s7105, 512, %s7103, %s7088, 64, 64, 4
        $region92: #{decoder_block_forward.1} parent=63 // pred_fallthru
          _
      $region64: #{decoder_block_forward.1} parent=5 // pred_fallthru
        _
      %p7111 = scmp.le.s32.totalorder 2, %s22
      // Predicated region
      $region93: #{decoder_block_forward.1} parent=5 // pred_check
        %p7112 = pneg %p7111
      $region94: #{decoder_block_forward.1} parent=5 // pred_check_branch
        %7114 = sbr.rel (%p7112) target = $region96
      $region95: #{decoder_block_forward.1} parent=5 // pred_region
        %s7115 = ssub.s32 %s22, 2
        // Predicated region
        $region97: #{decoder_block_forward.1} parent=95 // pred_check
          %p7116 = pneg %p306
        $region98: #{decoder_block_forward.1} parent=95 // pred_check_branch
          %7118 = sbr.rel (%p7116) target = $region100
        $region99: #{decoder_block_forward.1} parent=95 // pred_region
          %s7119 = sand.u32 %s291, 1
          %s7120 = scalar_lea.sflag [#allocation7], %s7119
          %s7121 = sand.u32 %s291, 1
          %s7122 = smul.addr %s7121, 32
          %s7123 = scalar_lea.vmem [#allocation12], %s7122
          %7124 = dma.done %s7120, 512
        $region100: #{decoder_block_forward.1} parent=95 // pred_fallthru
          _
      $region96: #{decoder_block_forward.1} parent=5 // pred_fallthru
        _
    $region6: #{decoder_block_forward.1} parent=1 // loop_footer
      %s26 = sadd.s32 1, %s22
    $region7: #{decoder_block_forward.1} parent=1 // loop_footer_branch
      %21 = sbr.rel target = $region3
    $region8: #{decoder_block_forward.1} parent=1 // loop_exit
      _
    %7125 = vsyncpa [#allocation7], 1
    %s7126 = scalar_lea.sflag [#allocation7], 1
    %7127 = vsyncpa %s7126, 1
    %7128 = vsyncpa [#allocation8], 1
    %s7129 = scalar_lea.sflag [#allocation8], 1
    %7130 = vsyncpa %s7129, 1
    %7131 = vsyncpa [#allocation10], 1

</llo_original>
